<compile_context>
chip_gen: v7x
topology: tpu7x:2x2x1
jax: 0.10.0
libtpu: 0.0.40
codegen_flags: <defaults>
</compile_context>

<pallas_src>
import functools

import jax
import jax.numpy as jnp
from jax import lax
from jax.experimental import pallas as pl
from jax.experimental.pallas import tpu as pltpu

EPS = 1e-5


# ----------------------------------------------------------------------------
# Fused kernel: conv1 -> [conv2]* -> conv3, all in VMEM.
# ----------------------------------------------------------------------------
def fused_mynet_kernel(*refs, n, h, w, cin, c, n3):
    """refs = [x, (w,b,g,beta) x n3 3x3-layers, w3,b3,g3,beta3, out, pad, col].

    x    : (N, H, W, Cin)            f32
    w    : (9*C, C)                  bf16  (tap-major, channel-minor; layer-1
                                            rows for channels >= Cin are zero)
    b/g/beta : (1, C)                f32
    w3   : (C, C)                    bf16
    out  : (C, N*H*W)                f32   (lane-dense store)
    pad  : (N, H+2, W+2, C)          f32   VMEM scratch (padded activation)
    col  : (N*H*W, 9*C)              bf16  VMEM scratch (im2col patches)
    """
    x_ref = refs[0]
    layer_refs = refs[1:1 + 4 * n3]
    w3_ref, b3_ref, g3_ref, bt3_ref = refs[1 + 4 * n3: 5 + 4 * n3]
    o_ref = refs[5 + 4 * n3]
    pad_ref = refs[6 + 4 * n3]
    col_ref = refs[7 + 4 * n3]

    npix = n * h * w
    inv_npix = 1.0 / npix

    def batchnorm(y, g, bt):
        # Single-pass training-mode batch stats over the pixel axis.
        mu = jnp.sum(y, axis=0, keepdims=True) * inv_npix
        var = jnp.sum(y * y, axis=0, keepdims=True) * inv_npix - mu * mu
        return (y - mu) * lax.rsqrt(var + EPS) * g + bt

    # Zero the padded-activation scratch once: the spatial halo and (for the
    # first layer) the unused input channels stay zero for the whole kernel.
    pad_ref[...] = jnp.zeros_like(pad_ref)
    pad_ref[:, 1:h + 1, 1:w + 1, :cin] = x_ref[...]

    act = None
    for li in range(n3):
        w_ref, b_ref, g_ref, bt_ref = layer_refs[4 * li: 4 * li + 4]

        # --- im2col: pack the 9 shifted taps into one (npix, 9*C) bf16 slab.
        xpad = pad_ref[...]                               # (N, H+2, W+2, C)
        t = 0
        for dy in range(3):
            for dx in range(3):
                col_ref[:, t * c:(t + 1) * c] = (
                    xpad[:, dy:dy + h, dx:dx + w, :]
                    .reshape(npix, c).astype(jnp.bfloat16))
                t += 1

        # --- one big MXU matmul (bf16 in, f32 accumulate) + bias + ReLU + BN.
        y = jnp.dot(col_ref[...], w_ref[...],
                    preferred_element_type=jnp.float32) + b_ref[...]
        y = jnp.maximum(y, 0.0)                           # ReLU before BN
        act = batchnorm(y, g_ref[...], bt_ref[...])       # (npix, C) f32

        # --- stage for the next 3x3 layer (interior only; halo stays zero).
        if li + 1 < n3:
            pad_ref[:, 1:h + 1, 1:w + 1, :] = act.reshape(n, h, w, c)

    # --- conv3: 1x1 conv (channel matmul) + BatchNorm, no ReLU.
    y3 = jnp.dot(act.astype(jnp.bfloat16), w3_ref[...],
                 preferred_element_type=jnp.float32) + b3_ref[...]
    y3 = batchnorm(y3, g3_ref[...], bt3_ref[...])

    # --- lane-dense store: (C, N*H*W) has a 128-multiple last dim.
    o_ref[...] = jnp.transpose(y3)


# ----------------------------------------------------------------------------
# Wrapper: layout plumbing only (weight flattening / casts); compute in-kernel.
# ----------------------------------------------------------------------------
@functools.partial(jax.jit, static_argnames=("n_conv",))
def mynet_forward(x_nchw, params, n_conv):
    """Full MyNet forward. Input is NCHW (PyTorch convention); output NCHW."""
    n, cin, h, w = x_nchw.shape
    c = params["w1"].shape[-1]                  # nChannel
    x_nhwc = jnp.transpose(x_nchw, (0, 2, 3, 1)).astype(jnp.float32)

    def flat3x3(w_hwio):
        # HWIO (3,3,Cin,C) -> (9*C, C), tap-major / channel-minor, Cin padded
        # with zero rows up to C so every 3x3 layer uses the same K = 9*C.
        k_cin = w_hwio.shape[2]
        if k_cin < c:
            w_hwio = jnp.pad(w_hwio, ((0, 0), (0, 0), (0, c - k_cin), (0, 0)))
        return w_hwio.reshape(9 * c, c).astype(jnp.bfloat16)

    ws = [flat3x3(params["w1"])] + [flat3x3(wi) for wi in params["w2"]]
    bs = [params["b1"]] + list(params["b2"])
    gs = [params["g1"]] + list(params["g2"])
    bts = [params["beta1"]] + list(params["beta2"])

    args = [x_nhwc]
    for wi, bi, gi, bti in zip(ws, bs, gs, bts):
        args += [wi, bi.reshape(1, c), gi.reshape(1, c), bti.reshape(1, c)]
    args += [params["w3"].astype(jnp.bfloat16),
             params["b3"].reshape(1, c), params["g3"].reshape(1, c),
             params["beta3"].reshape(1, c)]

    kernel = functools.partial(fused_mynet_kernel,
                               n=n, h=h, w=w, cin=cin, c=c, n3=n_conv)
    vmem = pl.BlockSpec(memory_space=pltpu.MemorySpace.VMEM)
    out = pl.pallas_call(
        kernel,
        out_shape=jax.ShapeDtypeStruct((c, n * h * w), jnp.float32),
        in_specs=[vmem] * len(args),
        out_specs=vmem,
        scratch_shapes=[
            pltpu.VMEM((n, h + 2, w + 2, c), jnp.float32),   # padded activation
            pltpu.VMEM((n * h * w, 9 * c), jnp.bfloat16),    # im2col patches
        ],
    )(*args)

    # (C, N*H*W) lane-dense slab -> (N, C, H, W), matching the PyTorch output.
    return jnp.transpose(out.reshape(c, n, h, w), (1, 0, 2, 3))


# ----------------------------------------------------------------------------
# Pure-JAX reference (correctness check only).
# `cast` controls the matmul-input precision: bf16 mirrors the kernel's MXU
# feeding (f32 accumulation either way); f32 is the exact module numerics.
# ----------------------------------------------------------------------------
def _ref_forward(x_nchw, params, n_conv, cast):
    dn = ("NHWC", "HWIO", "NHWC")
    x = jnp.transpose(x_nchw, (0, 2, 3, 1)).astype(jnp.float32)

    def conv(x, w):
        return lax.conv_general_dilated(
            x.astype(cast), w.astype(cast), (1, 1), "SAME",
            dimension_numbers=dn, preferred_element_type=jnp.float32)

    def bn(y, g, bt):
        mu = y.mean(axis=(0, 1, 2))
        var = ((y - mu) ** 2).mean(axis=(0, 1, 2))
        return (y - mu) * lax.rsqrt(var + EPS) * g + bt

    y = jnp.maximum(conv(x, params["w1"]) + params["b1"], 0.0)
    x = bn(y, params["g1"], params["beta1"])
    for i in range(n_conv - 1):
        y = jnp.maximum(conv(x, params["w2"][i]) + params["b2"][i], 0.0)
        x = bn(y, params["g2"][i], params["beta2"][i])
    y = jnp.einsum("nhwc,cf->nhwf", x.astype(cast), params["w3"].astype(cast),
                   preferred_element_type=jnp.float32) + params["b3"]
    y = bn(y, params["g3"], params["beta3"])
    return jnp.transpose(y, (0, 3, 1, 2))


# ----------------------------------------------------------------------------
# Main
# ----------------------------------------------------------------------------
if __name__ == "__main__":
    # Small, deterministic configuration (stand-ins for argparse defaults).
    N, INPUT_DIM, H, W = 2, 4, 16, 16      # x: (2, 4, 16, 16) NCHW
    N_CHANNEL = 32                         # args.nChannel
    N_CONV = 2                             # args.nConv

    key = jax.random.PRNGKey(0)
    keys = jax.random.split(key, 16)
    k = iter(keys)

    def rnd(shape, scale=0.1):
        return jax.random.normal(next(k), shape, jnp.float32) * scale

    params = {
        "w1": rnd((3, 3, INPUT_DIM, N_CHANNEL)),
        "b1": rnd((N_CHANNEL,)),
        "g1": 1.0 + rnd((N_CHANNEL,)),
        "beta1": rnd((N_CHANNEL,)),
        "w2": [rnd((3, 3, N_CHANNEL, N_CHANNEL)) for _ in range(N_CONV - 1)],
        "b2": [rnd((N_CHANNEL,)) for _ in range(N_CONV - 1)],
        "g2": [1.0 + rnd((N_CHANNEL,)) for _ in range(N_CONV - 1)],
        "beta2": [rnd((N_CHANNEL,)) for _ in range(N_CONV - 1)],
        "w3": rnd((N_CHANNEL, N_CHANNEL)),
        "b3": rnd((N_CHANNEL,)),
        "g3": 1.0 + rnd((N_CHANNEL,)),
        "beta3": rnd((N_CHANNEL,)),
    }

    x = jax.random.normal(next(k), (N, INPUT_DIM, H, W), jnp.float32)

    out = jax.block_until_ready(mynet_forward(x, params, N_CONV))
    assert out.shape == (N, N_CHANNEL, H, W)

    # Tight check against a reference that feeds the matmuls bf16 (same
    # quantization points as the kernel, f32 accumulation).
    ref_bf16 = jax.block_until_ready(_ref_forward(x, params, N_CONV, jnp.bfloat16))
    assert jnp.allclose(out, ref_bf16, atol=5e-3, rtol=5e-3)

    # Loose check against the exact f32 module numerics (bf16 MXU inputs are
    # the only deviation; BN keeps everything ~unit scale).
    ref_f32 = jax.block_until_ready(_ref_forward(x, params, N_CONV, jnp.float32))
    assert jnp.allclose(out, ref_f32, atol=5e-2, rtol=5e-2)

    print("KERNEL_OK")
</pallas_src>

<mosaic_0001>
module attributes {stable_mosaic.version = 11 : i64} {
  func.func @fused_mynet_kernel(%arg0: memref<2x16x16x4xf32, #tpu.memory_space<vmem>>, %arg1: memref<288x32xbf16, #tpu.memory_space<vmem>>, %arg2: memref<1x32xf32, #tpu.memory_space<vmem>>, %arg3: memref<1x32xf32, #tpu.memory_space<vmem>>, %arg4: memref<1x32xf32, #tpu.memory_space<vmem>>, %arg5: memref<288x32xbf16, #tpu.memory_space<vmem>>, %arg6: memref<1x32xf32, #tpu.memory_space<vmem>>, %arg7: memref<1x32xf32, #tpu.memory_space<vmem>>, %arg8: memref<1x32xf32, #tpu.memory_space<vmem>>, %arg9: memref<32x32xbf16, #tpu.memory_space<vmem>>, %arg10: memref<1x32xf32, #tpu.memory_space<vmem>>, %arg11: memref<1x32xf32, #tpu.memory_space<vmem>>, %arg12: memref<1x32xf32, #tpu.memory_space<vmem>>, %arg13: memref<32x512xf32, #tpu.memory_space<vmem>>, %arg14: memref<2x18x18x32xf32, #tpu.memory_space<vmem>>, %arg15: memref<512x288xbf16, #tpu.memory_space<vmem>>) attributes {dimension_semantics = [], scalar_prefetch = 0 : i64, scratch_operands = 2 : i64, tpu.core_type = #tpu.core_type<tc>} {
    %cst = arith.constant 0.000000e+00 : f32
    %0 = vector.broadcast %cst : f32 to vector<2x18x18x32xf32>
    %c0 = arith.constant 0 : index
    %c0_0 = arith.constant 0 : index
    %c0_1 = arith.constant 0 : index
    %c0_2 = arith.constant 0 : index
    %1 = vector.load %arg14[%c0, %c0_0, %c0_1, %c0_2] : memref<2x18x18x32xf32, #tpu.memory_space<vmem>>, vector<2x18x18x32xf32>
    tpu.vector_store %arg14[%c0, %c0_0, %c0_1, %c0_2], %0 {strides = array<i32>} : memref<2x18x18x32xf32, #tpu.memory_space<vmem>>, vector<2x18x18x32xf32>,
    %c0_3 = arith.constant 0 : index
    %c0_4 = arith.constant 0 : index
    %c0_5 = arith.constant 0 : index
    %c0_6 = arith.constant 0 : index
    %2 = vector.load %arg0[%c0_3, %c0_4, %c0_5, %c0_6] : memref<2x16x16x4xf32, #tpu.memory_space<vmem>>, vector<2x16x16x4xf32>
    %c0_7 = arith.constant 0 : index
    %c1 = arith.constant 1 : index
    %c1_8 = arith.constant 1 : index
    %c0_9 = arith.constant 0 : index
    %3 = vector.load %arg14[%c0_7, %c1, %c1_8, %c0_9] : memref<2x18x18x32xf32, #tpu.memory_space<vmem>>, vector<2x16x16x4xf32>
    tpu.vector_store %arg14[%c0_7, %c1, %c1_8, %c0_9], %2 {strides = array<i32>} : memref<2x18x18x32xf32, #tpu.memory_space<vmem>>, vector<2x16x16x4xf32>,
    %c0_10 = arith.constant 0 : index
    %c0_11 = arith.constant 0 : index
    %c0_12 = arith.constant 0 : index
    %c0_13 = arith.constant 0 : index
    %4 = vector.load %arg14[%c0_10, %c0_11, %c0_12, %c0_13] : memref<2x18x18x32xf32, #tpu.memory_space<vmem>>, vector<2x18x18x32xf32>
    %5 = vector.extract_strided_slice %4 {offsets = [0, 0, 0, 0], sizes = [2, 16, 16, 32], strides = [1, 1, 1, 1]} : vector<2x18x18x32xf32> to vector<2x16x16x32xf32>
    %6 = vector.shape_cast %5 : vector<2x16x16x32xf32> to vector<512x32xf32>
    %7 = arith.truncf %6 : vector<512x32xf32> to vector<512x32xbf16>
    %c0_14 = arith.constant 0 : index
    %c0_15 = arith.constant 0 : index
    %8 = vector.load %arg15[%c0_14, %c0_15] : memref<512x288xbf16, #tpu.memory_space<vmem>>, vector<512x32xbf16>
    tpu.vector_store %arg15[%c0_14, %c0_15], %7 {strides = array<i32>} : memref<512x288xbf16, #tpu.memory_space<vmem>>, vector<512x32xbf16>,
    %9 = vector.extract_strided_slice %4 {offsets = [0, 0, 1, 0], sizes = [2, 16, 16, 32], strides = [1, 1, 1, 1]} : vector<2x18x18x32xf32> to vector<2x16x16x32xf32>
    %10 = vector.shape_cast %9 : vector<2x16x16x32xf32> to vector<512x32xf32>
    %11 = arith.truncf %10 : vector<512x32xf32> to vector<512x32xbf16>
    %c0_16 = arith.constant 0 : index
    %c32 = arith.constant 32 : index
    %12 = vector.load %arg15[%c0_16, %c32] : memref<512x288xbf16, #tpu.memory_space<vmem>>, vector<512x32xbf16>
    tpu.vector_store %arg15[%c0_16, %c32], %11 {strides = array<i32>} : memref<512x288xbf16, #tpu.memory_space<vmem>>, vector<512x32xbf16>,
    %13 = vector.extract_strided_slice %4 {offsets = [0, 0, 2, 0], sizes = [2, 16, 16, 32], strides = [1, 1, 1, 1]} : vector<2x18x18x32xf32> to vector<2x16x16x32xf32>
    %14 = vector.shape_cast %13 : vector<2x16x16x32xf32> to vector<512x32xf32>
    %15 = arith.truncf %14 : vector<512x32xf32> to vector<512x32xbf16>
    %c0_17 = arith.constant 0 : index
    %c64 = arith.constant 64 : index
    %16 = vector.load %arg15[%c0_17, %c64] : memref<512x288xbf16, #tpu.memory_space<vmem>>, vector<512x32xbf16>
    tpu.vector_store %arg15[%c0_17, %c64], %15 {strides = array<i32>} : memref<512x288xbf16, #tpu.memory_space<vmem>>, vector<512x32xbf16>,
    %17 = vector.extract_strided_slice %4 {offsets = [0, 1, 0, 0], sizes = [2, 16, 16, 32], strides = [1, 1, 1, 1]} : vector<2x18x18x32xf32> to vector<2x16x16x32xf32>
    %18 = vector.shape_cast %17 : vector<2x16x16x32xf32> to vector<512x32xf32>
    %19 = arith.truncf %18 : vector<512x32xf32> to vector<512x32xbf16>
    %c0_18 = arith.constant 0 : index
    %c96 = arith.constant 96 : index
    %20 = vector.load %arg15[%c0_18, %c96] : memref<512x288xbf16, #tpu.memory_space<vmem>>, vector<512x32xbf16>
    tpu.vector_store %arg15[%c0_18, %c96], %19 {strides = array<i32>} : memref<512x288xbf16, #tpu.memory_space<vmem>>, vector<512x32xbf16>,
    %21 = vector.extract_strided_slice %4 {offsets = [0, 1, 1, 0], sizes = [2, 16, 16, 32], strides = [1, 1, 1, 1]} : vector<2x18x18x32xf32> to vector<2x16x16x32xf32>
    %22 = vector.shape_cast %21 : vector<2x16x16x32xf32> to vector<512x32xf32>
    %23 = arith.truncf %22 : vector<512x32xf32> to vector<512x32xbf16>
    %c0_19 = arith.constant 0 : index
    %c128 = arith.constant 128 : index
    %24 = vector.load %arg15[%c0_19, %c128] : memref<512x288xbf16, #tpu.memory_space<vmem>>, vector<512x32xbf16>
    tpu.vector_store %arg15[%c0_19, %c128], %23 {strides = array<i32>} : memref<512x288xbf16, #tpu.memory_space<vmem>>, vector<512x32xbf16>,
    %25 = vector.extract_strided_slice %4 {offsets = [0, 1, 2, 0], sizes = [2, 16, 16, 32], strides = [1, 1, 1, 1]} : vector<2x18x18x32xf32> to vector<2x16x16x32xf32>
    %26 = vector.shape_cast %25 : vector<2x16x16x32xf32> to vector<512x32xf32>
    %27 = arith.truncf %26 : vector<512x32xf32> to vector<512x32xbf16>
    %c0_20 = arith.constant 0 : index
    %c160 = arith.constant 160 : index
    %28 = vector.load %arg15[%c0_20, %c160] : memref<512x288xbf16, #tpu.memory_space<vmem>>, vector<512x32xbf16>
    tpu.vector_store %arg15[%c0_20, %c160], %27 {strides = array<i32>} : memref<512x288xbf16, #tpu.memory_space<vmem>>, vector<512x32xbf16>,
    %29 = vector.extract_strided_slice %4 {offsets = [0, 2, 0, 0], sizes = [2, 16, 16, 32], strides = [1, 1, 1, 1]} : vector<2x18x18x32xf32> to vector<2x16x16x32xf32>
    %30 = vector.shape_cast %29 : vector<2x16x16x32xf32> to vector<512x32xf32>
    %31 = arith.truncf %30 : vector<512x32xf32> to vector<512x32xbf16>
    %c0_21 = arith.constant 0 : index
    %c192 = arith.constant 192 : index
    %32 = vector.load %arg15[%c0_21, %c192] : memref<512x288xbf16, #tpu.memory_space<vmem>>, vector<512x32xbf16>
    tpu.vector_store %arg15[%c0_21, %c192], %31 {strides = array<i32>} : memref<512x288xbf16, #tpu.memory_space<vmem>>, vector<512x32xbf16>,
    %33 = vector.extract_strided_slice %4 {offsets = [0, 2, 1, 0], sizes = [2, 16, 16, 32], strides = [1, 1, 1, 1]} : vector<2x18x18x32xf32> to vector<2x16x16x32xf32>
    %34 = vector.shape_cast %33 : vector<2x16x16x32xf32> to vector<512x32xf32>
    %35 = arith.truncf %34 : vector<512x32xf32> to vector<512x32xbf16>
    %c0_22 = arith.constant 0 : index
    %c224 = arith.constant 224 : index
    %36 = vector.load %arg15[%c0_22, %c224] : memref<512x288xbf16, #tpu.memory_space<vmem>>, vector<512x32xbf16>
    tpu.vector_store %arg15[%c0_22, %c224], %35 {strides = array<i32>} : memref<512x288xbf16, #tpu.memory_space<vmem>>, vector<512x32xbf16>,
    %37 = vector.extract_strided_slice %4 {offsets = [0, 2, 2, 0], sizes = [2, 16, 16, 32], strides = [1, 1, 1, 1]} : vector<2x18x18x32xf32> to vector<2x16x16x32xf32>
    %38 = vector.shape_cast %37 : vector<2x16x16x32xf32> to vector<512x32xf32>
    %39 = arith.truncf %38 : vector<512x32xf32> to vector<512x32xbf16>
    %c0_23 = arith.constant 0 : index
    %c256 = arith.constant 256 : index
    %40 = vector.load %arg15[%c0_23, %c256] : memref<512x288xbf16, #tpu.memory_space<vmem>>, vector<512x32xbf16>
    tpu.vector_store %arg15[%c0_23, %c256], %39 {strides = array<i32>} : memref<512x288xbf16, #tpu.memory_space<vmem>>, vector<512x32xbf16>,
    %c0_24 = arith.constant 0 : index
    %c0_25 = arith.constant 0 : index
    %41 = vector.load %arg15[%c0_24, %c0_25] : memref<512x288xbf16, #tpu.memory_space<vmem>>, vector<512x288xbf16>
    %c0_26 = arith.constant 0 : index
    %c0_27 = arith.constant 0 : index
    %42 = vector.load %arg1[%c0_26, %c0_27] : memref<288x32xbf16, #tpu.memory_space<vmem>>, vector<288x32xbf16>
    %cst_28 = arith.constant dense<0.000000e+00> : vector<512x32xf32>
    %43 = tpu.matmul %41, %42, %cst_28 {dimension_numbers = #tpu.dot_dimension_numbers<[1], [0], [0], [1], [0, 0, 1, 1], [], []>} : vector<512x288xbf16>, vector<288x32xbf16>, vector<512x32xf32> -> vector<512x32xf32>
    %c0_29 = arith.constant 0 : index
    %c0_30 = arith.constant 0 : index
    %44 = vector.load %arg2[%c0_29, %c0_30] : memref<1x32xf32, #tpu.memory_space<vmem>>, vector<1x32xf32>
    %45 = vector.broadcast %44 : vector<1x32xf32> to vector<512x32xf32>
    %46 = arith.addf %43, %45 : vector<512x32xf32>
    %cst_31 = arith.constant 0.000000e+00 : f32
    %47 = vector.broadcast %cst_31 : f32 to vector<512x32xf32>
    %48 = arith.maximumf %46, %47 : vector<512x32xf32>
    %c0_32 = arith.constant 0 : index
    %c0_33 = arith.constant 0 : index
    %49 = vector.load %arg3[%c0_32, %c0_33] : memref<1x32xf32, #tpu.memory_space<vmem>>, vector<1x32xf32>
    %c0_34 = arith.constant 0 : index
    %c0_35 = arith.constant 0 : index
    %50 = vector.load %arg4[%c0_34, %c0_35] : memref<1x32xf32, #tpu.memory_space<vmem>>, vector<1x32xf32>
    %cst_36 = arith.constant dense<0.000000e+00> : vector<32xf32>
    %51 = vector.multi_reduction <add>, %48, %cst_36 [0] : vector<512x32xf32> to vector<32xf32>
    %52 = vector.shape_cast %51 : vector<32xf32> to vector<1x32xf32>
    %cst_37 = arith.constant 0.001953125 : f32
    %53 = vector.broadcast %cst_37 : f32 to vector<1x32xf32>
    %54 = arith.mulf %52, %53 : vector<1x32xf32>
    %55 = arith.mulf %48, %48 : vector<512x32xf32>
    %cst_38 = arith.constant dense<0.000000e+00> : vector<32xf32>
    %56 = vector.multi_reduction <add>, %55, %cst_38 [0] : vector<512x32xf32> to vector<32xf32>
    %57 = vector.shape_cast %56 : vector<32xf32> to vector<1x32xf32>
    %cst_39 = arith.constant 0.001953125 : f32
    %58 = vector.broadcast %cst_39 : f32 to vector<1x32xf32>
    %59 = arith.mulf %57, %58 : vector<1x32xf32>
    %60 = arith.mulf %54, %54 : vector<1x32xf32>
    %61 = arith.subf %59, %60 : vector<1x32xf32>
    %62 = vector.broadcast %54 : vector<1x32xf32> to vector<512x32xf32>
    %63 = arith.subf %48, %62 : vector<512x32xf32>
    %cst_40 = arith.constant 9.99999974E-6 : f32
    %64 = vector.broadcast %cst_40 : f32 to vector<1x32xf32>
    %65 = arith.addf %61, %64 : vector<1x32xf32>
    %66 = math.rsqrt %65 : vector<1x32xf32>
    %67 = vector.broadcast %66 : vector<1x32xf32> to vector<512x32xf32>
    %68 = arith.mulf %63, %67 : vector<512x32xf32>
    %69 = vector.broadcast %49 : vector<1x32xf32> to vector<512x32xf32>
    %70 = arith.mulf %68, %69 : vector<512x32xf32>
    %71 = vector.broadcast %50 : vector<1x32xf32> to vector<512x32xf32>
    %72 = arith.addf %70, %71 : vector<512x32xf32>
    %73 = vector.shape_cast %72 : vector<512x32xf32> to vector<2x16x16x32xf32>
    %c0_41 = arith.constant 0 : index
    %c1_42 = arith.constant 1 : index
    %c1_43 = arith.constant 1 : index
    %c0_44 = arith.constant 0 : index
    %74 = vector.load %arg14[%c0_41, %c1_42, %c1_43, %c0_44] : memref<2x18x18x32xf32, #tpu.memory_space<vmem>>, vector<2x16x16x32xf32>
    tpu.vector_store %arg14[%c0_41, %c1_42, %c1_43, %c0_44], %73 {strides = array<i32>} : memref<2x18x18x32xf32, #tpu.memory_space<vmem>>, vector<2x16x16x32xf32>,
    %c0_45 = arith.constant 0 : index
    %c0_46 = arith.constant 0 : index
    %c0_47 = arith.constant 0 : index
    %c0_48 = arith.constant 0 : index
    %75 = vector.load %arg14[%c0_45, %c0_46, %c0_47, %c0_48] : memref<2x18x18x32xf32, #tpu.memory_space<vmem>>, vector<2x18x18x32xf32>
    %76 = vector.extract_strided_slice %75 {offsets = [0, 0, 0, 0], sizes = [2, 16, 16, 32], strides = [1, 1, 1, 1]} : vector<2x18x18x32xf32> to vector<2x16x16x32xf32>
    %77 = vector.shape_cast %76 : vector<2x16x16x32xf32> to vector<512x32xf32>
    %78 = arith.truncf %77 : vector<512x32xf32> to vector<512x32xbf16>
    %c0_49 = arith.constant 0 : index
    %c0_50 = arith.constant 0 : index
    %79 = vector.load %arg15[%c0_49, %c0_50] : memref<512x288xbf16, #tpu.memory_space<vmem>>, vector<512x32xbf16>
    tpu.vector_store %arg15[%c0_49, %c0_50], %78 {strides = array<i32>} : memref<512x288xbf16, #tpu.memory_space<vmem>>, vector<512x32xbf16>,
    %80 = vector.extract_strided_slice %75 {offsets = [0, 0, 1, 0], sizes = [2, 16, 16, 32], strides = [1, 1, 1, 1]} : vector<2x18x18x32xf32> to vector<2x16x16x32xf32>
    %81 = vector.shape_cast %80 : vector<2x16x16x32xf32> to vector<512x32xf32>
    %82 = arith.truncf %81 : vector<512x32xf32> to vector<512x32xbf16>
    %c0_51 = arith.constant 0 : index
    %c32_52 = arith.constant 32 : index
    %83 = vector.load %arg15[%c0_51, %c32_52] : memref<512x288xbf16, #tpu.memory_space<vmem>>, vector<512x32xbf16>
    tpu.vector_store %arg15[%c0_51, %c32_52], %82 {strides = array<i32>} : memref<512x288xbf16, #tpu.memory_space<vmem>>, vector<512x32xbf16>,
    %84 = vector.extract_strided_slice %75 {offsets = [0, 0, 2, 0], sizes = [2, 16, 16, 32], strides = [1, 1, 1, 1]} : vector<2x18x18x32xf32> to vector<2x16x16x32xf32>
    %85 = vector.shape_cast %84 : vector<2x16x16x32xf32> to vector<512x32xf32>
    %86 = arith.truncf %85 : vector<512x32xf32> to vector<512x32xbf16>
    %c0_53 = arith.constant 0 : index
    %c64_54 = arith.constant 64 : index
    %87 = vector.load %arg15[%c0_53, %c64_54] : memref<512x288xbf16, #tpu.memory_space<vmem>>, vector<512x32xbf16>
    tpu.vector_store %arg15[%c0_53, %c64_54], %86 {strides = array<i32>} : memref<512x288xbf16, #tpu.memory_space<vmem>>, vector<512x32xbf16>,
    %88 = vector.extract_strided_slice %75 {offsets = [0, 1, 0, 0], sizes = [2, 16, 16, 32], strides = [1, 1, 1, 1]} : vector<2x18x18x32xf32> to vector<2x16x16x32xf32>
    %89 = vector.shape_cast %88 : vector<2x16x16x32xf32> to vector<512x32xf32>
    %90 = arith.truncf %89 : vector<512x32xf32> to vector<512x32xbf16>
    %c0_55 = arith.constant 0 : index
    %c96_56 = arith.constant 96 : index
    %91 = vector.load %arg15[%c0_55, %c96_56] : memref<512x288xbf16, #tpu.memory_space<vmem>>, vector<512x32xbf16>
    tpu.vector_store %arg15[%c0_55, %c96_56], %90 {strides = array<i32>} : memref<512x288xbf16, #tpu.memory_space<vmem>>, vector<512x32xbf16>,
    %92 = vector.extract_strided_slice %75 {offsets = [0, 1, 1, 0], sizes = [2, 16, 16, 32], strides = [1, 1, 1, 1]} : vector<2x18x18x32xf32> to vector<2x16x16x32xf32>
    %93 = vector.shape_cast %92 : vector<2x16x16x32xf32> to vector<512x32xf32>
    %94 = arith.truncf %93 : vector<512x32xf32> to vector<512x32xbf16>
    %c0_57 = arith.constant 0 : index
    %c128_58 = arith.constant 128 : index
    %95 = vector.load %arg15[%c0_57, %c128_58] : memref<512x288xbf16, #tpu.memory_space<vmem>>, vector<512x32xbf16>
    tpu.vector_store %arg15[%c0_57, %c128_58], %94 {strides = array<i32>} : memref<512x288xbf16, #tpu.memory_space<vmem>>, vector<512x32xbf16>,
    %96 = vector.extract_strided_slice %75 {offsets = [0, 1, 2, 0], sizes = [2, 16, 16, 32], strides = [1, 1, 1, 1]} : vector<2x18x18x32xf32> to vector<2x16x16x32xf32>
    %97 = vector.shape_cast %96 : vector<2x16x16x32xf32> to vector<512x32xf32>
    %98 = arith.truncf %97 : vector<512x32xf32> to vector<512x32xbf16>
    %c0_59 = arith.constant 0 : index
    %c160_60 = arith.constant 160 : index
    %99 = vector.load %arg15[%c0_59, %c160_60] : memref<512x288xbf16, #tpu.memory_space<vmem>>, vector<512x32xbf16>
    tpu.vector_store %arg15[%c0_59, %c160_60], %98 {strides = array<i32>} : memref<512x288xbf16, #tpu.memory_space<vmem>>, vector<512x32xbf16>,
    %100 = vector.extract_strided_slice %75 {offsets = [0, 2, 0, 0], sizes = [2, 16, 16, 32], strides = [1, 1, 1, 1]} : vector<2x18x18x32xf32> to vector<2x16x16x32xf32>
    %101 = vector.shape_cast %100 : vector<2x16x16x32xf32> to vector<512x32xf32>
    %102 = arith.truncf %101 : vector<512x32xf32> to vector<512x32xbf16>
    %c0_61 = arith.constant 0 : index
    %c192_62 = arith.constant 192 : index
    %103 = vector.load %arg15[%c0_61, %c192_62] : memref<512x288xbf16, #tpu.memory_space<vmem>>, vector<512x32xbf16>
    tpu.vector_store %arg15[%c0_61, %c192_62], %102 {strides = array<i32>} : memref<512x288xbf16, #tpu.memory_space<vmem>>, vector<512x32xbf16>,
    %104 = vector.extract_strided_slice %75 {offsets = [0, 2, 1, 0], sizes = [2, 16, 16, 32], strides = [1, 1, 1, 1]} : vector<2x18x18x32xf32> to vector<2x16x16x32xf32>
    %105 = vector.shape_cast %104 : vector<2x16x16x32xf32> to vector<512x32xf32>
    %106 = arith.truncf %105 : vector<512x32xf32> to vector<512x32xbf16>
    %c0_63 = arith.constant 0 : index
    %c224_64 = arith.constant 224 : index
    %107 = vector.load %arg15[%c0_63, %c224_64] : memref<512x288xbf16, #tpu.memory_space<vmem>>, vector<512x32xbf16>
    tpu.vector_store %arg15[%c0_63, %c224_64], %106 {strides = array<i32>} : memref<512x288xbf16, #tpu.memory_space<vmem>>, vector<512x32xbf16>,
    %108 = vector.extract_strided_slice %75 {offsets = [0, 2, 2, 0], sizes = [2, 16, 16, 32], strides = [1, 1, 1, 1]} : vector<2x18x18x32xf32> to vector<2x16x16x32xf32>
    %109 = vector.shape_cast %108 : vector<2x16x16x32xf32> to vector<512x32xf32>
    %110 = arith.truncf %109 : vector<512x32xf32> to vector<512x32xbf16>
    %c0_65 = arith.constant 0 : index
    %c256_66 = arith.constant 256 : index
    %111 = vector.load %arg15[%c0_65, %c256_66] : memref<512x288xbf16, #tpu.memory_space<vmem>>, vector<512x32xbf16>
    tpu.vector_store %arg15[%c0_65, %c256_66], %110 {strides = array<i32>} : memref<512x288xbf16, #tpu.memory_space<vmem>>, vector<512x32xbf16>,
    %c0_67 = arith.constant 0 : index
    %c0_68 = arith.constant 0 : index
    %112 = vector.load %arg15[%c0_67, %c0_68] : memref<512x288xbf16, #tpu.memory_space<vmem>>, vector<512x288xbf16>
    %c0_69 = arith.constant 0 : index
    %c0_70 = arith.constant 0 : index
    %113 = vector.load %arg5[%c0_69, %c0_70] : memref<288x32xbf16, #tpu.memory_space<vmem>>, vector<288x32xbf16>
    %cst_71 = arith.constant dense<0.000000e+00> : vector<512x32xf32>
    %114 = tpu.matmul %112, %113, %cst_71 {dimension_numbers = #tpu.dot_dimension_numbers<[1], [0], [0], [1], [0, 0, 1, 1], [], []>} : vector<512x288xbf16>, vector<288x32xbf16>, vector<512x32xf32> -> vector<512x32xf32>
    %c0_72 = arith.constant 0 : index
    %c0_73 = arith.constant 0 : index
    %115 = vector.load %arg6[%c0_72, %c0_73] : memref<1x32xf32, #tpu.memory_space<vmem>>, vector<1x32xf32>
    %116 = vector.broadcast %115 : vector<1x32xf32> to vector<512x32xf32>
    %117 = arith.addf %114, %116 : vector<512x32xf32>
    %cst_74 = arith.constant 0.000000e+00 : f32
    %118 = vector.broadcast %cst_74 : f32 to vector<512x32xf32>
    %119 = arith.maximumf %117, %118 : vector<512x32xf32>
    %c0_75 = arith.constant 0 : index
    %c0_76 = arith.constant 0 : index
    %120 = vector.load %arg7[%c0_75, %c0_76] : memref<1x32xf32, #tpu.memory_space<vmem>>, vector<1x32xf32>
    %c0_77 = arith.constant 0 : index
    %c0_78 = arith.constant 0 : index
    %121 = vector.load %arg8[%c0_77, %c0_78] : memref<1x32xf32, #tpu.memory_space<vmem>>, vector<1x32xf32>
    %cst_79 = arith.constant dense<0.000000e+00> : vector<32xf32>
    %122 = vector.multi_reduction <add>, %119, %cst_79 [0] : vector<512x32xf32> to vector<32xf32>
    %123 = vector.shape_cast %122 : vector<32xf32> to vector<1x32xf32>
    %cst_80 = arith.constant 0.001953125 : f32
    %124 = vector.broadcast %cst_80 : f32 to vector<1x32xf32>
    %125 = arith.mulf %123, %124 : vector<1x32xf32>
    %126 = arith.mulf %119, %119 : vector<512x32xf32>
    %cst_81 = arith.constant dense<0.000000e+00> : vector<32xf32>
    %127 = vector.multi_reduction <add>, %126, %cst_81 [0] : vector<512x32xf32> to vector<32xf32>
    %128 = vector.shape_cast %127 : vector<32xf32> to vector<1x32xf32>
    %cst_82 = arith.constant 0.001953125 : f32
    %129 = vector.broadcast %cst_82 : f32 to vector<1x32xf32>
    %130 = arith.mulf %128, %129 : vector<1x32xf32>
    %131 = arith.mulf %125, %125 : vector<1x32xf32>
    %132 = arith.subf %130, %131 : vector<1x32xf32>
    %133 = vector.broadcast %125 : vector<1x32xf32> to vector<512x32xf32>
    %134 = arith.subf %119, %133 : vector<512x32xf32>
    %cst_83 = arith.constant 9.99999974E-6 : f32
    %135 = vector.broadcast %cst_83 : f32 to vector<1x32xf32>
    %136 = arith.addf %132, %135 : vector<1x32xf32>
    %137 = math.rsqrt %136 : vector<1x32xf32>
    %138 = vector.broadcast %137 : vector<1x32xf32> to vector<512x32xf32>
    %139 = arith.mulf %134, %138 : vector<512x32xf32>
    %140 = vector.broadcast %120 : vector<1x32xf32> to vector<512x32xf32>
    %141 = arith.mulf %139, %140 : vector<512x32xf32>
    %142 = vector.broadcast %121 : vector<1x32xf32> to vector<512x32xf32>
    %143 = arith.addf %141, %142 : vector<512x32xf32>
    %144 = arith.truncf %143 : vector<512x32xf32> to vector<512x32xbf16>
    %c0_84 = arith.constant 0 : index
    %c0_85 = arith.constant 0 : index
    %145 = vector.load %arg9[%c0_84, %c0_85] : memref<32x32xbf16, #tpu.memory_space<vmem>>, vector<32x32xbf16>
    %cst_86 = arith.constant dense<0.000000e+00> : vector<512x32xf32>
    %146 = tpu.matmul %144, %145, %cst_86 {dimension_numbers = #tpu.dot_dimension_numbers<[1], [0], [0], [1], [0, 0, 1, 1], [], []>} : vector<512x32xbf16>, vector<32x32xbf16>, vector<512x32xf32> -> vector<512x32xf32>
    %c0_87 = arith.constant 0 : index
    %c0_88 = arith.constant 0 : index
    %147 = vector.load %arg10[%c0_87, %c0_88] : memref<1x32xf32, #tpu.memory_space<vmem>>, vector<1x32xf32>
    %148 = vector.broadcast %147 : vector<1x32xf32> to vector<512x32xf32>
    %149 = arith.addf %146, %148 : vector<512x32xf32>
    %c0_89 = arith.constant 0 : index
    %c0_90 = arith.constant 0 : index
    %150 = vector.load %arg11[%c0_89, %c0_90] : memref<1x32xf32, #tpu.memory_space<vmem>>, vector<1x32xf32>
    %c0_91 = arith.constant 0 : index
    %c0_92 = arith.constant 0 : index
    %151 = vector.load %arg12[%c0_91, %c0_92] : memref<1x32xf32, #tpu.memory_space<vmem>>, vector<1x32xf32>
    %cst_93 = arith.constant dense<0.000000e+00> : vector<32xf32>
    %152 = vector.multi_reduction <add>, %149, %cst_93 [0] : vector<512x32xf32> to vector<32xf32>
    %153 = vector.shape_cast %152 : vector<32xf32> to vector<1x32xf32>
    %cst_94 = arith.constant 0.001953125 : f32
    %154 = vector.broadcast %cst_94 : f32 to vector<1x32xf32>
    %155 = arith.mulf %153, %154 : vector<1x32xf32>
    %156 = arith.mulf %149, %149 : vector<512x32xf32>
    %cst_95 = arith.constant dense<0.000000e+00> : vector<32xf32>
    %157 = vector.multi_reduction <add>, %156, %cst_95 [0] : vector<512x32xf32> to vector<32xf32>
    %158 = vector.shape_cast %157 : vector<32xf32> to vector<1x32xf32>
    %cst_96 = arith.constant 0.001953125 : f32
    %159 = vector.broadcast %cst_96 : f32 to vector<1x32xf32>
    %160 = arith.mulf %158, %159 : vector<1x32xf32>
    %161 = arith.mulf %155, %155 : vector<1x32xf32>
    %162 = arith.subf %160, %161 : vector<1x32xf32>
    %163 = vector.broadcast %155 : vector<1x32xf32> to vector<512x32xf32>
    %164 = arith.subf %149, %163 : vector<512x32xf32>
    %cst_97 = arith.constant 9.99999974E-6 : f32
    %165 = vector.broadcast %cst_97 : f32 to vector<1x32xf32>
    %166 = arith.addf %162, %165 : vector<1x32xf32>
    %167 = math.rsqrt %166 : vector<1x32xf32>
    %168 = vector.broadcast %167 : vector<1x32xf32> to vector<512x32xf32>
    %169 = arith.mulf %164, %168 : vector<512x32xf32>
    %170 = vector.broadcast %150 : vector<1x32xf32> to vector<512x32xf32>
    %171 = arith.mulf %169, %170 : vector<512x32xf32>
    %172 = vector.broadcast %151 : vector<1x32xf32> to vector<512x32xf32>
    %173 = arith.addf %171, %172 : vector<512x32xf32>
    %174 = tpu.transpose %173, [1, 0] : vector<512x32xf32> -> vector<32x512xf32>
    %c0_98 = arith.constant 0 : index
    %c0_99 = arith.constant 0 : index
    %175 = vector.load %arg13[%c0_98, %c0_99] : memref<32x512xf32, #tpu.memory_space<vmem>>, vector<32x512xf32>
    tpu.vector_store %arg13[%c0_98, %c0_99], %174 {strides = array<i32>} : memref<32x512xf32, #tpu.memory_space<vmem>>, vector<32x512xf32>,
    return
  }
}

</mosaic_0001>

<llo_original>
// kernel: mynet_forward.1
$region0: #{mynet_forward.1}
  #allocation0 [shape = 'u32[]', space=smem, size = 0x4, offset = 0x4, fixed_abs, tag = 'smem constant byte address 0x4 - core index']
  #allocation1 [shape = 'u32[144,128]{1,0:T(1,128)}', space=vmem, size = 0x12000, scoped, tag = 'internal scratch']
  #allocation2 [shape = 'f32[2,18,18,32]{3,2,1,0:T(8,128)}', space=vmem, size = 0x6c000, scoped, tag = 'scratch operand']
  #allocation3 [shape = 'bf16[512,288]{1,0:T(16,128)(2,1)}', space=vmem, size = 0x60000, scoped, tag = 'scratch operand']
  %s0 = inlined_call_operand.vmem [shape: f32[2,16,16,4], index: 0, kind: input, shape index: {}]
  %s1 = inlined_call_operand.vmem [shape: bf16[288,32], index: 1, kind: input, shape index: {}]
  %s2 = inlined_call_operand.vmem [shape: f32[1,32], index: 2, kind: input, shape index: {}]
  %s3 = inlined_call_operand.vmem [shape: f32[1,32], index: 3, kind: input, shape index: {}]
  %s4 = inlined_call_operand.vmem [shape: f32[1,32], index: 4, kind: input, shape index: {}]
  %s5 = inlined_call_operand.vmem [shape: bf16[288,32], index: 5, kind: input, shape index: {}]
  %s6 = inlined_call_operand.vmem [shape: f32[1,32], index: 6, kind: input, shape index: {}]
  %s7 = inlined_call_operand.vmem [shape: f32[1,32], index: 7, kind: input, shape index: {}]
  %s8 = inlined_call_operand.vmem [shape: f32[1,32], index: 8, kind: input, shape index: {}]
  %s9 = inlined_call_operand.vmem [shape: bf16[32,32], index: 9, kind: input, shape index: {}]
  %s10 = inlined_call_operand.vmem [shape: f32[1,32], index: 10, kind: input, shape index: {}]
  %s11 = inlined_call_operand.vmem [shape: f32[1,32], index: 11, kind: input, shape index: {}]
  %s12 = inlined_call_operand.vmem [shape: f32[1,32], index: 12, kind: input, shape index: {}]
  %s13 = inlined_call_operand.vmem [shape: f32[32,512], index: 13, kind: output, shape index: {}]
  %s14 = sld [smem:[#allocation0]]
  $region62: #{mynet_forward.1} parent=0
    _
  %s16 = ssub.s32 1, %s14
  %s17 = scalar_select 0, %s16, %s14
  // Predicated region
  $region2: #{mynet_forward.1} parent=0 // pred_check
    _
  $region3: #{mynet_forward.1} parent=0 // pred_check_branch
    %19 = sbr.rel (0) target = $region5
  $region4: #{mynet_forward.1} parent=0 // pred_region
    _
  $region5: #{mynet_forward.1} parent=0 // pred_fallthru
    _
  // Predicated region
  $region6: #{mynet_forward.1} parent=0 // pred_check
    _
  $region7: #{mynet_forward.1} parent=0 // pred_check_branch
    %21 = sbr.rel (0) target = $region9
  $region8: #{mynet_forward.1} parent=0 // pred_region
    _
  $region9: #{mynet_forward.1} parent=0 // pred_fallthru
    _
  // Predicated region
  $region10: #{mynet_forward.1} parent=0 // pred_check
    _
  $region11: #{mynet_forward.1} parent=0 // pred_check_branch
    %23 = sbr.rel (0) target = $region13
  $region12: #{mynet_forward.1} parent=0 // pred_region
    _
  $region13: #{mynet_forward.1} parent=0 // pred_fallthru
    _
  // Predicated region
  $region14: #{mynet_forward.1} parent=0 // pred_check
    _
  $region15: #{mynet_forward.1} parent=0 // pred_check_branch
    %25 = sbr.rel (0) target = $region17
  $region16: #{mynet_forward.1} parent=0 // pred_region
    _
  $region17: #{mynet_forward.1} parent=0 // pred_fallthru
    _
  // Predicated region
  $region18: #{mynet_forward.1} parent=0 // pred_check
    _
  $region19: #{mynet_forward.1} parent=0 // pred_check_branch
    %27 = sbr.rel (0) target = $region21
  $region20: #{mynet_forward.1} parent=0 // pred_region
    _
  $region21: #{mynet_forward.1} parent=0 // pred_fallthru
    _
  // Predicated region
  $region22: #{mynet_forward.1} parent=0 // pred_check
    _
  $region23: #{mynet_forward.1} parent=0 // pred_check_branch
    %29 = sbr.rel (0) target = $region25
  $region24: #{mynet_forward.1} parent=0 // pred_region
    _
  $region25: #{mynet_forward.1} parent=0 // pred_fallthru
    _
  // Predicated region
  $region26: #{mynet_forward.1} parent=0 // pred_check
    _
  $region27: #{mynet_forward.1} parent=0 // pred_check_branch
    %31 = sbr.rel (0) target = $region29
  $region28: #{mynet_forward.1} parent=0 // pred_region
    _
  $region29: #{mynet_forward.1} parent=0 // pred_fallthru
    _
  // Predicated region
  $region30: #{mynet_forward.1} parent=0 // pred_check
    _
  $region31: #{mynet_forward.1} parent=0 // pred_check_branch
    %33 = sbr.rel (0) target = $region33
  $region32: #{mynet_forward.1} parent=0 // pred_region
    _
  $region33: #{mynet_forward.1} parent=0 // pred_fallthru
    _
  // Predicated region
  $region34: #{mynet_forward.1} parent=0 // pred_check
    _
  $region35: #{mynet_forward.1} parent=0 // pred_check_branch
    %35 = sbr.rel (0) target = $region37
  $region36: #{mynet_forward.1} parent=0 // pred_region
    _
  $region37: #{mynet_forward.1} parent=0 // pred_fallthru
    _
  // Predicated region
  $region38: #{mynet_forward.1} parent=0 // pred_check
    _
  $region39: #{mynet_forward.1} parent=0 // pred_check_branch
    %37 = sbr.rel (0) target = $region41
  $region40: #{mynet_forward.1} parent=0 // pred_region
    _
  $region41: #{mynet_forward.1} parent=0 // pred_fallthru
    _
  // Predicated region
  $region42: #{mynet_forward.1} parent=0 // pred_check
    _
  $region43: #{mynet_forward.1} parent=0 // pred_check_branch
    %39 = sbr.rel (0) target = $region45
  $region44: #{mynet_forward.1} parent=0 // pred_region
    _
  $region45: #{mynet_forward.1} parent=0 // pred_fallthru
    _
  // Predicated region
  $region46: #{mynet_forward.1} parent=0 // pred_check
    _
  $region47: #{mynet_forward.1} parent=0 // pred_check_branch
    %41 = sbr.rel (0) target = $region49
  $region48: #{mynet_forward.1} parent=0 // pred_region
    _
  $region49: #{mynet_forward.1} parent=0 // pred_fallthru
    _
  // Predicated region
  $region50: #{mynet_forward.1} parent=0 // pred_check
    _
  $region51: #{mynet_forward.1} parent=0 // pred_check_branch
    %43 = sbr.rel (0) target = $region53
  $region52: #{mynet_forward.1} parent=0 // pred_region
    _
  $region53: #{mynet_forward.1} parent=0 // pred_fallthru
    _
  %vm45 = vcmask 261120
  %46 = vst.msk [vmem:[#allocation2] sm:$0xff] %vm45, 0.0
  %47 = vst.msk [vmem:[#allocation2 + $0x8] sm:$0xff] %vm45, 0.0
  %vm48 = vcmask 254976
  %49 = vst.msk [vmem:[#allocation2 + $0x10] sm:$0x3] %vm48, 0.0
  %50 = vst.msk [vmem:[#allocation2 + $0x18] sm:$0xff] %vm45, 0.0
  %51 = vst.msk [vmem:[#allocation2 + $0x20] sm:$0xff] %vm45, 0.0
  %52 = vst.msk [vmem:[#allocation2 + $0x28] sm:$0x3] %vm48, 0.0
  %53 = vst.msk [vmem:[#allocation2 + $0x30] sm:$0xff] %vm45, 0.0
  %54 = vst.msk [vmem:[#allocation2 + $0x38] sm:$0xff] %vm45, 0.0
  %55 = vst.msk [vmem:[#allocation2 + $0x40] sm:$0x3] %vm48, 0.0
  %56 = vst.msk [vmem:[#allocation2 + $0x48] sm:$0xff] %vm45, 0.0
  %57 = vst.msk [vmem:[#allocation2 + $0x50] sm:$0xff] %vm45, 0.0
  %58 = vst.msk [vmem:[#allocation2 + $0x58] sm:$0x3] %vm48, 0.0
  %59 = vst.msk [vmem:[#allocation2 + $0x60] sm:$0xff] %vm45, 0.0
  %60 = vst.msk [vmem:[#allocation2 + $0x68] sm:$0xff] %vm45, 0.0
  %61 = vst.msk [vmem:[#allocation2 + $0x70] sm:$0x3] %vm48, 0.0
  %62 = vst.msk [vmem:[#allocation2 + $0x78] sm:$0xff] %vm45, 0.0
  %63 = vst.msk [vmem:[#allocation2 + $0x80] sm:$0xff] %vm45, 0.0
  %64 = vst.msk [vmem:[#allocation2 + $0x88] sm:$0x3] %vm48, 0.0
  %65 = vst.msk [vmem:[#allocation2 + $0x90] sm:$0xff] %vm45, 0.0
  %66 = vst.msk [vmem:[#allocation2 + $0x98] sm:$0xff] %vm45, 0.0
  %67 = vst.msk [vmem:[#allocation2 + $0xa0] sm:$0x3] %vm48, 0.0
  %68 = vst.msk [vmem:[#allocation2 + $0xa8] sm:$0xff] %vm45, 0.0
  %69 = vst.msk [vmem:[#allocation2 + $0xb0] sm:$0xff] %vm45, 0.0
  %70 = vst.msk [vmem:[#allocation2 + $0xb8] sm:$0x3] %vm48, 0.0
  %71 = vst.msk [vmem:[#allocation2 + $0xc0] sm:$0xff] %vm45, 0.0
  %72 = vst.msk [vmem:[#allocation2 + $0xc8] sm:$0xff] %vm45, 0.0
  %73 = vst.msk [vmem:[#allocation2 + $0xd0] sm:$0x3] %vm48, 0.0
  %74 = vst.msk [vmem:[#allocation2 + $0xd8] sm:$0xff] %vm45, 0.0
  %75 = vst.msk [vmem:[#allocation2 + $0xe0] sm:$0xff] %vm45, 0.0
  %76 = vst.msk [vmem:[#allocation2 + $0xe8] sm:$0x3] %vm48, 0.0
  %77 = vst.msk [vmem:[#allocation2 + $0xf0] sm:$0xff] %vm45, 0.0
  %78 = vst.msk [vmem:[#allocation2 + $0xf8] sm:$0xff] %vm45, 0.0
  %79 = vst.msk [vmem:[#allocation2 + $0x100] sm:$0x3] %vm48, 0.0
  %80 = vst.msk [vmem:[#allocation2 + $0x108] sm:$0xff] %vm45, 0.0
  %81 = vst.msk [vmem:[#allocation2 + $0x110] sm:$0xff] %vm45, 0.0
  %82 = vst.msk [vmem:[#allocation2 + $0x118] sm:$0x3] %vm48, 0.0
  %83 = vst.msk [vmem:[#allocation2 + $0x120] sm:$0xff] %vm45, 0.0
  %84 = vst.msk [vmem:[#allocation2 + $0x128] sm:$0xff] %vm45, 0.0
  %85 = vst.msk [vmem:[#allocation2 + $0x130] sm:$0x3] %vm48, 0.0
  %86 = vst.msk [vmem:[#allocation2 + $0x138] sm:$0xff] %vm45, 0.0
  %87 = vst.msk [vmem:[#allocation2 + $0x140] sm:$0xff] %vm45, 0.0
  %88 = vst.msk [vmem:[#allocation2 + $0x148] sm:$0x3] %vm48, 0.0
  %89 = vst.msk [vmem:[#allocation2 + $0x150] sm:$0xff] %vm45, 0.0
  %90 = vst.msk [vmem:[#allocation2 + $0x158] sm:$0xff] %vm45, 0.0
  %91 = vst.msk [vmem:[#allocation2 + $0x160] sm:$0x3] %vm48, 0.0
  %92 = vst.msk [vmem:[#allocation2 + $0x168] sm:$0xff] %vm45, 0.0
  %93 = vst.msk [vmem:[#allocation2 + $0x170] sm:$0xff] %vm45, 0.0
  %94 = vst.msk [vmem:[#allocation2 + $0x178] sm:$0x3] %vm48, 0.0
  %95 = vst.msk [vmem:[#allocation2 + $0x180] sm:$0xff] %vm45, 0.0
  %96 = vst.msk [vmem:[#allocation2 + $0x188] sm:$0xff] %vm45, 0.0
  %97 = vst.msk [vmem:[#allocation2 + $0x190] sm:$0x3] %vm48, 0.0
  %98 = vst.msk [vmem:[#allocation2 + $0x198] sm:$0xff] %vm45, 0.0
  %99 = vst.msk [vmem:[#allocation2 + $0x1a0] sm:$0xff] %vm45, 0.0
  %100 = vst.msk [vmem:[#allocation2 + $0x1a8] sm:$0x3] %vm48, 0.0
  %101 = vst.msk [vmem:[#allocation2 + $0x1b0] sm:$0xff] %vm45, 0.0
  %102 = vst.msk [vmem:[#allocation2 + $0x1b8] sm:$0xff] %vm45, 0.0
  %103 = vst.msk [vmem:[#allocation2 + $0x1c0] sm:$0x3] %vm48, 0.0
  %104 = vst.msk [vmem:[#allocation2 + $0x1c8] sm:$0xff] %vm45, 0.0
  %105 = vst.msk [vmem:[#allocation2 + $0x1d0] sm:$0xff] %vm45, 0.0
  %106 = vst.msk [vmem:[#allocation2 + $0x1d8] sm:$0x3] %vm48, 0.0
  %107 = vst.msk [vmem:[#allocation2 + $0x1e0] sm:$0xff] %vm45, 0.0
  %108 = vst.msk [vmem:[#allocation2 + $0x1e8] sm:$0xff] %vm45, 0.0
  %109 = vst.msk [vmem:[#allocation2 + $0x1f0] sm:$0x3] %vm48, 0.0
  %110 = vst.msk [vmem:[#allocation2 + $0x1f8] sm:$0xff] %vm45, 0.0
  %111 = vst.msk [vmem:[#allocation2 + $0x200] sm:$0xff] %vm45, 0.0
  %112 = vst.msk [vmem:[#allocation2 + $0x208] sm:$0x3] %vm48, 0.0
  %113 = vst.msk [vmem:[#allocation2 + $0x210] sm:$0xff] %vm45, 0.0
  %114 = vst.msk [vmem:[#allocation2 + $0x218] sm:$0xff] %vm45, 0.0
  %115 = vst.msk [vmem:[#allocation2 + $0x220] sm:$0x3] %vm48, 0.0
  %116 = vst.msk [vmem:[#allocation2 + $0x228] sm:$0xff] %vm45, 0.0
  %117 = vst.msk [vmem:[#allocation2 + $0x230] sm:$0xff] %vm45, 0.0
  %118 = vst.msk [vmem:[#allocation2 + $0x238] sm:$0x3] %vm48, 0.0
  %119 = vst.msk [vmem:[#allocation2 + $0x240] sm:$0xff] %vm45, 0.0
  %120 = vst.msk [vmem:[#allocation2 + $0x248] sm:$0xff] %vm45, 0.0
  %121 = vst.msk [vmem:[#allocation2 + $0x250] sm:$0x3] %vm48, 0.0
  %122 = vst.msk [vmem:[#allocation2 + $0x258] sm:$0xff] %vm45, 0.0
  %123 = vst.msk [vmem:[#allocation2 + $0x260] sm:$0xff] %vm45, 0.0
  %124 = vst.msk [vmem:[#allocation2 + $0x268] sm:$0x3] %vm48, 0.0
  %125 = vst.msk [vmem:[#allocation2 + $0x270] sm:$0xff] %vm45, 0.0
  %126 = vst.msk [vmem:[#allocation2 + $0x278] sm:$0xff] %vm45, 0.0
  %127 = vst.msk [vmem:[#allocation2 + $0x280] sm:$0x3] %vm48, 0.0
  %128 = vst.msk [vmem:[#allocation2 + $0x288] sm:$0xff] %vm45, 0.0
  %129 = vst.msk [vmem:[#allocation2 + $0x290] sm:$0xff] %vm45, 0.0
  %130 = vst.msk [vmem:[#allocation2 + $0x298] sm:$0x3] %vm48, 0.0
  %131 = vst.msk [vmem:[#allocation2 + $0x2a0] sm:$0xff] %vm45, 0.0
  %132 = vst.msk [vmem:[#allocation2 + $0x2a8] sm:$0xff] %vm45, 0.0
  %133 = vst.msk [vmem:[#allocation2 + $0x2b0] sm:$0x3] %vm48, 0.0
  %134 = vst.msk [vmem:[#allocation2 + $0x2b8] sm:$0xff] %vm45, 0.0
  %135 = vst.msk [vmem:[#allocation2 + $0x2c0] sm:$0xff] %vm45, 0.0
  %136 = vst.msk [vmem:[#allocation2 + $0x2c8] sm:$0x3] %vm48, 0.0
  %137 = vst.msk [vmem:[#allocation2 + $0x2d0] sm:$0xff] %vm45, 0.0
  %138 = vst.msk [vmem:[#allocation2 + $0x2d8] sm:$0xff] %vm45, 0.0
  %139 = vst.msk [vmem:[#allocation2 + $0x2e0] sm:$0x3] %vm48, 0.0
  %140 = vst.msk [vmem:[#allocation2 + $0x2e8] sm:$0xff] %vm45, 0.0
  %141 = vst.msk [vmem:[#allocation2 + $0x2f0] sm:$0xff] %vm45, 0.0
  %142 = vst.msk [vmem:[#allocation2 + $0x2f8] sm:$0x3] %vm48, 0.0
  %143 = vst.msk [vmem:[#allocation2 + $0x300] sm:$0xff] %vm45, 0.0
  %144 = vst.msk [vmem:[#allocation2 + $0x308] sm:$0xff] %vm45, 0.0
  %145 = vst.msk [vmem:[#allocation2 + $0x310] sm:$0x3] %vm48, 0.0
  %146 = vst.msk [vmem:[#allocation2 + $0x318] sm:$0xff] %vm45, 0.0
  %147 = vst.msk [vmem:[#allocation2 + $0x320] sm:$0xff] %vm45, 0.0
  %148 = vst.msk [vmem:[#allocation2 + $0x328] sm:$0x3] %vm48, 0.0
  %149 = vst.msk [vmem:[#allocation2 + $0x330] sm:$0xff] %vm45, 0.0
  %150 = vst.msk [vmem:[#allocation2 + $0x338] sm:$0xff] %vm45, 0.0
  %151 = vst.msk [vmem:[#allocation2 + $0x340] sm:$0x3] %vm48, 0.0
  %152 = vst.msk [vmem:[#allocation2 + $0x348] sm:$0xff] %vm45, 0.0
  %153 = vst.msk [vmem:[#allocation2 + $0x350] sm:$0xff] %vm45, 0.0
  %154 = vst.msk [vmem:[#allocation2 + $0x358] sm:$0x3] %vm48, 0.0
  %v155 = vld [vmem:[%s0] sm:$0xff]
  %v156 = vld [vmem:[%s0 + $0x8] sm:$0xff]
  %v157 = vld [vmem:[%s0 + $0x10] sm:$0xff]
  %v158 = vld [vmem:[%s0 + $0x18] sm:$0xff]
  %v159 = vld [vmem:[%s0 + $0x20] sm:$0xff]
  %v160 = vld [vmem:[%s0 + $0x28] sm:$0xff]
  %v161 = vld [vmem:[%s0 + $0x30] sm:$0xff]
  %v162 = vld [vmem:[%s0 + $0x38] sm:$0xff]
  %v163 = vld [vmem:[%s0 + $0x40] sm:$0xff]
  %v164 = vld [vmem:[%s0 + $0x48] sm:$0xff]
  %v165 = vld [vmem:[%s0 + $0x50] sm:$0xff]
  %v166 = vld [vmem:[%s0 + $0x58] sm:$0xff]
  %v167 = vld [vmem:[%s0 + $0x60] sm:$0xff]
  %v168 = vld [vmem:[%s0 + $0x68] sm:$0xff]
  %v169 = vld [vmem:[%s0 + $0x70] sm:$0xff]
  %v170 = vld [vmem:[%s0 + $0x78] sm:$0xff]
  %v171 = vld [vmem:[%s0 + $0x80] sm:$0xff]
  %v172 = vld [vmem:[%s0 + $0x88] sm:$0xff]
  %v173 = vld [vmem:[%s0 + $0x90] sm:$0xff]
  %v174 = vld [vmem:[%s0 + $0x98] sm:$0xff]
  %v175 = vld [vmem:[%s0 + $0xa0] sm:$0xff]
  %v176 = vld [vmem:[%s0 + $0xa8] sm:$0xff]
  %v177 = vld [vmem:[%s0 + $0xb0] sm:$0xff]
  %v178 = vld [vmem:[%s0 + $0xb8] sm:$0xff]
  %v179 = vld [vmem:[%s0 + $0xc0] sm:$0xff]
  %v180 = vld [vmem:[%s0 + $0xc8] sm:$0xff]
  %v181 = vld [vmem:[%s0 + $0xd0] sm:$0xff]
  %v182 = vld [vmem:[%s0 + $0xd8] sm:$0xff]
  %v183 = vld [vmem:[%s0 + $0xe0] sm:$0xff]
  %v184 = vld [vmem:[%s0 + $0xe8] sm:$0xff]
  %v185 = vld [vmem:[%s0 + $0xf0] sm:$0xff]
  %v186 = vld [vmem:[%s0 + $0xf8] sm:$0xff]
  %v187 = vld [vmem:[%s0 + $0x100] sm:$0xff]
  %v188 = vld [vmem:[%s0 + $0x108] sm:$0xff]
  %v189 = vld [vmem:[%s0 + $0x110] sm:$0xff]
  %v190 = vld [vmem:[%s0 + $0x118] sm:$0xff]
  %v191 = vld [vmem:[%s0 + $0x120] sm:$0xff]
  %v192 = vld [vmem:[%s0 + $0x128] sm:$0xff]
  %v193 = vld [vmem:[%s0 + $0x130] sm:$0xff]
  %v194 = vld [vmem:[%s0 + $0x138] sm:$0xff]
  %v195 = vld [vmem:[%s0 + $0x140] sm:$0xff]
  %v196 = vld [vmem:[%s0 + $0x148] sm:$0xff]
  %v197 = vld [vmem:[%s0 + $0x150] sm:$0xff]
  %v198 = vld [vmem:[%s0 + $0x158] sm:$0xff]
  %v199 = vld [vmem:[%s0 + $0x160] sm:$0xff]
  %v200 = vld [vmem:[%s0 + $0x168] sm:$0xff]
  %v201 = vld [vmem:[%s0 + $0x170] sm:$0xff]
  %v202 = vld [vmem:[%s0 + $0x178] sm:$0xff]
  %v203 = vld [vmem:[%s0 + $0x180] sm:$0xff]
  %v204 = vld [vmem:[%s0 + $0x188] sm:$0xff]
  %v205 = vld [vmem:[%s0 + $0x190] sm:$0xff]
  %v206 = vld [vmem:[%s0 + $0x198] sm:$0xff]
  %v207 = vld [vmem:[%s0 + $0x1a0] sm:$0xff]
  %v208 = vld [vmem:[%s0 + $0x1a8] sm:$0xff]
  %v209 = vld [vmem:[%s0 + $0x1b0] sm:$0xff]
  %v210 = vld [vmem:[%s0 + $0x1b8] sm:$0xff]
  %v211 = vld [vmem:[%s0 + $0x1c0] sm:$0xff]
  %v212 = vld [vmem:[%s0 + $0x1c8] sm:$0xff]
  %v213 = vld [vmem:[%s0 + $0x1d0] sm:$0xff]
  %v214 = vld [vmem:[%s0 + $0x1d8] sm:$0xff]
  %v215 = vld [vmem:[%s0 + $0x1e0] sm:$0xff]
  %v216 = vld [vmem:[%s0 + $0x1e8] sm:$0xff]
  %v217 = vld [vmem:[%s0 + $0x1f0] sm:$0xff]
  %v218 = vld [vmem:[%s0 + $0x1f8] sm:$0xff]
  %s219 = scalar_lea.vmem [#allocation2], 24
  %vm220 = vcmask 31744
  %221 = vst.msk [vmem:[%s219 + $0x1] sm:$0xff] %vm220, %v155
  %222 = vst.msk [vmem:[%s219 + $0x9] sm:$0xff] %vm220, %v156
  %223 = vst.msk [vmem:[%s219 + $0x19] sm:$0xff] %vm220, %v157
  %224 = vst.msk [vmem:[%s219 + $0x21] sm:$0xff] %vm220, %v158
  %225 = vst.msk [vmem:[%s219 + $0x31] sm:$0xff] %vm220, %v159
  %226 = vst.msk [vmem:[%s219 + $0x39] sm:$0xff] %vm220, %v160
  %227 = vst.msk [vmem:[%s219 + $0x49] sm:$0xff] %vm220, %v161
  %228 = vst.msk [vmem:[%s219 + $0x51] sm:$0xff] %vm220, %v162
  %229 = vst.msk [vmem:[%s219 + $0x61] sm:$0xff] %vm220, %v163
  %230 = vst.msk [vmem:[%s219 + $0x69] sm:$0xff] %vm220, %v164
  %231 = vst.msk [vmem:[%s219 + $0x79] sm:$0xff] %vm220, %v165
  %232 = vst.msk [vmem:[%s219 + $0x81] sm:$0xff] %vm220, %v166
  %233 = vst.msk [vmem:[%s219 + $0x91] sm:$0xff] %vm220, %v167
  %234 = vst.msk [vmem:[%s219 + $0x99] sm:$0xff] %vm220, %v168
  %235 = vst.msk [vmem:[%s219 + $0xa9] sm:$0xff] %vm220, %v169
  %236 = vst.msk [vmem:[%s219 + $0xb1] sm:$0xff] %vm220, %v170
  %237 = vst.msk [vmem:[%s219 + $0xc1] sm:$0xff] %vm220, %v171
  %238 = vst.msk [vmem:[%s219 + $0xc9] sm:$0xff] %vm220, %v172
  %239 = vst.msk [vmem:[%s219 + $0xd9] sm:$0xff] %vm220, %v173
  %240 = vst.msk [vmem:[%s219 + $0xe1] sm:$0xff] %vm220, %v174
  %241 = vst.msk [vmem:[%s219 + $0xf1] sm:$0xff] %vm220, %v175
  %242 = vst.msk [vmem:[%s219 + $0xf9] sm:$0xff] %vm220, %v176
  %243 = vst.msk [vmem:[%s219 + $0x109] sm:$0xff] %vm220, %v177
  %244 = vst.msk [vmem:[%s219 + $0x111] sm:$0xff] %vm220, %v178
  %245 = vst.msk [vmem:[%s219 + $0x121] sm:$0xff] %vm220, %v179
  %246 = vst.msk [vmem:[%s219 + $0x129] sm:$0xff] %vm220, %v180
  %247 = vst.msk [vmem:[%s219 + $0x139] sm:$0xff] %vm220, %v181
  %248 = vst.msk [vmem:[%s219 + $0x141] sm:$0xff] %vm220, %v182
  %249 = vst.msk [vmem:[%s219 + $0x151] sm:$0xff] %vm220, %v183
  %250 = vst.msk [vmem:[%s219 + $0x159] sm:$0xff] %vm220, %v184
  %251 = vst.msk [vmem:[%s219 + $0x169] sm:$0xff] %vm220, %v185
  %252 = vst.msk [vmem:[%s219 + $0x171] sm:$0xff] %vm220, %v186
  %253 = vst.msk [vmem:[%s219 + $0x1b1] sm:$0xff] %vm220, %v187
  %254 = vst.msk [vmem:[%s219 + $0x1b9] sm:$0xff] %vm220, %v188
  %255 = vst.msk [vmem:[%s219 + $0x1c9] sm:$0xff] %vm220, %v189
  %256 = vst.msk [vmem:[%s219 + $0x1d1] sm:$0xff] %vm220, %v190
  %257 = vst.msk [vmem:[%s219 + $0x1e1] sm:$0xff] %vm220, %v191
  %258 = vst.msk [vmem:[%s219 + $0x1e9] sm:$0xff] %vm220, %v192
  %259 = vst.msk [vmem:[%s219 + $0x1f9] sm:$0xff] %vm220, %v193
  %260 = vst.msk [vmem:[%s219 + $0x201] sm:$0xff] %vm220, %v194
  %261 = vst.msk [vmem:[%s219 + $0x211] sm:$0xff] %vm220, %v195
  %262 = vst.msk [vmem:[%s219 + $0x219] sm:$0xff] %vm220, %v196
  %263 = vst.msk [vmem:[%s219 + $0x229] sm:$0xff] %vm220, %v197
  %264 = vst.msk [vmem:[%s219 + $0x231] sm:$0xff] %vm220, %v198
  %265 = vst.msk [vmem:[%s219 + $0x241] sm:$0xff] %vm220, %v199
  %266 = vst.msk [vmem:[%s219 + $0x249] sm:$0xff] %vm220, %v200
  %267 = vst.msk [vmem:[%s219 + $0x259] sm:$0xff] %vm220, %v201
  %268 = vst.msk [vmem:[%s219 + $0x261] sm:$0xff] %vm220, %v202
  %269 = vst.msk [vmem:[%s219 + $0x271] sm:$0xff] %vm220, %v203
  %270 = vst.msk [vmem:[%s219 + $0x279] sm:$0xff] %vm220, %v204
  %271 = vst.msk [vmem:[%s219 + $0x289] sm:$0xff] %vm220, %v205
  %272 = vst.msk [vmem:[%s219 + $0x291] sm:$0xff] %vm220, %v206
  %273 = vst.msk [vmem:[%s219 + $0x2a1] sm:$0xff] %vm220, %v207
  %274 = vst.msk [vmem:[%s219 + $0x2a9] sm:$0xff] %vm220, %v208
  %275 = vst.msk [vmem:[%s219 + $0x2b9] sm:$0xff] %vm220, %v209
  %276 = vst.msk [vmem:[%s219 + $0x2c1] sm:$0xff] %vm220, %v210
  %277 = vst.msk [vmem:[%s219 + $0x2d1] sm:$0xff] %vm220, %v211
  %278 = vst.msk [vmem:[%s219 + $0x2d9] sm:$0xff] %vm220, %v212
  %279 = vst.msk [vmem:[%s219 + $0x2e9] sm:$0xff] %vm220, %v213
  %280 = vst.msk [vmem:[%s219 + $0x2f1] sm:$0xff] %vm220, %v214
  %281 = vst.msk [vmem:[%s219 + $0x301] sm:$0xff] %vm220, %v215
  %282 = vst.msk [vmem:[%s219 + $0x309] sm:$0xff] %vm220, %v216
  %283 = vst.msk [vmem:[%s219 + $0x319] sm:$0xff] %vm220, %v217
  %284 = vst.msk [vmem:[%s219 + $0x321] sm:$0xff] %vm220, %v218
  %v285 = vld [vmem:[#allocation2] sm:$0xff]
  %v286 = vld [vmem:[#allocation2 + $0x8] sm:$0xff]
  %v287 = vld [vmem:[#allocation2 + $0x10] sm:$0x3]
  %v288 = vld [vmem:[#allocation2 + $0x18] sm:$0xff]
  %v289 = vld [vmem:[#allocation2 + $0x20] sm:$0xff]
  %v290 = vld [vmem:[#allocation2 + $0x28] sm:$0x3]
  %v291 = vld [vmem:[#allocation2 + $0x30] sm:$0xff]
  %v292 = vld [vmem:[#allocation2 + $0x38] sm:$0xff]
  %v293 = vld [vmem:[#allocation2 + $0x40] sm:$0x3]
  %v294 = vld [vmem:[#allocation2 + $0x48] sm:$0xff]
  %v295 = vld [vmem:[#allocation2 + $0x50] sm:$0xff]
  %v296 = vld [vmem:[#allocation2 + $0x58] sm:$0x3]
  %v297 = vld [vmem:[#allocation2 + $0x60] sm:$0xff]
  %v298 = vld [vmem:[#allocation2 + $0x68] sm:$0xff]
  %v299 = vld [vmem:[#allocation2 + $0x70] sm:$0x3]
  %v300 = vld [vmem:[#allocation2 + $0x78] sm:$0xff]
  %v301 = vld [vmem:[#allocation2 + $0x80] sm:$0xff]
  %v302 = vld [vmem:[#allocation2 + $0x88] sm:$0x3]
  %v303 = vld [vmem:[#allocation2 + $0x90] sm:$0xff]
  %v304 = vld [vmem:[#allocation2 + $0x98] sm:$0xff]
  %v305 = vld [vmem:[#allocation2 + $0xa0] sm:$0x3]
  %v306 = vld [vmem:[#allocation2 + $0xa8] sm:$0xff]
  %v307 = vld [vmem:[#allocation2 + $0xb0] sm:$0xff]
  %v308 = vld [vmem:[#allocation2 + $0xb8] sm:$0x3]
  %v309 = vld [vmem:[#allocation2 + $0xc0] sm:$0xff]
  %v310 = vld [vmem:[#allocation2 + $0xc8] sm:$0xff]
  %v311 = vld [vmem:[#allocation2 + $0xd0] sm:$0x3]
  %v312 = vld [vmem:[#allocation2 + $0xd8] sm:$0xff]
  %v313 = vld [vmem:[#allocation2 + $0xe0] sm:$0xff]
  %v314 = vld [vmem:[#allocation2 + $0xe8] sm:$0x3]
  %v315 = vld [vmem:[#allocation2 + $0xf0] sm:$0xff]
  %v316 = vld [vmem:[#allocation2 + $0xf8] sm:$0xff]
  %v317 = vld [vmem:[#allocation2 + $0x100] sm:$0x3]
  %v318 = vld [vmem:[#allocation2 + $0x108] sm:$0xff]
  %v319 = vld [vmem:[#allocation2 + $0x110] sm:$0xff]
  %v320 = vld [vmem:[#allocation2 + $0x118] sm:$0x3]
  %v321 = vld [vmem:[#allocation2 + $0x120] sm:$0xff]
  %v322 = vld [vmem:[#allocation2 + $0x128] sm:$0xff]
  %v323 = vld [vmem:[#allocation2 + $0x130] sm:$0x3]
  %v324 = vld [vmem:[#allocation2 + $0x138] sm:$0xff]
  %v325 = vld [vmem:[#allocation2 + $0x140] sm:$0xff]
  %v326 = vld [vmem:[#allocation2 + $0x148] sm:$0x3]
  %v327 = vld [vmem:[#allocation2 + $0x150] sm:$0xff]
  %v328 = vld [vmem:[#allocation2 + $0x158] sm:$0xff]
  %v329 = vld [vmem:[#allocation2 + $0x160] sm:$0x3]
  %v330 = vld [vmem:[#allocation2 + $0x168] sm:$0xff]
  %v331 = vld [vmem:[#allocation2 + $0x170] sm:$0xff]
  %v332 = vld [vmem:[#allocation2 + $0x178] sm:$0x3]
  %v333 = vld [vmem:[#allocation2 + $0x180] sm:$0xff]
  %v334 = vld [vmem:[#allocation2 + $0x188] sm:$0xff]
  %v335 = vld [vmem:[#allocation2 + $0x190] sm:$0x3]
  %v336 = vld [vmem:[#allocation2 + $0x198] sm:$0xff]
  %v337 = vld [vmem:[#allocation2 + $0x1a0] sm:$0xff]
  %v338 = vld [vmem:[#allocation2 + $0x1a8] sm:$0x3]
  %v339 = vld [vmem:[#allocation2 + $0x1b0] sm:$0xff]
  %v340 = vld [vmem:[#allocation2 + $0x1b8] sm:$0xff]
  %v341 = vld [vmem:[#allocation2 + $0x1c0] sm:$0x3]
  %v342 = vld [vmem:[#allocation2 + $0x1c8] sm:$0xff]
  %v343 = vld [vmem:[#allocation2 + $0x1d0] sm:$0xff]
  %v344 = vld [vmem:[#allocation2 + $0x1d8] sm:$0x3]
  %v345 = vld [vmem:[#allocation2 + $0x1e0] sm:$0xff]
  %v346 = vld [vmem:[#allocation2 + $0x1e8] sm:$0xff]
  %v347 = vld [vmem:[#allocation2 + $0x1f0] sm:$0x3]
  %v348 = vld [vmem:[#allocation2 + $0x1f8] sm:$0xff]
  %v349 = vld [vmem:[#allocation2 + $0x200] sm:$0xff]
  %v350 = vld [vmem:[#allocation2 + $0x208] sm:$0x3]
  %v351 = vld [vmem:[#allocation2 + $0x210] sm:$0xff]
  %v352 = vld [vmem:[#allocation2 + $0x218] sm:$0xff]
  %v353 = vld [vmem:[#allocation2 + $0x220] sm:$0x3]
  %v354 = vld [vmem:[#allocation2 + $0x228] sm:$0xff]
  %v355 = vld [vmem:[#allocation2 + $0x230] sm:$0xff]
  %v356 = vld [vmem:[#allocation2 + $0x238] sm:$0x3]
  %v357 = vld [vmem:[#allocation2 + $0x240] sm:$0xff]
  %v358 = vld [vmem:[#allocation2 + $0x248] sm:$0xff]
  %v359 = vld [vmem:[#allocation2 + $0x250] sm:$0x3]
  %v360 = vld [vmem:[#allocation2 + $0x258] sm:$0xff]
  %v361 = vld [vmem:[#allocation2 + $0x260] sm:$0xff]
  %v362 = vld [vmem:[#allocation2 + $0x268] sm:$0x3]
  %v363 = vld [vmem:[#allocation2 + $0x270] sm:$0xff]
  %v364 = vld [vmem:[#allocation2 + $0x278] sm:$0xff]
  %v365 = vld [vmem:[#allocation2 + $0x280] sm:$0x3]
  %v366 = vld [vmem:[#allocation2 + $0x288] sm:$0xff]
  %v367 = vld [vmem:[#allocation2 + $0x290] sm:$0xff]
  %v368 = vld [vmem:[#allocation2 + $0x298] sm:$0x3]
  %v369 = vld [vmem:[#allocation2 + $0x2a0] sm:$0xff]
  %v370 = vld [vmem:[#allocation2 + $0x2a8] sm:$0xff]
  %v371 = vld [vmem:[#allocation2 + $0x2b0] sm:$0x3]
  %v372 = vld [vmem:[#allocation2 + $0x2b8] sm:$0xff]
  %v373 = vld [vmem:[#allocation2 + $0x2c0] sm:$0xff]
  %v374 = vld [vmem:[#allocation2 + $0x2c8] sm:$0x3]
  %v375 = vld [vmem:[#allocation2 + $0x2d0] sm:$0xff]
  %v376 = vld [vmem:[#allocation2 + $0x2d8] sm:$0xff]
  %v377 = vld [vmem:[#allocation2 + $0x2e0] sm:$0x3]
  %v378 = vld [vmem:[#allocation2 + $0x2e8] sm:$0xff]
  %v379 = vld [vmem:[#allocation2 + $0x2f0] sm:$0xff]
  %v380 = vld [vmem:[#allocation2 + $0x2f8] sm:$0x3]
  %v381 = vld [vmem:[#allocation2 + $0x300] sm:$0xff]
  %v382 = vld [vmem:[#allocation2 + $0x308] sm:$0xff]
  %v383 = vld [vmem:[#allocation2 + $0x310] sm:$0x3]
  %v384 = vld [vmem:[#allocation2 + $0x318] sm:$0xff]
  %v385 = vld [vmem:[#allocation2 + $0x320] sm:$0xff]
  %v386 = vld [vmem:[#allocation2 + $0x328] sm:$0x3]
  %v387 = vld [vmem:[#allocation2 + $0x330] sm:$0xff]
  %v388 = vld [vmem:[#allocation2 + $0x338] sm:$0xff]
  %v389 = vld [vmem:[#allocation2 + $0x340] sm:$0x3]
  %v390 = vld [vmem:[#allocation2 + $0x348] sm:$0xff]
  %v391 = vld [vmem:[#allocation2 + $0x350] sm:$0xff]
  %v392 = vld [vmem:[#allocation2 + $0x358] sm:$0x3]
  %v393 = vpack.c.bf16 %v286, %v285
  %v394 = vpack.c.bf16 %v289, %v288
  %v395 = vpack.c.bf16 %v292, %v291
  %v396 = vpack.c.bf16 %v295, %v294
  %v397 = vpack.c.bf16 %v298, %v297
  %v398 = vpack.c.bf16 %v301, %v300
  %v399 = vpack.c.bf16 %v304, %v303
  %v400 = vpack.c.bf16 %v307, %v306
  %v401 = vpack.c.bf16 %v310, %v309
  %v402 = vpack.c.bf16 %v313, %v312
  %v403 = vpack.c.bf16 %v316, %v315
  %v404 = vpack.c.bf16 %v319, %v318
  %v405 = vpack.c.bf16 %v322, %v321
  %v406 = vpack.c.bf16 %v325, %v324
  %v407 = vpack.c.bf16 %v328, %v327
  %v408 = vpack.c.bf16 %v331, %v330
  %v409 = vpack.c.bf16 %v340, %v339
  %v410 = vpack.c.bf16 %v343, %v342
  %v411 = vpack.c.bf16 %v346, %v345
  %v412 = vpack.c.bf16 %v349, %v348
  %v413 = vpack.c.bf16 %v352, %v351
  %v414 = vpack.c.bf16 %v355, %v354
  %v415 = vpack.c.bf16 %v358, %v357
  %v416 = vpack.c.bf16 %v361, %v360
  %v417 = vpack.c.bf16 %v364, %v363
  %v418 = vpack.c.bf16 %v367, %v366
  %v419 = vpack.c.bf16 %v370, %v369
  %v420 = vpack.c.bf16 %v373, %v372
  %v421 = vpack.c.bf16 %v376, %v375
  %v422 = vpack.c.bf16 %v379, %v378
  %v423 = vpack.c.bf16 %v382, %v381
  %v424 = vpack.c.bf16 %v385, %v384
  %425 = vst.msk [vmem:[#allocation3] sm:$0xff] %vm45, %v393
  %426 = vst.msk [vmem:[#allocation3 + $0x18] sm:$0xff] %vm45, %v394
  %427 = vst.msk [vmem:[#allocation3 + $0x30] sm:$0xff] %vm45, %v395
  %428 = vst.msk [vmem:[#allocation3 + $0x48] sm:$0xff] %vm45, %v396
  %429 = vst.msk [vmem:[#allocation3 + $0x60] sm:$0xff] %vm45, %v397
  %430 = vst.msk [vmem:[#allocation3 + $0x78] sm:$0xff] %vm45, %v398
  %431 = vst.msk [vmem:[#allocation3 + $0x90] sm:$0xff] %vm45, %v399
  %432 = vst.msk [vmem:[#allocation3 + $0xa8] sm:$0xff] %vm45, %v400
  %433 = vst.msk [vmem:[#allocation3 + $0xc0] sm:$0xff] %vm45, %v401
  %434 = vst.msk [vmem:[#allocation3 + $0xd8] sm:$0xff] %vm45, %v402
  %435 = vst.msk [vmem:[#allocation3 + $0xf0] sm:$0xff] %vm45, %v403
  %436 = vst.msk [vmem:[#allocation3 + $0x108] sm:$0xff] %vm45, %v404
  %437 = vst.msk [vmem:[#allocation3 + $0x120] sm:$0xff] %vm45, %v405
  %438 = vst.msk [vmem:[#allocation3 + $0x138] sm:$0xff] %vm45, %v406
  %439 = vst.msk [vmem:[#allocation3 + $0x150] sm:$0xff] %vm45, %v407
  %440 = vst.msk [vmem:[#allocation3 + $0x168] sm:$0xff] %vm45, %v408
  %441 = vst.msk [vmem:[#allocation3 + $0x180] sm:$0xff] %vm45, %v409
  %442 = vst.msk [vmem:[#allocation3 + $0x198] sm:$0xff] %vm45, %v410
  %443 = vst.msk [vmem:[#allocation3 + $0x1b0] sm:$0xff] %vm45, %v411
  %444 = vst.msk [vmem:[#allocation3 + $0x1c8] sm:$0xff] %vm45, %v412
  %445 = vst.msk [vmem:[#allocation3 + $0x1e0] sm:$0xff] %vm45, %v413
  %446 = vst.msk [vmem:[#allocation3 + $0x1f8] sm:$0xff] %vm45, %v414
  %447 = vst.msk [vmem:[#allocation3 + $0x210] sm:$0xff] %vm45, %v415
  %448 = vst.msk [vmem:[#allocation3 + $0x228] sm:$0xff] %vm45, %v416
  %449 = vst.msk [vmem:[#allocation3 + $0x240] sm:$0xff] %vm45, %v417
  %450 = vst.msk [vmem:[#allocation3 + $0x258] sm:$0xff] %vm45, %v418
  %451 = vst.msk [vmem:[#allocation3 + $0x270] sm:$0xff] %vm45, %v419
  %452 = vst.msk [vmem:[#allocation3 + $0x288] sm:$0xff] %vm45, %v420
  %453 = vst.msk [vmem:[#allocation3 + $0x2a0] sm:$0xff] %vm45, %v421
  %454 = vst.msk [vmem:[#allocation3 + $0x2b8] sm:$0xff] %vm45, %v422
  %455 = vst.msk [vmem:[#allocation3 + $0x2d0] sm:$0xff] %vm45, %v423
  %456 = vst.msk [vmem:[#allocation3 + $0x2e8] sm:$0xff] %vm45, %v424
  %vm553 = vcmask 1046528
  %v554 = vrot.slane %v285, 1
  %v555 = vrot.slane %v286, 1
  %v556 = vsel %vm553, %v554, %v555
  %v557 = vrot.slane %v287, 1
  %v558 = vsel %vm553, %v555, %v557
  %v559 = vrot.slane %v288, 1
  %v560 = vrot.slane %v289, 1
  %v561 = vsel %vm553, %v559, %v560
  %v562 = vrot.slane %v290, 1
  %v563 = vsel %vm553, %v560, %v562
  %v564 = vrot.slane %v291, 1
  %v565 = vrot.slane %v292, 1
  %v566 = vsel %vm553, %v564, %v565
  %v567 = vrot.slane %v293, 1
  %v568 = vsel %vm553, %v565, %v567
  %v569 = vrot.slane %v294, 1
  %v570 = vrot.slane %v295, 1
  %v571 = vsel %vm553, %v569, %v570
  %v572 = vrot.slane %v296, 1
  %v573 = vsel %vm553, %v570, %v572
  %v574 = vrot.slane %v297, 1
  %v575 = vrot.slane %v298, 1
  %v576 = vsel %vm553, %v574, %v575
  %v577 = vrot.slane %v299, 1
  %v578 = vsel %vm553, %v575, %v577
  %v579 = vrot.slane %v300, 1
  %v580 = vrot.slane %v301, 1
  %v581 = vsel %vm553, %v579, %v580
  %v582 = vrot.slane %v302, 1
  %v583 = vsel %vm553, %v580, %v582
  %v584 = vrot.slane %v303, 1
  %v585 = vrot.slane %v304, 1
  %v586 = vsel %vm553, %v584, %v585
  %v587 = vrot.slane %v305, 1
  %v588 = vsel %vm553, %v585, %v587
  %v589 = vrot.slane %v306, 1
  %v590 = vrot.slane %v307, 1
  %v591 = vsel %vm553, %v589, %v590
  %v592 = vrot.slane %v308, 1
  %v593 = vsel %vm553, %v590, %v592
  %v594 = vrot.slane %v309, 1
  %v595 = vrot.slane %v310, 1
  %v596 = vsel %vm553, %v594, %v595
  %v597 = vrot.slane %v311, 1
  %v598 = vsel %vm553, %v595, %v597
  %v599 = vrot.slane %v312, 1
  %v600 = vrot.slane %v313, 1
  %v601 = vsel %vm553, %v599, %v600
  %v602 = vrot.slane %v314, 1
  %v603 = vsel %vm553, %v600, %v602
  %v604 = vrot.slane %v315, 1
  %v605 = vrot.slane %v316, 1
  %v606 = vsel %vm553, %v604, %v605
  %v607 = vrot.slane %v317, 1
  %v608 = vsel %vm553, %v605, %v607
  %v609 = vrot.slane %v318, 1
  %v610 = vrot.slane %v319, 1
  %v611 = vsel %vm553, %v609, %v610
  %v612 = vrot.slane %v320, 1
  %v613 = vsel %vm553, %v610, %v612
  %v614 = vrot.slane %v321, 1
  %v615 = vrot.slane %v322, 1
  %v616 = vsel %vm553, %v614, %v615
  %v617 = vrot.slane %v323, 1
  %v618 = vsel %vm553, %v615, %v617
  %v619 = vrot.slane %v324, 1
  %v620 = vrot.slane %v325, 1
  %v621 = vsel %vm553, %v619, %v620
  %v622 = vrot.slane %v326, 1
  %v623 = vsel %vm553, %v620, %v622
  %v624 = vrot.slane %v327, 1
  %v625 = vrot.slane %v328, 1
  %v626 = vsel %vm553, %v624, %v625
  %v627 = vrot.slane %v329, 1
  %v628 = vsel %vm553, %v625, %v627
  %v629 = vrot.slane %v330, 1
  %v630 = vrot.slane %v331, 1
  %v631 = vsel %vm553, %v629, %v630
  %v632 = vrot.slane %v332, 1
  %v633 = vsel %vm553, %v630, %v632
  %v634 = vrot.slane %v339, 1
  %v635 = vrot.slane %v340, 1
  %v636 = vsel %vm553, %v634, %v635
  %v637 = vrot.slane %v341, 1
  %v638 = vsel %vm553, %v635, %v637
  %v639 = vrot.slane %v342, 1
  %v640 = vrot.slane %v343, 1
  %v641 = vsel %vm553, %v639, %v640
  %v642 = vrot.slane %v344, 1
  %v643 = vsel %vm553, %v640, %v642
  %v644 = vrot.slane %v345, 1
  %v645 = vrot.slane %v346, 1
  %v646 = vsel %vm553, %v644, %v645
  %v647 = vrot.slane %v347, 1
  %v648 = vsel %vm553, %v645, %v647
  %v649 = vrot.slane %v348, 1
  %v650 = vrot.slane %v349, 1
  %v651 = vsel %vm553, %v649, %v650
  %v652 = vrot.slane %v350, 1
  %v653 = vsel %vm553, %v650, %v652
  %v654 = vrot.slane %v351, 1
  %v655 = vrot.slane %v352, 1
  %v656 = vsel %vm553, %v654, %v655
  %v657 = vrot.slane %v353, 1
  %v658 = vsel %vm553, %v655, %v657
  %v659 = vrot.slane %v354, 1
  %v660 = vrot.slane %v355, 1
  %v661 = vsel %vm553, %v659, %v660
  %v662 = vrot.slane %v356, 1
  %v663 = vsel %vm553, %v660, %v662
  %v664 = vrot.slane %v357, 1
  %v665 = vrot.slane %v358, 1
  %v666 = vsel %vm553, %v664, %v665
  %v667 = vrot.slane %v359, 1
  %v668 = vsel %vm553, %v665, %v667
  %v669 = vrot.slane %v360, 1
  %v670 = vrot.slane %v361, 1
  %v671 = vsel %vm553, %v669, %v670
  %v672 = vrot.slane %v362, 1
  %v673 = vsel %vm553, %v670, %v672
  %v674 = vrot.slane %v363, 1
  %v675 = vrot.slane %v364, 1
  %v676 = vsel %vm553, %v674, %v675
  %v677 = vrot.slane %v365, 1
  %v678 = vsel %vm553, %v675, %v677
  %v679 = vrot.slane %v366, 1
  %v680 = vrot.slane %v367, 1
  %v681 = vsel %vm553, %v679, %v680
  %v682 = vrot.slane %v368, 1
  %v683 = vsel %vm553, %v680, %v682
  %v684 = vrot.slane %v369, 1
  %v685 = vrot.slane %v370, 1
  %v686 = vsel %vm553, %v684, %v685
  %v687 = vrot.slane %v371, 1
  %v688 = vsel %vm553, %v685, %v687
  %v689 = vrot.slane %v372, 1
  %v690 = vrot.slane %v373, 1
  %v691 = vsel %vm553, %v689, %v690
  %v692 = vrot.slane %v374, 1
  %v693 = vsel %vm553, %v690, %v692
  %v694 = vrot.slane %v375, 1
  %v695 = vrot.slane %v376, 1
  %v696 = vsel %vm553, %v694, %v695
  %v697 = vrot.slane %v377, 1
  %v698 = vsel %vm553, %v695, %v697
  %v699 = vrot.slane %v378, 1
  %v700 = vrot.slane %v379, 1
  %v701 = vsel %vm553, %v699, %v700
  %v702 = vrot.slane %v380, 1
  %v703 = vsel %vm553, %v700, %v702
  %v704 = vrot.slane %v381, 1
  %v705 = vrot.slane %v382, 1
  %v706 = vsel %vm553, %v704, %v705
  %v707 = vrot.slane %v383, 1
  %v708 = vsel %vm553, %v705, %v707
  %v709 = vrot.slane %v384, 1
  %v710 = vrot.slane %v385, 1
  %v711 = vsel %vm553, %v709, %v710
  %v712 = vrot.slane %v386, 1
  %v713 = vsel %vm553, %v710, %v712
  %v778 = vpack.c.bf16 %v558, %v556
  %v779 = vpack.c.bf16 %v563, %v561
  %v780 = vpack.c.bf16 %v568, %v566
  %v781 = vpack.c.bf16 %v573, %v571
  %v782 = vpack.c.bf16 %v578, %v576
  %v783 = vpack.c.bf16 %v583, %v581
  %v784 = vpack.c.bf16 %v588, %v586
  %v785 = vpack.c.bf16 %v593, %v591
  %v786 = vpack.c.bf16 %v598, %v596
  %v787 = vpack.c.bf16 %v603, %v601
  %v788 = vpack.c.bf16 %v608, %v606
  %v789 = vpack.c.bf16 %v613, %v611
  %v790 = vpack.c.bf16 %v618, %v616
  %v791 = vpack.c.bf16 %v623, %v621
  %v792 = vpack.c.bf16 %v628, %v626
  %v793 = vpack.c.bf16 %v633, %v631
  %v794 = vpack.c.bf16 %v638, %v636
  %v795 = vpack.c.bf16 %v643, %v641
  %v796 = vpack.c.bf16 %v648, %v646
  %v797 = vpack.c.bf16 %v653, %v651
  %v798 = vpack.c.bf16 %v658, %v656
  %v799 = vpack.c.bf16 %v663, %v661
  %v800 = vpack.c.bf16 %v668, %v666
  %v801 = vpack.c.bf16 %v673, %v671
  %v802 = vpack.c.bf16 %v678, %v676
  %v803 = vpack.c.bf16 %v683, %v681
  %v804 = vpack.c.bf16 %v688, %v686
  %v805 = vpack.c.bf16 %v693, %v691
  %v806 = vpack.c.bf16 %v698, %v696
  %v807 = vpack.c.bf16 %v703, %v701
  %v808 = vpack.c.bf16 %v708, %v706
  %v809 = vpack.c.bf16 %v713, %v711
  %842 = vrot.lane.b32.xlu0 %v778, 32
  %v843 = vpop.permute.xlu0 %842
  %844 = vrot.lane.b32.xlu0 %v779, 32
  %v845 = vpop.permute.xlu0 %844
  %846 = vrot.lane.b32.xlu0 %v780, 32
  %v847 = vpop.permute.xlu0 %846
  %848 = vrot.lane.b32.xlu0 %v781, 32
  %v849 = vpop.permute.xlu0 %848
  %850 = vrot.lane.b32.xlu0 %v782, 32
  %v851 = vpop.permute.xlu0 %850
  %852 = vrot.lane.b32.xlu0 %v783, 32
  %v853 = vpop.permute.xlu0 %852
  %854 = vrot.lane.b32.xlu0 %v784, 32
  %v855 = vpop.permute.xlu0 %854
  %856 = vrot.lane.b32.xlu0 %v785, 32
  %v857 = vpop.permute.xlu0 %856
  %858 = vrot.lane.b32.xlu0 %v786, 32
  %v859 = vpop.permute.xlu0 %858
  %860 = vrot.lane.b32.xlu0 %v787, 32
  %v861 = vpop.permute.xlu0 %860
  %862 = vrot.lane.b32.xlu0 %v788, 32
  %v863 = vpop.permute.xlu0 %862
  %864 = vrot.lane.b32.xlu0 %v789, 32
  %v865 = vpop.permute.xlu0 %864
  %866 = vrot.lane.b32.xlu0 %v790, 32
  %v867 = vpop.permute.xlu0 %866
  %868 = vrot.lane.b32.xlu0 %v791, 32
  %v869 = vpop.permute.xlu0 %868
  %870 = vrot.lane.b32.xlu0 %v792, 32
  %v871 = vpop.permute.xlu0 %870
  %872 = vrot.lane.b32.xlu0 %v793, 32
  %v873 = vpop.permute.xlu0 %872
  %874 = vrot.lane.b32.xlu0 %v794, 32
  %v875 = vpop.permute.xlu0 %874
  %876 = vrot.lane.b32.xlu0 %v795, 32
  %v877 = vpop.permute.xlu0 %876
  %878 = vrot.lane.b32.xlu0 %v796, 32
  %v879 = vpop.permute.xlu0 %878
  %880 = vrot.lane.b32.xlu0 %v797, 32
  %v881 = vpop.permute.xlu0 %880
  %882 = vrot.lane.b32.xlu0 %v798, 32
  %v883 = vpop.permute.xlu0 %882
  %884 = vrot.lane.b32.xlu0 %v799, 32
  %v885 = vpop.permute.xlu0 %884
  %886 = vrot.lane.b32.xlu0 %v800, 32
  %v887 = vpop.permute.xlu0 %886
  %888 = vrot.lane.b32.xlu0 %v801, 32
  %v889 = vpop.permute.xlu0 %888
  %890 = vrot.lane.b32.xlu0 %v802, 32
  %v891 = vpop.permute.xlu0 %890
  %892 = vrot.lane.b32.xlu0 %v803, 32
  %v893 = vpop.permute.xlu0 %892
  %894 = vrot.lane.b32.xlu0 %v804, 32
  %v895 = vpop.permute.xlu0 %894
  %896 = vrot.lane.b32.xlu0 %v805, 32
  %v897 = vpop.permute.xlu0 %896
  %898 = vrot.lane.b32.xlu0 %v806, 32
  %v899 = vpop.permute.xlu0 %898
  %900 = vrot.lane.b32.xlu0 %v807, 32
  %v901 = vpop.permute.xlu0 %900
  %902 = vrot.lane.b32.xlu0 %v808, 32
  %v903 = vpop.permute.xlu0 %902
  %904 = vrot.lane.b32.xlu0 %v809, 32
  %v905 = vpop.permute.xlu0 %904
  %vm938 = vcmask 523520
  %939 = vst.msk [vmem:[#allocation3] sm:$0xff] %vm938, %v843
  %940 = vst.msk [vmem:[#allocation3 + $0x18] sm:$0xff] %vm938, %v845
  %941 = vst.msk [vmem:[#allocation3 + $0x30] sm:$0xff] %vm938, %v847
  %942 = vst.msk [vmem:[#allocation3 + $0x48] sm:$0xff] %vm938, %v849
  %943 = vst.msk [vmem:[#allocation3 + $0x60] sm:$0xff] %vm938, %v851
  %944 = vst.msk [vmem:[#allocation3 + $0x78] sm:$0xff] %vm938, %v853
  %945 = vst.msk [vmem:[#allocation3 + $0x90] sm:$0xff] %vm938, %v855
  %946 = vst.msk [vmem:[#allocation3 + $0xa8] sm:$0xff] %vm938, %v857
  %947 = vst.msk [vmem:[#allocation3 + $0xc0] sm:$0xff] %vm938, %v859
  %948 = vst.msk [vmem:[#allocation3 + $0xd8] sm:$0xff] %vm938, %v861
  %949 = vst.msk [vmem:[#allocation3 + $0xf0] sm:$0xff] %vm938, %v863
  %950 = vst.msk [vmem:[#allocation3 + $0x108] sm:$0xff] %vm938, %v865
  %951 = vst.msk [vmem:[#allocation3 + $0x120] sm:$0xff] %vm938, %v867
  %952 = vst.msk [vmem:[#allocation3 + $0x138] sm:$0xff] %vm938, %v869
  %953 = vst.msk [vmem:[#allocation3 + $0x150] sm:$0xff] %vm938, %v871
  %954 = vst.msk [vmem:[#allocation3 + $0x168] sm:$0xff] %vm938, %v873
  %955 = vst.msk [vmem:[#allocation3 + $0x180] sm:$0xff] %vm938, %v875
  %956 = vst.msk [vmem:[#allocation3 + $0x198] sm:$0xff] %vm938, %v877
  %957 = vst.msk [vmem:[#allocation3 + $0x1b0] sm:$0xff] %vm938, %v879
  %958 = vst.msk [vmem:[#allocation3 + $0x1c8] sm:$0xff] %vm938, %v881
  %959 = vst.msk [vmem:[#allocation3 + $0x1e0] sm:$0xff] %vm938, %v883
  %960 = vst.msk [vmem:[#allocation3 + $0x1f8] sm:$0xff] %vm938, %v885
  %961 = vst.msk [vmem:[#allocation3 + $0x210] sm:$0xff] %vm938, %v887
  %962 = vst.msk [vmem:[#allocation3 + $0x228] sm:$0xff] %vm938, %v889
  %963 = vst.msk [vmem:[#allocation3 + $0x240] sm:$0xff] %vm938, %v891
  %964 = vst.msk [vmem:[#allocation3 + $0x258] sm:$0xff] %vm938, %v893
  %965 = vst.msk [vmem:[#allocation3 + $0x270] sm:$0xff] %vm938, %v895
  %966 = vst.msk [vmem:[#allocation3 + $0x288] sm:$0xff] %vm938, %v897
  %967 = vst.msk [vmem:[#allocation3 + $0x2a0] sm:$0xff] %vm938, %v899
  %968 = vst.msk [vmem:[#allocation3 + $0x2b8] sm:$0xff] %vm938, %v901
  %969 = vst.msk [vmem:[#allocation3 + $0x2d0] sm:$0xff] %vm938, %v903
  %970 = vst.msk [vmem:[#allocation3 + $0x2e8] sm:$0xff] %vm938, %v905
  %vm971 = vcmask 1045504
  %v972 = vrot.slane %v285, 2
  %v973 = vrot.slane %v286, 2
  %v974 = vsel %vm971, %v972, %v973
  %v975 = vrot.slane %v287, 2
  %v976 = vsel %vm971, %v973, %v975
  %v977 = vrot.slane %v288, 2
  %v978 = vrot.slane %v289, 2
  %v979 = vsel %vm971, %v977, %v978
  %v980 = vrot.slane %v290, 2
  %v981 = vsel %vm971, %v978, %v980
  %v982 = vrot.slane %v291, 2
  %v983 = vrot.slane %v292, 2
  %v984 = vsel %vm971, %v982, %v983
  %v985 = vrot.slane %v293, 2
  %v986 = vsel %vm971, %v983, %v985
  %v987 = vrot.slane %v294, 2
  %v988 = vrot.slane %v295, 2
  %v989 = vsel %vm971, %v987, %v988
  %v990 = vrot.slane %v296, 2
  %v991 = vsel %vm971, %v988, %v990
  %v992 = vrot.slane %v297, 2
  %v993 = vrot.slane %v298, 2
  %v994 = vsel %vm971, %v992, %v993
  %v995 = vrot.slane %v299, 2
  %v996 = vsel %vm971, %v993, %v995
  %v997 = vrot.slane %v300, 2
  %v998 = vrot.slane %v301, 2
  %v999 = vsel %vm971, %v997, %v998
  %v1000 = vrot.slane %v302, 2
  %v1001 = vsel %vm971, %v998, %v1000
  %v1002 = vrot.slane %v303, 2
  %v1003 = vrot.slane %v304, 2
  %v1004 = vsel %vm971, %v1002, %v1003
  %v1005 = vrot.slane %v305, 2
  %v1006 = vsel %vm971, %v1003, %v1005
  %v1007 = vrot.slane %v306, 2
  %v1008 = vrot.slane %v307, 2
  %v1009 = vsel %vm971, %v1007, %v1008
  %v1010 = vrot.slane %v308, 2
  %v1011 = vsel %vm971, %v1008, %v1010
  %v1012 = vrot.slane %v309, 2
  %v1013 = vrot.slane %v310, 2
  %v1014 = vsel %vm971, %v1012, %v1013
  %v1015 = vrot.slane %v311, 2
  %v1016 = vsel %vm971, %v1013, %v1015
  %v1017 = vrot.slane %v312, 2
  %v1018 = vrot.slane %v313, 2
  %v1019 = vsel %vm971, %v1017, %v1018
  %v1020 = vrot.slane %v314, 2
  %v1021 = vsel %vm971, %v1018, %v1020
  %v1022 = vrot.slane %v315, 2
  %v1023 = vrot.slane %v316, 2
  %v1024 = vsel %vm971, %v1022, %v1023
  %v1025 = vrot.slane %v317, 2
  %v1026 = vsel %vm971, %v1023, %v1025
  %v1027 = vrot.slane %v318, 2
  %v1028 = vrot.slane %v319, 2
  %v1029 = vsel %vm971, %v1027, %v1028
  %v1030 = vrot.slane %v320, 2
  %v1031 = vsel %vm971, %v1028, %v1030
  %v1032 = vrot.slane %v321, 2
  %v1033 = vrot.slane %v322, 2
  %v1034 = vsel %vm971, %v1032, %v1033
  %v1035 = vrot.slane %v323, 2
  %v1036 = vsel %vm971, %v1033, %v1035
  %v1037 = vrot.slane %v324, 2
  %v1038 = vrot.slane %v325, 2
  %v1039 = vsel %vm971, %v1037, %v1038
  %v1040 = vrot.slane %v326, 2
  %v1041 = vsel %vm971, %v1038, %v1040
  %v1042 = vrot.slane %v327, 2
  %v1043 = vrot.slane %v328, 2
  %v1044 = vsel %vm971, %v1042, %v1043
  %v1045 = vrot.slane %v329, 2
  %v1046 = vsel %vm971, %v1043, %v1045
  %v1047 = vrot.slane %v330, 2
  %v1048 = vrot.slane %v331, 2
  %v1049 = vsel %vm971, %v1047, %v1048
  %v1050 = vrot.slane %v332, 2
  %v1051 = vsel %vm971, %v1048, %v1050
  %v1052 = vrot.slane %v339, 2
  %v1053 = vrot.slane %v340, 2
  %v1054 = vsel %vm971, %v1052, %v1053
  %v1055 = vrot.slane %v341, 2
  %v1056 = vsel %vm971, %v1053, %v1055
  %v1057 = vrot.slane %v342, 2
  %v1058 = vrot.slane %v343, 2
  %v1059 = vsel %vm971, %v1057, %v1058
  %v1060 = vrot.slane %v344, 2
  %v1061 = vsel %vm971, %v1058, %v1060
  %v1062 = vrot.slane %v345, 2
  %v1063 = vrot.slane %v346, 2
  %v1064 = vsel %vm971, %v1062, %v1063
  %v1065 = vrot.slane %v347, 2
  %v1066 = vsel %vm971, %v1063, %v1065
  %v1067 = vrot.slane %v348, 2
  %v1068 = vrot.slane %v349, 2
  %v1069 = vsel %vm971, %v1067, %v1068
  %v1070 = vrot.slane %v350, 2
  %v1071 = vsel %vm971, %v1068, %v1070
  %v1072 = vrot.slane %v351, 2
  %v1073 = vrot.slane %v352, 2
  %v1074 = vsel %vm971, %v1072, %v1073
  %v1075 = vrot.slane %v353, 2
  %v1076 = vsel %vm971, %v1073, %v1075
  %v1077 = vrot.slane %v354, 2
  %v1078 = vrot.slane %v355, 2
  %v1079 = vsel %vm971, %v1077, %v1078
  %v1080 = vrot.slane %v356, 2
  %v1081 = vsel %vm971, %v1078, %v1080
  %v1082 = vrot.slane %v357, 2
  %v1083 = vrot.slane %v358, 2
  %v1084 = vsel %vm971, %v1082, %v1083
  %v1085 = vrot.slane %v359, 2
  %v1086 = vsel %vm971, %v1083, %v1085
  %v1087 = vrot.slane %v360, 2
  %v1088 = vrot.slane %v361, 2
  %v1089 = vsel %vm971, %v1087, %v1088
  %v1090 = vrot.slane %v362, 2
  %v1091 = vsel %vm971, %v1088, %v1090
  %v1092 = vrot.slane %v363, 2
  %v1093 = vrot.slane %v364, 2
  %v1094 = vsel %vm971, %v1092, %v1093
  %v1095 = vrot.slane %v365, 2
  %v1096 = vsel %vm971, %v1093, %v1095
  %v1097 = vrot.slane %v366, 2
  %v1098 = vrot.slane %v367, 2
  %v1099 = vsel %vm971, %v1097, %v1098
  %v1100 = vrot.slane %v368, 2
  %v1101 = vsel %vm971, %v1098, %v1100
  %v1102 = vrot.slane %v369, 2
  %v1103 = vrot.slane %v370, 2
  %v1104 = vsel %vm971, %v1102, %v1103
  %v1105 = vrot.slane %v371, 2
  %v1106 = vsel %vm971, %v1103, %v1105
  %v1107 = vrot.slane %v372, 2
  %v1108 = vrot.slane %v373, 2
  %v1109 = vsel %vm971, %v1107, %v1108
  %v1110 = vrot.slane %v374, 2
  %v1111 = vsel %vm971, %v1108, %v1110
  %v1112 = vrot.slane %v375, 2
  %v1113 = vrot.slane %v376, 2
  %v1114 = vsel %vm971, %v1112, %v1113
  %v1115 = vrot.slane %v377, 2
  %v1116 = vsel %vm971, %v1113, %v1115
  %v1117 = vrot.slane %v378, 2
  %v1118 = vrot.slane %v379, 2
  %v1119 = vsel %vm971, %v1117, %v1118
  %v1120 = vrot.slane %v380, 2
  %v1121 = vsel %vm971, %v1118, %v1120
  %v1122 = vrot.slane %v381, 2
  %v1123 = vrot.slane %v382, 2
  %v1124 = vsel %vm971, %v1122, %v1123
  %v1125 = vrot.slane %v383, 2
  %v1126 = vsel %vm971, %v1123, %v1125
  %v1127 = vrot.slane %v384, 2
  %v1128 = vrot.slane %v385, 2
  %v1129 = vsel %vm971, %v1127, %v1128
  %v1130 = vrot.slane %v386, 2
  %v1131 = vsel %vm971, %v1128, %v1130
  %v1196 = vpack.c.bf16 %v976, %v974
  %v1197 = vpack.c.bf16 %v981, %v979
  %v1198 = vpack.c.bf16 %v986, %v984
  %v1199 = vpack.c.bf16 %v991, %v989
  %v1200 = vpack.c.bf16 %v996, %v994
  %v1201 = vpack.c.bf16 %v1001, %v999
  %v1202 = vpack.c.bf16 %v1006, %v1004
  %v1203 = vpack.c.bf16 %v1011, %v1009
  %v1204 = vpack.c.bf16 %v1016, %v1014
  %v1205 = vpack.c.bf16 %v1021, %v1019
  %v1206 = vpack.c.bf16 %v1026, %v1024
  %v1207 = vpack.c.bf16 %v1031, %v1029
  %v1208 = vpack.c.bf16 %v1036, %v1034
  %v1209 = vpack.c.bf16 %v1041, %v1039
  %v1210 = vpack.c.bf16 %v1046, %v1044
  %v1211 = vpack.c.bf16 %v1051, %v1049
  %v1212 = vpack.c.bf16 %v1056, %v1054
  %v1213 = vpack.c.bf16 %v1061, %v1059
  %v1214 = vpack.c.bf16 %v1066, %v1064
  %v1215 = vpack.c.bf16 %v1071, %v1069
  %v1216 = vpack.c.bf16 %v1076, %v1074
  %v1217 = vpack.c.bf16 %v1081, %v1079
  %v1218 = vpack.c.bf16 %v1086, %v1084
  %v1219 = vpack.c.bf16 %v1091, %v1089
  %v1220 = vpack.c.bf16 %v1096, %v1094
  %v1221 = vpack.c.bf16 %v1101, %v1099
  %v1222 = vpack.c.bf16 %v1106, %v1104
  %v1223 = vpack.c.bf16 %v1111, %v1109
  %v1224 = vpack.c.bf16 %v1116, %v1114
  %v1225 = vpack.c.bf16 %v1121, %v1119
  %v1226 = vpack.c.bf16 %v1126, %v1124
  %v1227 = vpack.c.bf16 %v1131, %v1129
  %1260 = vrot.lane.b32.xlu0 %v1196, 64
  %v1261 = vpop.permute.xlu0 %1260
  %1262 = vrot.lane.b32.xlu0 %v1197, 64
  %v1263 = vpop.permute.xlu0 %1262
  %1264 = vrot.lane.b32.xlu0 %v1198, 64
  %v1265 = vpop.permute.xlu0 %1264
  %1266 = vrot.lane.b32.xlu0 %v1199, 64
  %v1267 = vpop.permute.xlu0 %1266
  %1268 = vrot.lane.b32.xlu0 %v1200, 64
  %v1269 = vpop.permute.xlu0 %1268
  %1270 = vrot.lane.b32.xlu0 %v1201, 64
  %v1271 = vpop.permute.xlu0 %1270
  %1272 = vrot.lane.b32.xlu0 %v1202, 64
  %v1273 = vpop.permute.xlu0 %1272
  %1274 = vrot.lane.b32.xlu0 %v1203, 64
  %v1275 = vpop.permute.xlu0 %1274
  %1276 = vrot.lane.b32.xlu0 %v1204, 64
  %v1277 = vpop.permute.xlu0 %1276
  %1278 = vrot.lane.b32.xlu0 %v1205, 64
  %v1279 = vpop.permute.xlu0 %1278
  %1280 = vrot.lane.b32.xlu0 %v1206, 64
  %v1281 = vpop.permute.xlu0 %1280
  %1282 = vrot.lane.b32.xlu0 %v1207, 64
  %v1283 = vpop.permute.xlu0 %1282
  %1284 = vrot.lane.b32.xlu0 %v1208, 64
  %v1285 = vpop.permute.xlu0 %1284
  %1286 = vrot.lane.b32.xlu0 %v1209, 64
  %v1287 = vpop.permute.xlu0 %1286
  %1288 = vrot.lane.b32.xlu0 %v1210, 64
  %v1289 = vpop.permute.xlu0 %1288
  %1290 = vrot.lane.b32.xlu0 %v1211, 64
  %v1291 = vpop.permute.xlu0 %1290
  %1292 = vrot.lane.b32.xlu0 %v1212, 64
  %v1293 = vpop.permute.xlu0 %1292
  %1294 = vrot.lane.b32.xlu0 %v1213, 64
  %v1295 = vpop.permute.xlu0 %1294
  %1296 = vrot.lane.b32.xlu0 %v1214, 64
  %v1297 = vpop.permute.xlu0 %1296
  %1298 = vrot.lane.b32.xlu0 %v1215, 64
  %v1299 = vpop.permute.xlu0 %1298
  %1300 = vrot.lane.b32.xlu0 %v1216, 64
  %v1301 = vpop.permute.xlu0 %1300
  %1302 = vrot.lane.b32.xlu0 %v1217, 64
  %v1303 = vpop.permute.xlu0 %1302
  %1304 = vrot.lane.b32.xlu0 %v1218, 64
  %v1305 = vpop.permute.xlu0 %1304
  %1306 = vrot.lane.b32.xlu0 %v1219, 64
  %v1307 = vpop.permute.xlu0 %1306
  %1308 = vrot.lane.b32.xlu0 %v1220, 64
  %v1309 = vpop.permute.xlu0 %1308
  %1310 = vrot.lane.b32.xlu0 %v1221, 64
  %v1311 = vpop.permute.xlu0 %1310
  %1312 = vrot.lane.b32.xlu0 %v1222, 64
  %v1313 = vpop.permute.xlu0 %1312
  %1314 = vrot.lane.b32.xlu0 %v1223, 64
  %v1315 = vpop.permute.xlu0 %1314
  %1316 = vrot.lane.b32.xlu0 %v1224, 64
  %v1317 = vpop.permute.xlu0 %1316
  %1318 = vrot.lane.b32.xlu0 %v1225, 64
  %v1319 = vpop.permute.xlu0 %1318
  %1320 = vrot.lane.b32.xlu0 %v1226, 64
  %v1321 = vpop.permute.xlu0 %1320
  %1322 = vrot.lane.b32.xlu0 %v1227, 64
  %v1323 = vpop.permute.xlu0 %1322
  %vm1356 = vcmask 785920
  %1357 = vst.msk [vmem:[#allocation3] sm:$0xff] %vm1356, %v1261
  %1358 = vst.msk [vmem:[#allocation3 + $0x18] sm:$0xff] %vm1356, %v1263
  %1359 = vst.msk [vmem:[#allocation3 + $0x30] sm:$0xff] %vm1356, %v1265
  %1360 = vst.msk [vmem:[#allocation3 + $0x48] sm:$0xff] %vm1356, %v1267
  %1361 = vst.msk [vmem:[#allocation3 + $0x60] sm:$0xff] %vm1356, %v1269
  %1362 = vst.msk [vmem:[#allocation3 + $0x78] sm:$0xff] %vm1356, %v1271
  %1363 = vst.msk [vmem:[#allocation3 + $0x90] sm:$0xff] %vm1356, %v1273
  %1364 = vst.msk [vmem:[#allocation3 + $0xa8] sm:$0xff] %vm1356, %v1275
  %1365 = vst.msk [vmem:[#allocation3 + $0xc0] sm:$0xff] %vm1356, %v1277
  %1366 = vst.msk [vmem:[#allocation3 + $0xd8] sm:$0xff] %vm1356, %v1279
  %1367 = vst.msk [vmem:[#allocation3 + $0xf0] sm:$0xff] %vm1356, %v1281
  %1368 = vst.msk [vmem:[#allocation3 + $0x108] sm:$0xff] %vm1356, %v1283
  %1369 = vst.msk [vmem:[#allocation3 + $0x120] sm:$0xff] %vm1356, %v1285
  %1370 = vst.msk [vmem:[#allocation3 + $0x138] sm:$0xff] %vm1356, %v1287
  %1371 = vst.msk [vmem:[#allocation3 + $0x150] sm:$0xff] %vm1356, %v1289
  %1372 = vst.msk [vmem:[#allocation3 + $0x168] sm:$0xff] %vm1356, %v1291
  %1373 = vst.msk [vmem:[#allocation3 + $0x180] sm:$0xff] %vm1356, %v1293
  %1374 = vst.msk [vmem:[#allocation3 + $0x198] sm:$0xff] %vm1356, %v1295
  %1375 = vst.msk [vmem:[#allocation3 + $0x1b0] sm:$0xff] %vm1356, %v1297
  %1376 = vst.msk [vmem:[#allocation3 + $0x1c8] sm:$0xff] %vm1356, %v1299
  %1377 = vst.msk [vmem:[#allocation3 + $0x1e0] sm:$0xff] %vm1356, %v1301
  %1378 = vst.msk [vmem:[#allocation3 + $0x1f8] sm:$0xff] %vm1356, %v1303
  %1379 = vst.msk [vmem:[#allocation3 + $0x210] sm:$0xff] %vm1356, %v1305
  %1380 = vst.msk [vmem:[#allocation3 + $0x228] sm:$0xff] %vm1356, %v1307
  %1381 = vst.msk [vmem:[#allocation3 + $0x240] sm:$0xff] %vm1356, %v1309
  %1382 = vst.msk [vmem:[#allocation3 + $0x258] sm:$0xff] %vm1356, %v1311
  %1383 = vst.msk [vmem:[#allocation3 + $0x270] sm:$0xff] %vm1356, %v1313
  %1384 = vst.msk [vmem:[#allocation3 + $0x288] sm:$0xff] %vm1356, %v1315
  %1385 = vst.msk [vmem:[#allocation3 + $0x2a0] sm:$0xff] %vm1356, %v1317
  %1386 = vst.msk [vmem:[#allocation3 + $0x2b8] sm:$0xff] %vm1356, %v1319
  %1387 = vst.msk [vmem:[#allocation3 + $0x2d0] sm:$0xff] %vm1356, %v1321
  %1388 = vst.msk [vmem:[#allocation3 + $0x2e8] sm:$0xff] %vm1356, %v1323
  %v1389 = vpack.c.bf16 %v334, %v333
  %v1390 = vpack.c.bf16 %v388, %v387
  %1423 = vrot.lane.b32.xlu0 %v394, 96
  %v1424 = vpop.permute.xlu0 %1423
  %1425 = vrot.lane.b32.xlu0 %v395, 96
  %v1426 = vpop.permute.xlu0 %1425
  %1427 = vrot.lane.b32.xlu0 %v396, 96
  %v1428 = vpop.permute.xlu0 %1427
  %1429 = vrot.lane.b32.xlu0 %v397, 96
  %v1430 = vpop.permute.xlu0 %1429
  %1431 = vrot.lane.b32.xlu0 %v398, 96
  %v1432 = vpop.permute.xlu0 %1431
  %1433 = vrot.lane.b32.xlu0 %v399, 96
  %v1434 = vpop.permute.xlu0 %1433
  %1435 = vrot.lane.b32.xlu0 %v400, 96
  %v1436 = vpop.permute.xlu0 %1435
  %1437 = vrot.lane.b32.xlu0 %v401, 96
  %v1438 = vpop.permute.xlu0 %1437
  %1439 = vrot.lane.b32.xlu0 %v402, 96
  %v1440 = vpop.permute.xlu0 %1439
  %1441 = vrot.lane.b32.xlu0 %v403, 96
  %v1442 = vpop.permute.xlu0 %1441
  %1443 = vrot.lane.b32.xlu0 %v404, 96
  %v1444 = vpop.permute.xlu0 %1443
  %1445 = vrot.lane.b32.xlu0 %v405, 96
  %v1446 = vpop.permute.xlu0 %1445
  %1447 = vrot.lane.b32.xlu0 %v406, 96
  %v1448 = vpop.permute.xlu0 %1447
  %1449 = vrot.lane.b32.xlu0 %v407, 96
  %v1450 = vpop.permute.xlu0 %1449
  %1451 = vrot.lane.b32.xlu0 %v408, 96
  %v1452 = vpop.permute.xlu0 %1451
  %1453 = vrot.lane.b32.xlu0 %v1389, 96
  %v1454 = vpop.permute.xlu0 %1453
  %1455 = vrot.lane.b32.xlu0 %v410, 96
  %v1456 = vpop.permute.xlu0 %1455
  %1457 = vrot.lane.b32.xlu0 %v411, 96
  %v1458 = vpop.permute.xlu0 %1457
  %1459 = vrot.lane.b32.xlu0 %v412, 96
  %v1460 = vpop.permute.xlu0 %1459
  %1461 = vrot.lane.b32.xlu0 %v413, 96
  %v1462 = vpop.permute.xlu0 %1461
  %1463 = vrot.lane.b32.xlu0 %v414, 96
  %v1464 = vpop.permute.xlu0 %1463
  %1465 = vrot.lane.b32.xlu0 %v415, 96
  %v1466 = vpop.permute.xlu0 %1465
  %1467 = vrot.lane.b32.xlu0 %v416, 96
  %v1468 = vpop.permute.xlu0 %1467
  %1469 = vrot.lane.b32.xlu0 %v417, 96
  %v1470 = vpop.permute.xlu0 %1469
  %1471 = vrot.lane.b32.xlu0 %v418, 96
  %v1472 = vpop.permute.xlu0 %1471
  %1473 = vrot.lane.b32.xlu0 %v419, 96
  %v1474 = vpop.permute.xlu0 %1473
  %1475 = vrot.lane.b32.xlu0 %v420, 96
  %v1476 = vpop.permute.xlu0 %1475
  %1477 = vrot.lane.b32.xlu0 %v421, 96
  %v1478 = vpop.permute.xlu0 %1477
  %1479 = vrot.lane.b32.xlu0 %v422, 96
  %v1480 = vpop.permute.xlu0 %1479
  %1481 = vrot.lane.b32.xlu0 %v423, 96
  %v1482 = vpop.permute.xlu0 %1481
  %1483 = vrot.lane.b32.xlu0 %v424, 96
  %v1484 = vpop.permute.xlu0 %1483
  %1485 = vrot.lane.b32.xlu0 %v1390, 96
  %v1486 = vpop.permute.xlu0 %1485
  %vm1519 = vcmask 1048320
  %1520 = vst.msk [vmem:[#allocation3] sm:$0xff] %vm1519, %v1424
  %1521 = vst.msk [vmem:[#allocation3 + $0x18] sm:$0xff] %vm1519, %v1426
  %1522 = vst.msk [vmem:[#allocation3 + $0x30] sm:$0xff] %vm1519, %v1428
  %1523 = vst.msk [vmem:[#allocation3 + $0x48] sm:$0xff] %vm1519, %v1430
  %1524 = vst.msk [vmem:[#allocation3 + $0x60] sm:$0xff] %vm1519, %v1432
  %1525 = vst.msk [vmem:[#allocation3 + $0x78] sm:$0xff] %vm1519, %v1434
  %1526 = vst.msk [vmem:[#allocation3 + $0x90] sm:$0xff] %vm1519, %v1436
  %1527 = vst.msk [vmem:[#allocation3 + $0xa8] sm:$0xff] %vm1519, %v1438
  %1528 = vst.msk [vmem:[#allocation3 + $0xc0] sm:$0xff] %vm1519, %v1440
  %1529 = vst.msk [vmem:[#allocation3 + $0xd8] sm:$0xff] %vm1519, %v1442
  %1530 = vst.msk [vmem:[#allocation3 + $0xf0] sm:$0xff] %vm1519, %v1444
  %1531 = vst.msk [vmem:[#allocation3 + $0x108] sm:$0xff] %vm1519, %v1446
  %1532 = vst.msk [vmem:[#allocation3 + $0x120] sm:$0xff] %vm1519, %v1448
  %1533 = vst.msk [vmem:[#allocation3 + $0x138] sm:$0xff] %vm1519, %v1450
  %1534 = vst.msk [vmem:[#allocation3 + $0x150] sm:$0xff] %vm1519, %v1452
  %1535 = vst.msk [vmem:[#allocation3 + $0x168] sm:$0xff] %vm1519, %v1454
  %1536 = vst.msk [vmem:[#allocation3 + $0x180] sm:$0xff] %vm1519, %v1456
  %1537 = vst.msk [vmem:[#allocation3 + $0x198] sm:$0xff] %vm1519, %v1458
  %1538 = vst.msk [vmem:[#allocation3 + $0x1b0] sm:$0xff] %vm1519, %v1460
  %1539 = vst.msk [vmem:[#allocation3 + $0x1c8] sm:$0xff] %vm1519, %v1462
  %1540 = vst.msk [vmem:[#allocation3 + $0x1e0] sm:$0xff] %vm1519, %v1464
  %1541 = vst.msk [vmem:[#allocation3 + $0x1f8] sm:$0xff] %vm1519, %v1466
  %1542 = vst.msk [vmem:[#allocation3 + $0x210] sm:$0xff] %vm1519, %v1468
  %1543 = vst.msk [vmem:[#allocation3 + $0x228] sm:$0xff] %vm1519, %v1470
  %1544 = vst.msk [vmem:[#allocation3 + $0x240] sm:$0xff] %vm1519, %v1472
  %1545 = vst.msk [vmem:[#allocation3 + $0x258] sm:$0xff] %vm1519, %v1474
  %1546 = vst.msk [vmem:[#allocation3 + $0x270] sm:$0xff] %vm1519, %v1476
  %1547 = vst.msk [vmem:[#allocation3 + $0x288] sm:$0xff] %vm1519, %v1478
  %1548 = vst.msk [vmem:[#allocation3 + $0x2a0] sm:$0xff] %vm1519, %v1480
  %1549 = vst.msk [vmem:[#allocation3 + $0x2b8] sm:$0xff] %vm1519, %v1482
  %1550 = vst.msk [vmem:[#allocation3 + $0x2d0] sm:$0xff] %vm1519, %v1484
  %1551 = vst.msk [vmem:[#allocation3 + $0x2e8] sm:$0xff] %vm1519, %v1486
  %v1558 = vrot.slane %v333, 1
  %v1559 = vrot.slane %v334, 1
  %v1560 = vsel %vm553, %v1558, %v1559
  %v1561 = vrot.slane %v335, 1
  %v1562 = vsel %vm553, %v1559, %v1561
  %v1563 = vrot.slane %v387, 1
  %v1564 = vrot.slane %v388, 1
  %v1565 = vsel %vm553, %v1563, %v1564
  %v1566 = vrot.slane %v389, 1
  %v1567 = vsel %vm553, %v1564, %v1566
  %v1572 = vpack.c.bf16 %v1562, %v1560
  %v1573 = vpack.c.bf16 %v1567, %v1565
  %1574 = vst.msk [vmem:[#allocation3 + $0x8] sm:$0xff] %vm45, %v779
  %1575 = vst.msk [vmem:[#allocation3 + $0x20] sm:$0xff] %vm45, %v780
  %1576 = vst.msk [vmem:[#allocation3 + $0x38] sm:$0xff] %vm45, %v781
  %1577 = vst.msk [vmem:[#allocation3 + $0x50] sm:$0xff] %vm45, %v782
  %1578 = vst.msk [vmem:[#allocation3 + $0x68] sm:$0xff] %vm45, %v783
  %1579 = vst.msk [vmem:[#allocation3 + $0x80] sm:$0xff] %vm45, %v784
  %1580 = vst.msk [vmem:[#allocation3 + $0x98] sm:$0xff] %vm45, %v785
  %1581 = vst.msk [vmem:[#allocation3 + $0xb0] sm:$0xff] %vm45, %v786
  %1582 = vst.msk [vmem:[#allocation3 + $0xc8] sm:$0xff] %vm45, %v787
  %1583 = vst.msk [vmem:[#allocation3 + $0xe0] sm:$0xff] %vm45, %v788
  %1584 = vst.msk [vmem:[#allocation3 + $0xf8] sm:$0xff] %vm45, %v789
  %1585 = vst.msk [vmem:[#allocation3 + $0x110] sm:$0xff] %vm45, %v790
  %1586 = vst.msk [vmem:[#allocation3 + $0x128] sm:$0xff] %vm45, %v791
  %1587 = vst.msk [vmem:[#allocation3 + $0x140] sm:$0xff] %vm45, %v792
  %1588 = vst.msk [vmem:[#allocation3 + $0x158] sm:$0xff] %vm45, %v793
  %1589 = vst.msk [vmem:[#allocation3 + $0x170] sm:$0xff] %vm45, %v1572
  %1590 = vst.msk [vmem:[#allocation3 + $0x188] sm:$0xff] %vm45, %v795
  %1591 = vst.msk [vmem:[#allocation3 + $0x1a0] sm:$0xff] %vm45, %v796
  %1592 = vst.msk [vmem:[#allocation3 + $0x1b8] sm:$0xff] %vm45, %v797
  %1593 = vst.msk [vmem:[#allocation3 + $0x1d0] sm:$0xff] %vm45, %v798
  %1594 = vst.msk [vmem:[#allocation3 + $0x1e8] sm:$0xff] %vm45, %v799
  %1595 = vst.msk [vmem:[#allocation3 + $0x200] sm:$0xff] %vm45, %v800
  %1596 = vst.msk [vmem:[#allocation3 + $0x218] sm:$0xff] %vm45, %v801
  %1597 = vst.msk [vmem:[#allocation3 + $0x230] sm:$0xff] %vm45, %v802
  %1598 = vst.msk [vmem:[#allocation3 + $0x248] sm:$0xff] %vm45, %v803
  %1599 = vst.msk [vmem:[#allocation3 + $0x260] sm:$0xff] %vm45, %v804
  %1600 = vst.msk [vmem:[#allocation3 + $0x278] sm:$0xff] %vm45, %v805
  %1601 = vst.msk [vmem:[#allocation3 + $0x290] sm:$0xff] %vm45, %v806
  %1602 = vst.msk [vmem:[#allocation3 + $0x2a8] sm:$0xff] %vm45, %v807
  %1603 = vst.msk [vmem:[#allocation3 + $0x2c0] sm:$0xff] %vm45, %v808
  %1604 = vst.msk [vmem:[#allocation3 + $0x2d8] sm:$0xff] %vm45, %v809
  %1605 = vst.msk [vmem:[#allocation3 + $0x2f0] sm:$0xff] %vm45, %v1573
  %v1606 = vrot.slane %v333, 2
  %v1607 = vrot.slane %v334, 2
  %v1608 = vsel %vm971, %v1606, %v1607
  %v1609 = vrot.slane %v335, 2
  %v1610 = vsel %vm971, %v1607, %v1609
  %v1611 = vrot.slane %v387, 2
  %v1612 = vrot.slane %v388, 2
  %v1613 = vsel %vm971, %v1611, %v1612
  %v1614 = vrot.slane %v389, 2
  %v1615 = vsel %vm971, %v1612, %v1614
  %v1620 = vpack.c.bf16 %v1610, %v1608
  %v1621 = vpack.c.bf16 %v1615, %v1613
  %1624 = vrot.lane.b32.xlu0 %v1197, 32
  %v1625 = vpop.permute.xlu0 %1624
  %1626 = vrot.lane.b32.xlu0 %v1198, 32
  %v1627 = vpop.permute.xlu0 %1626
  %1628 = vrot.lane.b32.xlu0 %v1199, 32
  %v1629 = vpop.permute.xlu0 %1628
  %1630 = vrot.lane.b32.xlu0 %v1200, 32
  %v1631 = vpop.permute.xlu0 %1630
  %1632 = vrot.lane.b32.xlu0 %v1201, 32
  %v1633 = vpop.permute.xlu0 %1632
  %1634 = vrot.lane.b32.xlu0 %v1202, 32
  %v1635 = vpop.permute.xlu0 %1634
  %1636 = vrot.lane.b32.xlu0 %v1203, 32
  %v1637 = vpop.permute.xlu0 %1636
  %1638 = vrot.lane.b32.xlu0 %v1204, 32
  %v1639 = vpop.permute.xlu0 %1638
  %1640 = vrot.lane.b32.xlu0 %v1205, 32
  %v1641 = vpop.permute.xlu0 %1640
  %1642 = vrot.lane.b32.xlu0 %v1206, 32
  %v1643 = vpop.permute.xlu0 %1642
  %1644 = vrot.lane.b32.xlu0 %v1207, 32
  %v1645 = vpop.permute.xlu0 %1644
  %1646 = vrot.lane.b32.xlu0 %v1208, 32
  %v1647 = vpop.permute.xlu0 %1646
  %1648 = vrot.lane.b32.xlu0 %v1209, 32
  %v1649 = vpop.permute.xlu0 %1648
  %1650 = vrot.lane.b32.xlu0 %v1210, 32
  %v1651 = vpop.permute.xlu0 %1650
  %1652 = vrot.lane.b32.xlu0 %v1211, 32
  %v1653 = vpop.permute.xlu0 %1652
  %1654 = vrot.lane.b32.xlu0 %v1620, 32
  %v1655 = vpop.permute.xlu0 %1654
  %1656 = vrot.lane.b32.xlu0 %v1213, 32
  %v1657 = vpop.permute.xlu0 %1656
  %1658 = vrot.lane.b32.xlu0 %v1214, 32
  %v1659 = vpop.permute.xlu0 %1658
  %1660 = vrot.lane.b32.xlu0 %v1215, 32
  %v1661 = vpop.permute.xlu0 %1660
  %1662 = vrot.lane.b32.xlu0 %v1216, 32
  %v1663 = vpop.permute.xlu0 %1662
  %1664 = vrot.lane.b32.xlu0 %v1217, 32
  %v1665 = vpop.permute.xlu0 %1664
  %1666 = vrot.lane.b32.xlu0 %v1218, 32
  %v1667 = vpop.permute.xlu0 %1666
  %1668 = vrot.lane.b32.xlu0 %v1219, 32
  %v1669 = vpop.permute.xlu0 %1668
  %1670 = vrot.lane.b32.xlu0 %v1220, 32
  %v1671 = vpop.permute.xlu0 %1670
  %1672 = vrot.lane.b32.xlu0 %v1221, 32
  %v1673 = vpop.permute.xlu0 %1672
  %1674 = vrot.lane.b32.xlu0 %v1222, 32
  %v1675 = vpop.permute.xlu0 %1674
  %1676 = vrot.lane.b32.xlu0 %v1223, 32
  %v1677 = vpop.permute.xlu0 %1676
  %1678 = vrot.lane.b32.xlu0 %v1224, 32
  %v1679 = vpop.permute.xlu0 %1678
  %1680 = vrot.lane.b32.xlu0 %v1225, 32
  %v1681 = vpop.permute.xlu0 %1680
  %1682 = vrot.lane.b32.xlu0 %v1226, 32
  %v1683 = vpop.permute.xlu0 %1682
  %1684 = vrot.lane.b32.xlu0 %v1227, 32
  %v1685 = vpop.permute.xlu0 %1684
  %1686 = vrot.lane.b32.xlu0 %v1621, 32
  %v1687 = vpop.permute.xlu0 %1686
  %1720 = vst.msk [vmem:[#allocation3 + $0x8] sm:$0xff] %vm938, %v1625
  %1721 = vst.msk [vmem:[#allocation3 + $0x20] sm:$0xff] %vm938, %v1627
  %1722 = vst.msk [vmem:[#allocation3 + $0x38] sm:$0xff] %vm938, %v1629
  %1723 = vst.msk [vmem:[#allocation3 + $0x50] sm:$0xff] %vm938, %v1631
  %1724 = vst.msk [vmem:[#allocation3 + $0x68] sm:$0xff] %vm938, %v1633
  %1725 = vst.msk [vmem:[#allocation3 + $0x80] sm:$0xff] %vm938, %v1635
  %1726 = vst.msk [vmem:[#allocation3 + $0x98] sm:$0xff] %vm938, %v1637
  %1727 = vst.msk [vmem:[#allocation3 + $0xb0] sm:$0xff] %vm938, %v1639
  %1728 = vst.msk [vmem:[#allocation3 + $0xc8] sm:$0xff] %vm938, %v1641
  %1729 = vst.msk [vmem:[#allocation3 + $0xe0] sm:$0xff] %vm938, %v1643
  %1730 = vst.msk [vmem:[#allocation3 + $0xf8] sm:$0xff] %vm938, %v1645
  %1731 = vst.msk [vmem:[#allocation3 + $0x110] sm:$0xff] %vm938, %v1647
  %1732 = vst.msk [vmem:[#allocation3 + $0x128] sm:$0xff] %vm938, %v1649
  %1733 = vst.msk [vmem:[#allocation3 + $0x140] sm:$0xff] %vm938, %v1651
  %1734 = vst.msk [vmem:[#allocation3 + $0x158] sm:$0xff] %vm938, %v1653
  %1735 = vst.msk [vmem:[#allocation3 + $0x170] sm:$0xff] %vm938, %v1655
  %1736 = vst.msk [vmem:[#allocation3 + $0x188] sm:$0xff] %vm938, %v1657
  %1737 = vst.msk [vmem:[#allocation3 + $0x1a0] sm:$0xff] %vm938, %v1659
  %1738 = vst.msk [vmem:[#allocation3 + $0x1b8] sm:$0xff] %vm938, %v1661
  %1739 = vst.msk [vmem:[#allocation3 + $0x1d0] sm:$0xff] %vm938, %v1663
  %1740 = vst.msk [vmem:[#allocation3 + $0x1e8] sm:$0xff] %vm938, %v1665
  %1741 = vst.msk [vmem:[#allocation3 + $0x200] sm:$0xff] %vm938, %v1667
  %1742 = vst.msk [vmem:[#allocation3 + $0x218] sm:$0xff] %vm938, %v1669
  %1743 = vst.msk [vmem:[#allocation3 + $0x230] sm:$0xff] %vm938, %v1671
  %1744 = vst.msk [vmem:[#allocation3 + $0x248] sm:$0xff] %vm938, %v1673
  %1745 = vst.msk [vmem:[#allocation3 + $0x260] sm:$0xff] %vm938, %v1675
  %1746 = vst.msk [vmem:[#allocation3 + $0x278] sm:$0xff] %vm938, %v1677
  %1747 = vst.msk [vmem:[#allocation3 + $0x290] sm:$0xff] %vm938, %v1679
  %1748 = vst.msk [vmem:[#allocation3 + $0x2a8] sm:$0xff] %vm938, %v1681
  %1749 = vst.msk [vmem:[#allocation3 + $0x2c0] sm:$0xff] %vm938, %v1683
  %1750 = vst.msk [vmem:[#allocation3 + $0x2d8] sm:$0xff] %vm938, %v1685
  %1751 = vst.msk [vmem:[#allocation3 + $0x2f0] sm:$0xff] %vm938, %v1687
  %v1752 = vpack.c.bf16 %v337, %v336
  %v1753 = vpack.c.bf16 %v391, %v390
  %1756 = vrot.lane.b32.xlu0 %v395, 64
  %v1757 = vpop.permute.xlu0 %1756
  %1758 = vrot.lane.b32.xlu0 %v396, 64
  %v1759 = vpop.permute.xlu0 %1758
  %1760 = vrot.lane.b32.xlu0 %v397, 64
  %v1761 = vpop.permute.xlu0 %1760
  %1762 = vrot.lane.b32.xlu0 %v398, 64
  %v1763 = vpop.permute.xlu0 %1762
  %1764 = vrot.lane.b32.xlu0 %v399, 64
  %v1765 = vpop.permute.xlu0 %1764
  %1766 = vrot.lane.b32.xlu0 %v400, 64
  %v1767 = vpop.permute.xlu0 %1766
  %1768 = vrot.lane.b32.xlu0 %v401, 64
  %v1769 = vpop.permute.xlu0 %1768
  %1770 = vrot.lane.b32.xlu0 %v402, 64
  %v1771 = vpop.permute.xlu0 %1770
  %1772 = vrot.lane.b32.xlu0 %v403, 64
  %v1773 = vpop.permute.xlu0 %1772
  %1774 = vrot.lane.b32.xlu0 %v404, 64
  %v1775 = vpop.permute.xlu0 %1774
  %1776 = vrot.lane.b32.xlu0 %v405, 64
  %v1777 = vpop.permute.xlu0 %1776
  %1778 = vrot.lane.b32.xlu0 %v406, 64
  %v1779 = vpop.permute.xlu0 %1778
  %1780 = vrot.lane.b32.xlu0 %v407, 64
  %v1781 = vpop.permute.xlu0 %1780
  %1782 = vrot.lane.b32.xlu0 %v408, 64
  %v1783 = vpop.permute.xlu0 %1782
  %1784 = vrot.lane.b32.xlu0 %v1389, 64
  %v1785 = vpop.permute.xlu0 %1784
  %1786 = vrot.lane.b32.xlu0 %v1752, 64
  %v1787 = vpop.permute.xlu0 %1786
  %1788 = vrot.lane.b32.xlu0 %v411, 64
  %v1789 = vpop.permute.xlu0 %1788
  %1790 = vrot.lane.b32.xlu0 %v412, 64
  %v1791 = vpop.permute.xlu0 %1790
  %1792 = vrot.lane.b32.xlu0 %v413, 64
  %v1793 = vpop.permute.xlu0 %1792
  %1794 = vrot.lane.b32.xlu0 %v414, 64
  %v1795 = vpop.permute.xlu0 %1794
  %1796 = vrot.lane.b32.xlu0 %v415, 64
  %v1797 = vpop.permute.xlu0 %1796
  %1798 = vrot.lane.b32.xlu0 %v416, 64
  %v1799 = vpop.permute.xlu0 %1798
  %1800 = vrot.lane.b32.xlu0 %v417, 64
  %v1801 = vpop.permute.xlu0 %1800
  %1802 = vrot.lane.b32.xlu0 %v418, 64
  %v1803 = vpop.permute.xlu0 %1802
  %1804 = vrot.lane.b32.xlu0 %v419, 64
  %v1805 = vpop.permute.xlu0 %1804
  %1806 = vrot.lane.b32.xlu0 %v420, 64
  %v1807 = vpop.permute.xlu0 %1806
  %1808 = vrot.lane.b32.xlu0 %v421, 64
  %v1809 = vpop.permute.xlu0 %1808
  %1810 = vrot.lane.b32.xlu0 %v422, 64
  %v1811 = vpop.permute.xlu0 %1810
  %1812 = vrot.lane.b32.xlu0 %v423, 64
  %v1813 = vpop.permute.xlu0 %1812
  %1814 = vrot.lane.b32.xlu0 %v424, 64
  %v1815 = vpop.permute.xlu0 %1814
  %1816 = vrot.lane.b32.xlu0 %v1390, 64
  %v1817 = vpop.permute.xlu0 %1816
  %1818 = vrot.lane.b32.xlu0 %v1753, 64
  %v1819 = vpop.permute.xlu0 %1818
  %1852 = vst.msk [vmem:[#allocation3 + $0x8] sm:$0xff] %vm1356, %v1757
  %1853 = vst.msk [vmem:[#allocation3 + $0x20] sm:$0xff] %vm1356, %v1759
  %1854 = vst.msk [vmem:[#allocation3 + $0x38] sm:$0xff] %vm1356, %v1761
  %1855 = vst.msk [vmem:[#allocation3 + $0x50] sm:$0xff] %vm1356, %v1763
  %1856 = vst.msk [vmem:[#allocation3 + $0x68] sm:$0xff] %vm1356, %v1765
  %1857 = vst.msk [vmem:[#allocation3 + $0x80] sm:$0xff] %vm1356, %v1767
  %1858 = vst.msk [vmem:[#allocation3 + $0x98] sm:$0xff] %vm1356, %v1769
  %1859 = vst.msk [vmem:[#allocation3 + $0xb0] sm:$0xff] %vm1356, %v1771
  %1860 = vst.msk [vmem:[#allocation3 + $0xc8] sm:$0xff] %vm1356, %v1773
  %1861 = vst.msk [vmem:[#allocation3 + $0xe0] sm:$0xff] %vm1356, %v1775
  %1862 = vst.msk [vmem:[#allocation3 + $0xf8] sm:$0xff] %vm1356, %v1777
  %1863 = vst.msk [vmem:[#allocation3 + $0x110] sm:$0xff] %vm1356, %v1779
  %1864 = vst.msk [vmem:[#allocation3 + $0x128] sm:$0xff] %vm1356, %v1781
  %1865 = vst.msk [vmem:[#allocation3 + $0x140] sm:$0xff] %vm1356, %v1783
  %1866 = vst.msk [vmem:[#allocation3 + $0x158] sm:$0xff] %vm1356, %v1785
  %1867 = vst.msk [vmem:[#allocation3 + $0x170] sm:$0xff] %vm1356, %v1787
  %1868 = vst.msk [vmem:[#allocation3 + $0x188] sm:$0xff] %vm1356, %v1789
  %1869 = vst.msk [vmem:[#allocation3 + $0x1a0] sm:$0xff] %vm1356, %v1791
  %1870 = vst.msk [vmem:[#allocation3 + $0x1b8] sm:$0xff] %vm1356, %v1793
  %1871 = vst.msk [vmem:[#allocation3 + $0x1d0] sm:$0xff] %vm1356, %v1795
  %1872 = vst.msk [vmem:[#allocation3 + $0x1e8] sm:$0xff] %vm1356, %v1797
  %1873 = vst.msk [vmem:[#allocation3 + $0x200] sm:$0xff] %vm1356, %v1799
  %1874 = vst.msk [vmem:[#allocation3 + $0x218] sm:$0xff] %vm1356, %v1801
  %1875 = vst.msk [vmem:[#allocation3 + $0x230] sm:$0xff] %vm1356, %v1803
  %1876 = vst.msk [vmem:[#allocation3 + $0x248] sm:$0xff] %vm1356, %v1805
  %1877 = vst.msk [vmem:[#allocation3 + $0x260] sm:$0xff] %vm1356, %v1807
  %1878 = vst.msk [vmem:[#allocation3 + $0x278] sm:$0xff] %vm1356, %v1809
  %1879 = vst.msk [vmem:[#allocation3 + $0x290] sm:$0xff] %vm1356, %v1811
  %1880 = vst.msk [vmem:[#allocation3 + $0x2a8] sm:$0xff] %vm1356, %v1813
  %1881 = vst.msk [vmem:[#allocation3 + $0x2c0] sm:$0xff] %vm1356, %v1815
  %1882 = vst.msk [vmem:[#allocation3 + $0x2d8] sm:$0xff] %vm1356, %v1817
  %1883 = vst.msk [vmem:[#allocation3 + $0x2f0] sm:$0xff] %vm1356, %v1819
  %v1890 = vrot.slane %v336, 1
  %v1891 = vrot.slane %v337, 1
  %v1892 = vsel %vm553, %v1890, %v1891
  %v1893 = vrot.slane %v338, 1
  %v1894 = vsel %vm553, %v1891, %v1893
  %v1895 = vrot.slane %v390, 1
  %v1896 = vrot.slane %v391, 1
  %v1897 = vsel %vm553, %v1895, %v1896
  %v1898 = vrot.slane %v392, 1
  %v1899 = vsel %vm553, %v1896, %v1898
  %v1904 = vpack.c.bf16 %v1894, %v1892
  %v1905 = vpack.c.bf16 %v1899, %v1897
  %1910 = vrot.lane.b32.xlu0 %v780, 96
  %v1911 = vpop.permute.xlu0 %1910
  %1912 = vrot.lane.b32.xlu0 %v781, 96
  %v1913 = vpop.permute.xlu0 %1912
  %1914 = vrot.lane.b32.xlu0 %v782, 96
  %v1915 = vpop.permute.xlu0 %1914
  %1916 = vrot.lane.b32.xlu0 %v783, 96
  %v1917 = vpop.permute.xlu0 %1916
  %1918 = vrot.lane.b32.xlu0 %v784, 96
  %v1919 = vpop.permute.xlu0 %1918
  %1920 = vrot.lane.b32.xlu0 %v785, 96
  %v1921 = vpop.permute.xlu0 %1920
  %1922 = vrot.lane.b32.xlu0 %v786, 96
  %v1923 = vpop.permute.xlu0 %1922
  %1924 = vrot.lane.b32.xlu0 %v787, 96
  %v1925 = vpop.permute.xlu0 %1924
  %1926 = vrot.lane.b32.xlu0 %v788, 96
  %v1927 = vpop.permute.xlu0 %1926
  %1928 = vrot.lane.b32.xlu0 %v789, 96
  %v1929 = vpop.permute.xlu0 %1928
  %1930 = vrot.lane.b32.xlu0 %v790, 96
  %v1931 = vpop.permute.xlu0 %1930
  %1932 = vrot.lane.b32.xlu0 %v791, 96
  %v1933 = vpop.permute.xlu0 %1932
  %1934 = vrot.lane.b32.xlu0 %v792, 96
  %v1935 = vpop.permute.xlu0 %1934
  %1936 = vrot.lane.b32.xlu0 %v793, 96
  %v1937 = vpop.permute.xlu0 %1936
  %1938 = vrot.lane.b32.xlu0 %v1572, 96
  %v1939 = vpop.permute.xlu0 %1938
  %1940 = vrot.lane.b32.xlu0 %v1904, 96
  %v1941 = vpop.permute.xlu0 %1940
  %1942 = vrot.lane.b32.xlu0 %v796, 96
  %v1943 = vpop.permute.xlu0 %1942
  %1944 = vrot.lane.b32.xlu0 %v797, 96
  %v1945 = vpop.permute.xlu0 %1944
  %1946 = vrot.lane.b32.xlu0 %v798, 96
  %v1947 = vpop.permute.xlu0 %1946
  %1948 = vrot.lane.b32.xlu0 %v799, 96
  %v1949 = vpop.permute.xlu0 %1948
  %1950 = vrot.lane.b32.xlu0 %v800, 96
  %v1951 = vpop.permute.xlu0 %1950
  %1952 = vrot.lane.b32.xlu0 %v801, 96
  %v1953 = vpop.permute.xlu0 %1952
  %1954 = vrot.lane.b32.xlu0 %v802, 96
  %v1955 = vpop.permute.xlu0 %1954
  %1956 = vrot.lane.b32.xlu0 %v803, 96
  %v1957 = vpop.permute.xlu0 %1956
  %1958 = vrot.lane.b32.xlu0 %v804, 96
  %v1959 = vpop.permute.xlu0 %1958
  %1960 = vrot.lane.b32.xlu0 %v805, 96
  %v1961 = vpop.permute.xlu0 %1960
  %1962 = vrot.lane.b32.xlu0 %v806, 96
  %v1963 = vpop.permute.xlu0 %1962
  %1964 = vrot.lane.b32.xlu0 %v807, 96
  %v1965 = vpop.permute.xlu0 %1964
  %1966 = vrot.lane.b32.xlu0 %v808, 96
  %v1967 = vpop.permute.xlu0 %1966
  %1968 = vrot.lane.b32.xlu0 %v809, 96
  %v1969 = vpop.permute.xlu0 %1968
  %1970 = vrot.lane.b32.xlu0 %v1573, 96
  %v1971 = vpop.permute.xlu0 %1970
  %1972 = vrot.lane.b32.xlu0 %v1905, 96
  %v1973 = vpop.permute.xlu0 %1972
  %2006 = vst.msk [vmem:[#allocation3 + $0x8] sm:$0xff] %vm1519, %v1911
  %2007 = vst.msk [vmem:[#allocation3 + $0x20] sm:$0xff] %vm1519, %v1913
  %2008 = vst.msk [vmem:[#allocation3 + $0x38] sm:$0xff] %vm1519, %v1915
  %2009 = vst.msk [vmem:[#allocation3 + $0x50] sm:$0xff] %vm1519, %v1917
  %2010 = vst.msk [vmem:[#allocation3 + $0x68] sm:$0xff] %vm1519, %v1919
  %2011 = vst.msk [vmem:[#allocation3 + $0x80] sm:$0xff] %vm1519, %v1921
  %2012 = vst.msk [vmem:[#allocation3 + $0x98] sm:$0xff] %vm1519, %v1923
  %2013 = vst.msk [vmem:[#allocation3 + $0xb0] sm:$0xff] %vm1519, %v1925
  %2014 = vst.msk [vmem:[#allocation3 + $0xc8] sm:$0xff] %vm1519, %v1927
  %2015 = vst.msk [vmem:[#allocation3 + $0xe0] sm:$0xff] %vm1519, %v1929
  %2016 = vst.msk [vmem:[#allocation3 + $0xf8] sm:$0xff] %vm1519, %v1931
  %2017 = vst.msk [vmem:[#allocation3 + $0x110] sm:$0xff] %vm1519, %v1933
  %2018 = vst.msk [vmem:[#allocation3 + $0x128] sm:$0xff] %vm1519, %v1935
  %2019 = vst.msk [vmem:[#allocation3 + $0x140] sm:$0xff] %vm1519, %v1937
  %2020 = vst.msk [vmem:[#allocation3 + $0x158] sm:$0xff] %vm1519, %v1939
  %2021 = vst.msk [vmem:[#allocation3 + $0x170] sm:$0xff] %vm1519, %v1941
  %2022 = vst.msk [vmem:[#allocation3 + $0x188] sm:$0xff] %vm1519, %v1943
  %2023 = vst.msk [vmem:[#allocation3 + $0x1a0] sm:$0xff] %vm1519, %v1945
  %2024 = vst.msk [vmem:[#allocation3 + $0x1b8] sm:$0xff] %vm1519, %v1947
  %2025 = vst.msk [vmem:[#allocation3 + $0x1d0] sm:$0xff] %vm1519, %v1949
  %2026 = vst.msk [vmem:[#allocation3 + $0x1e8] sm:$0xff] %vm1519, %v1951
  %2027 = vst.msk [vmem:[#allocation3 + $0x200] sm:$0xff] %vm1519, %v1953
  %2028 = vst.msk [vmem:[#allocation3 + $0x218] sm:$0xff] %vm1519, %v1955
  %2029 = vst.msk [vmem:[#allocation3 + $0x230] sm:$0xff] %vm1519, %v1957
  %2030 = vst.msk [vmem:[#allocation3 + $0x248] sm:$0xff] %vm1519, %v1959
  %2031 = vst.msk [vmem:[#allocation3 + $0x260] sm:$0xff] %vm1519, %v1961
  %2032 = vst.msk [vmem:[#allocation3 + $0x278] sm:$0xff] %vm1519, %v1963
  %2033 = vst.msk [vmem:[#allocation3 + $0x290] sm:$0xff] %vm1519, %v1965
  %2034 = vst.msk [vmem:[#allocation3 + $0x2a8] sm:$0xff] %vm1519, %v1967
  %2035 = vst.msk [vmem:[#allocation3 + $0x2c0] sm:$0xff] %vm1519, %v1969
  %2036 = vst.msk [vmem:[#allocation3 + $0x2d8] sm:$0xff] %vm1519, %v1971
  %2037 = vst.msk [vmem:[#allocation3 + $0x2f0] sm:$0xff] %vm1519, %v1973
  %v2038 = vrot.slane %v336, 2
  %v2039 = vrot.slane %v337, 2
  %v2040 = vsel %vm971, %v2038, %v2039
  %v2041 = vrot.slane %v338, 2
  %v2042 = vsel %vm971, %v2039, %v2041
  %v2043 = vrot.slane %v390, 2
  %v2044 = vrot.slane %v391, 2
  %v2045 = vsel %vm971, %v2043, %v2044
  %v2046 = vrot.slane %v392, 2
  %v2047 = vsel %vm971, %v2044, %v2046
  %v2052 = vpack.c.bf16 %v2042, %v2040
  %v2053 = vpack.c.bf16 %v2047, %v2045
  %2054 = vst.msk [vmem:[#allocation3 + $0x10] sm:$0xff] %vm45, %v1198
  %2055 = vst.msk [vmem:[#allocation3 + $0x28] sm:$0xff] %vm45, %v1199
  %2056 = vst.msk [vmem:[#allocation3 + $0x40] sm:$0xff] %vm45, %v1200
  %2057 = vst.msk [vmem:[#allocation3 + $0x58] sm:$0xff] %vm45, %v1201
  %2058 = vst.msk [vmem:[#allocation3 + $0x70] sm:$0xff] %vm45, %v1202
  %2059 = vst.msk [vmem:[#allocation3 + $0x88] sm:$0xff] %vm45, %v1203
  %2060 = vst.msk [vmem:[#allocation3 + $0xa0] sm:$0xff] %vm45, %v1204
  %2061 = vst.msk [vmem:[#allocation3 + $0xb8] sm:$0xff] %vm45, %v1205
  %2062 = vst.msk [vmem:[#allocation3 + $0xd0] sm:$0xff] %vm45, %v1206
  %2063 = vst.msk [vmem:[#allocation3 + $0xe8] sm:$0xff] %vm45, %v1207
  %2064 = vst.msk [vmem:[#allocation3 + $0x100] sm:$0xff] %vm45, %v1208
  %2065 = vst.msk [vmem:[#allocation3 + $0x118] sm:$0xff] %vm45, %v1209
  %2066 = vst.msk [vmem:[#allocation3 + $0x130] sm:$0xff] %vm45, %v1210
  %2067 = vst.msk [vmem:[#allocation3 + $0x148] sm:$0xff] %vm45, %v1211
  %2068 = vst.msk [vmem:[#allocation3 + $0x160] sm:$0xff] %vm45, %v1620
  %2069 = vst.msk [vmem:[#allocation3 + $0x178] sm:$0xff] %vm45, %v2052
  %2070 = vst.msk [vmem:[#allocation3 + $0x190] sm:$0xff] %vm45, %v1214
  %2071 = vst.msk [vmem:[#allocation3 + $0x1a8] sm:$0xff] %vm45, %v1215
  %2072 = vst.msk [vmem:[#allocation3 + $0x1c0] sm:$0xff] %vm45, %v1216
  %2073 = vst.msk [vmem:[#allocation3 + $0x1d8] sm:$0xff] %vm45, %v1217
  %2074 = vst.msk [vmem:[#allocation3 + $0x1f0] sm:$0xff] %vm45, %v1218
  %2075 = vst.msk [vmem:[#allocation3 + $0x208] sm:$0xff] %vm45, %v1219
  %2076 = vst.msk [vmem:[#allocation3 + $0x220] sm:$0xff] %vm45, %v1220
  %2077 = vst.msk [vmem:[#allocation3 + $0x238] sm:$0xff] %vm45, %v1221
  %2078 = vst.msk [vmem:[#allocation3 + $0x250] sm:$0xff] %vm45, %v1222
  %2079 = vst.msk [vmem:[#allocation3 + $0x268] sm:$0xff] %vm45, %v1223
  %2080 = vst.msk [vmem:[#allocation3 + $0x280] sm:$0xff] %vm45, %v1224
  %2081 = vst.msk [vmem:[#allocation3 + $0x298] sm:$0xff] %vm45, %v1225
  %2082 = vst.msk [vmem:[#allocation3 + $0x2b0] sm:$0xff] %vm45, %v1226
  %2083 = vst.msk [vmem:[#allocation3 + $0x2c8] sm:$0xff] %vm45, %v1227
  %2084 = vst.msk [vmem:[#allocation3 + $0x2e0] sm:$0xff] %vm45, %v1621
  %2085 = vst.msk [vmem:[#allocation3 + $0x2f8] sm:$0xff] %vm45, %v2053
  %v2086 = vld [vmem:[#allocation3] sm:$0xff]
  %v2087 = vld [vmem:[#allocation3 + $0x8] sm:$0xff]
  %v2088 = vld [vmem:[#allocation3 + $0x10] sm:$0xff]
  %v2089 = vld [vmem:[#allocation3 + $0x18] sm:$0xff]
  %v2090 = vld [vmem:[#allocation3 + $0x20] sm:$0xff]
  %v2091 = vld [vmem:[#allocation3 + $0x28] sm:$0xff]
  %v2092 = vld [vmem:[#allocation3 + $0x30] sm:$0xff]
  %v2093 = vld [vmem:[#allocation3 + $0x38] sm:$0xff]
  %v2094 = vld [vmem:[#allocation3 + $0x40] sm:$0xff]
  %v2095 = vld [vmem:[#allocation3 + $0x48] sm:$0xff]
  %v2096 = vld [vmem:[#allocation3 + $0x50] sm:$0xff]
  %v2097 = vld [vmem:[#allocation3 + $0x58] sm:$0xff]
  %v2098 = vld [vmem:[#allocation3 + $0x60] sm:$0xff]
  %v2099 = vld [vmem:[#allocation3 + $0x68] sm:$0xff]
  %v2100 = vld [vmem:[#allocation3 + $0x70] sm:$0xff]
  %v2101 = vld [vmem:[#allocation3 + $0x78] sm:$0xff]
  %v2102 = vld [vmem:[#allocation3 + $0x80] sm:$0xff]
  %v2103 = vld [vmem:[#allocation3 + $0x88] sm:$0xff]
  %v2104 = vld [vmem:[#allocation3 + $0x90] sm:$0xff]
  %v2105 = vld [vmem:[#allocation3 + $0x98] sm:$0xff]
  %v2106 = vld [vmem:[#allocation3 + $0xa0] sm:$0xff]
  %v2107 = vld [vmem:[#allocation3 + $0xa8] sm:$0xff]
  %v2108 = vld [vmem:[#allocation3 + $0xb0] sm:$0xff]
  %v2109 = vld [vmem:[#allocation3 + $0xb8] sm:$0xff]
  %v2110 = vld [vmem:[#allocation3 + $0xc0] sm:$0xff]
  %v2111 = vld [vmem:[#allocation3 + $0xc8] sm:$0xff]
  %v2112 = vld [vmem:[#allocation3 + $0xd0] sm:$0xff]
  %v2113 = vld [vmem:[#allocation3 + $0xd8] sm:$0xff]
  %v2114 = vld [vmem:[#allocation3 + $0xe0] sm:$0xff]
  %v2115 = vld [vmem:[#allocation3 + $0xe8] sm:$0xff]
  %v2116 = vld [vmem:[#allocation3 + $0xf0] sm:$0xff]
  %v2117 = vld [vmem:[#allocation3 + $0xf8] sm:$0xff]
  %v2118 = vld [vmem:[#allocation3 + $0x100] sm:$0xff]
  %v2119 = vld [vmem:[#allocation3 + $0x108] sm:$0xff]
  %v2120 = vld [vmem:[#allocation3 + $0x110] sm:$0xff]
  %v2121 = vld [vmem:[#allocation3 + $0x118] sm:$0xff]
  %v2122 = vld [vmem:[#allocation3 + $0x120] sm:$0xff]
  %v2123 = vld [vmem:[#allocation3 + $0x128] sm:$0xff]
  %v2124 = vld [vmem:[#allocation3 + $0x130] sm:$0xff]
  %v2125 = vld [vmem:[#allocation3 + $0x138] sm:$0xff]
  %v2126 = vld [vmem:[#allocation3 + $0x140] sm:$0xff]
  %v2127 = vld [vmem:[#allocation3 + $0x148] sm:$0xff]
  %v2128 = vld [vmem:[#allocation3 + $0x150] sm:$0xff]
  %v2129 = vld [vmem:[#allocation3 + $0x158] sm:$0xff]
  %v2130 = vld [vmem:[#allocation3 + $0x160] sm:$0xff]
  %v2131 = vld [vmem:[#allocation3 + $0x168] sm:$0xff]
  %v2132 = vld [vmem:[#allocation3 + $0x170] sm:$0xff]
  %v2133 = vld [vmem:[#allocation3 + $0x178] sm:$0xff]
  %v2134 = vld [vmem:[#allocation3 + $0x180] sm:$0xff]
  %v2135 = vld [vmem:[#allocation3 + $0x188] sm:$0xff]
  %v2136 = vld [vmem:[#allocation3 + $0x190] sm:$0xff]
  %v2137 = vld [vmem:[#allocation3 + $0x198] sm:$0xff]
  %v2138 = vld [vmem:[#allocation3 + $0x1a0] sm:$0xff]
  %v2139 = vld [vmem:[#allocation3 + $0x1a8] sm:$0xff]
  %v2140 = vld [vmem:[#allocation3 + $0x1b0] sm:$0xff]
  %v2141 = vld [vmem:[#allocation3 + $0x1b8] sm:$0xff]
  %v2142 = vld [vmem:[#allocation3 + $0x1c0] sm:$0xff]
  %v2143 = vld [vmem:[#allocation3 + $0x1c8] sm:$0xff]
  %v2144 = vld [vmem:[#allocation3 + $0x1d0] sm:$0xff]
  %v2145 = vld [vmem:[#allocation3 + $0x1d8] sm:$0xff]
  %v2146 = vld [vmem:[#allocation3 + $0x1e0] sm:$0xff]
  %v2147 = vld [vmem:[#allocation3 + $0x1e8] sm:$0xff]
  %v2148 = vld [vmem:[#allocation3 + $0x1f0] sm:$0xff]
  %v2149 = vld [vmem:[#allocation3 + $0x1f8] sm:$0xff]
  %v2150 = vld [vmem:[#allocation3 + $0x200] sm:$0xff]
  %v2151 = vld [vmem:[#allocation3 + $0x208] sm:$0xff]
  %v2152 = vld [vmem:[#allocation3 + $0x210] sm:$0xff]
  %v2153 = vld [vmem:[#allocation3 + $0x218] sm:$0xff]
  %v2154 = vld [vmem:[#allocation3 + $0x220] sm:$0xff]
  %v2155 = vld [vmem:[#allocation3 + $0x228] sm:$0xff]
  %v2156 = vld [vmem:[#allocation3 + $0x230] sm:$0xff]
  %v2157 = vld [vmem:[#allocation3 + $0x238] sm:$0xff]
  %v2158 = vld [vmem:[#allocation3 + $0x240] sm:$0xff]
  %v2159 = vld [vmem:[#allocation3 + $0x248] sm:$0xff]
  %v2160 = vld [vmem:[#allocation3 + $0x250] sm:$0xff]
  %v2161 = vld [vmem:[#allocation3 + $0x258] sm:$0xff]
  %v2162 = vld [vmem:[#allocation3 + $0x260] sm:$0xff]
  %v2163 = vld [vmem:[#allocation3 + $0x268] sm:$0xff]
  %v2164 = vld [vmem:[#allocation3 + $0x270] sm:$0xff]
  %v2165 = vld [vmem:[#allocation3 + $0x278] sm:$0xff]
  %v2166 = vld [vmem:[#allocation3 + $0x280] sm:$0xff]
  %v2167 = vld [vmem:[#allocation3 + $0x288] sm:$0xff]
  %v2168 = vld [vmem:[#allocation3 + $0x290] sm:$0xff]
  %v2169 = vld [vmem:[#allocation3 + $0x298] sm:$0xff]
  %v2170 = vld [vmem:[#allocation3 + $0x2a0] sm:$0xff]
  %v2171 = vld [vmem:[#allocation3 + $0x2a8] sm:$0xff]
  %v2172 = vld [vmem:[#allocation3 + $0x2b0] sm:$0xff]
  %v2173 = vld [vmem:[#allocation3 + $0x2b8] sm:$0xff]
  %v2174 = vld [vmem:[#allocation3 + $0x2c0] sm:$0xff]
  %v2175 = vld [vmem:[#allocation3 + $0x2c8] sm:$0xff]
  %v2176 = vld [vmem:[#allocation3 + $0x2d0] sm:$0xff]
  %v2177 = vld [vmem:[#allocation3 + $0x2d8] sm:$0xff]
  %v2178 = vld [vmem:[#allocation3 + $0x2e0] sm:$0xff]
  %v2179 = vld [vmem:[#allocation3 + $0x2e8] sm:$0xff]
  %v2180 = vld [vmem:[#allocation3 + $0x2f0] sm:$0xff]
  %v2181 = vld [vmem:[#allocation3 + $0x2f8] sm:$0xff]
  %v2182 = vld [vmem:[%s1] sm:$0xf]
  %v2183 = vld [vmem:[%s1 + $0x4] sm:$0xf]
  %v2184 = vld [vmem:[%s1 + $0x8] sm:$0xf]
  %v2185 = vld [vmem:[%s1 + $0xc] sm:$0xf]
  %v2186 = vld [vmem:[%s1 + $0x10] sm:$0xf]
  %v2187 = vld [vmem:[%s1 + $0x14] sm:$0xf]
  %v2188 = vld [vmem:[%s1 + $0x18] sm:$0xf]
  %v2189 = vld [vmem:[%s1 + $0x1c] sm:$0xf]
  %v2190 = vld [vmem:[%s1 + $0x20] sm:$0xf]
  %v2191 = vld [vmem:[%s1 + $0x24] sm:$0xf]
  %v2192 = vld [vmem:[%s1 + $0x28] sm:$0xf]
  %v2193 = vld [vmem:[%s1 + $0x2c] sm:$0xf]
  %v2194 = vld [vmem:[%s1 + $0x30] sm:$0xf]
  %v2195 = vld [vmem:[%s1 + $0x34] sm:$0xf]
  %v2196 = vld [vmem:[%s1 + $0x38] sm:$0xf]
  %v2197 = vld [vmem:[%s1 + $0x3c] sm:$0xf]
  %v2198 = vld [vmem:[%s1 + $0x40] sm:$0xf]
  %v2199 = vld [vmem:[%s1 + $0x44] sm:$0xf]
  %v2200 = vld [vmem:[%s1 + $0x48] sm:$0xf]
  %v2201 = vld [vmem:[%s1 + $0x4c] sm:$0xf]
  %v2202 = vld [vmem:[%s1 + $0x50] sm:$0xf]
  %v2203 = vld [vmem:[%s1 + $0x54] sm:$0xf]
  %v2204 = vld [vmem:[%s1 + $0x58] sm:$0xf]
  %v2205 = vld [vmem:[%s1 + $0x5c] sm:$0xf]
  %v2206 = vld [vmem:[%s1 + $0x60] sm:$0xf]
  %v2207 = vld [vmem:[%s1 + $0x64] sm:$0xf]
  %v2208 = vld [vmem:[%s1 + $0x68] sm:$0xf]
  %v2209 = vld [vmem:[%s1 + $0x6c] sm:$0xf]
  %v2210 = vld [vmem:[%s1 + $0x70] sm:$0xf]
  %v2211 = vld [vmem:[%s1 + $0x74] sm:$0xf]
  %v2212 = vld [vmem:[%s1 + $0x78] sm:$0xf]
  %v2213 = vld [vmem:[%s1 + $0x7c] sm:$0xf]
  %v2214 = vld [vmem:[%s1 + $0x80] sm:$0xf]
  %v2215 = vld [vmem:[%s1 + $0x84] sm:$0xf]
  %v2216 = vld [vmem:[%s1 + $0x88] sm:$0xf]
  %v2217 = vld [vmem:[%s1 + $0x8c] sm:$0xf]
  %v2218 = vld [vmem:[%s2] sm:$0x1]
  %v2220 = vlaneseq
  %v2221 = vshrl.u32 %v2220, 7
  %v2222 = vsub.s32 0, %v2221
  %v2223 = vrot.slane %v2218, %v2222
  %v2261 = vunpack.c.l.b16 %v2182
  %v2262 = vunpack.c.l.b16 %v2183
  %v2263 = vunpack.c.l.b16 %v2184
  %v2264 = vunpack.c.l.b16 %v2185
  %v2265 = vunpack.c.l.b16 %v2186
  %v2266 = vunpack.c.l.b16 %v2187
  %v2267 = vunpack.c.l.b16 %v2188
  %v2268 = vunpack.c.l.b16 %v2189
  %v2269 = vunpack.c.l.b16 %v2190
  %v2270 = vunpack.c.l.b16 %v2191
  %v2271 = vunpack.c.l.b16 %v2192
  %v2272 = vunpack.c.l.b16 %v2193
  %v2273 = vunpack.c.l.b16 %v2194
  %v2274 = vunpack.c.l.b16 %v2195
  %v2275 = vunpack.c.l.b16 %v2196
  %v2276 = vunpack.c.l.b16 %v2197
  %v2277 = vunpack.c.l.b16 %v2198
  %v2278 = vunpack.c.l.b16 %v2199
  %v2279 = vunpack.c.l.b16 %v2200
  %v2280 = vunpack.c.l.b16 %v2201
  %v2281 = vunpack.c.l.b16 %v2202
  %v2282 = vunpack.c.l.b16 %v2203
  %v2283 = vunpack.c.l.b16 %v2204
  %v2284 = vunpack.c.l.b16 %v2205
  %v2285 = vunpack.c.l.b16 %v2206
  %v2286 = vunpack.c.l.b16 %v2207
  %v2287 = vunpack.c.l.b16 %v2208
  %v2288 = vunpack.c.l.b16 %v2209
  %v2289 = vunpack.c.l.b16 %v2210
  %v2290 = vunpack.c.l.b16 %v2211
  %v2291 = vunpack.c.l.b16 %v2212
  %v2292 = vunpack.c.l.b16 %v2213
  %v2293 = vunpack.c.l.b16 %v2214
  %v2294 = vunpack.c.l.b16 %v2215
  %v2295 = vunpack.c.l.b16 %v2216
  %v2296 = vunpack.c.l.b16 %v2217
  %v2297 = vpack.c.b16 %v2262, %v2261
  %v2298 = vpack.c.b16 %v2264, %v2263
  %v2299 = vpack.c.b16 %v2266, %v2265
  %v2300 = vpack.c.b16 %v2268, %v2267
  %v2301 = vpack.c.b16 %v2270, %v2269
  %v2302 = vpack.c.b16 %v2272, %v2271
  %v2303 = vpack.c.b16 %v2274, %v2273
  %v2304 = vpack.c.b16 %v2276, %v2275
  %v2305 = vpack.c.b16 %v2278, %v2277
  %v2306 = vpack.c.b16 %v2280, %v2279
  %v2307 = vpack.c.b16 %v2282, %v2281
  %v2308 = vpack.c.b16 %v2284, %v2283
  %v2309 = vpack.c.b16 %v2286, %v2285
  %v2310 = vpack.c.b16 %v2288, %v2287
  %v2311 = vpack.c.b16 %v2290, %v2289
  %v2312 = vpack.c.b16 %v2292, %v2291
  %v2313 = vpack.c.b16 %v2294, %v2293
  %v2314 = vpack.c.b16 %v2296, %v2295
  %v2334 = vsel %vm45, %v2088, 0
  %v2337 = vsel %vm45, %v2091, 0
  %v2340 = vsel %vm45, %v2094, 0
  %v2343 = vsel %vm45, %v2097, 0
  %v2346 = vsel %vm45, %v2100, 0
  %v2349 = vsel %vm45, %v2103, 0
  %v2352 = vsel %vm45, %v2106, 0
  %v2355 = vsel %vm45, %v2109, 0
  %v2358 = vsel %vm45, %v2112, 0
  %v2361 = vsel %vm45, %v2115, 0
  %v2364 = vsel %vm45, %v2118, 0
  %v2367 = vsel %vm45, %v2121, 0
  %v2370 = vsel %vm45, %v2124, 0
  %v2373 = vsel %vm45, %v2127, 0
  %v2376 = vsel %vm45, %v2130, 0
  %v2379 = vsel %vm45, %v2133, 0
  %v2382 = vsel %vm45, %v2136, 0
  %v2385 = vsel %vm45, %v2139, 0
  %v2388 = vsel %vm45, %v2142, 0
  %v2391 = vsel %vm45, %v2145, 0
  %v2394 = vsel %vm45, %v2148, 0
  %v2397 = vsel %vm45, %v2151, 0
  %v2400 = vsel %vm45, %v2154, 0
  %v2403 = vsel %vm45, %v2157, 0
  %v2406 = vsel %vm45, %v2160, 0
  %v2409 = vsel %vm45, %v2163, 0
  %v2412 = vsel %vm45, %v2166, 0
  %v2415 = vsel %vm45, %v2169, 0
  %v2418 = vsel %vm45, %v2172, 0
  %v2421 = vsel %vm45, %v2175, 0
  %v2424 = vsel %vm45, %v2178, 0
  %v2427 = vsel %vm45, %v2181, 0
  %2429 = vmatprep.subr.bf16.mxu0 0
  %2430 = vmatpush1.bf16.msra.mxu0 %v2297
  %2431 = vmatprep.subr.bf16.mxu0 0
  %2432 = vmatpush1.bf16.msra.mxu0 %v2298
  %2433 = vmatprep.subr.bf16.mxu0 0
  %2434 = vmatpush1.bf16.msra.mxu0 %v2299
  %2435 = vmatprep.subr.bf16.mxu0 0
  %2436 = vmatpush1.bf16.msra.mxu0 %v2300
  %2437 = vmatprep.subr.bf16.mxu0 0
  %2438 = vmatpush1.bf16.msra.mxu0 %v2301
  %2439 = vmatprep.subr.bf16.mxu0 0
  %2440 = vmatpush1.bf16.msra.mxu0 %v2302
  %2441 = vmatprep.subr.bf16.mxu0 0
  %2442 = vmatpush1.bf16.msra.mxu0 %v2303
  %2443 = vmatprep.subr.bf16.mxu0 0
  %2444 = vmatpush1.bf16.msra.mxu0 %v2304
  %2445 = vmatprep.subr.bf16.mxu0 0
  %2446 = vmatpush1.bf16.msra.mxu0 %v2305
  %2447 = vmatprep.subr.bf16.mxu0 0
  %2448 = vmatpush1.bf16.msra.mxu0 %v2306
  %2449 = vmatprep.subr.bf16.mxu0 0
  %2450 = vmatpush1.bf16.msra.mxu0 %v2307
  %2451 = vmatprep.subr.bf16.mxu0 0
  %2452 = vmatpush1.bf16.msra.mxu0 %v2308
  %2453 = vmatprep.subr.bf16.mxu0 0
  %2454 = vmatpush1.bf16.msra.mxu0 %v2309
  %2455 = vmatprep.subr.bf16.mxu0 0
  %2456 = vmatpush1.bf16.msra.mxu0 %v2310
  %2457 = vmatprep.subr.bf16.mxu0 0
  %2458 = vmatpush1.bf16.msra.mxu0 %v2311
  %2459 = vmatprep.subr.bf16.mxu0 0
  %2460 = vmatpush1.bf16.msra.mxu0 %v2312
  %2461 = vmatprep.mubr.bf16.mxu0 %v2087
  %2462 = vmatmul.mubr.bf16.gmra.mrb[0].mxu0 %v2086
  %v2463 = vpop.f32.mrb[0].mxu0
  %v2464 = vadd.f32 %v2223, %v2463
  %v2465 = vpop.f32.mrb[0].mxu0
  %v2466 = vpop.f32.mrb[0].mxu0
  %v2467 = vadd.f32 %v2223, %v2466
  %v2468 = vpop.f32.mrb[0].mxu0
  %2469 = vmatprep.mubr.bf16.mxu0 %v2090
  %2470 = vmatmul.mubr.bf16.gmra.mrb[0].mxu0 %v2089
  %v2471 = vpop.f32.mrb[0].mxu0
  %v2472 = vadd.f32 %v2223, %v2471
  %v2473 = vpop.f32.mrb[0].mxu0
  %v2474 = vpop.f32.mrb[0].mxu0
  %v2475 = vadd.f32 %v2223, %v2474
  %v2476 = vpop.f32.mrb[0].mxu0
  %2477 = vmatprep.mubr.bf16.mxu0 %v2093
  %2478 = vmatmul.mubr.bf16.gmra.mrb[0].mxu0 %v2092
  %v2479 = vpop.f32.mrb[0].mxu0
  %v2480 = vadd.f32 %v2223, %v2479
  %v2481 = vpop.f32.mrb[0].mxu0
  %v2482 = vpop.f32.mrb[0].mxu0
  %v2483 = vadd.f32 %v2223, %v2482
  %v2484 = vpop.f32.mrb[0].mxu0
  %2485 = vmatprep.mubr.bf16.mxu0 %v2096
  %2486 = vmatmul.mubr.bf16.gmra.mrb[0].mxu0 %v2095
  %v2487 = vpop.f32.mrb[0].mxu0
  %v2488 = vadd.f32 %v2223, %v2487
  %v2489 = vpop.f32.mrb[0].mxu0
  %v2490 = vpop.f32.mrb[0].mxu0
  %v2491 = vadd.f32 %v2223, %v2490
  %v2492 = vpop.f32.mrb[0].mxu0
  %2493 = vmatprep.mubr.bf16.mxu0 %v2099
  %2494 = vmatmul.mubr.bf16.gmra.mrb[0].mxu0 %v2098
  %v2495 = vpop.f32.mrb[0].mxu0
  %v2496 = vadd.f32 %v2223, %v2495
  %v2497 = vpop.f32.mrb[0].mxu0
  %v2498 = vpop.f32.mrb[0].mxu0
  %v2499 = vadd.f32 %v2223, %v2498
  %v2500 = vpop.f32.mrb[0].mxu0
  %2501 = vmatprep.mubr.bf16.mxu0 %v2102
  %2502 = vmatmul.mubr.bf16.gmra.mrb[0].mxu0 %v2101
  %v2503 = vpop.f32.mrb[0].mxu0
  %v2504 = vadd.f32 %v2223, %v2503
  %v2505 = vpop.f32.mrb[0].mxu0
  %v2506 = vpop.f32.mrb[0].mxu0
  %v2507 = vadd.f32 %v2223, %v2506
  %v2508 = vpop.f32.mrb[0].mxu0
  %2509 = vmatprep.mubr.bf16.mxu0 %v2105
  %2510 = vmatmul.mubr.bf16.gmra.mrb[0].mxu0 %v2104
  %v2511 = vpop.f32.mrb[0].mxu0
  %v2512 = vadd.f32 %v2223, %v2511
  %v2513 = vpop.f32.mrb[0].mxu0
  %v2514 = vpop.f32.mrb[0].mxu0
  %v2515 = vadd.f32 %v2223, %v2514
  %v2516 = vpop.f32.mrb[0].mxu0
  %2517 = vmatprep.mubr.bf16.mxu0 %v2108
  %2518 = vmatmul.mubr.bf16.gmra.mrb[0].mxu0 %v2107
  %v2519 = vpop.f32.mrb[0].mxu0
  %v2520 = vadd.f32 %v2223, %v2519
  %v2521 = vpop.f32.mrb[0].mxu0
  %v2522 = vpop.f32.mrb[0].mxu0
  %v2523 = vadd.f32 %v2223, %v2522
  %v2524 = vpop.f32.mrb[0].mxu0
  %2525 = vmatprep.mubr.bf16.mxu0 %v2111
  %2526 = vmatmul.mubr.bf16.gmra.mrb[0].mxu0 %v2110
  %v2527 = vpop.f32.mrb[0].mxu0
  %v2528 = vadd.f32 %v2223, %v2527
  %v2529 = vpop.f32.mrb[0].mxu0
  %v2530 = vpop.f32.mrb[0].mxu0
  %v2531 = vadd.f32 %v2223, %v2530
  %v2532 = vpop.f32.mrb[0].mxu0
  %2533 = vmatprep.mubr.bf16.mxu0 %v2114
  %2534 = vmatmul.mubr.bf16.gmra.mrb[0].mxu0 %v2113
  %v2535 = vpop.f32.mrb[0].mxu0
  %v2536 = vadd.f32 %v2223, %v2535
  %v2537 = vpop.f32.mrb[0].mxu0
  %v2538 = vpop.f32.mrb[0].mxu0
  %v2539 = vadd.f32 %v2223, %v2538
  %v2540 = vpop.f32.mrb[0].mxu0
  %2541 = vmatprep.mubr.bf16.mxu0 %v2117
  %2542 = vmatmul.mubr.bf16.gmra.mrb[0].mxu0 %v2116
  %v2543 = vpop.f32.mrb[0].mxu0
  %v2544 = vadd.f32 %v2223, %v2543
  %v2545 = vpop.f32.mrb[0].mxu0
  %v2546 = vpop.f32.mrb[0].mxu0
  %v2547 = vadd.f32 %v2223, %v2546
  %v2548 = vpop.f32.mrb[0].mxu0
  %2549 = vmatprep.mubr.bf16.mxu0 %v2120
  %2550 = vmatmul.mubr.bf16.gmra.mrb[0].mxu0 %v2119
  %v2551 = vpop.f32.mrb[0].mxu0
  %v2552 = vadd.f32 %v2223, %v2551
  %v2553 = vpop.f32.mrb[0].mxu0
  %v2554 = vpop.f32.mrb[0].mxu0
  %v2555 = vadd.f32 %v2223, %v2554
  %v2556 = vpop.f32.mrb[0].mxu0
  %2557 = vmatprep.mubr.bf16.mxu0 %v2123
  %2558 = vmatmul.mubr.bf16.gmra.mrb[0].mxu0 %v2122
  %v2559 = vpop.f32.mrb[0].mxu0
  %v2560 = vadd.f32 %v2223, %v2559
  %v2561 = vpop.f32.mrb[0].mxu0
  %v2562 = vpop.f32.mrb[0].mxu0
  %v2563 = vadd.f32 %v2223, %v2562
  %v2564 = vpop.f32.mrb[0].mxu0
  %2565 = vmatprep.mubr.bf16.mxu0 %v2126
  %2566 = vmatmul.mubr.bf16.gmra.mrb[0].mxu0 %v2125
  %v2567 = vpop.f32.mrb[0].mxu0
  %v2568 = vadd.f32 %v2223, %v2567
  %v2569 = vpop.f32.mrb[0].mxu0
  %v2570 = vpop.f32.mrb[0].mxu0
  %v2571 = vadd.f32 %v2223, %v2570
  %v2572 = vpop.f32.mrb[0].mxu0
  %2573 = vmatprep.mubr.bf16.mxu0 %v2129
  %2574 = vmatmul.mubr.bf16.gmra.mrb[0].mxu0 %v2128
  %v2575 = vpop.f32.mrb[0].mxu0
  %v2576 = vadd.f32 %v2223, %v2575
  %v2577 = vpop.f32.mrb[0].mxu0
  %v2578 = vpop.f32.mrb[0].mxu0
  %v2579 = vadd.f32 %v2223, %v2578
  %v2580 = vpop.f32.mrb[0].mxu0
  %2581 = vmatprep.mubr.bf16.mxu0 %v2132
  %2582 = vmatmul.mubr.bf16.gmra.mrb[0].mxu0 %v2131
  %v2583 = vpop.f32.mrb[0].mxu0
  %v2584 = vadd.f32 %v2223, %v2583
  %v2585 = vpop.f32.mrb[0].mxu0
  %v2586 = vpop.f32.mrb[0].mxu0
  %v2587 = vadd.f32 %v2223, %v2586
  %v2588 = vpop.f32.mrb[0].mxu0
  %2589 = vmatprep.mubr.bf16.mxu0 %v2135
  %2590 = vmatmul.mubr.bf16.gmra.mrb[0].mxu0 %v2134
  %v2591 = vpop.f32.mrb[0].mxu0
  %v2592 = vadd.f32 %v2223, %v2591
  %v2593 = vpop.f32.mrb[0].mxu0
  %v2594 = vpop.f32.mrb[0].mxu0
  %v2595 = vadd.f32 %v2223, %v2594
  %v2596 = vpop.f32.mrb[0].mxu0
  %2597 = vmatprep.mubr.bf16.mxu0 %v2138
  %2598 = vmatmul.mubr.bf16.gmra.mrb[0].mxu0 %v2137
  %v2599 = vpop.f32.mrb[0].mxu0
  %v2600 = vadd.f32 %v2223, %v2599
  %v2601 = vpop.f32.mrb[0].mxu0
  %v2602 = vpop.f32.mrb[0].mxu0
  %v2603 = vadd.f32 %v2223, %v2602
  %v2604 = vpop.f32.mrb[0].mxu0
  %2605 = vmatprep.mubr.bf16.mxu0 %v2141
  %2606 = vmatmul.mubr.bf16.gmra.mrb[0].mxu0 %v2140
  %v2607 = vpop.f32.mrb[0].mxu0
  %v2608 = vadd.f32 %v2223, %v2607
  %v2609 = vpop.f32.mrb[0].mxu0
  %v2610 = vpop.f32.mrb[0].mxu0
  %v2611 = vadd.f32 %v2223, %v2610
  %v2612 = vpop.f32.mrb[0].mxu0
  %2613 = vmatprep.mubr.bf16.mxu0 %v2144
  %2614 = vmatmul.mubr.bf16.gmra.mrb[0].mxu0 %v2143
  %v2615 = vpop.f32.mrb[0].mxu0
  %v2616 = vadd.f32 %v2223, %v2615
  %v2617 = vpop.f32.mrb[0].mxu0
  %v2618 = vpop.f32.mrb[0].mxu0
  %v2619 = vadd.f32 %v2223, %v2618
  %v2620 = vpop.f32.mrb[0].mxu0
  %2621 = vmatprep.mubr.bf16.mxu0 %v2147
  %2622 = vmatmul.mubr.bf16.gmra.mrb[0].mxu0 %v2146
  %v2623 = vpop.f32.mrb[0].mxu0
  %v2624 = vadd.f32 %v2223, %v2623
  %v2625 = vpop.f32.mrb[0].mxu0
  %v2626 = vpop.f32.mrb[0].mxu0
  %v2627 = vadd.f32 %v2223, %v2626
  %v2628 = vpop.f32.mrb[0].mxu0
  %2629 = vmatprep.mubr.bf16.mxu0 %v2150
  %2630 = vmatmul.mubr.bf16.gmra.mrb[0].mxu0 %v2149
  %v2631 = vpop.f32.mrb[0].mxu0
  %v2632 = vadd.f32 %v2223, %v2631
  %v2633 = vpop.f32.mrb[0].mxu0
  %v2634 = vpop.f32.mrb[0].mxu0
  %v2635 = vadd.f32 %v2223, %v2634
  %v2636 = vpop.f32.mrb[0].mxu0
  %2637 = vmatprep.mubr.bf16.mxu0 %v2153
  %2638 = vmatmul.mubr.bf16.gmra.mrb[0].mxu0 %v2152
  %v2639 = vpop.f32.mrb[0].mxu0
  %v2640 = vadd.f32 %v2223, %v2639
  %v2641 = vpop.f32.mrb[0].mxu0
  %v2642 = vpop.f32.mrb[0].mxu0
  %v2643 = vadd.f32 %v2223, %v2642
  %v2644 = vpop.f32.mrb[0].mxu0
  %2645 = vmatprep.mubr.bf16.mxu0 %v2156
  %2646 = vmatmul.mubr.bf16.gmra.mrb[0].mxu0 %v2155
  %v2647 = vpop.f32.mrb[0].mxu0
  %v2648 = vadd.f32 %v2223, %v2647
  %v2649 = vpop.f32.mrb[0].mxu0
  %v2650 = vpop.f32.mrb[0].mxu0
  %v2651 = vadd.f32 %v2223, %v2650
  %v2652 = vpop.f32.mrb[0].mxu0
  %2653 = vmatprep.mubr.bf16.mxu0 %v2159
  %2654 = vmatmul.mubr.bf16.gmra.mrb[0].mxu0 %v2158
  %v2655 = vpop.f32.mrb[0].mxu0
  %v2656 = vadd.f32 %v2223, %v2655
  %v2657 = vpop.f32.mrb[0].mxu0
  %v2658 = vpop.f32.mrb[0].mxu0
  %v2659 = vadd.f32 %v2223, %v2658
  %v2660 = vpop.f32.mrb[0].mxu0
  %2661 = vmatprep.mubr.bf16.mxu0 %v2162
  %2662 = vmatmul.mubr.bf16.gmra.mrb[0].mxu0 %v2161
  %v2663 = vpop.f32.mrb[0].mxu0
  %v2664 = vadd.f32 %v2223, %v2663
  %v2665 = vpop.f32.mrb[0].mxu0
  %v2666 = vpop.f32.mrb[0].mxu0
  %v2667 = vadd.f32 %v2223, %v2666
  %v2668 = vpop.f32.mrb[0].mxu0
  %2669 = vmatprep.mubr.bf16.mxu0 %v2165
  %2670 = vmatmul.mubr.bf16.gmra.mrb[0].mxu0 %v2164
  %v2671 = vpop.f32.mrb[0].mxu0
  %v2672 = vadd.f32 %v2223, %v2671
  %v2673 = vpop.f32.mrb[0].mxu0
  %v2674 = vpop.f32.mrb[0].mxu0
  %v2675 = vadd.f32 %v2223, %v2674
  %v2676 = vpop.f32.mrb[0].mxu0
  %2677 = vmatprep.mubr.bf16.mxu0 %v2168
  %2678 = vmatmul.mubr.bf16.gmra.mrb[0].mxu0 %v2167
  %v2679 = vpop.f32.mrb[0].mxu0
  %v2680 = vadd.f32 %v2223, %v2679
  %v2681 = vpop.f32.mrb[0].mxu0
  %v2682 = vpop.f32.mrb[0].mxu0
  %v2683 = vadd.f32 %v2223, %v2682
  %v2684 = vpop.f32.mrb[0].mxu0
  %2685 = vmatprep.mubr.bf16.mxu0 %v2171
  %2686 = vmatmul.mubr.bf16.gmra.mrb[0].mxu0 %v2170
  %v2687 = vpop.f32.mrb[0].mxu0
  %v2688 = vadd.f32 %v2223, %v2687
  %v2689 = vpop.f32.mrb[0].mxu0
  %v2690 = vpop.f32.mrb[0].mxu0
  %v2691 = vadd.f32 %v2223, %v2690
  %v2692 = vpop.f32.mrb[0].mxu0
  %2693 = vmatprep.mubr.bf16.mxu0 %v2174
  %2694 = vmatmul.mubr.bf16.gmra.mrb[0].mxu0 %v2173
  %v2695 = vpop.f32.mrb[0].mxu0
  %v2696 = vadd.f32 %v2223, %v2695
  %v2697 = vpop.f32.mrb[0].mxu0
  %v2698 = vpop.f32.mrb[0].mxu0
  %v2699 = vadd.f32 %v2223, %v2698
  %v2700 = vpop.f32.mrb[0].mxu0
  %2701 = vmatprep.mubr.bf16.mxu0 %v2177
  %2702 = vmatmul.mubr.bf16.gmra.mrb[0].mxu0 %v2176
  %v2703 = vpop.f32.mrb[0].mxu0
  %v2704 = vadd.f32 %v2223, %v2703
  %v2705 = vpop.f32.mrb[0].mxu0
  %v2706 = vpop.f32.mrb[0].mxu0
  %v2707 = vadd.f32 %v2223, %v2706
  %v2708 = vpop.f32.mrb[0].mxu0
  %2709 = vmatprep.mubr.bf16.mxu0 %v2180
  %2710 = vmatmul.mubr.bf16.gmra.mrb[0].mxu0 %v2179
  %v2711 = vpop.f32.mrb[0].mxu0
  %v2712 = vadd.f32 %v2223, %v2711
  %v2713 = vpop.f32.mrb[0].mxu0
  %v2714 = vpop.f32.mrb[0].mxu0
  %v2715 = vadd.f32 %v2223, %v2714
  %v2716 = vpop.f32.mrb[0].mxu0
  %2717 = vdwg.mxu0
  %2718 = vmatprep.subr.bf16.mxu0 0
  %2719 = vmatpush1.bf16.msra.mxu0 %v2313
  %2720 = vmatprep.subr.bf16.mxu0 0
  %2721 = vmatpush1.bf16.msra.mxu0 %v2314
  %2722 = vmatprep.subr.bf16.mxu0 0
  %2723 = vmatpush1.bf16.msra.mxu0 0
  %2724 = vmatprep.subr.bf16.mxu0 0
  %2725 = vmatpush1.bf16.msra.mxu0 0
  %2726 = vmatprep.subr.bf16.mxu0 0
  %2727 = vmatpush1.bf16.msra.mxu0 0
  %2728 = vmatprep.subr.bf16.mxu0 0
  %2729 = vmatpush1.bf16.msra.mxu0 0
  %2730 = vmatprep.subr.bf16.mxu0 0
  %2731 = vmatpush1.bf16.msra.mxu0 0
  %2732 = vmatprep.subr.bf16.mxu0 0
  %2733 = vmatpush1.bf16.msra.mxu0 0
  %2734 = vmatprep.subr.bf16.mxu0 0
  %2735 = vmatpush1.bf16.msra.mxu0 0
  %2736 = vmatprep.subr.bf16.mxu0 0
  %2737 = vmatpush1.bf16.msra.mxu0 0
  %2738 = vmatprep.subr.bf16.mxu0 0
  %2739 = vmatpush1.bf16.msra.mxu0 0
  %2740 = vmatprep.subr.bf16.mxu0 0
  %2741 = vmatpush1.bf16.msra.mxu0 0
  %2742 = vmatprep.subr.bf16.mxu0 0
  %2743 = vmatpush1.bf16.msra.mxu0 0
  %2744 = vmatprep.subr.bf16.mxu0 0
  %2745 = vmatpush1.bf16.msra.mxu0 0
  %2746 = vmatprep.subr.bf16.mxu0 0
  %2747 = vmatpush1.bf16.msra.mxu0 0
  %2748 = vmatprep.subr.bf16.mxu0 0
  %2749 = vmatpush1.bf16.msra.mxu0 0
  %2750 = vmatprep.mubr.bf16.mxu0 0
  %2751 = vmatmul.mubr.bf16.gmra.mrb[0].mxu0 %v2334
  %v2752 = vpop.f32.mrb[0].mxu0
  %v2753 = vadd.f32 %v2464, %v2752
  %v2754 = vpop.f32.mrb[0].mxu0
  %v2755 = vpop.f32.mrb[0].mxu0
  %v2756 = vadd.f32 %v2467, %v2755
  %v2757 = vpop.f32.mrb[0].mxu0
  %2758 = vmatprep.mubr.bf16.mxu0 0
  %2759 = vmatmul.mubr.bf16.gmra.mrb[0].mxu0 %v2337
  %v2760 = vpop.f32.mrb[0].mxu0
  %v2761 = vadd.f32 %v2472, %v2760
  %v2762 = vpop.f32.mrb[0].mxu0
  %v2763 = vpop.f32.mrb[0].mxu0
  %v2764 = vadd.f32 %v2475, %v2763
  %v2765 = vpop.f32.mrb[0].mxu0
  %2766 = vmatprep.mubr.bf16.mxu0 0
  %2767 = vmatmul.mubr.bf16.gmra.mrb[0].mxu0 %v2340
  %v2768 = vpop.f32.mrb[0].mxu0
  %v2769 = vadd.f32 %v2480, %v2768
  %v2770 = vpop.f32.mrb[0].mxu0
  %v2771 = vpop.f32.mrb[0].mxu0
  %v2772 = vadd.f32 %v2483, %v2771
  %v2773 = vpop.f32.mrb[0].mxu0
  %2774 = vmatprep.mubr.bf16.mxu0 0
  %2775 = vmatmul.mubr.bf16.gmra.mrb[0].mxu0 %v2343
  %v2776 = vpop.f32.mrb[0].mxu0
  %v2777 = vadd.f32 %v2488, %v2776
  %v2778 = vpop.f32.mrb[0].mxu0
  %v2779 = vpop.f32.mrb[0].mxu0
  %v2780 = vadd.f32 %v2491, %v2779
  %v2781 = vpop.f32.mrb[0].mxu0
  %2782 = vmatprep.mubr.bf16.mxu0 0
  %2783 = vmatmul.mubr.bf16.gmra.mrb[0].mxu0 %v2346
  %v2784 = vpop.f32.mrb[0].mxu0
  %v2785 = vadd.f32 %v2496, %v2784
  %v2786 = vpop.f32.mrb[0].mxu0
  %v2787 = vpop.f32.mrb[0].mxu0
  %v2788 = vadd.f32 %v2499, %v2787
  %v2789 = vpop.f32.mrb[0].mxu0
  %2790 = vmatprep.mubr.bf16.mxu0 0
  %2791 = vmatmul.mubr.bf16.gmra.mrb[0].mxu0 %v2349
  %v2792 = vpop.f32.mrb[0].mxu0
  %v2793 = vadd.f32 %v2504, %v2792
  %v2794 = vpop.f32.mrb[0].mxu0
  %v2795 = vpop.f32.mrb[0].mxu0
  %v2796 = vadd.f32 %v2507, %v2795
  %v2797 = vpop.f32.mrb[0].mxu0
  %2798 = vmatprep.mubr.bf16.mxu0 0
  %2799 = vmatmul.mubr.bf16.gmra.mrb[0].mxu0 %v2352
  %v2800 = vpop.f32.mrb[0].mxu0
  %v2801 = vadd.f32 %v2512, %v2800
  %v2802 = vpop.f32.mrb[0].mxu0
  %v2803 = vpop.f32.mrb[0].mxu0
  %v2804 = vadd.f32 %v2515, %v2803
  %v2805 = vpop.f32.mrb[0].mxu0
  %2806 = vmatprep.mubr.bf16.mxu0 0
  %2807 = vmatmul.mubr.bf16.gmra.mrb[0].mxu0 %v2355
  %v2808 = vpop.f32.mrb[0].mxu0
  %v2809 = vadd.f32 %v2520, %v2808
  %v2810 = vpop.f32.mrb[0].mxu0
  %v2811 = vpop.f32.mrb[0].mxu0
  %v2812 = vadd.f32 %v2523, %v2811
  %v2813 = vpop.f32.mrb[0].mxu0
  %2814 = vmatprep.mubr.bf16.mxu0 0
  %2815 = vmatmul.mubr.bf16.gmra.mrb[0].mxu0 %v2358
  %v2816 = vpop.f32.mrb[0].mxu0
  %v2817 = vadd.f32 %v2528, %v2816
  %v2818 = vpop.f32.mrb[0].mxu0
  %v2819 = vpop.f32.mrb[0].mxu0
  %v2820 = vadd.f32 %v2531, %v2819
  %v2821 = vpop.f32.mrb[0].mxu0
  %2822 = vmatprep.mubr.bf16.mxu0 0
  %2823 = vmatmul.mubr.bf16.gmra.mrb[0].mxu0 %v2361
  %v2824 = vpop.f32.mrb[0].mxu0
  %v2825 = vadd.f32 %v2536, %v2824
  %v2826 = vpop.f32.mrb[0].mxu0
  %v2827 = vpop.f32.mrb[0].mxu0
  %v2828 = vadd.f32 %v2539, %v2827
  %v2829 = vpop.f32.mrb[0].mxu0
  %2830 = vmatprep.mubr.bf16.mxu0 0
  %2831 = vmatmul.mubr.bf16.gmra.mrb[0].mxu0 %v2364
  %v2832 = vpop.f32.mrb[0].mxu0
  %v2833 = vadd.f32 %v2544, %v2832
  %v2834 = vpop.f32.mrb[0].mxu0
  %v2835 = vpop.f32.mrb[0].mxu0
  %v2836 = vadd.f32 %v2547, %v2835
  %v2837 = vpop.f32.mrb[0].mxu0
  %2838 = vmatprep.mubr.bf16.mxu0 0
  %2839 = vmatmul.mubr.bf16.gmra.mrb[0].mxu0 %v2367
  %v2840 = vpop.f32.mrb[0].mxu0
  %v2841 = vadd.f32 %v2552, %v2840
  %v2842 = vpop.f32.mrb[0].mxu0
  %v2843 = vpop.f32.mrb[0].mxu0
  %v2844 = vadd.f32 %v2555, %v2843
  %v2845 = vpop.f32.mrb[0].mxu0
  %2846 = vmatprep.mubr.bf16.mxu0 0
  %2847 = vmatmul.mubr.bf16.gmra.mrb[0].mxu0 %v2370
  %v2848 = vpop.f32.mrb[0].mxu0
  %v2849 = vadd.f32 %v2560, %v2848
  %v2850 = vpop.f32.mrb[0].mxu0
  %v2851 = vpop.f32.mrb[0].mxu0
  %v2852 = vadd.f32 %v2563, %v2851
  %v2853 = vpop.f32.mrb[0].mxu0
  %2854 = vmatprep.mubr.bf16.mxu0 0
  %2855 = vmatmul.mubr.bf16.gmra.mrb[0].mxu0 %v2373
  %v2856 = vpop.f32.mrb[0].mxu0
  %v2857 = vadd.f32 %v2568, %v2856
  %v2858 = vpop.f32.mrb[0].mxu0
  %v2859 = vpop.f32.mrb[0].mxu0
  %v2860 = vadd.f32 %v2571, %v2859
  %v2861 = vpop.f32.mrb[0].mxu0
  %2862 = vmatprep.mubr.bf16.mxu0 0
  %2863 = vmatmul.mubr.bf16.gmra.mrb[0].mxu0 %v2376
  %v2864 = vpop.f32.mrb[0].mxu0
  %v2865 = vadd.f32 %v2576, %v2864
  %v2866 = vpop.f32.mrb[0].mxu0
  %v2867 = vpop.f32.mrb[0].mxu0
  %v2868 = vadd.f32 %v2579, %v2867
  %v2869 = vpop.f32.mrb[0].mxu0
  %2870 = vmatprep.mubr.bf16.mxu0 0
  %2871 = vmatmul.mubr.bf16.gmra.mrb[0].mxu0 %v2379
  %v2872 = vpop.f32.mrb[0].mxu0
  %v2873 = vadd.f32 %v2584, %v2872
  %v2874 = vpop.f32.mrb[0].mxu0
  %v2875 = vpop.f32.mrb[0].mxu0
  %v2876 = vadd.f32 %v2587, %v2875
  %v2877 = vpop.f32.mrb[0].mxu0
  %2878 = vmatprep.mubr.bf16.mxu0 0
  %2879 = vmatmul.mubr.bf16.gmra.mrb[0].mxu0 %v2382
  %v2880 = vpop.f32.mrb[0].mxu0
  %v2881 = vadd.f32 %v2592, %v2880
  %v2882 = vpop.f32.mrb[0].mxu0
  %v2883 = vpop.f32.mrb[0].mxu0
  %v2884 = vadd.f32 %v2595, %v2883
  %v2885 = vpop.f32.mrb[0].mxu0
  %2886 = vmatprep.mubr.bf16.mxu0 0
  %2887 = vmatmul.mubr.bf16.gmra.mrb[0].mxu0 %v2385
  %v2888 = vpop.f32.mrb[0].mxu0
  %v2889 = vadd.f32 %v2600, %v2888
  %v2890 = vpop.f32.mrb[0].mxu0
  %v2891 = vpop.f32.mrb[0].mxu0
  %v2892 = vadd.f32 %v2603, %v2891
  %v2893 = vpop.f32.mrb[0].mxu0
  %2894 = vmatprep.mubr.bf16.mxu0 0
  %2895 = vmatmul.mubr.bf16.gmra.mrb[0].mxu0 %v2388
  %v2896 = vpop.f32.mrb[0].mxu0
  %v2897 = vadd.f32 %v2608, %v2896
  %v2898 = vpop.f32.mrb[0].mxu0
  %v2899 = vpop.f32.mrb[0].mxu0
  %v2900 = vadd.f32 %v2611, %v2899
  %v2901 = vpop.f32.mrb[0].mxu0
  %2902 = vmatprep.mubr.bf16.mxu0 0
  %2903 = vmatmul.mubr.bf16.gmra.mrb[0].mxu0 %v2391
  %v2904 = vpop.f32.mrb[0].mxu0
  %v2905 = vadd.f32 %v2616, %v2904
  %v2906 = vpop.f32.mrb[0].mxu0
  %v2907 = vpop.f32.mrb[0].mxu0
  %v2908 = vadd.f32 %v2619, %v2907
  %v2909 = vpop.f32.mrb[0].mxu0
  %2910 = vmatprep.mubr.bf16.mxu0 0
  %2911 = vmatmul.mubr.bf16.gmra.mrb[0].mxu0 %v2394
  %v2912 = vpop.f32.mrb[0].mxu0
  %v2913 = vadd.f32 %v2624, %v2912
  %v2914 = vpop.f32.mrb[0].mxu0
  %v2915 = vpop.f32.mrb[0].mxu0
  %v2916 = vadd.f32 %v2627, %v2915
  %v2917 = vpop.f32.mrb[0].mxu0
  %2918 = vmatprep.mubr.bf16.mxu0 0
  %2919 = vmatmul.mubr.bf16.gmra.mrb[0].mxu0 %v2397
  %v2920 = vpop.f32.mrb[0].mxu0
  %v2921 = vadd.f32 %v2632, %v2920
  %v2922 = vpop.f32.mrb[0].mxu0
  %v2923 = vpop.f32.mrb[0].mxu0
  %v2924 = vadd.f32 %v2635, %v2923
  %v2925 = vpop.f32.mrb[0].mxu0
  %2926 = vmatprep.mubr.bf16.mxu0 0
  %2927 = vmatmul.mubr.bf16.gmra.mrb[0].mxu0 %v2400
  %v2928 = vpop.f32.mrb[0].mxu0
  %v2929 = vadd.f32 %v2640, %v2928
  %v2930 = vpop.f32.mrb[0].mxu0
  %v2931 = vpop.f32.mrb[0].mxu0
  %v2932 = vadd.f32 %v2643, %v2931
  %v2933 = vpop.f32.mrb[0].mxu0
  %2934 = vmatprep.mubr.bf16.mxu0 0
  %2935 = vmatmul.mubr.bf16.gmra.mrb[0].mxu0 %v2403
  %v2936 = vpop.f32.mrb[0].mxu0
  %v2937 = vadd.f32 %v2648, %v2936
  %v2938 = vpop.f32.mrb[0].mxu0
  %v2939 = vpop.f32.mrb[0].mxu0
  %v2940 = vadd.f32 %v2651, %v2939
  %v2941 = vpop.f32.mrb[0].mxu0
  %2942 = vmatprep.mubr.bf16.mxu0 0
  %2943 = vmatmul.mubr.bf16.gmra.mrb[0].mxu0 %v2406
  %v2944 = vpop.f32.mrb[0].mxu0
  %v2945 = vadd.f32 %v2656, %v2944
  %v2946 = vpop.f32.mrb[0].mxu0
  %v2947 = vpop.f32.mrb[0].mxu0
  %v2948 = vadd.f32 %v2659, %v2947
  %v2949 = vpop.f32.mrb[0].mxu0
  %2950 = vmatprep.mubr.bf16.mxu0 0
  %2951 = vmatmul.mubr.bf16.gmra.mrb[0].mxu0 %v2409
  %v2952 = vpop.f32.mrb[0].mxu0
  %v2953 = vadd.f32 %v2664, %v2952
  %v2954 = vpop.f32.mrb[0].mxu0
  %v2955 = vpop.f32.mrb[0].mxu0
  %v2956 = vadd.f32 %v2667, %v2955
  %v2957 = vpop.f32.mrb[0].mxu0
  %2958 = vmatprep.mubr.bf16.mxu0 0
  %2959 = vmatmul.mubr.bf16.gmra.mrb[0].mxu0 %v2412
  %v2960 = vpop.f32.mrb[0].mxu0
  %v2961 = vadd.f32 %v2672, %v2960
  %v2962 = vpop.f32.mrb[0].mxu0
  %v2963 = vpop.f32.mrb[0].mxu0
  %v2964 = vadd.f32 %v2675, %v2963
  %v2965 = vpop.f32.mrb[0].mxu0
  %2966 = vmatprep.mubr.bf16.mxu0 0
  %2967 = vmatmul.mubr.bf16.gmra.mrb[0].mxu0 %v2415
  %v2968 = vpop.f32.mrb[0].mxu0
  %v2969 = vadd.f32 %v2680, %v2968
  %v2970 = vpop.f32.mrb[0].mxu0
  %v2971 = vpop.f32.mrb[0].mxu0
  %v2972 = vadd.f32 %v2683, %v2971
  %v2973 = vpop.f32.mrb[0].mxu0
  %2974 = vmatprep.mubr.bf16.mxu0 0
  %2975 = vmatmul.mubr.bf16.gmra.mrb[0].mxu0 %v2418
  %v2976 = vpop.f32.mrb[0].mxu0
  %v2977 = vadd.f32 %v2688, %v2976
  %v2978 = vpop.f32.mrb[0].mxu0
  %v2979 = vpop.f32.mrb[0].mxu0
  %v2980 = vadd.f32 %v2691, %v2979
  %v2981 = vpop.f32.mrb[0].mxu0
  %2982 = vmatprep.mubr.bf16.mxu0 0
  %2983 = vmatmul.mubr.bf16.gmra.mrb[0].mxu0 %v2421
  %v2984 = vpop.f32.mrb[0].mxu0
  %v2985 = vadd.f32 %v2696, %v2984
  %v2986 = vpop.f32.mrb[0].mxu0
  %v2987 = vpop.f32.mrb[0].mxu0
  %v2988 = vadd.f32 %v2699, %v2987
  %v2989 = vpop.f32.mrb[0].mxu0
  %2990 = vmatprep.mubr.bf16.mxu0 0
  %2991 = vmatmul.mubr.bf16.gmra.mrb[0].mxu0 %v2424
  %v2992 = vpop.f32.mrb[0].mxu0
  %v2993 = vadd.f32 %v2704, %v2992
  %v2994 = vpop.f32.mrb[0].mxu0
  %v2995 = vpop.f32.mrb[0].mxu0
  %v2996 = vadd.f32 %v2707, %v2995
  %v2997 = vpop.f32.mrb[0].mxu0
  %2998 = vmatprep.mubr.bf16.mxu0 0
  %2999 = vmatmul.mubr.bf16.gmra.mrb[0].mxu0 %v2427
  %v3000 = vpop.f32.mrb[0].mxu0
  %v3001 = vadd.f32 %v2712, %v3000
  %v3002 = vpop.f32.mrb[0].mxu0
  %v3003 = vpop.f32.mrb[0].mxu0
  %v3004 = vadd.f32 %v2715, %v3003
  %v3005 = vpop.f32.mrb[0].mxu0
  %3006 = vdwg.mxu0
  %v3007 = vmax.f32 %v2753, 0.0
  %v3008 = vmax.f32 %v2756, 0.0
  %v3009 = vmax.f32 %v2761, 0.0
  %v3010 = vmax.f32 %v2764, 0.0
  %v3011 = vmax.f32 %v2769, 0.0
  %v3012 = vmax.f32 %v2772, 0.0
  %v3013 = vmax.f32 %v2777, 0.0
  %v3014 = vmax.f32 %v2780, 0.0
  %v3015 = vmax.f32 %v2785, 0.0
  %v3016 = vmax.f32 %v2788, 0.0
  %v3017 = vmax.f32 %v2793, 0.0
  %v3018 = vmax.f32 %v2796, 0.0
  %v3019 = vmax.f32 %v2801, 0.0
  %v3020 = vmax.f32 %v2804, 0.0
  %v3021 = vmax.f32 %v2809, 0.0
  %v3022 = vmax.f32 %v2812, 0.0
  %v3023 = vmax.f32 %v2817, 0.0
  %v3024 = vmax.f32 %v2820, 0.0
  %v3025 = vmax.f32 %v2825, 0.0
  %v3026 = vmax.f32 %v2828, 0.0
  %v3027 = vmax.f32 %v2833, 0.0
  %v3028 = vmax.f32 %v2836, 0.0
  %v3029 = vmax.f32 %v2841, 0.0
  %v3030 = vmax.f32 %v2844, 0.0
  %v3031 = vmax.f32 %v2849, 0.0
  %v3032 = vmax.f32 %v2852, 0.0
  %v3033 = vmax.f32 %v2857, 0.0
  %v3034 = vmax.f32 %v2860, 0.0
  %v3035 = vmax.f32 %v2865, 0.0
  %v3036 = vmax.f32 %v2868, 0.0
  %v3037 = vmax.f32 %v2873, 0.0
  %v3038 = vmax.f32 %v2876, 0.0
  %v3039 = vmax.f32 %v2881, 0.0
  %v3040 = vmax.f32 %v2884, 0.0
  %v3041 = vmax.f32 %v2889, 0.0
  %v3042 = vmax.f32 %v2892, 0.0
  %v3043 = vmax.f32 %v2897, 0.0
  %v3044 = vmax.f32 %v2900, 0.0
  %v3045 = vmax.f32 %v2905, 0.0
  %v3046 = vmax.f32 %v2908, 0.0
  %v3047 = vmax.f32 %v2913, 0.0
  %v3048 = vmax.f32 %v2916, 0.0
  %v3049 = vmax.f32 %v2921, 0.0
  %v3050 = vmax.f32 %v2924, 0.0
  %v3051 = vmax.f32 %v2929, 0.0
  %v3052 = vmax.f32 %v2932, 0.0
  %v3053 = vmax.f32 %v2937, 0.0
  %v3054 = vmax.f32 %v2940, 0.0
  %v3055 = vmax.f32 %v2945, 0.0
  %v3056 = vmax.f32 %v2948, 0.0
  %v3057 = vmax.f32 %v2953, 0.0
  %v3058 = vmax.f32 %v2956, 0.0
  %v3059 = vmax.f32 %v2961, 0.0
  %v3060 = vmax.f32 %v2964, 0.0
  %v3061 = vmax.f32 %v2969, 0.0
  %v3062 = vmax.f32 %v2972, 0.0
  %v3063 = vmax.f32 %v2977, 0.0
  %v3064 = vmax.f32 %v2980, 0.0
  %v3065 = vmax.f32 %v2985, 0.0
  %v3066 = vmax.f32 %v2988, 0.0
  %v3067 = vmax.f32 %v2993, 0.0
  %v3068 = vmax.f32 %v2996, 0.0
  %v3069 = vmax.f32 %v3001, 0.0
  %v3070 = vmax.f32 %v3004, 0.0
  %v3071 = vld [vmem:[%s3] sm:$0x1]
  %v3072 = vld [vmem:[%s4] sm:$0x1]
  %v3073 = vsel %vm45, %v3007, 0.0
  %v3074 = vsel %vm45, %v3008, 0.0
  %v3075 = vadd.f32 %v3073, %v3074
  %v3076 = vsel %vm45, %v3009, 0.0
  %v3077 = vadd.f32 %v3075, %v3076
  %v3078 = vsel %vm45, %v3010, 0.0
  %v3079 = vadd.f32 %v3077, %v3078
  %v3080 = vsel %vm45, %v3011, 0.0
  %v3081 = vadd.f32 %v3079, %v3080
  %v3082 = vsel %vm45, %v3012, 0.0
  %v3083 = vadd.f32 %v3081, %v3082
  %v3084 = vsel %vm45, %v3013, 0.0
  %v3085 = vadd.f32 %v3083, %v3084
  %v3086 = vsel %vm45, %v3014, 0.0
  %v3087 = vadd.f32 %v3085, %v3086
  %v3088 = vsel %vm45, %v3015, 0.0
  %v3089 = vadd.f32 %v3087, %v3088
  %v3090 = vsel %vm45, %v3016, 0.0
  %v3091 = vadd.f32 %v3089, %v3090
  %v3092 = vsel %vm45, %v3017, 0.0
  %v3093 = vadd.f32 %v3091, %v3092
  %v3094 = vsel %vm45, %v3018, 0.0
  %v3095 = vadd.f32 %v3093, %v3094
  %v3096 = vsel %vm45, %v3019, 0.0
  %v3097 = vadd.f32 %v3095, %v3096
  %v3098 = vsel %vm45, %v3020, 0.0
  %v3099 = vadd.f32 %v3097, %v3098
  %v3100 = vsel %vm45, %v3021, 0.0
  %v3101 = vadd.f32 %v3099, %v3100
  %v3102 = vsel %vm45, %v3022, 0.0
  %v3103 = vadd.f32 %v3101, %v3102
  %v3104 = vsel %vm45, %v3023, 0.0
  %v3105 = vadd.f32 %v3103, %v3104
  %v3106 = vsel %vm45, %v3024, 0.0
  %v3107 = vadd.f32 %v3105, %v3106
  %v3108 = vsel %vm45, %v3025, 0.0
  %v3109 = vadd.f32 %v3107, %v3108
  %v3110 = vsel %vm45, %v3026, 0.0
  %v3111 = vadd.f32 %v3109, %v3110
  %v3112 = vsel %vm45, %v3027, 0.0
  %v3113 = vadd.f32 %v3111, %v3112
  %v3114 = vsel %vm45, %v3028, 0.0
  %v3115 = vadd.f32 %v3113, %v3114
  %v3116 = vsel %vm45, %v3029, 0.0
  %v3117 = vadd.f32 %v3115, %v3116
  %v3118 = vsel %vm45, %v3030, 0.0
  %v3119 = vadd.f32 %v3117, %v3118
  %v3120 = vsel %vm45, %v3031, 0.0
  %v3121 = vadd.f32 %v3119, %v3120
  %v3122 = vsel %vm45, %v3032, 0.0
  %v3123 = vadd.f32 %v3121, %v3122
  %v3124 = vsel %vm45, %v3033, 0.0
  %v3125 = vadd.f32 %v3123, %v3124
  %v3126 = vsel %vm45, %v3034, 0.0
  %v3127 = vadd.f32 %v3125, %v3126
  %v3128 = vsel %vm45, %v3035, 0.0
  %v3129 = vadd.f32 %v3127, %v3128
  %v3130 = vsel %vm45, %v3036, 0.0
  %v3131 = vadd.f32 %v3129, %v3130
  %v3132 = vsel %vm45, %v3037, 0.0
  %v3133 = vadd.f32 %v3131, %v3132
  %v3134 = vsel %vm45, %v3038, 0.0
  %v3135 = vadd.f32 %v3133, %v3134
  %v3136 = vsel %vm45, %v3039, 0.0
  %v3137 = vadd.f32 %v3135, %v3136
  %v3138 = vsel %vm45, %v3040, 0.0
  %v3139 = vadd.f32 %v3137, %v3138
  %v3140 = vsel %vm45, %v3041, 0.0
  %v3141 = vadd.f32 %v3139, %v3140
  %v3142 = vsel %vm45, %v3042, 0.0
  %v3143 = vadd.f32 %v3141, %v3142
  %v3144 = vsel %vm45, %v3043, 0.0
  %v3145 = vadd.f32 %v3143, %v3144
  %v3146 = vsel %vm45, %v3044, 0.0
  %v3147 = vadd.f32 %v3145, %v3146
  %v3148 = vsel %vm45, %v3045, 0.0
  %v3149 = vadd.f32 %v3147, %v3148
  %v3150 = vsel %vm45, %v3046, 0.0
  %v3151 = vadd.f32 %v3149, %v3150
  %v3152 = vsel %vm45, %v3047, 0.0
  %v3153 = vadd.f32 %v3151, %v3152
  %v3154 = vsel %vm45, %v3048, 0.0
  %v3155 = vadd.f32 %v3153, %v3154
  %v3156 = vsel %vm45, %v3049, 0.0
  %v3157 = vadd.f32 %v3155, %v3156
  %v3158 = vsel %vm45, %v3050, 0.0
  %v3159 = vadd.f32 %v3157, %v3158
  %v3160 = vsel %vm45, %v3051, 0.0
  %v3161 = vadd.f32 %v3159, %v3160
  %v3162 = vsel %vm45, %v3052, 0.0
  %v3163 = vadd.f32 %v3161, %v3162
  %v3164 = vsel %vm45, %v3053, 0.0
  %v3165 = vadd.f32 %v3163, %v3164
  %v3166 = vsel %vm45, %v3054, 0.0
  %v3167 = vadd.f32 %v3165, %v3166
  %v3168 = vsel %vm45, %v3055, 0.0
  %v3169 = vadd.f32 %v3167, %v3168
  %v3170 = vsel %vm45, %v3056, 0.0
  %v3171 = vadd.f32 %v3169, %v3170
  %v3172 = vsel %vm45, %v3057, 0.0
  %v3173 = vadd.f32 %v3171, %v3172
  %v3174 = vsel %vm45, %v3058, 0.0
  %v3175 = vadd.f32 %v3173, %v3174
  %v3176 = vsel %vm45, %v3059, 0.0
  %v3177 = vadd.f32 %v3175, %v3176
  %v3178 = vsel %vm45, %v3060, 0.0
  %v3179 = vadd.f32 %v3177, %v3178
  %v3180 = vsel %vm45, %v3061, 0.0
  %v3181 = vadd.f32 %v3179, %v3180
  %v3182 = vsel %vm45, %v3062, 0.0
  %v3183 = vadd.f32 %v3181, %v3182
  %v3184 = vsel %vm45, %v3063, 0.0
  %v3185 = vadd.f32 %v3183, %v3184
  %v3186 = vsel %vm45, %v3064, 0.0
  %v3187 = vadd.f32 %v3185, %v3186
  %v3188 = vsel %vm45, %v3065, 0.0
  %v3189 = vadd.f32 %v3187, %v3188
  %v3190 = vsel %vm45, %v3066, 0.0
  %v3191 = vadd.f32 %v3189, %v3190
  %v3192 = vsel %vm45, %v3067, 0.0
  %v3193 = vadd.f32 %v3191, %v3192
  %v3194 = vsel %vm45, %v3068, 0.0
  %v3195 = vadd.f32 %v3193, %v3194
  %v3196 = vsel %vm45, %v3069, 0.0
  %v3197 = vadd.f32 %v3195, %v3196
  %v3198 = vsel %vm45, %v3070, 0.0
  %v3199 = vadd.f32 %v3197, %v3198
  %v3200 = vrot.slane %v3199, 4
  %v3201 = vadd.f32 %v3199, %v3200
  %v3202 = vrot.slane %v3201, 2
  %v3203 = vadd.f32 %v3201, %v3202
  %v3204 = vrot.slane %v3203, 1
  %v3205 = vadd.f32 %v3203, %v3204
  %v3206 = vmul.f32 %v3205, 0.001953125
  %v3207 = vmul.f32 %v3007, %v3007
  %v3208 = vmul.f32 %v3008, %v3008
  %v3209 = vmul.f32 %v3009, %v3009
  %v3210 = vmul.f32 %v3010, %v3010
  %v3211 = vmul.f32 %v3011, %v3011
  %v3212 = vmul.f32 %v3012, %v3012
  %v3213 = vmul.f32 %v3013, %v3013
  %v3214 = vmul.f32 %v3014, %v3014
  %v3215 = vmul.f32 %v3015, %v3015
  %v3216 = vmul.f32 %v3016, %v3016
  %v3217 = vmul.f32 %v3017, %v3017
  %v3218 = vmul.f32 %v3018, %v3018
  %v3219 = vmul.f32 %v3019, %v3019
  %v3220 = vmul.f32 %v3020, %v3020
  %v3221 = vmul.f32 %v3021, %v3021
  %v3222 = vmul.f32 %v3022, %v3022
  %v3223 = vmul.f32 %v3023, %v3023
  %v3224 = vmul.f32 %v3024, %v3024
  %v3225 = vmul.f32 %v3025, %v3025
  %v3226 = vmul.f32 %v3026, %v3026
  %v3227 = vmul.f32 %v3027, %v3027
  %v3228 = vmul.f32 %v3028, %v3028
  %v3229 = vmul.f32 %v3029, %v3029
  %v3230 = vmul.f32 %v3030, %v3030
  %v3231 = vmul.f32 %v3031, %v3031
  %v3232 = vmul.f32 %v3032, %v3032
  %v3233 = vmul.f32 %v3033, %v3033
  %v3234 = vmul.f32 %v3034, %v3034
  %v3235 = vmul.f32 %v3035, %v3035
  %v3236 = vmul.f32 %v3036, %v3036
  %v3237 = vmul.f32 %v3037, %v3037
  %v3238 = vmul.f32 %v3038, %v3038
  %v3239 = vmul.f32 %v3039, %v3039
  %v3240 = vmul.f32 %v3040, %v3040
  %v3241 = vmul.f32 %v3041, %v3041
  %v3242 = vmul.f32 %v3042, %v3042
  %v3243 = vmul.f32 %v3043, %v3043
  %v3244 = vmul.f32 %v3044, %v3044
  %v3245 = vmul.f32 %v3045, %v3045
  %v3246 = vmul.f32 %v3046, %v3046
  %v3247 = vmul.f32 %v3047, %v3047
  %v3248 = vmul.f32 %v3048, %v3048
  %v3249 = vmul.f32 %v3049, %v3049
  %v3250 = vmul.f32 %v3050, %v3050
  %v3251 = vmul.f32 %v3051, %v3051
  %v3252 = vmul.f32 %v3052, %v3052
  %v3253 = vmul.f32 %v3053, %v3053
  %v3254 = vmul.f32 %v3054, %v3054
  %v3255 = vmul.f32 %v3055, %v3055
  %v3256 = vmul.f32 %v3056, %v3056
  %v3257 = vmul.f32 %v3057, %v3057
  %v3258 = vmul.f32 %v3058, %v3058
  %v3259 = vmul.f32 %v3059, %v3059
  %v3260 = vmul.f32 %v3060, %v3060
  %v3261 = vmul.f32 %v3061, %v3061
  %v3262 = vmul.f32 %v3062, %v3062
  %v3263 = vmul.f32 %v3063, %v3063
  %v3264 = vmul.f32 %v3064, %v3064
  %v3265 = vmul.f32 %v3065, %v3065
  %v3266 = vmul.f32 %v3066, %v3066
  %v3267 = vmul.f32 %v3067, %v3067
  %v3268 = vmul.f32 %v3068, %v3068
  %v3269 = vmul.f32 %v3069, %v3069
  %v3270 = vmul.f32 %v3070, %v3070
  %v3271 = vsel %vm45, %v3207, 0.0
  %v3272 = vsel %vm45, %v3208, 0.0
  %v3273 = vadd.f32 %v3271, %v3272
  %v3274 = vsel %vm45, %v3209, 0.0
  %v3275 = vadd.f32 %v3273, %v3274
  %v3276 = vsel %vm45, %v3210, 0.0
  %v3277 = vadd.f32 %v3275, %v3276
  %v3278 = vsel %vm45, %v3211, 0.0
  %v3279 = vadd.f32 %v3277, %v3278
  %v3280 = vsel %vm45, %v3212, 0.0
  %v3281 = vadd.f32 %v3279, %v3280
  %v3282 = vsel %vm45, %v3213, 0.0
  %v3283 = vadd.f32 %v3281, %v3282
  %v3284 = vsel %vm45, %v3214, 0.0
  %v3285 = vadd.f32 %v3283, %v3284
  %v3286 = vsel %vm45, %v3215, 0.0
  %v3287 = vadd.f32 %v3285, %v3286
  %v3288 = vsel %vm45, %v3216, 0.0
  %v3289 = vadd.f32 %v3287, %v3288
  %v3290 = vsel %vm45, %v3217, 0.0
  %v3291 = vadd.f32 %v3289, %v3290
  %v3292 = vsel %vm45, %v3218, 0.0
  %v3293 = vadd.f32 %v3291, %v3292
  %v3294 = vsel %vm45, %v3219, 0.0
  %v3295 = vadd.f32 %v3293, %v3294
  %v3296 = vsel %vm45, %v3220, 0.0
  %v3297 = vadd.f32 %v3295, %v3296
  %v3298 = vsel %vm45, %v3221, 0.0
  %v3299 = vadd.f32 %v3297, %v3298
  %v3300 = vsel %vm45, %v3222, 0.0
  %v3301 = vadd.f32 %v3299, %v3300
  %v3302 = vsel %vm45, %v3223, 0.0
  %v3303 = vadd.f32 %v3301, %v3302
  %v3304 = vsel %vm45, %v3224, 0.0
  %v3305 = vadd.f32 %v3303, %v3304
  %v3306 = vsel %vm45, %v3225, 0.0
  %v3307 = vadd.f32 %v3305, %v3306
  %v3308 = vsel %vm45, %v3226, 0.0
  %v3309 = vadd.f32 %v3307, %v3308
  %v3310 = vsel %vm45, %v3227, 0.0
  %v3311 = vadd.f32 %v3309, %v3310
  %v3312 = vsel %vm45, %v3228, 0.0
  %v3313 = vadd.f32 %v3311, %v3312
  %v3314 = vsel %vm45, %v3229, 0.0
  %v3315 = vadd.f32 %v3313, %v3314
  %v3316 = vsel %vm45, %v3230, 0.0
  %v3317 = vadd.f32 %v3315, %v3316
  %v3318 = vsel %vm45, %v3231, 0.0
  %v3319 = vadd.f32 %v3317, %v3318
  %v3320 = vsel %vm45, %v3232, 0.0
  %v3321 = vadd.f32 %v3319, %v3320
  %v3322 = vsel %vm45, %v3233, 0.0
  %v3323 = vadd.f32 %v3321, %v3322
  %v3324 = vsel %vm45, %v3234, 0.0
  %v3325 = vadd.f32 %v3323, %v3324
  %v3326 = vsel %vm45, %v3235, 0.0
  %v3327 = vadd.f32 %v3325, %v3326
  %v3328 = vsel %vm45, %v3236, 0.0
  %v3329 = vadd.f32 %v3327, %v3328
  %v3330 = vsel %vm45, %v3237, 0.0
  %v3331 = vadd.f32 %v3329, %v3330
  %v3332 = vsel %vm45, %v3238, 0.0
  %v3333 = vadd.f32 %v3331, %v3332
  %v3334 = vsel %vm45, %v3239, 0.0
  %v3335 = vadd.f32 %v3333, %v3334
  %v3336 = vsel %vm45, %v3240, 0.0
  %v3337 = vadd.f32 %v3335, %v3336
  %v3338 = vsel %vm45, %v3241, 0.0
  %v3339 = vadd.f32 %v3337, %v3338
  %v3340 = vsel %vm45, %v3242, 0.0
  %v3341 = vadd.f32 %v3339, %v3340
  %v3342 = vsel %vm45, %v3243, 0.0
  %v3343 = vadd.f32 %v3341, %v3342
  %v3344 = vsel %vm45, %v3244, 0.0
  %v3345 = vadd.f32 %v3343, %v3344
  %v3346 = vsel %vm45, %v3245, 0.0
  %v3347 = vadd.f32 %v3345, %v3346
  %v3348 = vsel %vm45, %v3246, 0.0
  %v3349 = vadd.f32 %v3347, %v3348
  %v3350 = vsel %vm45, %v3247, 0.0
  %v3351 = vadd.f32 %v3349, %v3350
  %v3352 = vsel %vm45, %v3248, 0.0
  %v3353 = vadd.f32 %v3351, %v3352
  %v3354 = vsel %vm45, %v3249, 0.0
  %v3355 = vadd.f32 %v3353, %v3354
  %v3356 = vsel %vm45, %v3250, 0.0
  %v3357 = vadd.f32 %v3355, %v3356
  %v3358 = vsel %vm45, %v3251, 0.0
  %v3359 = vadd.f32 %v3357, %v3358
  %v3360 = vsel %vm45, %v3252, 0.0
  %v3361 = vadd.f32 %v3359, %v3360
  %v3362 = vsel %vm45, %v3253, 0.0
  %v3363 = vadd.f32 %v3361, %v3362
  %v3364 = vsel %vm45, %v3254, 0.0
  %v3365 = vadd.f32 %v3363, %v3364
  %v3366 = vsel %vm45, %v3255, 0.0
  %v3367 = vadd.f32 %v3365, %v3366
  %v3368 = vsel %vm45, %v3256, 0.0
  %v3369 = vadd.f32 %v3367, %v3368
  %v3370 = vsel %vm45, %v3257, 0.0
  %v3371 = vadd.f32 %v3369, %v3370
  %v3372 = vsel %vm45, %v3258, 0.0
  %v3373 = vadd.f32 %v3371, %v3372
  %v3374 = vsel %vm45, %v3259, 0.0
  %v3375 = vadd.f32 %v3373, %v3374
  %v3376 = vsel %vm45, %v3260, 0.0
  %v3377 = vadd.f32 %v3375, %v3376
  %v3378 = vsel %vm45, %v3261, 0.0
  %v3379 = vadd.f32 %v3377, %v3378
  %v3380 = vsel %vm45, %v3262, 0.0
  %v3381 = vadd.f32 %v3379, %v3380
  %v3382 = vsel %vm45, %v3263, 0.0
  %v3383 = vadd.f32 %v3381, %v3382
  %v3384 = vsel %vm45, %v3264, 0.0
  %v3385 = vadd.f32 %v3383, %v3384
  %v3386 = vsel %vm45, %v3265, 0.0
  %v3387 = vadd.f32 %v3385, %v3386
  %v3388 = vsel %vm45, %v3266, 0.0
  %v3389 = vadd.f32 %v3387, %v3388
  %v3390 = vsel %vm45, %v3267, 0.0
  %v3391 = vadd.f32 %v3389, %v3390
  %v3392 = vsel %vm45, %v3268, 0.0
  %v3393 = vadd.f32 %v3391, %v3392
  %v3394 = vsel %vm45, %v3269, 0.0
  %v3395 = vadd.f32 %v3393, %v3394
  %v3396 = vsel %vm45, %v3270, 0.0
  %v3397 = vadd.f32 %v3395, %v3396
  %v3398 = vrot.slane %v3397, 4
  %v3399 = vadd.f32 %v3397, %v3398
  %v3400 = vrot.slane %v3399, 2
  %v3401 = vadd.f32 %v3399, %v3400
  %v3402 = vrot.slane %v3401, 1
  %v3403 = vadd.f32 %v3401, %v3402
  %v3404 = vmul.f32 %v3403, 0.001953125
  %v3405 = vmul.f32 %v3206, %v3206
  %v3406 = vsub.f32 %v3404, %v3405
  %v3407 = vsub.f32 %v3007, %v3206
  %v3408 = vsub.f32 %v3008, %v3206
  %v3409 = vsub.f32 %v3009, %v3206
  %v3410 = vsub.f32 %v3010, %v3206
  %v3411 = vsub.f32 %v3011, %v3206
  %v3412 = vsub.f32 %v3012, %v3206
  %v3413 = vsub.f32 %v3013, %v3206
  %v3414 = vsub.f32 %v3014, %v3206
  %v3415 = vsub.f32 %v3015, %v3206
  %v3416 = vsub.f32 %v3016, %v3206
  %v3417 = vsub.f32 %v3017, %v3206
  %v3418 = vsub.f32 %v3018, %v3206
  %v3419 = vsub.f32 %v3019, %v3206
  %v3420 = vsub.f32 %v3020, %v3206
  %v3421 = vsub.f32 %v3021, %v3206
  %v3422 = vsub.f32 %v3022, %v3206
  %v3423 = vsub.f32 %v3023, %v3206
  %v3424 = vsub.f32 %v3024, %v3206
  %v3425 = vsub.f32 %v3025, %v3206
  %v3426 = vsub.f32 %v3026, %v3206
  %v3427 = vsub.f32 %v3027, %v3206
  %v3428 = vsub.f32 %v3028, %v3206
  %v3429 = vsub.f32 %v3029, %v3206
  %v3430 = vsub.f32 %v3030, %v3206
  %v3431 = vsub.f32 %v3031, %v3206
  %v3432 = vsub.f32 %v3032, %v3206
  %v3433 = vsub.f32 %v3033, %v3206
  %v3434 = vsub.f32 %v3034, %v3206
  %v3435 = vsub.f32 %v3035, %v3206
  %v3436 = vsub.f32 %v3036, %v3206
  %v3437 = vsub.f32 %v3037, %v3206
  %v3438 = vsub.f32 %v3038, %v3206
  %v3439 = vsub.f32 %v3039, %v3206
  %v3440 = vsub.f32 %v3040, %v3206
  %v3441 = vsub.f32 %v3041, %v3206
  %v3442 = vsub.f32 %v3042, %v3206
  %v3443 = vsub.f32 %v3043, %v3206
  %v3444 = vsub.f32 %v3044, %v3206
  %v3445 = vsub.f32 %v3045, %v3206
  %v3446 = vsub.f32 %v3046, %v3206
  %v3447 = vsub.f32 %v3047, %v3206
  %v3448 = vsub.f32 %v3048, %v3206
  %v3449 = vsub.f32 %v3049, %v3206
  %v3450 = vsub.f32 %v3050, %v3206
  %v3451 = vsub.f32 %v3051, %v3206
  %v3452 = vsub.f32 %v3052, %v3206
  %v3453 = vsub.f32 %v3053, %v3206
  %v3454 = vsub.f32 %v3054, %v3206
  %v3455 = vsub.f32 %v3055, %v3206
  %v3456 = vsub.f32 %v3056, %v3206
  %v3457 = vsub.f32 %v3057, %v3206
  %v3458 = vsub.f32 %v3058, %v3206
  %v3459 = vsub.f32 %v3059, %v3206
  %v3460 = vsub.f32 %v3060, %v3206
  %v3461 = vsub.f32 %v3061, %v3206
  %v3462 = vsub.f32 %v3062, %v3206
  %v3463 = vsub.f32 %v3063, %v3206
  %v3464 = vsub.f32 %v3064, %v3206
  %v3465 = vsub.f32 %v3065, %v3206
  %v3466 = vsub.f32 %v3066, %v3206
  %v3467 = vsub.f32 %v3067, %v3206
  %v3468 = vsub.f32 %v3068, %v3206
  %v3469 = vsub.f32 %v3069, %v3206
  %v3470 = vsub.f32 %v3070, %v3206
  %v3471 = vadd.f32 %v3406, 1e-05
  %v3472 = vrsqrt.pop %v3471
  %v3473 = vmul.f32 %v3407, %v3472
  %v3474 = vmul.f32 %v3408, %v3472
  %v3475 = vmul.f32 %v3409, %v3472
  %v3476 = vmul.f32 %v3410, %v3472
  %v3477 = vmul.f32 %v3411, %v3472
  %v3478 = vmul.f32 %v3412, %v3472
  %v3479 = vmul.f32 %v3413, %v3472
  %v3480 = vmul.f32 %v3414, %v3472
  %v3481 = vmul.f32 %v3415, %v3472
  %v3482 = vmul.f32 %v3416, %v3472
  %v3483 = vmul.f32 %v3417, %v3472
  %v3484 = vmul.f32 %v3418, %v3472
  %v3485 = vmul.f32 %v3419, %v3472
  %v3486 = vmul.f32 %v3420, %v3472
  %v3487 = vmul.f32 %v3421, %v3472
  %v3488 = vmul.f32 %v3422, %v3472
  %v3489 = vmul.f32 %v3423, %v3472
  %v3490 = vmul.f32 %v3424, %v3472
  %v3491 = vmul.f32 %v3425, %v3472
  %v3492 = vmul.f32 %v3426, %v3472
  %v3493 = vmul.f32 %v3427, %v3472
  %v3494 = vmul.f32 %v3428, %v3472
  %v3495 = vmul.f32 %v3429, %v3472
  %v3496 = vmul.f32 %v3430, %v3472
  %v3497 = vmul.f32 %v3431, %v3472
  %v3498 = vmul.f32 %v3432, %v3472
  %v3499 = vmul.f32 %v3433, %v3472
  %v3500 = vmul.f32 %v3434, %v3472
  %v3501 = vmul.f32 %v3435, %v3472
  %v3502 = vmul.f32 %v3436, %v3472
  %v3503 = vmul.f32 %v3437, %v3472
  %v3504 = vmul.f32 %v3438, %v3472
  %v3505 = vmul.f32 %v3439, %v3472
  %v3506 = vmul.f32 %v3440, %v3472
  %v3507 = vmul.f32 %v3441, %v3472
  %v3508 = vmul.f32 %v3442, %v3472
  %v3509 = vmul.f32 %v3443, %v3472
  %v3510 = vmul.f32 %v3444, %v3472
  %v3511 = vmul.f32 %v3445, %v3472
  %v3512 = vmul.f32 %v3446, %v3472
  %v3513 = vmul.f32 %v3447, %v3472
  %v3514 = vmul.f32 %v3448, %v3472
  %v3515 = vmul.f32 %v3449, %v3472
  %v3516 = vmul.f32 %v3450, %v3472
  %v3517 = vmul.f32 %v3451, %v3472
  %v3518 = vmul.f32 %v3452, %v3472
  %v3519 = vmul.f32 %v3453, %v3472
  %v3520 = vmul.f32 %v3454, %v3472
  %v3521 = vmul.f32 %v3455, %v3472
  %v3522 = vmul.f32 %v3456, %v3472
  %v3523 = vmul.f32 %v3457, %v3472
  %v3524 = vmul.f32 %v3458, %v3472
  %v3525 = vmul.f32 %v3459, %v3472
  %v3526 = vmul.f32 %v3460, %v3472
  %v3527 = vmul.f32 %v3461, %v3472
  %v3528 = vmul.f32 %v3462, %v3472
  %v3529 = vmul.f32 %v3463, %v3472
  %v3530 = vmul.f32 %v3464, %v3472
  %v3531 = vmul.f32 %v3465, %v3472
  %v3532 = vmul.f32 %v3466, %v3472
  %v3533 = vmul.f32 %v3467, %v3472
  %v3534 = vmul.f32 %v3468, %v3472
  %v3535 = vmul.f32 %v3469, %v3472
  %v3536 = vmul.f32 %v3470, %v3472
  %v3538 = vlaneseq
  %v3539 = vshrl.u32 %v3538, 7
  %v3540 = vsub.s32 0, %v3539
  %v3541 = vrot.slane %v3071, %v3540
  %v3543 = vmul.f32 %v3473, %v3541
  %v3544 = vmul.f32 %v3474, %v3541
  %v3545 = vmul.f32 %v3475, %v3541
  %v3546 = vmul.f32 %v3476, %v3541
  %v3547 = vmul.f32 %v3477, %v3541
  %v3548 = vmul.f32 %v3478, %v3541
  %v3549 = vmul.f32 %v3479, %v3541
  %v3550 = vmul.f32 %v3480, %v3541
  %v3551 = vmul.f32 %v3481, %v3541
  %v3552 = vmul.f32 %v3482, %v3541
  %v3553 = vmul.f32 %v3483, %v3541
  %v3554 = vmul.f32 %v3484, %v3541
  %v3555 = vmul.f32 %v3485, %v3541
  %v3556 = vmul.f32 %v3486, %v3541
  %v3557 = vmul.f32 %v3487, %v3541
  %v3558 = vmul.f32 %v3488, %v3541
  %v3559 = vmul.f32 %v3489, %v3541
  %v3560 = vmul.f32 %v3490, %v3541
  %v3561 = vmul.f32 %v3491, %v3541
  %v3562 = vmul.f32 %v3492, %v3541
  %v3563 = vmul.f32 %v3493, %v3541
  %v3564 = vmul.f32 %v3494, %v3541
  %v3565 = vmul.f32 %v3495, %v3541
  %v3566 = vmul.f32 %v3496, %v3541
  %v3567 = vmul.f32 %v3497, %v3541
  %v3568 = vmul.f32 %v3498, %v3541
  %v3569 = vmul.f32 %v3499, %v3541
  %v3570 = vmul.f32 %v3500, %v3541
  %v3571 = vmul.f32 %v3501, %v3541
  %v3572 = vmul.f32 %v3502, %v3541
  %v3573 = vmul.f32 %v3503, %v3541
  %v3574 = vmul.f32 %v3504, %v3541
  %v3575 = vmul.f32 %v3505, %v3541
  %v3576 = vmul.f32 %v3506, %v3541
  %v3577 = vmul.f32 %v3507, %v3541
  %v3578 = vmul.f32 %v3508, %v3541
  %v3579 = vmul.f32 %v3509, %v3541
  %v3580 = vmul.f32 %v3510, %v3541
  %v3581 = vmul.f32 %v3511, %v3541
  %v3582 = vmul.f32 %v3512, %v3541
  %v3583 = vmul.f32 %v3513, %v3541
  %v3584 = vmul.f32 %v3514, %v3541
  %v3585 = vmul.f32 %v3515, %v3541
  %v3586 = vmul.f32 %v3516, %v3541
  %v3587 = vmul.f32 %v3517, %v3541
  %v3588 = vmul.f32 %v3518, %v3541
  %v3589 = vmul.f32 %v3519, %v3541
  %v3590 = vmul.f32 %v3520, %v3541
  %v3591 = vmul.f32 %v3521, %v3541
  %v3592 = vmul.f32 %v3522, %v3541
  %v3593 = vmul.f32 %v3523, %v3541
  %v3594 = vmul.f32 %v3524, %v3541
  %v3595 = vmul.f32 %v3525, %v3541
  %v3596 = vmul.f32 %v3526, %v3541
  %v3597 = vmul.f32 %v3527, %v3541
  %v3598 = vmul.f32 %v3528, %v3541
  %v3599 = vmul.f32 %v3529, %v3541
  %v3600 = vmul.f32 %v3530, %v3541
  %v3601 = vmul.f32 %v3531, %v3541
  %v3602 = vmul.f32 %v3532, %v3541
  %v3603 = vmul.f32 %v3533, %v3541
  %v3604 = vmul.f32 %v3534, %v3541
  %v3605 = vmul.f32 %v3535, %v3541
  %v3606 = vmul.f32 %v3536, %v3541
  %v3608 = vlaneseq
  %v3609 = vshrl.u32 %v3608, 7
  %v3610 = vsub.s32 0, %v3609
  %v3611 = vrot.slane %v3072, %v3610
  %v3613 = vadd.f32 %v3543, %v3611
  %v3614 = vadd.f32 %v3544, %v3611
  %v3615 = vadd.f32 %v3545, %v3611
  %v3616 = vadd.f32 %v3546, %v3611
  %v3617 = vadd.f32 %v3547, %v3611
  %v3618 = vadd.f32 %v3548, %v3611
  %v3619 = vadd.f32 %v3549, %v3611
  %v3620 = vadd.f32 %v3550, %v3611
  %v3621 = vadd.f32 %v3551, %v3611
  %v3622 = vadd.f32 %v3552, %v3611
  %v3623 = vadd.f32 %v3553, %v3611
  %v3624 = vadd.f32 %v3554, %v3611
  %v3625 = vadd.f32 %v3555, %v3611
  %v3626 = vadd.f32 %v3556, %v3611
  %v3627 = vadd.f32 %v3557, %v3611
  %v3628 = vadd.f32 %v3558, %v3611
  %v3629 = vadd.f32 %v3559, %v3611
  %v3630 = vadd.f32 %v3560, %v3611
  %v3631 = vadd.f32 %v3561, %v3611
  %v3632 = vadd.f32 %v3562, %v3611
  %v3633 = vadd.f32 %v3563, %v3611
  %v3634 = vadd.f32 %v3564, %v3611
  %v3635 = vadd.f32 %v3565, %v3611
  %v3636 = vadd.f32 %v3566, %v3611
  %v3637 = vadd.f32 %v3567, %v3611
  %v3638 = vadd.f32 %v3568, %v3611
  %v3639 = vadd.f32 %v3569, %v3611
  %v3640 = vadd.f32 %v3570, %v3611
  %v3641 = vadd.f32 %v3571, %v3611
  %v3642 = vadd.f32 %v3572, %v3611
  %v3643 = vadd.f32 %v3573, %v3611
  %v3644 = vadd.f32 %v3574, %v3611
  %v3645 = vadd.f32 %v3575, %v3611
  %v3646 = vadd.f32 %v3576, %v3611
  %v3647 = vadd.f32 %v3577, %v3611
  %v3648 = vadd.f32 %v3578, %v3611
  %v3649 = vadd.f32 %v3579, %v3611
  %v3650 = vadd.f32 %v3580, %v3611
  %v3651 = vadd.f32 %v3581, %v3611
  %v3652 = vadd.f32 %v3582, %v3611
  %v3653 = vadd.f32 %v3583, %v3611
  %v3654 = vadd.f32 %v3584, %v3611
  %v3655 = vadd.f32 %v3585, %v3611
  %v3656 = vadd.f32 %v3586, %v3611
  %v3657 = vadd.f32 %v3587, %v3611
  %v3658 = vadd.f32 %v3588, %v3611
  %v3659 = vadd.f32 %v3589, %v3611
  %v3660 = vadd.f32 %v3590, %v3611
  %v3661 = vadd.f32 %v3591, %v3611
  %v3662 = vadd.f32 %v3592, %v3611
  %v3663 = vadd.f32 %v3593, %v3611
  %v3664 = vadd.f32 %v3594, %v3611
  %v3665 = vadd.f32 %v3595, %v3611
  %v3666 = vadd.f32 %v3596, %v3611
  %v3667 = vadd.f32 %v3597, %v3611
  %v3668 = vadd.f32 %v3598, %v3611
  %v3669 = vadd.f32 %v3599, %v3611
  %v3670 = vadd.f32 %v3600, %v3611
  %v3671 = vadd.f32 %v3601, %v3611
  %v3672 = vadd.f32 %v3602, %v3611
  %v3673 = vadd.f32 %v3603, %v3611
  %v3674 = vadd.f32 %v3604, %v3611
  %v3675 = vadd.f32 %v3605, %v3611
  %v3676 = vadd.f32 %v3606, %v3611
  %3677 = vst.msk [vmem:[%s219 + $0x1] sm:$0xff] %vm45, %v3613
  %3678 = vst.msk [vmem:[%s219 + $0x9] sm:$0xff] %vm45, %v3614
  %3679 = vst.msk [vmem:[%s219 + $0x19] sm:$0xff] %vm45, %v3615
  %3680 = vst.msk [vmem:[%s219 + $0x21] sm:$0xff] %vm45, %v3616
  %3681 = vst.msk [vmem:[%s219 + $0x31] sm:$0xff] %vm45, %v3617
  %3682 = vst.msk [vmem:[%s219 + $0x39] sm:$0xff] %vm45, %v3618
  %3683 = vst.msk [vmem:[%s219 + $0x49] sm:$0xff] %vm45, %v3619
  %3684 = vst.msk [vmem:[%s219 + $0x51] sm:$0xff] %vm45, %v3620
  %3685 = vst.msk [vmem:[%s219 + $0x61] sm:$0xff] %vm45, %v3621
  %3686 = vst.msk [vmem:[%s219 + $0x69] sm:$0xff] %vm45, %v3622
  %3687 = vst.msk [vmem:[%s219 + $0x79] sm:$0xff] %vm45, %v3623
  %3688 = vst.msk [vmem:[%s219 + $0x81] sm:$0xff] %vm45, %v3624
  %3689 = vst.msk [vmem:[%s219 + $0x91] sm:$0xff] %vm45, %v3625
  %3690 = vst.msk [vmem:[%s219 + $0x99] sm:$0xff] %vm45, %v3626
  %3691 = vst.msk [vmem:[%s219 + $0xa9] sm:$0xff] %vm45, %v3627
  %3692 = vst.msk [vmem:[%s219 + $0xb1] sm:$0xff] %vm45, %v3628
  %3693 = vst.msk [vmem:[%s219 + $0xc1] sm:$0xff] %vm45, %v3629
  %3694 = vst.msk [vmem:[%s219 + $0xc9] sm:$0xff] %vm45, %v3630
  %3695 = vst.msk [vmem:[%s219 + $0xd9] sm:$0xff] %vm45, %v3631
  %3696 = vst.msk [vmem:[%s219 + $0xe1] sm:$0xff] %vm45, %v3632
  %3697 = vst.msk [vmem:[%s219 + $0xf1] sm:$0xff] %vm45, %v3633
  %3698 = vst.msk [vmem:[%s219 + $0xf9] sm:$0xff] %vm45, %v3634
  %3699 = vst.msk [vmem:[%s219 + $0x109] sm:$0xff] %vm45, %v3635
  %3700 = vst.msk [vmem:[%s219 + $0x111] sm:$0xff] %vm45, %v3636
  %3701 = vst.msk [vmem:[%s219 + $0x121] sm:$0xff] %vm45, %v3637
  %3702 = vst.msk [vmem:[%s219 + $0x129] sm:$0xff] %vm45, %v3638
  %3703 = vst.msk [vmem:[%s219 + $0x139] sm:$0xff] %vm45, %v3639
  %3704 = vst.msk [vmem:[%s219 + $0x141] sm:$0xff] %vm45, %v3640
  %3705 = vst.msk [vmem:[%s219 + $0x151] sm:$0xff] %vm45, %v3641
  %3706 = vst.msk [vmem:[%s219 + $0x159] sm:$0xff] %vm45, %v3642
  %3707 = vst.msk [vmem:[%s219 + $0x169] sm:$0xff] %vm45, %v3643
  %3708 = vst.msk [vmem:[%s219 + $0x171] sm:$0xff] %vm45, %v3644
  %3709 = vst.msk [vmem:[%s219 + $0x1b1] sm:$0xff] %vm45, %v3645
  %3710 = vst.msk [vmem:[%s219 + $0x1b9] sm:$0xff] %vm45, %v3646
  %3711 = vst.msk [vmem:[%s219 + $0x1c9] sm:$0xff] %vm45, %v3647
  %3712 = vst.msk [vmem:[%s219 + $0x1d1] sm:$0xff] %vm45, %v3648
  %3713 = vst.msk [vmem:[%s219 + $0x1e1] sm:$0xff] %vm45, %v3649
  %3714 = vst.msk [vmem:[%s219 + $0x1e9] sm:$0xff] %vm45, %v3650
  %3715 = vst.msk [vmem:[%s219 + $0x1f9] sm:$0xff] %vm45, %v3651
  %3716 = vst.msk [vmem:[%s219 + $0x201] sm:$0xff] %vm45, %v3652
  %3717 = vst.msk [vmem:[%s219 + $0x211] sm:$0xff] %vm45, %v3653
  %3718 = vst.msk [vmem:[%s219 + $0x219] sm:$0xff] %vm45, %v3654
  %3719 = vst.msk [vmem:[%s219 + $0x229] sm:$0xff] %vm45, %v3655
  %3720 = vst.msk [vmem:[%s219 + $0x231] sm:$0xff] %vm45, %v3656
  %3721 = vst.msk [vmem:[%s219 + $0x241] sm:$0xff] %vm45, %v3657
  %3722 = vst.msk [vmem:[%s219 + $0x249] sm:$0xff] %vm45, %v3658
  %3723 = vst.msk [vmem:[%s219 + $0x259] sm:$0xff] %vm45, %v3659
  %3724 = vst.msk [vmem:[%s219 + $0x261] sm:$0xff] %vm45, %v3660
  %3725 = vst.msk [vmem:[%s219 + $0x271] sm:$0xff] %vm45, %v3661
  %3726 = vst.msk [vmem:[%s219 + $0x279] sm:$0xff] %vm45, %v3662
  %3727 = vst.msk [vmem:[%s219 + $0x289] sm:$0xff] %vm45, %v3663
  %3728 = vst.msk [vmem:[%s219 + $0x291] sm:$0xff] %vm45, %v3664
  %3729 = vst.msk [vmem:[%s219 + $0x2a1] sm:$0xff] %vm45, %v3665
  %3730 = vst.msk [vmem:[%s219 + $0x2a9] sm:$0xff] %vm45, %v3666
  %3731 = vst.msk [vmem:[%s219 + $0x2b9] sm:$0xff] %vm45, %v3667
  %3732 = vst.msk [vmem:[%s219 + $0x2c1] sm:$0xff] %vm45, %v3668
  %3733 = vst.msk [vmem:[%s219 + $0x2d1] sm:$0xff] %vm45, %v3669
  %3734 = vst.msk [vmem:[%s219 + $0x2d9] sm:$0xff] %vm45, %v3670
  %3735 = vst.msk [vmem:[%s219 + $0x2e9] sm:$0xff] %vm45, %v3671
  %3736 = vst.msk [vmem:[%s219 + $0x2f1] sm:$0xff] %vm45, %v3672
  %3737 = vst.msk [vmem:[%s219 + $0x301] sm:$0xff] %vm45, %v3673
  %3738 = vst.msk [vmem:[%s219 + $0x309] sm:$0xff] %vm45, %v3674
  %3739 = vst.msk [vmem:[%s219 + $0x319] sm:$0xff] %vm45, %v3675
  %3740 = vst.msk [vmem:[%s219 + $0x321] sm:$0xff] %vm45, %v3676
  %v3741 = vld [vmem:[#allocation2] sm:$0xff]
  %v3742 = vld [vmem:[#allocation2 + $0x8] sm:$0xff]
  %v3743 = vld [vmem:[#allocation2 + $0x10] sm:$0x3]
  %v3744 = vld [vmem:[#allocation2 + $0x18] sm:$0xff]
  %v3745 = vld [vmem:[#allocation2 + $0x20] sm:$0xff]
  %v3746 = vld [vmem:[#allocation2 + $0x28] sm:$0x3]
  %v3747 = vld [vmem:[#allocation2 + $0x30] sm:$0xff]
  %v3748 = vld [vmem:[#allocation2 + $0x38] sm:$0xff]
  %v3749 = vld [vmem:[#allocation2 + $0x40] sm:$0x3]
  %v3750 = vld [vmem:[#allocation2 + $0x48] sm:$0xff]
  %v3751 = vld [vmem:[#allocation2 + $0x50] sm:$0xff]
  %v3752 = vld [vmem:[#allocation2 + $0x58] sm:$0x3]
  %v3753 = vld [vmem:[#allocation2 + $0x60] sm:$0xff]
  %v3754 = vld [vmem:[#allocation2 + $0x68] sm:$0xff]
  %v3755 = vld [vmem:[#allocation2 + $0x70] sm:$0x3]
  %v3756 = vld [vmem:[#allocation2 + $0x78] sm:$0xff]
  %v3757 = vld [vmem:[#allocation2 + $0x80] sm:$0xff]
  %v3758 = vld [vmem:[#allocation2 + $0x88] sm:$0x3]
  %v3759 = vld [vmem:[#allocation2 + $0x90] sm:$0xff]
  %v3760 = vld [vmem:[#allocation2 + $0x98] sm:$0xff]
  %v3761 = vld [vmem:[#allocation2 + $0xa0] sm:$0x3]
  %v3762 = vld [vmem:[#allocation2 + $0xa8] sm:$0xff]
  %v3763 = vld [vmem:[#allocation2 + $0xb0] sm:$0xff]
  %v3764 = vld [vmem:[#allocation2 + $0xb8] sm:$0x3]
  %v3765 = vld [vmem:[#allocation2 + $0xc0] sm:$0xff]
  %v3766 = vld [vmem:[#allocation2 + $0xc8] sm:$0xff]
  %v3767 = vld [vmem:[#allocation2 + $0xd0] sm:$0x3]
  %v3768 = vld [vmem:[#allocation2 + $0xd8] sm:$0xff]
  %v3769 = vld [vmem:[#allocation2 + $0xe0] sm:$0xff]
  %v3770 = vld [vmem:[#allocation2 + $0xe8] sm:$0x3]
  %v3771 = vld [vmem:[#allocation2 + $0xf0] sm:$0xff]
  %v3772 = vld [vmem:[#allocation2 + $0xf8] sm:$0xff]
  %v3773 = vld [vmem:[#allocation2 + $0x100] sm:$0x3]
  %v3774 = vld [vmem:[#allocation2 + $0x108] sm:$0xff]
  %v3775 = vld [vmem:[#allocation2 + $0x110] sm:$0xff]
  %v3776 = vld [vmem:[#allocation2 + $0x118] sm:$0x3]
  %v3777 = vld [vmem:[#allocation2 + $0x120] sm:$0xff]
  %v3778 = vld [vmem:[#allocation2 + $0x128] sm:$0xff]
  %v3779 = vld [vmem:[#allocation2 + $0x130] sm:$0x3]
  %v3780 = vld [vmem:[#allocation2 + $0x138] sm:$0xff]
  %v3781 = vld [vmem:[#allocation2 + $0x140] sm:$0xff]
  %v3782 = vld [vmem:[#allocation2 + $0x148] sm:$0x3]
  %v3783 = vld [vmem:[#allocation2 + $0x150] sm:$0xff]
  %v3784 = vld [vmem:[#allocation2 + $0x158] sm:$0xff]
  %v3785 = vld [vmem:[#allocation2 + $0x160] sm:$0x3]
  %v3786 = vld [vmem:[#allocation2 + $0x168] sm:$0xff]
  %v3787 = vld [vmem:[#allocation2 + $0x170] sm:$0xff]
  %v3788 = vld [vmem:[#allocation2 + $0x178] sm:$0x3]
  %v3789 = vld [vmem:[#allocation2 + $0x180] sm:$0xff]
  %v3790 = vld [vmem:[#allocation2 + $0x188] sm:$0xff]
  %v3791 = vld [vmem:[#allocation2 + $0x190] sm:$0x3]
  %v3792 = vld [vmem:[#allocation2 + $0x198] sm:$0xff]
  %v3793 = vld [vmem:[#allocation2 + $0x1a0] sm:$0xff]
  %v3794 = vld [vmem:[#allocation2 + $0x1a8] sm:$0x3]
  %v3795 = vld [vmem:[#allocation2 + $0x1b0] sm:$0xff]
  %v3796 = vld [vmem:[#allocation2 + $0x1b8] sm:$0xff]
  %v3797 = vld [vmem:[#allocation2 + $0x1c0] sm:$0x3]
  %v3798 = vld [vmem:[#allocation2 + $0x1c8] sm:$0xff]
  %v3799 = vld [vmem:[#allocation2 + $0x1d0] sm:$0xff]
  %v3800 = vld [vmem:[#allocation2 + $0x1d8] sm:$0x3]
  %v3801 = vld [vmem:[#allocation2 + $0x1e0] sm:$0xff]
  %v3802 = vld [vmem:[#allocation2 + $0x1e8] sm:$0xff]
  %v3803 = vld [vmem:[#allocation2 + $0x1f0] sm:$0x3]
  %v3804 = vld [vmem:[#allocation2 + $0x1f8] sm:$0xff]
  %v3805 = vld [vmem:[#allocation2 + $0x200] sm:$0xff]
  %v3806 = vld [vmem:[#allocation2 + $0x208] sm:$0x3]
  %v3807 = vld [vmem:[#allocation2 + $0x210] sm:$0xff]
  %v3808 = vld [vmem:[#allocation2 + $0x218] sm:$0xff]
  %v3809 = vld [vmem:[#allocation2 + $0x220] sm:$0x3]
  %v3810 = vld [vmem:[#allocation2 + $0x228] sm:$0xff]
  %v3811 = vld [vmem:[#allocation2 + $0x230] sm:$0xff]
  %v3812 = vld [vmem:[#allocation2 + $0x238] sm:$0x3]
  %v3813 = vld [vmem:[#allocation2 + $0x240] sm:$0xff]
  %v3814 = vld [vmem:[#allocation2 + $0x248] sm:$0xff]
  %v3815 = vld [vmem:[#allocation2 + $0x250] sm:$0x3]
  %v3816 = vld [vmem:[#allocation2 + $0x258] sm:$0xff]
  %v3817 = vld [vmem:[#allocation2 + $0x260] sm:$0xff]
  %v3818 = vld [vmem:[#allocation2 + $0x268] sm:$0x3]
  %v3819 = vld [vmem:[#allocation2 + $0x270] sm:$0xff]
  %v3820 = vld [vmem:[#allocation2 + $0x278] sm:$0xff]
  %v3821 = vld [vmem:[#allocation2 + $0x280] sm:$0x3]
  %v3822 = vld [vmem:[#allocation2 + $0x288] sm:$0xff]
  %v3823 = vld [vmem:[#allocation2 + $0x290] sm:$0xff]
  %v3824 = vld [vmem:[#allocation2 + $0x298] sm:$0x3]
  %v3825 = vld [vmem:[#allocation2 + $0x2a0] sm:$0xff]
  %v3826 = vld [vmem:[#allocation2 + $0x2a8] sm:$0xff]
  %v3827 = vld [vmem:[#allocation2 + $0x2b0] sm:$0x3]
  %v3828 = vld [vmem:[#allocation2 + $0x2b8] sm:$0xff]
  %v3829 = vld [vmem:[#allocation2 + $0x2c0] sm:$0xff]
  %v3830 = vld [vmem:[#allocation2 + $0x2c8] sm:$0x3]
  %v3831 = vld [vmem:[#allocation2 + $0x2d0] sm:$0xff]
  %v3832 = vld [vmem:[#allocation2 + $0x2d8] sm:$0xff]
  %v3833 = vld [vmem:[#allocation2 + $0x2e0] sm:$0x3]
  %v3834 = vld [vmem:[#allocation2 + $0x2e8] sm:$0xff]
  %v3835 = vld [vmem:[#allocation2 + $0x2f0] sm:$0xff]
  %v3836 = vld [vmem:[#allocation2 + $0x2f8] sm:$0x3]
  %v3837 = vld [vmem:[#allocation2 + $0x300] sm:$0xff]
  %v3838 = vld [vmem:[#allocation2 + $0x308] sm:$0xff]
  %v3839 = vld [vmem:[#allocation2 + $0x310] sm:$0x3]
  %v3840 = vld [vmem:[#allocation2 + $0x318] sm:$0xff]
  %v3841 = vld [vmem:[#allocation2 + $0x320] sm:$0xff]
  %v3842 = vld [vmem:[#allocation2 + $0x328] sm:$0x3]
  %v3843 = vld [vmem:[#allocation2 + $0x330] sm:$0xff]
  %v3844 = vld [vmem:[#allocation2 + $0x338] sm:$0xff]
  %v3845 = vld [vmem:[#allocation2 + $0x340] sm:$0x3]
  %v3846 = vld [vmem:[#allocation2 + $0x348] sm:$0xff]
  %v3847 = vld [vmem:[#allocation2 + $0x350] sm:$0xff]
  %v3848 = vld [vmem:[#allocation2 + $0x358] sm:$0x3]
  %v3849 = vpack.c.bf16 %v3742, %v3741
  %v3850 = vpack.c.bf16 %v3745, %v3744
  %v3851 = vpack.c.bf16 %v3748, %v3747
  %v3852 = vpack.c.bf16 %v3751, %v3750
  %v3853 = vpack.c.bf16 %v3754, %v3753
  %v3854 = vpack.c.bf16 %v3757, %v3756
  %v3855 = vpack.c.bf16 %v3760, %v3759
  %v3856 = vpack.c.bf16 %v3763, %v3762
  %v3857 = vpack.c.bf16 %v3766, %v3765
  %v3858 = vpack.c.bf16 %v3769, %v3768
  %v3859 = vpack.c.bf16 %v3772, %v3771
  %v3860 = vpack.c.bf16 %v3775, %v3774
  %v3861 = vpack.c.bf16 %v3778, %v3777
  %v3862 = vpack.c.bf16 %v3781, %v3780
  %v3863 = vpack.c.bf16 %v3784, %v3783
  %v3864 = vpack.c.bf16 %v3787, %v3786
  %v3865 = vpack.c.bf16 %v3796, %v3795
  %v3866 = vpack.c.bf16 %v3799, %v3798
  %v3867 = vpack.c.bf16 %v3802, %v3801
  %v3868 = vpack.c.bf16 %v3805, %v3804
  %v3869 = vpack.c.bf16 %v3808, %v3807
  %v3870 = vpack.c.bf16 %v3811, %v3810
  %v3871 = vpack.c.bf16 %v3814, %v3813
  %v3872 = vpack.c.bf16 %v3817, %v3816
  %v3873 = vpack.c.bf16 %v3820, %v3819
  %v3874 = vpack.c.bf16 %v3823, %v3822
  %v3875 = vpack.c.bf16 %v3826, %v3825
  %v3876 = vpack.c.bf16 %v3829, %v3828
  %v3877 = vpack.c.bf16 %v3832, %v3831
  %v3878 = vpack.c.bf16 %v3835, %v3834
  %v3879 = vpack.c.bf16 %v3838, %v3837
  %v3880 = vpack.c.bf16 %v3841, %v3840
  %3881 = vst.msk [vmem:[#allocation3] sm:$0xff] %vm45, %v3849
  %3882 = vst.msk [vmem:[#allocation3 + $0x18] sm:$0xff] %vm45, %v3850
  %3883 = vst.msk [vmem:[#allocation3 + $0x30] sm:$0xff] %vm45, %v3851
  %3884 = vst.msk [vmem:[#allocation3 + $0x48] sm:$0xff] %vm45, %v3852
  %3885 = vst.msk [vmem:[#allocation3 + $0x60] sm:$0xff] %vm45, %v3853
  %3886 = vst.msk [vmem:[#allocation3 + $0x78] sm:$0xff] %vm45, %v3854
  %3887 = vst.msk [vmem:[#allocation3 + $0x90] sm:$0xff] %vm45, %v3855
  %3888 = vst.msk [vmem:[#allocation3 + $0xa8] sm:$0xff] %vm45, %v3856
  %3889 = vst.msk [vmem:[#allocation3 + $0xc0] sm:$0xff] %vm45, %v3857
  %3890 = vst.msk [vmem:[#allocation3 + $0xd8] sm:$0xff] %vm45, %v3858
  %3891 = vst.msk [vmem:[#allocation3 + $0xf0] sm:$0xff] %vm45, %v3859
  %3892 = vst.msk [vmem:[#allocation3 + $0x108] sm:$0xff] %vm45, %v3860
  %3893 = vst.msk [vmem:[#allocation3 + $0x120] sm:$0xff] %vm45, %v3861
  %3894 = vst.msk [vmem:[#allocation3 + $0x138] sm:$0xff] %vm45, %v3862
  %3895 = vst.msk [vmem:[#allocation3 + $0x150] sm:$0xff] %vm45, %v3863
  %3896 = vst.msk [vmem:[#allocation3 + $0x168] sm:$0xff] %vm45, %v3864
  %3897 = vst.msk [vmem:[#allocation3 + $0x180] sm:$0xff] %vm45, %v3865
  %3898 = vst.msk [vmem:[#allocation3 + $0x198] sm:$0xff] %vm45, %v3866
  %3899 = vst.msk [vmem:[#allocation3 + $0x1b0] sm:$0xff] %vm45, %v3867
  %3900 = vst.msk [vmem:[#allocation3 + $0x1c8] sm:$0xff] %vm45, %v3868
  %3901 = vst.msk [vmem:[#allocation3 + $0x1e0] sm:$0xff] %vm45, %v3869
  %3902 = vst.msk [vmem:[#allocation3 + $0x1f8] sm:$0xff] %vm45, %v3870
  %3903 = vst.msk [vmem:[#allocation3 + $0x210] sm:$0xff] %vm45, %v3871
  %3904 = vst.msk [vmem:[#allocation3 + $0x228] sm:$0xff] %vm45, %v3872
  %3905 = vst.msk [vmem:[#allocation3 + $0x240] sm:$0xff] %vm45, %v3873
  %3906 = vst.msk [vmem:[#allocation3 + $0x258] sm:$0xff] %vm45, %v3874
  %3907 = vst.msk [vmem:[#allocation3 + $0x270] sm:$0xff] %vm45, %v3875
  %3908 = vst.msk [vmem:[#allocation3 + $0x288] sm:$0xff] %vm45, %v3876
  %3909 = vst.msk [vmem:[#allocation3 + $0x2a0] sm:$0xff] %vm45, %v3877
  %3910 = vst.msk [vmem:[#allocation3 + $0x2b8] sm:$0xff] %vm45, %v3878
  %3911 = vst.msk [vmem:[#allocation3 + $0x2d0] sm:$0xff] %vm45, %v3879
  %3912 = vst.msk [vmem:[#allocation3 + $0x2e8] sm:$0xff] %vm45, %v3880
  %v4009 = vrot.slane %v3741, 1
  %v4010 = vrot.slane %v3742, 1
  %v4011 = vsel %vm553, %v4009, %v4010
  %v4012 = vrot.slane %v3743, 1
  %v4013 = vsel %vm553, %v4010, %v4012
  %v4014 = vrot.slane %v3744, 1
  %v4015 = vrot.slane %v3745, 1
  %v4016 = vsel %vm553, %v4014, %v4015
  %v4017 = vrot.slane %v3746, 1
  %v4018 = vsel %vm553, %v4015, %v4017
  %v4019 = vrot.slane %v3747, 1
  %v4020 = vrot.slane %v3748, 1
  %v4021 = vsel %vm553, %v4019, %v4020
  %v4022 = vrot.slane %v3749, 1
  %v4023 = vsel %vm553, %v4020, %v4022
  %v4024 = vrot.slane %v3750, 1
  %v4025 = vrot.slane %v3751, 1
  %v4026 = vsel %vm553, %v4024, %v4025
  %v4027 = vrot.slane %v3752, 1
  %v4028 = vsel %vm553, %v4025, %v4027
  %v4029 = vrot.slane %v3753, 1
  %v4030 = vrot.slane %v3754, 1
  %v4031 = vsel %vm553, %v4029, %v4030
  %v4032 = vrot.slane %v3755, 1
  %v4033 = vsel %vm553, %v4030, %v4032
  %v4034 = vrot.slane %v3756, 1
  %v4035 = vrot.slane %v3757, 1
  %v4036 = vsel %vm553, %v4034, %v4035
  %v4037 = vrot.slane %v3758, 1
  %v4038 = vsel %vm553, %v4035, %v4037
  %v4039 = vrot.slane %v3759, 1
  %v4040 = vrot.slane %v3760, 1
  %v4041 = vsel %vm553, %v4039, %v4040
  %v4042 = vrot.slane %v3761, 1
  %v4043 = vsel %vm553, %v4040, %v4042
  %v4044 = vrot.slane %v3762, 1
  %v4045 = vrot.slane %v3763, 1
  %v4046 = vsel %vm553, %v4044, %v4045
  %v4047 = vrot.slane %v3764, 1
  %v4048 = vsel %vm553, %v4045, %v4047
  %v4049 = vrot.slane %v3765, 1
  %v4050 = vrot.slane %v3766, 1
  %v4051 = vsel %vm553, %v4049, %v4050
  %v4052 = vrot.slane %v3767, 1
  %v4053 = vsel %vm553, %v4050, %v4052
  %v4054 = vrot.slane %v3768, 1
  %v4055 = vrot.slane %v3769, 1
  %v4056 = vsel %vm553, %v4054, %v4055
  %v4057 = vrot.slane %v3770, 1
  %v4058 = vsel %vm553, %v4055, %v4057
  %v4059 = vrot.slane %v3771, 1
  %v4060 = vrot.slane %v3772, 1
  %v4061 = vsel %vm553, %v4059, %v4060
  %v4062 = vrot.slane %v3773, 1
  %v4063 = vsel %vm553, %v4060, %v4062
  %v4064 = vrot.slane %v3774, 1
  %v4065 = vrot.slane %v3775, 1
  %v4066 = vsel %vm553, %v4064, %v4065
  %v4067 = vrot.slane %v3776, 1
  %v4068 = vsel %vm553, %v4065, %v4067
  %v4069 = vrot.slane %v3777, 1
  %v4070 = vrot.slane %v3778, 1
  %v4071 = vsel %vm553, %v4069, %v4070
  %v4072 = vrot.slane %v3779, 1
  %v4073 = vsel %vm553, %v4070, %v4072
  %v4074 = vrot.slane %v3780, 1
  %v4075 = vrot.slane %v3781, 1
  %v4076 = vsel %vm553, %v4074, %v4075
  %v4077 = vrot.slane %v3782, 1
  %v4078 = vsel %vm553, %v4075, %v4077
  %v4079 = vrot.slane %v3783, 1
  %v4080 = vrot.slane %v3784, 1
  %v4081 = vsel %vm553, %v4079, %v4080
  %v4082 = vrot.slane %v3785, 1
  %v4083 = vsel %vm553, %v4080, %v4082
  %v4084 = vrot.slane %v3786, 1
  %v4085 = vrot.slane %v3787, 1
  %v4086 = vsel %vm553, %v4084, %v4085
  %v4087 = vrot.slane %v3788, 1
  %v4088 = vsel %vm553, %v4085, %v4087
  %v4089 = vrot.slane %v3795, 1
  %v4090 = vrot.slane %v3796, 1
  %v4091 = vsel %vm553, %v4089, %v4090
  %v4092 = vrot.slane %v3797, 1
  %v4093 = vsel %vm553, %v4090, %v4092
  %v4094 = vrot.slane %v3798, 1
  %v4095 = vrot.slane %v3799, 1
  %v4096 = vsel %vm553, %v4094, %v4095
  %v4097 = vrot.slane %v3800, 1
  %v4098 = vsel %vm553, %v4095, %v4097
  %v4099 = vrot.slane %v3801, 1
  %v4100 = vrot.slane %v3802, 1
  %v4101 = vsel %vm553, %v4099, %v4100
  %v4102 = vrot.slane %v3803, 1
  %v4103 = vsel %vm553, %v4100, %v4102
  %v4104 = vrot.slane %v3804, 1
  %v4105 = vrot.slane %v3805, 1
  %v4106 = vsel %vm553, %v4104, %v4105
  %v4107 = vrot.slane %v3806, 1
  %v4108 = vsel %vm553, %v4105, %v4107
  %v4109 = vrot.slane %v3807, 1
  %v4110 = vrot.slane %v3808, 1
  %v4111 = vsel %vm553, %v4109, %v4110
  %v4112 = vrot.slane %v3809, 1
  %v4113 = vsel %vm553, %v4110, %v4112
  %v4114 = vrot.slane %v3810, 1
  %v4115 = vrot.slane %v3811, 1
  %v4116 = vsel %vm553, %v4114, %v4115
  %v4117 = vrot.slane %v3812, 1
  %v4118 = vsel %vm553, %v4115, %v4117
  %v4119 = vrot.slane %v3813, 1
  %v4120 = vrot.slane %v3814, 1
  %v4121 = vsel %vm553, %v4119, %v4120
  %v4122 = vrot.slane %v3815, 1
  %v4123 = vsel %vm553, %v4120, %v4122
  %v4124 = vrot.slane %v3816, 1
  %v4125 = vrot.slane %v3817, 1
  %v4126 = vsel %vm553, %v4124, %v4125
  %v4127 = vrot.slane %v3818, 1
  %v4128 = vsel %vm553, %v4125, %v4127
  %v4129 = vrot.slane %v3819, 1
  %v4130 = vrot.slane %v3820, 1
  %v4131 = vsel %vm553, %v4129, %v4130
  %v4132 = vrot.slane %v3821, 1
  %v4133 = vsel %vm553, %v4130, %v4132
  %v4134 = vrot.slane %v3822, 1
  %v4135 = vrot.slane %v3823, 1
  %v4136 = vsel %vm553, %v4134, %v4135
  %v4137 = vrot.slane %v3824, 1
  %v4138 = vsel %vm553, %v4135, %v4137
  %v4139 = vrot.slane %v3825, 1
  %v4140 = vrot.slane %v3826, 1
  %v4141 = vsel %vm553, %v4139, %v4140
  %v4142 = vrot.slane %v3827, 1
  %v4143 = vsel %vm553, %v4140, %v4142
  %v4144 = vrot.slane %v3828, 1
  %v4145 = vrot.slane %v3829, 1
  %v4146 = vsel %vm553, %v4144, %v4145
  %v4147 = vrot.slane %v3830, 1
  %v4148 = vsel %vm553, %v4145, %v4147
  %v4149 = vrot.slane %v3831, 1
  %v4150 = vrot.slane %v3832, 1
  %v4151 = vsel %vm553, %v4149, %v4150
  %v4152 = vrot.slane %v3833, 1
  %v4153 = vsel %vm553, %v4150, %v4152
  %v4154 = vrot.slane %v3834, 1
  %v4155 = vrot.slane %v3835, 1
  %v4156 = vsel %vm553, %v4154, %v4155
  %v4157 = vrot.slane %v3836, 1
  %v4158 = vsel %vm553, %v4155, %v4157
  %v4159 = vrot.slane %v3837, 1
  %v4160 = vrot.slane %v3838, 1
  %v4161 = vsel %vm553, %v4159, %v4160
  %v4162 = vrot.slane %v3839, 1
  %v4163 = vsel %vm553, %v4160, %v4162
  %v4164 = vrot.slane %v3840, 1
  %v4165 = vrot.slane %v3841, 1
  %v4166 = vsel %vm553, %v4164, %v4165
  %v4167 = vrot.slane %v3842, 1
  %v4168 = vsel %vm553, %v4165, %v4167
  %v4233 = vpack.c.bf16 %v4013, %v4011
  %v4234 = vpack.c.bf16 %v4018, %v4016
  %v4235 = vpack.c.bf16 %v4023, %v4021
  %v4236 = vpack.c.bf16 %v4028, %v4026
  %v4237 = vpack.c.bf16 %v4033, %v4031
  %v4238 = vpack.c.bf16 %v4038, %v4036
  %v4239 = vpack.c.bf16 %v4043, %v4041
  %v4240 = vpack.c.bf16 %v4048, %v4046
  %v4241 = vpack.c.bf16 %v4053, %v4051
  %v4242 = vpack.c.bf16 %v4058, %v4056
  %v4243 = vpack.c.bf16 %v4063, %v4061
  %v4244 = vpack.c.bf16 %v4068, %v4066
  %v4245 = vpack.c.bf16 %v4073, %v4071
  %v4246 = vpack.c.bf16 %v4078, %v4076
  %v4247 = vpack.c.bf16 %v4083, %v4081
  %v4248 = vpack.c.bf16 %v4088, %v4086
  %v4249 = vpack.c.bf16 %v4093, %v4091
  %v4250 = vpack.c.bf16 %v4098, %v4096
  %v4251 = vpack.c.bf16 %v4103, %v4101
  %v4252 = vpack.c.bf16 %v4108, %v4106
  %v4253 = vpack.c.bf16 %v4113, %v4111
  %v4254 = vpack.c.bf16 %v4118, %v4116
  %v4255 = vpack.c.bf16 %v4123, %v4121
  %v4256 = vpack.c.bf16 %v4128, %v4126
  %v4257 = vpack.c.bf16 %v4133, %v4131
  %v4258 = vpack.c.bf16 %v4138, %v4136
  %v4259 = vpack.c.bf16 %v4143, %v4141
  %v4260 = vpack.c.bf16 %v4148, %v4146
  %v4261 = vpack.c.bf16 %v4153, %v4151
  %v4262 = vpack.c.bf16 %v4158, %v4156
  %v4263 = vpack.c.bf16 %v4163, %v4161
  %v4264 = vpack.c.bf16 %v4168, %v4166
  %4297 = vrot.lane.b32.xlu0 %v4233, 32
  %v4298 = vpop.permute.xlu0 %4297
  %4299 = vrot.lane.b32.xlu0 %v4234, 32
  %v4300 = vpop.permute.xlu0 %4299
  %4301 = vrot.lane.b32.xlu0 %v4235, 32
  %v4302 = vpop.permute.xlu0 %4301
  %4303 = vrot.lane.b32.xlu0 %v4236, 32
  %v4304 = vpop.permute.xlu0 %4303
  %4305 = vrot.lane.b32.xlu0 %v4237, 32
  %v4306 = vpop.permute.xlu0 %4305
  %4307 = vrot.lane.b32.xlu0 %v4238, 32
  %v4308 = vpop.permute.xlu0 %4307
  %4309 = vrot.lane.b32.xlu0 %v4239, 32
  %v4310 = vpop.permute.xlu0 %4309
  %4311 = vrot.lane.b32.xlu0 %v4240, 32
  %v4312 = vpop.permute.xlu0 %4311
  %4313 = vrot.lane.b32.xlu0 %v4241, 32
  %v4314 = vpop.permute.xlu0 %4313
  %4315 = vrot.lane.b32.xlu0 %v4242, 32
  %v4316 = vpop.permute.xlu0 %4315
  %4317 = vrot.lane.b32.xlu0 %v4243, 32
  %v4318 = vpop.permute.xlu0 %4317
  %4319 = vrot.lane.b32.xlu0 %v4244, 32
  %v4320 = vpop.permute.xlu0 %4319
  %4321 = vrot.lane.b32.xlu0 %v4245, 32
  %v4322 = vpop.permute.xlu0 %4321
  %4323 = vrot.lane.b32.xlu0 %v4246, 32
  %v4324 = vpop.permute.xlu0 %4323
  %4325 = vrot.lane.b32.xlu0 %v4247, 32
  %v4326 = vpop.permute.xlu0 %4325
  %4327 = vrot.lane.b32.xlu0 %v4248, 32
  %v4328 = vpop.permute.xlu0 %4327
  %4329 = vrot.lane.b32.xlu0 %v4249, 32
  %v4330 = vpop.permute.xlu0 %4329
  %4331 = vrot.lane.b32.xlu0 %v4250, 32
  %v4332 = vpop.permute.xlu0 %4331
  %4333 = vrot.lane.b32.xlu0 %v4251, 32
  %v4334 = vpop.permute.xlu0 %4333
  %4335 = vrot.lane.b32.xlu0 %v4252, 32
  %v4336 = vpop.permute.xlu0 %4335
  %4337 = vrot.lane.b32.xlu0 %v4253, 32
  %v4338 = vpop.permute.xlu0 %4337
  %4339 = vrot.lane.b32.xlu0 %v4254, 32
  %v4340 = vpop.permute.xlu0 %4339
  %4341 = vrot.lane.b32.xlu0 %v4255, 32
  %v4342 = vpop.permute.xlu0 %4341
  %4343 = vrot.lane.b32.xlu0 %v4256, 32
  %v4344 = vpop.permute.xlu0 %4343
  %4345 = vrot.lane.b32.xlu0 %v4257, 32
  %v4346 = vpop.permute.xlu0 %4345
  %4347 = vrot.lane.b32.xlu0 %v4258, 32
  %v4348 = vpop.permute.xlu0 %4347
  %4349 = vrot.lane.b32.xlu0 %v4259, 32
  %v4350 = vpop.permute.xlu0 %4349
  %4351 = vrot.lane.b32.xlu0 %v4260, 32
  %v4352 = vpop.permute.xlu0 %4351
  %4353 = vrot.lane.b32.xlu0 %v4261, 32
  %v4354 = vpop.permute.xlu0 %4353
  %4355 = vrot.lane.b32.xlu0 %v4262, 32
  %v4356 = vpop.permute.xlu0 %4355
  %4357 = vrot.lane.b32.xlu0 %v4263, 32
  %v4358 = vpop.permute.xlu0 %4357
  %4359 = vrot.lane.b32.xlu0 %v4264, 32
  %v4360 = vpop.permute.xlu0 %4359
  %4393 = vst.msk [vmem:[#allocation3] sm:$0xff] %vm938, %v4298
  %4394 = vst.msk [vmem:[#allocation3 + $0x18] sm:$0xff] %vm938, %v4300
  %4395 = vst.msk [vmem:[#allocation3 + $0x30] sm:$0xff] %vm938, %v4302
  %4396 = vst.msk [vmem:[#allocation3 + $0x48] sm:$0xff] %vm938, %v4304
  %4397 = vst.msk [vmem:[#allocation3 + $0x60] sm:$0xff] %vm938, %v4306
  %4398 = vst.msk [vmem:[#allocation3 + $0x78] sm:$0xff] %vm938, %v4308
  %4399 = vst.msk [vmem:[#allocation3 + $0x90] sm:$0xff] %vm938, %v4310
  %4400 = vst.msk [vmem:[#allocation3 + $0xa8] sm:$0xff] %vm938, %v4312
  %4401 = vst.msk [vmem:[#allocation3 + $0xc0] sm:$0xff] %vm938, %v4314
  %4402 = vst.msk [vmem:[#allocation3 + $0xd8] sm:$0xff] %vm938, %v4316
  %4403 = vst.msk [vmem:[#allocation3 + $0xf0] sm:$0xff] %vm938, %v4318
  %4404 = vst.msk [vmem:[#allocation3 + $0x108] sm:$0xff] %vm938, %v4320
  %4405 = vst.msk [vmem:[#allocation3 + $0x120] sm:$0xff] %vm938, %v4322
  %4406 = vst.msk [vmem:[#allocation3 + $0x138] sm:$0xff] %vm938, %v4324
  %4407 = vst.msk [vmem:[#allocation3 + $0x150] sm:$0xff] %vm938, %v4326
  %4408 = vst.msk [vmem:[#allocation3 + $0x168] sm:$0xff] %vm938, %v4328
  %4409 = vst.msk [vmem:[#allocation3 + $0x180] sm:$0xff] %vm938, %v4330
  %4410 = vst.msk [vmem:[#allocation3 + $0x198] sm:$0xff] %vm938, %v4332
  %4411 = vst.msk [vmem:[#allocation3 + $0x1b0] sm:$0xff] %vm938, %v4334
  %4412 = vst.msk [vmem:[#allocation3 + $0x1c8] sm:$0xff] %vm938, %v4336
  %4413 = vst.msk [vmem:[#allocation3 + $0x1e0] sm:$0xff] %vm938, %v4338
  %4414 = vst.msk [vmem:[#allocation3 + $0x1f8] sm:$0xff] %vm938, %v4340
  %4415 = vst.msk [vmem:[#allocation3 + $0x210] sm:$0xff] %vm938, %v4342
  %4416 = vst.msk [vmem:[#allocation3 + $0x228] sm:$0xff] %vm938, %v4344
  %4417 = vst.msk [vmem:[#allocation3 + $0x240] sm:$0xff] %vm938, %v4346
  %4418 = vst.msk [vmem:[#allocation3 + $0x258] sm:$0xff] %vm938, %v4348
  %4419 = vst.msk [vmem:[#allocation3 + $0x270] sm:$0xff] %vm938, %v4350
  %4420 = vst.msk [vmem:[#allocation3 + $0x288] sm:$0xff] %vm938, %v4352
  %4421 = vst.msk [vmem:[#allocation3 + $0x2a0] sm:$0xff] %vm938, %v4354
  %4422 = vst.msk [vmem:[#allocation3 + $0x2b8] sm:$0xff] %vm938, %v4356
  %4423 = vst.msk [vmem:[#allocation3 + $0x2d0] sm:$0xff] %vm938, %v4358
  %4424 = vst.msk [vmem:[#allocation3 + $0x2e8] sm:$0xff] %vm938, %v4360
  %v4425 = vrot.slane %v3741, 2
  %v4426 = vrot.slane %v3742, 2
  %v4427 = vsel %vm971, %v4425, %v4426
  %v4428 = vrot.slane %v3743, 2
  %v4429 = vsel %vm971, %v4426, %v4428
  %v4430 = vrot.slane %v3744, 2
  %v4431 = vrot.slane %v3745, 2
  %v4432 = vsel %vm971, %v4430, %v4431
  %v4433 = vrot.slane %v3746, 2
  %v4434 = vsel %vm971, %v4431, %v4433
  %v4435 = vrot.slane %v3747, 2
  %v4436 = vrot.slane %v3748, 2
  %v4437 = vsel %vm971, %v4435, %v4436
  %v4438 = vrot.slane %v3749, 2
  %v4439 = vsel %vm971, %v4436, %v4438
  %v4440 = vrot.slane %v3750, 2
  %v4441 = vrot.slane %v3751, 2
  %v4442 = vsel %vm971, %v4440, %v4441
  %v4443 = vrot.slane %v3752, 2
  %v4444 = vsel %vm971, %v4441, %v4443
  %v4445 = vrot.slane %v3753, 2
  %v4446 = vrot.slane %v3754, 2
  %v4447 = vsel %vm971, %v4445, %v4446
  %v4448 = vrot.slane %v3755, 2
  %v4449 = vsel %vm971, %v4446, %v4448
  %v4450 = vrot.slane %v3756, 2
  %v4451 = vrot.slane %v3757, 2
  %v4452 = vsel %vm971, %v4450, %v4451
  %v4453 = vrot.slane %v3758, 2
  %v4454 = vsel %vm971, %v4451, %v4453
  %v4455 = vrot.slane %v3759, 2
  %v4456 = vrot.slane %v3760, 2
  %v4457 = vsel %vm971, %v4455, %v4456
  %v4458 = vrot.slane %v3761, 2
  %v4459 = vsel %vm971, %v4456, %v4458
  %v4460 = vrot.slane %v3762, 2
  %v4461 = vrot.slane %v3763, 2
  %v4462 = vsel %vm971, %v4460, %v4461
  %v4463 = vrot.slane %v3764, 2
  %v4464 = vsel %vm971, %v4461, %v4463
  %v4465 = vrot.slane %v3765, 2
  %v4466 = vrot.slane %v3766, 2
  %v4467 = vsel %vm971, %v4465, %v4466
  %v4468 = vrot.slane %v3767, 2
  %v4469 = vsel %vm971, %v4466, %v4468
  %v4470 = vrot.slane %v3768, 2
  %v4471 = vrot.slane %v3769, 2
  %v4472 = vsel %vm971, %v4470, %v4471
  %v4473 = vrot.slane %v3770, 2
  %v4474 = vsel %vm971, %v4471, %v4473
  %v4475 = vrot.slane %v3771, 2
  %v4476 = vrot.slane %v3772, 2
  %v4477 = vsel %vm971, %v4475, %v4476
  %v4478 = vrot.slane %v3773, 2
  %v4479 = vsel %vm971, %v4476, %v4478
  %v4480 = vrot.slane %v3774, 2
  %v4481 = vrot.slane %v3775, 2
  %v4482 = vsel %vm971, %v4480, %v4481
  %v4483 = vrot.slane %v3776, 2
  %v4484 = vsel %vm971, %v4481, %v4483
  %v4485 = vrot.slane %v3777, 2
  %v4486 = vrot.slane %v3778, 2
  %v4487 = vsel %vm971, %v4485, %v4486
  %v4488 = vrot.slane %v3779, 2
  %v4489 = vsel %vm971, %v4486, %v4488
  %v4490 = vrot.slane %v3780, 2
  %v4491 = vrot.slane %v3781, 2
  %v4492 = vsel %vm971, %v4490, %v4491
  %v4493 = vrot.slane %v3782, 2
  %v4494 = vsel %vm971, %v4491, %v4493
  %v4495 = vrot.slane %v3783, 2
  %v4496 = vrot.slane %v3784, 2
  %v4497 = vsel %vm971, %v4495, %v4496
  %v4498 = vrot.slane %v3785, 2
  %v4499 = vsel %vm971, %v4496, %v4498
  %v4500 = vrot.slane %v3786, 2
  %v4501 = vrot.slane %v3787, 2
  %v4502 = vsel %vm971, %v4500, %v4501
  %v4503 = vrot.slane %v3788, 2
  %v4504 = vsel %vm971, %v4501, %v4503
  %v4505 = vrot.slane %v3795, 2
  %v4506 = vrot.slane %v3796, 2
  %v4507 = vsel %vm971, %v4505, %v4506
  %v4508 = vrot.slane %v3797, 2
  %v4509 = vsel %vm971, %v4506, %v4508
  %v4510 = vrot.slane %v3798, 2
  %v4511 = vrot.slane %v3799, 2
  %v4512 = vsel %vm971, %v4510, %v4511
  %v4513 = vrot.slane %v3800, 2
  %v4514 = vsel %vm971, %v4511, %v4513
  %v4515 = vrot.slane %v3801, 2
  %v4516 = vrot.slane %v3802, 2
  %v4517 = vsel %vm971, %v4515, %v4516
  %v4518 = vrot.slane %v3803, 2
  %v4519 = vsel %vm971, %v4516, %v4518
  %v4520 = vrot.slane %v3804, 2
  %v4521 = vrot.slane %v3805, 2
  %v4522 = vsel %vm971, %v4520, %v4521
  %v4523 = vrot.slane %v3806, 2
  %v4524 = vsel %vm971, %v4521, %v4523
  %v4525 = vrot.slane %v3807, 2
  %v4526 = vrot.slane %v3808, 2
  %v4527 = vsel %vm971, %v4525, %v4526
  %v4528 = vrot.slane %v3809, 2
  %v4529 = vsel %vm971, %v4526, %v4528
  %v4530 = vrot.slane %v3810, 2
  %v4531 = vrot.slane %v3811, 2
  %v4532 = vsel %vm971, %v4530, %v4531
  %v4533 = vrot.slane %v3812, 2
  %v4534 = vsel %vm971, %v4531, %v4533
  %v4535 = vrot.slane %v3813, 2
  %v4536 = vrot.slane %v3814, 2
  %v4537 = vsel %vm971, %v4535, %v4536
  %v4538 = vrot.slane %v3815, 2
  %v4539 = vsel %vm971, %v4536, %v4538
  %v4540 = vrot.slane %v3816, 2
  %v4541 = vrot.slane %v3817, 2
  %v4542 = vsel %vm971, %v4540, %v4541
  %v4543 = vrot.slane %v3818, 2
  %v4544 = vsel %vm971, %v4541, %v4543
  %v4545 = vrot.slane %v3819, 2
  %v4546 = vrot.slane %v3820, 2
  %v4547 = vsel %vm971, %v4545, %v4546
  %v4548 = vrot.slane %v3821, 2
  %v4549 = vsel %vm971, %v4546, %v4548
  %v4550 = vrot.slane %v3822, 2
  %v4551 = vrot.slane %v3823, 2
  %v4552 = vsel %vm971, %v4550, %v4551
  %v4553 = vrot.slane %v3824, 2
  %v4554 = vsel %vm971, %v4551, %v4553
  %v4555 = vrot.slane %v3825, 2
  %v4556 = vrot.slane %v3826, 2
  %v4557 = vsel %vm971, %v4555, %v4556
  %v4558 = vrot.slane %v3827, 2
  %v4559 = vsel %vm971, %v4556, %v4558
  %v4560 = vrot.slane %v3828, 2
  %v4561 = vrot.slane %v3829, 2
  %v4562 = vsel %vm971, %v4560, %v4561
  %v4563 = vrot.slane %v3830, 2
  %v4564 = vsel %vm971, %v4561, %v4563
  %v4565 = vrot.slane %v3831, 2
  %v4566 = vrot.slane %v3832, 2
  %v4567 = vsel %vm971, %v4565, %v4566
  %v4568 = vrot.slane %v3833, 2
  %v4569 = vsel %vm971, %v4566, %v4568
  %v4570 = vrot.slane %v3834, 2
  %v4571 = vrot.slane %v3835, 2
  %v4572 = vsel %vm971, %v4570, %v4571
  %v4573 = vrot.slane %v3836, 2
  %v4574 = vsel %vm971, %v4571, %v4573
  %v4575 = vrot.slane %v3837, 2
  %v4576 = vrot.slane %v3838, 2
  %v4577 = vsel %vm971, %v4575, %v4576
  %v4578 = vrot.slane %v3839, 2
  %v4579 = vsel %vm971, %v4576, %v4578
  %v4580 = vrot.slane %v3840, 2
  %v4581 = vrot.slane %v3841, 2
  %v4582 = vsel %vm971, %v4580, %v4581
  %v4583 = vrot.slane %v3842, 2
  %v4584 = vsel %vm971, %v4581, %v4583
  %v4649 = vpack.c.bf16 %v4429, %v4427
  %v4650 = vpack.c.bf16 %v4434, %v4432
  %v4651 = vpack.c.bf16 %v4439, %v4437
  %v4652 = vpack.c.bf16 %v4444, %v4442
  %v4653 = vpack.c.bf16 %v4449, %v4447
  %v4654 = vpack.c.bf16 %v4454, %v4452
  %v4655 = vpack.c.bf16 %v4459, %v4457
  %v4656 = vpack.c.bf16 %v4464, %v4462
  %v4657 = vpack.c.bf16 %v4469, %v4467
  %v4658 = vpack.c.bf16 %v4474, %v4472
  %v4659 = vpack.c.bf16 %v4479, %v4477
  %v4660 = vpack.c.bf16 %v4484, %v4482
  %v4661 = vpack.c.bf16 %v4489, %v4487
  %v4662 = vpack.c.bf16 %v4494, %v4492
  %v4663 = vpack.c.bf16 %v4499, %v4497
  %v4664 = vpack.c.bf16 %v4504, %v4502
  %v4665 = vpack.c.bf16 %v4509, %v4507
  %v4666 = vpack.c.bf16 %v4514, %v4512
  %v4667 = vpack.c.bf16 %v4519, %v4517
  %v4668 = vpack.c.bf16 %v4524, %v4522
  %v4669 = vpack.c.bf16 %v4529, %v4527
  %v4670 = vpack.c.bf16 %v4534, %v4532
  %v4671 = vpack.c.bf16 %v4539, %v4537
  %v4672 = vpack.c.bf16 %v4544, %v4542
  %v4673 = vpack.c.bf16 %v4549, %v4547
  %v4674 = vpack.c.bf16 %v4554, %v4552
  %v4675 = vpack.c.bf16 %v4559, %v4557
  %v4676 = vpack.c.bf16 %v4564, %v4562
  %v4677 = vpack.c.bf16 %v4569, %v4567
  %v4678 = vpack.c.bf16 %v4574, %v4572
  %v4679 = vpack.c.bf16 %v4579, %v4577
  %v4680 = vpack.c.bf16 %v4584, %v4582
  %4713 = vrot.lane.b32.xlu0 %v4649, 64
  %v4714 = vpop.permute.xlu0 %4713
  %4715 = vrot.lane.b32.xlu0 %v4650, 64
  %v4716 = vpop.permute.xlu0 %4715
  %4717 = vrot.lane.b32.xlu0 %v4651, 64
  %v4718 = vpop.permute.xlu0 %4717
  %4719 = vrot.lane.b32.xlu0 %v4652, 64
  %v4720 = vpop.permute.xlu0 %4719
  %4721 = vrot.lane.b32.xlu0 %v4653, 64
  %v4722 = vpop.permute.xlu0 %4721
  %4723 = vrot.lane.b32.xlu0 %v4654, 64
  %v4724 = vpop.permute.xlu0 %4723
  %4725 = vrot.lane.b32.xlu0 %v4655, 64
  %v4726 = vpop.permute.xlu0 %4725
  %4727 = vrot.lane.b32.xlu0 %v4656, 64
  %v4728 = vpop.permute.xlu0 %4727
  %4729 = vrot.lane.b32.xlu0 %v4657, 64
  %v4730 = vpop.permute.xlu0 %4729
  %4731 = vrot.lane.b32.xlu0 %v4658, 64
  %v4732 = vpop.permute.xlu0 %4731
  %4733 = vrot.lane.b32.xlu0 %v4659, 64
  %v4734 = vpop.permute.xlu0 %4733
  %4735 = vrot.lane.b32.xlu0 %v4660, 64
  %v4736 = vpop.permute.xlu0 %4735
  %4737 = vrot.lane.b32.xlu0 %v4661, 64
  %v4738 = vpop.permute.xlu0 %4737
  %4739 = vrot.lane.b32.xlu0 %v4662, 64
  %v4740 = vpop.permute.xlu0 %4739
  %4741 = vrot.lane.b32.xlu0 %v4663, 64
  %v4742 = vpop.permute.xlu0 %4741
  %4743 = vrot.lane.b32.xlu0 %v4664, 64
  %v4744 = vpop.permute.xlu0 %4743
  %4745 = vrot.lane.b32.xlu0 %v4665, 64
  %v4746 = vpop.permute.xlu0 %4745
  %4747 = vrot.lane.b32.xlu0 %v4666, 64
  %v4748 = vpop.permute.xlu0 %4747
  %4749 = vrot.lane.b32.xlu0 %v4667, 64
  %v4750 = vpop.permute.xlu0 %4749
  %4751 = vrot.lane.b32.xlu0 %v4668, 64
  %v4752 = vpop.permute.xlu0 %4751
  %4753 = vrot.lane.b32.xlu0 %v4669, 64
  %v4754 = vpop.permute.xlu0 %4753
  %4755 = vrot.lane.b32.xlu0 %v4670, 64
  %v4756 = vpop.permute.xlu0 %4755
  %4757 = vrot.lane.b32.xlu0 %v4671, 64
  %v4758 = vpop.permute.xlu0 %4757
  %4759 = vrot.lane.b32.xlu0 %v4672, 64
  %v4760 = vpop.permute.xlu0 %4759
  %4761 = vrot.lane.b32.xlu0 %v4673, 64
  %v4762 = vpop.permute.xlu0 %4761
  %4763 = vrot.lane.b32.xlu0 %v4674, 64
  %v4764 = vpop.permute.xlu0 %4763
  %4765 = vrot.lane.b32.xlu0 %v4675, 64
  %v4766 = vpop.permute.xlu0 %4765
  %4767 = vrot.lane.b32.xlu0 %v4676, 64
  %v4768 = vpop.permute.xlu0 %4767
  %4769 = vrot.lane.b32.xlu0 %v4677, 64
  %v4770 = vpop.permute.xlu0 %4769
  %4771 = vrot.lane.b32.xlu0 %v4678, 64
  %v4772 = vpop.permute.xlu0 %4771
  %4773 = vrot.lane.b32.xlu0 %v4679, 64
  %v4774 = vpop.permute.xlu0 %4773
  %4775 = vrot.lane.b32.xlu0 %v4680, 64
  %v4776 = vpop.permute.xlu0 %4775
  %4809 = vst.msk [vmem:[#allocation3] sm:$0xff] %vm1356, %v4714
  %4810 = vst.msk [vmem:[#allocation3 + $0x18] sm:$0xff] %vm1356, %v4716
  %4811 = vst.msk [vmem:[#allocation3 + $0x30] sm:$0xff] %vm1356, %v4718
  %4812 = vst.msk [vmem:[#allocation3 + $0x48] sm:$0xff] %vm1356, %v4720
  %4813 = vst.msk [vmem:[#allocation3 + $0x60] sm:$0xff] %vm1356, %v4722
  %4814 = vst.msk [vmem:[#allocation3 + $0x78] sm:$0xff] %vm1356, %v4724
  %4815 = vst.msk [vmem:[#allocation3 + $0x90] sm:$0xff] %vm1356, %v4726
  %4816 = vst.msk [vmem:[#allocation3 + $0xa8] sm:$0xff] %vm1356, %v4728
  %4817 = vst.msk [vmem:[#allocation3 + $0xc0] sm:$0xff] %vm1356, %v4730
  %4818 = vst.msk [vmem:[#allocation3 + $0xd8] sm:$0xff] %vm1356, %v4732
  %4819 = vst.msk [vmem:[#allocation3 + $0xf0] sm:$0xff] %vm1356, %v4734
  %4820 = vst.msk [vmem:[#allocation3 + $0x108] sm:$0xff] %vm1356, %v4736
  %4821 = vst.msk [vmem:[#allocation3 + $0x120] sm:$0xff] %vm1356, %v4738
  %4822 = vst.msk [vmem:[#allocation3 + $0x138] sm:$0xff] %vm1356, %v4740
  %4823 = vst.msk [vmem:[#allocation3 + $0x150] sm:$0xff] %vm1356, %v4742
  %4824 = vst.msk [vmem:[#allocation3 + $0x168] sm:$0xff] %vm1356, %v4744
  %4825 = vst.msk [vmem:[#allocation3 + $0x180] sm:$0xff] %vm1356, %v4746
  %4826 = vst.msk [vmem:[#allocation3 + $0x198] sm:$0xff] %vm1356, %v4748
  %4827 = vst.msk [vmem:[#allocation3 + $0x1b0] sm:$0xff] %vm1356, %v4750
  %4828 = vst.msk [vmem:[#allocation3 + $0x1c8] sm:$0xff] %vm1356, %v4752
  %4829 = vst.msk [vmem:[#allocation3 + $0x1e0] sm:$0xff] %vm1356, %v4754
  %4830 = vst.msk [vmem:[#allocation3 + $0x1f8] sm:$0xff] %vm1356, %v4756
  %4831 = vst.msk [vmem:[#allocation3 + $0x210] sm:$0xff] %vm1356, %v4758
  %4832 = vst.msk [vmem:[#allocation3 + $0x228] sm:$0xff] %vm1356, %v4760
  %4833 = vst.msk [vmem:[#allocation3 + $0x240] sm:$0xff] %vm1356, %v4762
  %4834 = vst.msk [vmem:[#allocation3 + $0x258] sm:$0xff] %vm1356, %v4764
  %4835 = vst.msk [vmem:[#allocation3 + $0x270] sm:$0xff] %vm1356, %v4766
  %4836 = vst.msk [vmem:[#allocation3 + $0x288] sm:$0xff] %vm1356, %v4768
  %4837 = vst.msk [vmem:[#allocation3 + $0x2a0] sm:$0xff] %vm1356, %v4770
  %4838 = vst.msk [vmem:[#allocation3 + $0x2b8] sm:$0xff] %vm1356, %v4772
  %4839 = vst.msk [vmem:[#allocation3 + $0x2d0] sm:$0xff] %vm1356, %v4774
  %4840 = vst.msk [vmem:[#allocation3 + $0x2e8] sm:$0xff] %vm1356, %v4776
  %v4841 = vpack.c.bf16 %v3790, %v3789
  %v4842 = vpack.c.bf16 %v3844, %v3843
  %4875 = vrot.lane.b32.xlu0 %v3850, 96
  %v4876 = vpop.permute.xlu0 %4875
  %4877 = vrot.lane.b32.xlu0 %v3851, 96
  %v4878 = vpop.permute.xlu0 %4877
  %4879 = vrot.lane.b32.xlu0 %v3852, 96
  %v4880 = vpop.permute.xlu0 %4879
  %4881 = vrot.lane.b32.xlu0 %v3853, 96
  %v4882 = vpop.permute.xlu0 %4881
  %4883 = vrot.lane.b32.xlu0 %v3854, 96
  %v4884 = vpop.permute.xlu0 %4883
  %4885 = vrot.lane.b32.xlu0 %v3855, 96
  %v4886 = vpop.permute.xlu0 %4885
  %4887 = vrot.lane.b32.xlu0 %v3856, 96
  %v4888 = vpop.permute.xlu0 %4887
  %4889 = vrot.lane.b32.xlu0 %v3857, 96
  %v4890 = vpop.permute.xlu0 %4889
  %4891 = vrot.lane.b32.xlu0 %v3858, 96
  %v4892 = vpop.permute.xlu0 %4891
  %4893 = vrot.lane.b32.xlu0 %v3859, 96
  %v4894 = vpop.permute.xlu0 %4893
  %4895 = vrot.lane.b32.xlu0 %v3860, 96
  %v4896 = vpop.permute.xlu0 %4895
  %4897 = vrot.lane.b32.xlu0 %v3861, 96
  %v4898 = vpop.permute.xlu0 %4897
  %4899 = vrot.lane.b32.xlu0 %v3862, 96
  %v4900 = vpop.permute.xlu0 %4899
  %4901 = vrot.lane.b32.xlu0 %v3863, 96
  %v4902 = vpop.permute.xlu0 %4901
  %4903 = vrot.lane.b32.xlu0 %v3864, 96
  %v4904 = vpop.permute.xlu0 %4903
  %4905 = vrot.lane.b32.xlu0 %v4841, 96
  %v4906 = vpop.permute.xlu0 %4905
  %4907 = vrot.lane.b32.xlu0 %v3866, 96
  %v4908 = vpop.permute.xlu0 %4907
  %4909 = vrot.lane.b32.xlu0 %v3867, 96
  %v4910 = vpop.permute.xlu0 %4909
  %4911 = vrot.lane.b32.xlu0 %v3868, 96
  %v4912 = vpop.permute.xlu0 %4911
  %4913 = vrot.lane.b32.xlu0 %v3869, 96
  %v4914 = vpop.permute.xlu0 %4913
  %4915 = vrot.lane.b32.xlu0 %v3870, 96
  %v4916 = vpop.permute.xlu0 %4915
  %4917 = vrot.lane.b32.xlu0 %v3871, 96
  %v4918 = vpop.permute.xlu0 %4917
  %4919 = vrot.lane.b32.xlu0 %v3872, 96
  %v4920 = vpop.permute.xlu0 %4919
  %4921 = vrot.lane.b32.xlu0 %v3873, 96
  %v4922 = vpop.permute.xlu0 %4921
  %4923 = vrot.lane.b32.xlu0 %v3874, 96
  %v4924 = vpop.permute.xlu0 %4923
  %4925 = vrot.lane.b32.xlu0 %v3875, 96
  %v4926 = vpop.permute.xlu0 %4925
  %4927 = vrot.lane.b32.xlu0 %v3876, 96
  %v4928 = vpop.permute.xlu0 %4927
  %4929 = vrot.lane.b32.xlu0 %v3877, 96
  %v4930 = vpop.permute.xlu0 %4929
  %4931 = vrot.lane.b32.xlu0 %v3878, 96
  %v4932 = vpop.permute.xlu0 %4931
  %4933 = vrot.lane.b32.xlu0 %v3879, 96
  %v4934 = vpop.permute.xlu0 %4933
  %4935 = vrot.lane.b32.xlu0 %v3880, 96
  %v4936 = vpop.permute.xlu0 %4935
  %4937 = vrot.lane.b32.xlu0 %v4842, 96
  %v4938 = vpop.permute.xlu0 %4937
  %4971 = vst.msk [vmem:[#allocation3] sm:$0xff] %vm1519, %v4876
  %4972 = vst.msk [vmem:[#allocation3 + $0x18] sm:$0xff] %vm1519, %v4878
  %4973 = vst.msk [vmem:[#allocation3 + $0x30] sm:$0xff] %vm1519, %v4880
  %4974 = vst.msk [vmem:[#allocation3 + $0x48] sm:$0xff] %vm1519, %v4882
  %4975 = vst.msk [vmem:[#allocation3 + $0x60] sm:$0xff] %vm1519, %v4884
  %4976 = vst.msk [vmem:[#allocation3 + $0x78] sm:$0xff] %vm1519, %v4886
  %4977 = vst.msk [vmem:[#allocation3 + $0x90] sm:$0xff] %vm1519, %v4888
  %4978 = vst.msk [vmem:[#allocation3 + $0xa8] sm:$0xff] %vm1519, %v4890
  %4979 = vst.msk [vmem:[#allocation3 + $0xc0] sm:$0xff] %vm1519, %v4892
  %4980 = vst.msk [vmem:[#allocation3 + $0xd8] sm:$0xff] %vm1519, %v4894
  %4981 = vst.msk [vmem:[#allocation3 + $0xf0] sm:$0xff] %vm1519, %v4896
  %4982 = vst.msk [vmem:[#allocation3 + $0x108] sm:$0xff] %vm1519, %v4898
  %4983 = vst.msk [vmem:[#allocation3 + $0x120] sm:$0xff] %vm1519, %v4900
  %4984 = vst.msk [vmem:[#allocation3 + $0x138] sm:$0xff] %vm1519, %v4902
  %4985 = vst.msk [vmem:[#allocation3 + $0x150] sm:$0xff] %vm1519, %v4904
  %4986 = vst.msk [vmem:[#allocation3 + $0x168] sm:$0xff] %vm1519, %v4906
  %4987 = vst.msk [vmem:[#allocation3 + $0x180] sm:$0xff] %vm1519, %v4908
  %4988 = vst.msk [vmem:[#allocation3 + $0x198] sm:$0xff] %vm1519, %v4910
  %4989 = vst.msk [vmem:[#allocation3 + $0x1b0] sm:$0xff] %vm1519, %v4912
  %4990 = vst.msk [vmem:[#allocation3 + $0x1c8] sm:$0xff] %vm1519, %v4914
  %4991 = vst.msk [vmem:[#allocation3 + $0x1e0] sm:$0xff] %vm1519, %v4916
  %4992 = vst.msk [vmem:[#allocation3 + $0x1f8] sm:$0xff] %vm1519, %v4918
  %4993 = vst.msk [vmem:[#allocation3 + $0x210] sm:$0xff] %vm1519, %v4920
  %4994 = vst.msk [vmem:[#allocation3 + $0x228] sm:$0xff] %vm1519, %v4922
  %4995 = vst.msk [vmem:[#allocation3 + $0x240] sm:$0xff] %vm1519, %v4924
  %4996 = vst.msk [vmem:[#allocation3 + $0x258] sm:$0xff] %vm1519, %v4926
  %4997 = vst.msk [vmem:[#allocation3 + $0x270] sm:$0xff] %vm1519, %v4928
  %4998 = vst.msk [vmem:[#allocation3 + $0x288] sm:$0xff] %vm1519, %v4930
  %4999 = vst.msk [vmem:[#allocation3 + $0x2a0] sm:$0xff] %vm1519, %v4932
  %5000 = vst.msk [vmem:[#allocation3 + $0x2b8] sm:$0xff] %vm1519, %v4934
  %5001 = vst.msk [vmem:[#allocation3 + $0x2d0] sm:$0xff] %vm1519, %v4936
  %5002 = vst.msk [vmem:[#allocation3 + $0x2e8] sm:$0xff] %vm1519, %v4938
  %v5009 = vrot.slane %v3789, 1
  %v5010 = vrot.slane %v3790, 1
  %v5011 = vsel %vm553, %v5009, %v5010
  %v5012 = vrot.slane %v3791, 1
  %v5013 = vsel %vm553, %v5010, %v5012
  %v5014 = vrot.slane %v3843, 1
  %v5015 = vrot.slane %v3844, 1
  %v5016 = vsel %vm553, %v5014, %v5015
  %v5017 = vrot.slane %v3845, 1
  %v5018 = vsel %vm553, %v5015, %v5017
  %v5023 = vpack.c.bf16 %v5013, %v5011
  %v5024 = vpack.c.bf16 %v5018, %v5016
  %5025 = vst.msk [vmem:[#allocation3 + $0x8] sm:$0xff] %vm45, %v4234
  %5026 = vst.msk [vmem:[#allocation3 + $0x20] sm:$0xff] %vm45, %v4235
  %5027 = vst.msk [vmem:[#allocation3 + $0x38] sm:$0xff] %vm45, %v4236
  %5028 = vst.msk [vmem:[#allocation3 + $0x50] sm:$0xff] %vm45, %v4237
  %5029 = vst.msk [vmem:[#allocation3 + $0x68] sm:$0xff] %vm45, %v4238
  %5030 = vst.msk [vmem:[#allocation3 + $0x80] sm:$0xff] %vm45, %v4239
  %5031 = vst.msk [vmem:[#allocation3 + $0x98] sm:$0xff] %vm45, %v4240
  %5032 = vst.msk [vmem:[#allocation3 + $0xb0] sm:$0xff] %vm45, %v4241
  %5033 = vst.msk [vmem:[#allocation3 + $0xc8] sm:$0xff] %vm45, %v4242
  %5034 = vst.msk [vmem:[#allocation3 + $0xe0] sm:$0xff] %vm45, %v4243
  %5035 = vst.msk [vmem:[#allocation3 + $0xf8] sm:$0xff] %vm45, %v4244
  %5036 = vst.msk [vmem:[#allocation3 + $0x110] sm:$0xff] %vm45, %v4245
  %5037 = vst.msk [vmem:[#allocation3 + $0x128] sm:$0xff] %vm45, %v4246
  %5038 = vst.msk [vmem:[#allocation3 + $0x140] sm:$0xff] %vm45, %v4247
  %5039 = vst.msk [vmem:[#allocation3 + $0x158] sm:$0xff] %vm45, %v4248
  %5040 = vst.msk [vmem:[#allocation3 + $0x170] sm:$0xff] %vm45, %v5023
  %5041 = vst.msk [vmem:[#allocation3 + $0x188] sm:$0xff] %vm45, %v4250
  %5042 = vst.msk [vmem:[#allocation3 + $0x1a0] sm:$0xff] %vm45, %v4251
  %5043 = vst.msk [vmem:[#allocation3 + $0x1b8] sm:$0xff] %vm45, %v4252
  %5044 = vst.msk [vmem:[#allocation3 + $0x1d0] sm:$0xff] %vm45, %v4253
  %5045 = vst.msk [vmem:[#allocation3 + $0x1e8] sm:$0xff] %vm45, %v4254
  %5046 = vst.msk [vmem:[#allocation3 + $0x200] sm:$0xff] %vm45, %v4255
  %5047 = vst.msk [vmem:[#allocation3 + $0x218] sm:$0xff] %vm45, %v4256
  %5048 = vst.msk [vmem:[#allocation3 + $0x230] sm:$0xff] %vm45, %v4257
  %5049 = vst.msk [vmem:[#allocation3 + $0x248] sm:$0xff] %vm45, %v4258
  %5050 = vst.msk [vmem:[#allocation3 + $0x260] sm:$0xff] %vm45, %v4259
  %5051 = vst.msk [vmem:[#allocation3 + $0x278] sm:$0xff] %vm45, %v4260
  %5052 = vst.msk [vmem:[#allocation3 + $0x290] sm:$0xff] %vm45, %v4261
  %5053 = vst.msk [vmem:[#allocation3 + $0x2a8] sm:$0xff] %vm45, %v4262
  %5054 = vst.msk [vmem:[#allocation3 + $0x2c0] sm:$0xff] %vm45, %v4263
  %5055 = vst.msk [vmem:[#allocation3 + $0x2d8] sm:$0xff] %vm45, %v4264
  %5056 = vst.msk [vmem:[#allocation3 + $0x2f0] sm:$0xff] %vm45, %v5024
  %v5057 = vrot.slane %v3789, 2
  %v5058 = vrot.slane %v3790, 2
  %v5059 = vsel %vm971, %v5057, %v5058
  %v5060 = vrot.slane %v3791, 2
  %v5061 = vsel %vm971, %v5058, %v5060
  %v5062 = vrot.slane %v3843, 2
  %v5063 = vrot.slane %v3844, 2
  %v5064 = vsel %vm971, %v5062, %v5063
  %v5065 = vrot.slane %v3845, 2
  %v5066 = vsel %vm971, %v5063, %v5065
  %v5071 = vpack.c.bf16 %v5061, %v5059
  %v5072 = vpack.c.bf16 %v5066, %v5064
  %5075 = vrot.lane.b32.xlu0 %v4650, 32
  %v5076 = vpop.permute.xlu0 %5075
  %5077 = vrot.lane.b32.xlu0 %v4651, 32
  %v5078 = vpop.permute.xlu0 %5077
  %5079 = vrot.lane.b32.xlu0 %v4652, 32
  %v5080 = vpop.permute.xlu0 %5079
  %5081 = vrot.lane.b32.xlu0 %v4653, 32
  %v5082 = vpop.permute.xlu0 %5081
  %5083 = vrot.lane.b32.xlu0 %v4654, 32
  %v5084 = vpop.permute.xlu0 %5083
  %5085 = vrot.lane.b32.xlu0 %v4655, 32
  %v5086 = vpop.permute.xlu0 %5085
  %5087 = vrot.lane.b32.xlu0 %v4656, 32
  %v5088 = vpop.permute.xlu0 %5087
  %5089 = vrot.lane.b32.xlu0 %v4657, 32
  %v5090 = vpop.permute.xlu0 %5089
  %5091 = vrot.lane.b32.xlu0 %v4658, 32
  %v5092 = vpop.permute.xlu0 %5091
  %5093 = vrot.lane.b32.xlu0 %v4659, 32
  %v5094 = vpop.permute.xlu0 %5093
  %5095 = vrot.lane.b32.xlu0 %v4660, 32
  %v5096 = vpop.permute.xlu0 %5095
  %5097 = vrot.lane.b32.xlu0 %v4661, 32
  %v5098 = vpop.permute.xlu0 %5097
  %5099 = vrot.lane.b32.xlu0 %v4662, 32
  %v5100 = vpop.permute.xlu0 %5099
  %5101 = vrot.lane.b32.xlu0 %v4663, 32
  %v5102 = vpop.permute.xlu0 %5101
  %5103 = vrot.lane.b32.xlu0 %v4664, 32
  %v5104 = vpop.permute.xlu0 %5103
  %5105 = vrot.lane.b32.xlu0 %v5071, 32
  %v5106 = vpop.permute.xlu0 %5105
  %5107 = vrot.lane.b32.xlu0 %v4666, 32
  %v5108 = vpop.permute.xlu0 %5107
  %5109 = vrot.lane.b32.xlu0 %v4667, 32
  %v5110 = vpop.permute.xlu0 %5109
  %5111 = vrot.lane.b32.xlu0 %v4668, 32
  %v5112 = vpop.permute.xlu0 %5111
  %5113 = vrot.lane.b32.xlu0 %v4669, 32
  %v5114 = vpop.permute.xlu0 %5113
  %5115 = vrot.lane.b32.xlu0 %v4670, 32
  %v5116 = vpop.permute.xlu0 %5115
  %5117 = vrot.lane.b32.xlu0 %v4671, 32
  %v5118 = vpop.permute.xlu0 %5117
  %5119 = vrot.lane.b32.xlu0 %v4672, 32
  %v5120 = vpop.permute.xlu0 %5119
  %5121 = vrot.lane.b32.xlu0 %v4673, 32
  %v5122 = vpop.permute.xlu0 %5121
  %5123 = vrot.lane.b32.xlu0 %v4674, 32
  %v5124 = vpop.permute.xlu0 %5123
  %5125 = vrot.lane.b32.xlu0 %v4675, 32
  %v5126 = vpop.permute.xlu0 %5125
  %5127 = vrot.lane.b32.xlu0 %v4676, 32
  %v5128 = vpop.permute.xlu0 %5127
  %5129 = vrot.lane.b32.xlu0 %v4677, 32
  %v5130 = vpop.permute.xlu0 %5129
  %5131 = vrot.lane.b32.xlu0 %v4678, 32
  %v5132 = vpop.permute.xlu0 %5131
  %5133 = vrot.lane.b32.xlu0 %v4679, 32
  %v5134 = vpop.permute.xlu0 %5133
  %5135 = vrot.lane.b32.xlu0 %v4680, 32
  %v5136 = vpop.permute.xlu0 %5135
  %5137 = vrot.lane.b32.xlu0 %v5072, 32
  %v5138 = vpop.permute.xlu0 %5137
  %5171 = vst.msk [vmem:[#allocation3 + $0x8] sm:$0xff] %vm938, %v5076
  %5172 = vst.msk [vmem:[#allocation3 + $0x20] sm:$0xff] %vm938, %v5078
  %5173 = vst.msk [vmem:[#allocation3 + $0x38] sm:$0xff] %vm938, %v5080
  %5174 = vst.msk [vmem:[#allocation3 + $0x50] sm:$0xff] %vm938, %v5082
  %5175 = vst.msk [vmem:[#allocation3 + $0x68] sm:$0xff] %vm938, %v5084
  %5176 = vst.msk [vmem:[#allocation3 + $0x80] sm:$0xff] %vm938, %v5086
  %5177 = vst.msk [vmem:[#allocation3 + $0x98] sm:$0xff] %vm938, %v5088
  %5178 = vst.msk [vmem:[#allocation3 + $0xb0] sm:$0xff] %vm938, %v5090
  %5179 = vst.msk [vmem:[#allocation3 + $0xc8] sm:$0xff] %vm938, %v5092
  %5180 = vst.msk [vmem:[#allocation3 + $0xe0] sm:$0xff] %vm938, %v5094
  %5181 = vst.msk [vmem:[#allocation3 + $0xf8] sm:$0xff] %vm938, %v5096
  %5182 = vst.msk [vmem:[#allocation3 + $0x110] sm:$0xff] %vm938, %v5098
  %5183 = vst.msk [vmem:[#allocation3 + $0x128] sm:$0xff] %vm938, %v5100
  %5184 = vst.msk [vmem:[#allocation3 + $0x140] sm:$0xff] %vm938, %v5102
  %5185 = vst.msk [vmem:[#allocation3 + $0x158] sm:$0xff] %vm938, %v5104
  %5186 = vst.msk [vmem:[#allocation3 + $0x170] sm:$0xff] %vm938, %v5106
  %5187 = vst.msk [vmem:[#allocation3 + $0x188] sm:$0xff] %vm938, %v5108
  %5188 = vst.msk [vmem:[#allocation3 + $0x1a0] sm:$0xff] %vm938, %v5110
  %5189 = vst.msk [vmem:[#allocation3 + $0x1b8] sm:$0xff] %vm938, %v5112
  %5190 = vst.msk [vmem:[#allocation3 + $0x1d0] sm:$0xff] %vm938, %v5114
  %5191 = vst.msk [vmem:[#allocation3 + $0x1e8] sm:$0xff] %vm938, %v5116
  %5192 = vst.msk [vmem:[#allocation3 + $0x200] sm:$0xff] %vm938, %v5118
  %5193 = vst.msk [vmem:[#allocation3 + $0x218] sm:$0xff] %vm938, %v5120
  %5194 = vst.msk [vmem:[#allocation3 + $0x230] sm:$0xff] %vm938, %v5122
  %5195 = vst.msk [vmem:[#allocation3 + $0x248] sm:$0xff] %vm938, %v5124
  %5196 = vst.msk [vmem:[#allocation3 + $0x260] sm:$0xff] %vm938, %v5126
  %5197 = vst.msk [vmem:[#allocation3 + $0x278] sm:$0xff] %vm938, %v5128
  %5198 = vst.msk [vmem:[#allocation3 + $0x290] sm:$0xff] %vm938, %v5130
  %5199 = vst.msk [vmem:[#allocation3 + $0x2a8] sm:$0xff] %vm938, %v5132
  %5200 = vst.msk [vmem:[#allocation3 + $0x2c0] sm:$0xff] %vm938, %v5134
  %5201 = vst.msk [vmem:[#allocation3 + $0x2d8] sm:$0xff] %vm938, %v5136
  %5202 = vst.msk [vmem:[#allocation3 + $0x2f0] sm:$0xff] %vm938, %v5138
  %v5203 = vpack.c.bf16 %v3793, %v3792
  %v5204 = vpack.c.bf16 %v3847, %v3846
  %5207 = vrot.lane.b32.xlu0 %v3851, 64
  %v5208 = vpop.permute.xlu0 %5207
  %5209 = vrot.lane.b32.xlu0 %v3852, 64
  %v5210 = vpop.permute.xlu0 %5209
  %5211 = vrot.lane.b32.xlu0 %v3853, 64
  %v5212 = vpop.permute.xlu0 %5211
  %5213 = vrot.lane.b32.xlu0 %v3854, 64
  %v5214 = vpop.permute.xlu0 %5213
  %5215 = vrot.lane.b32.xlu0 %v3855, 64
  %v5216 = vpop.permute.xlu0 %5215
  %5217 = vrot.lane.b32.xlu0 %v3856, 64
  %v5218 = vpop.permute.xlu0 %5217
  %5219 = vrot.lane.b32.xlu0 %v3857, 64
  %v5220 = vpop.permute.xlu0 %5219
  %5221 = vrot.lane.b32.xlu0 %v3858, 64
  %v5222 = vpop.permute.xlu0 %5221
  %5223 = vrot.lane.b32.xlu0 %v3859, 64
  %v5224 = vpop.permute.xlu0 %5223
  %5225 = vrot.lane.b32.xlu0 %v3860, 64
  %v5226 = vpop.permute.xlu0 %5225
  %5227 = vrot.lane.b32.xlu0 %v3861, 64
  %v5228 = vpop.permute.xlu0 %5227
  %5229 = vrot.lane.b32.xlu0 %v3862, 64
  %v5230 = vpop.permute.xlu0 %5229
  %5231 = vrot.lane.b32.xlu0 %v3863, 64
  %v5232 = vpop.permute.xlu0 %5231
  %5233 = vrot.lane.b32.xlu0 %v3864, 64
  %v5234 = vpop.permute.xlu0 %5233
  %5235 = vrot.lane.b32.xlu0 %v4841, 64
  %v5236 = vpop.permute.xlu0 %5235
  %5237 = vrot.lane.b32.xlu0 %v5203, 64
  %v5238 = vpop.permute.xlu0 %5237
  %5239 = vrot.lane.b32.xlu0 %v3867, 64
  %v5240 = vpop.permute.xlu0 %5239
  %5241 = vrot.lane.b32.xlu0 %v3868, 64
  %v5242 = vpop.permute.xlu0 %5241
  %5243 = vrot.lane.b32.xlu0 %v3869, 64
  %v5244 = vpop.permute.xlu0 %5243
  %5245 = vrot.lane.b32.xlu0 %v3870, 64
  %v5246 = vpop.permute.xlu0 %5245
  %5247 = vrot.lane.b32.xlu0 %v3871, 64
  %v5248 = vpop.permute.xlu0 %5247
  %5249 = vrot.lane.b32.xlu0 %v3872, 64
  %v5250 = vpop.permute.xlu0 %5249
  %5251 = vrot.lane.b32.xlu0 %v3873, 64
  %v5252 = vpop.permute.xlu0 %5251
  %5253 = vrot.lane.b32.xlu0 %v3874, 64
  %v5254 = vpop.permute.xlu0 %5253
  %5255 = vrot.lane.b32.xlu0 %v3875, 64
  %v5256 = vpop.permute.xlu0 %5255
  %5257 = vrot.lane.b32.xlu0 %v3876, 64
  %v5258 = vpop.permute.xlu0 %5257
  %5259 = vrot.lane.b32.xlu0 %v3877, 64
  %v5260 = vpop.permute.xlu0 %5259
  %5261 = vrot.lane.b32.xlu0 %v3878, 64
  %v5262 = vpop.permute.xlu0 %5261
  %5263 = vrot.lane.b32.xlu0 %v3879, 64
  %v5264 = vpop.permute.xlu0 %5263
  %5265 = vrot.lane.b32.xlu0 %v3880, 64
  %v5266 = vpop.permute.xlu0 %5265
  %5267 = vrot.lane.b32.xlu0 %v4842, 64
  %v5268 = vpop.permute.xlu0 %5267
  %5269 = vrot.lane.b32.xlu0 %v5204, 64
  %v5270 = vpop.permute.xlu0 %5269
  %5303 = vst.msk [vmem:[#allocation3 + $0x8] sm:$0xff] %vm1356, %v5208
  %5304 = vst.msk [vmem:[#allocation3 + $0x20] sm:$0xff] %vm1356, %v5210
  %5305 = vst.msk [vmem:[#allocation3 + $0x38] sm:$0xff] %vm1356, %v5212
  %5306 = vst.msk [vmem:[#allocation3 + $0x50] sm:$0xff] %vm1356, %v5214
  %5307 = vst.msk [vmem:[#allocation3 + $0x68] sm:$0xff] %vm1356, %v5216
  %5308 = vst.msk [vmem:[#allocation3 + $0x80] sm:$0xff] %vm1356, %v5218
  %5309 = vst.msk [vmem:[#allocation3 + $0x98] sm:$0xff] %vm1356, %v5220
  %5310 = vst.msk [vmem:[#allocation3 + $0xb0] sm:$0xff] %vm1356, %v5222
  %5311 = vst.msk [vmem:[#allocation3 + $0xc8] sm:$0xff] %vm1356, %v5224
  %5312 = vst.msk [vmem:[#allocation3 + $0xe0] sm:$0xff] %vm1356, %v5226
  %5313 = vst.msk [vmem:[#allocation3 + $0xf8] sm:$0xff] %vm1356, %v5228
  %5314 = vst.msk [vmem:[#allocation3 + $0x110] sm:$0xff] %vm1356, %v5230
  %5315 = vst.msk [vmem:[#allocation3 + $0x128] sm:$0xff] %vm1356, %v5232
  %5316 = vst.msk [vmem:[#allocation3 + $0x140] sm:$0xff] %vm1356, %v5234
  %5317 = vst.msk [vmem:[#allocation3 + $0x158] sm:$0xff] %vm1356, %v5236
  %5318 = vst.msk [vmem:[#allocation3 + $0x170] sm:$0xff] %vm1356, %v5238
  %5319 = vst.msk [vmem:[#allocation3 + $0x188] sm:$0xff] %vm1356, %v5240
  %5320 = vst.msk [vmem:[#allocation3 + $0x1a0] sm:$0xff] %vm1356, %v5242
  %5321 = vst.msk [vmem:[#allocation3 + $0x1b8] sm:$0xff] %vm1356, %v5244
  %5322 = vst.msk [vmem:[#allocation3 + $0x1d0] sm:$0xff] %vm1356, %v5246
  %5323 = vst.msk [vmem:[#allocation3 + $0x1e8] sm:$0xff] %vm1356, %v5248
  %5324 = vst.msk [vmem:[#allocation3 + $0x200] sm:$0xff] %vm1356, %v5250
  %5325 = vst.msk [vmem:[#allocation3 + $0x218] sm:$0xff] %vm1356, %v5252
  %5326 = vst.msk [vmem:[#allocation3 + $0x230] sm:$0xff] %vm1356, %v5254
  %5327 = vst.msk [vmem:[#allocation3 + $0x248] sm:$0xff] %vm1356, %v5256
  %5328 = vst.msk [vmem:[#allocation3 + $0x260] sm:$0xff] %vm1356, %v5258
  %5329 = vst.msk [vmem:[#allocation3 + $0x278] sm:$0xff] %vm1356, %v5260
  %5330 = vst.msk [vmem:[#allocation3 + $0x290] sm:$0xff] %vm1356, %v5262
  %5331 = vst.msk [vmem:[#allocation3 + $0x2a8] sm:$0xff] %vm1356, %v5264
  %5332 = vst.msk [vmem:[#allocation3 + $0x2c0] sm:$0xff] %vm1356, %v5266
  %5333 = vst.msk [vmem:[#allocation3 + $0x2d8] sm:$0xff] %vm1356, %v5268
  %5334 = vst.msk [vmem:[#allocation3 + $0x2f0] sm:$0xff] %vm1356, %v5270
  %v5341 = vrot.slane %v3792, 1
  %v5342 = vrot.slane %v3793, 1
  %v5343 = vsel %vm553, %v5341, %v5342
  %v5344 = vrot.slane %v3794, 1
  %v5345 = vsel %vm553, %v5342, %v5344
  %v5346 = vrot.slane %v3846, 1
  %v5347 = vrot.slane %v3847, 1
  %v5348 = vsel %vm553, %v5346, %v5347
  %v5349 = vrot.slane %v3848, 1
  %v5350 = vsel %vm553, %v5347, %v5349
  %v5355 = vpack.c.bf16 %v5345, %v5343
  %v5356 = vpack.c.bf16 %v5350, %v5348
  %5361 = vrot.lane.b32.xlu0 %v4235, 96
  %v5362 = vpop.permute.xlu0 %5361
  %5363 = vrot.lane.b32.xlu0 %v4236, 96
  %v5364 = vpop.permute.xlu0 %5363
  %5365 = vrot.lane.b32.xlu0 %v4237, 96
  %v5366 = vpop.permute.xlu0 %5365
  %5367 = vrot.lane.b32.xlu0 %v4238, 96
  %v5368 = vpop.permute.xlu0 %5367
  %5369 = vrot.lane.b32.xlu0 %v4239, 96
  %v5370 = vpop.permute.xlu0 %5369
  %5371 = vrot.lane.b32.xlu0 %v4240, 96
  %v5372 = vpop.permute.xlu0 %5371
  %5373 = vrot.lane.b32.xlu0 %v4241, 96
  %v5374 = vpop.permute.xlu0 %5373
  %5375 = vrot.lane.b32.xlu0 %v4242, 96
  %v5376 = vpop.permute.xlu0 %5375
  %5377 = vrot.lane.b32.xlu0 %v4243, 96
  %v5378 = vpop.permute.xlu0 %5377
  %5379 = vrot.lane.b32.xlu0 %v4244, 96
  %v5380 = vpop.permute.xlu0 %5379
  %5381 = vrot.lane.b32.xlu0 %v4245, 96
  %v5382 = vpop.permute.xlu0 %5381
  %5383 = vrot.lane.b32.xlu0 %v4246, 96
  %v5384 = vpop.permute.xlu0 %5383
  %5385 = vrot.lane.b32.xlu0 %v4247, 96
  %v5386 = vpop.permute.xlu0 %5385
  %5387 = vrot.lane.b32.xlu0 %v4248, 96
  %v5388 = vpop.permute.xlu0 %5387
  %5389 = vrot.lane.b32.xlu0 %v5023, 96
  %v5390 = vpop.permute.xlu0 %5389
  %5391 = vrot.lane.b32.xlu0 %v5355, 96
  %v5392 = vpop.permute.xlu0 %5391
  %5393 = vrot.lane.b32.xlu0 %v4251, 96
  %v5394 = vpop.permute.xlu0 %5393
  %5395 = vrot.lane.b32.xlu0 %v4252, 96
  %v5396 = vpop.permute.xlu0 %5395
  %5397 = vrot.lane.b32.xlu0 %v4253, 96
  %v5398 = vpop.permute.xlu0 %5397
  %5399 = vrot.lane.b32.xlu0 %v4254, 96
  %v5400 = vpop.permute.xlu0 %5399
  %5401 = vrot.lane.b32.xlu0 %v4255, 96
  %v5402 = vpop.permute.xlu0 %5401
  %5403 = vrot.lane.b32.xlu0 %v4256, 96
  %v5404 = vpop.permute.xlu0 %5403
  %5405 = vrot.lane.b32.xlu0 %v4257, 96
  %v5406 = vpop.permute.xlu0 %5405
  %5407 = vrot.lane.b32.xlu0 %v4258, 96
  %v5408 = vpop.permute.xlu0 %5407
  %5409 = vrot.lane.b32.xlu0 %v4259, 96
  %v5410 = vpop.permute.xlu0 %5409
  %5411 = vrot.lane.b32.xlu0 %v4260, 96
  %v5412 = vpop.permute.xlu0 %5411
  %5413 = vrot.lane.b32.xlu0 %v4261, 96
  %v5414 = vpop.permute.xlu0 %5413
  %5415 = vrot.lane.b32.xlu0 %v4262, 96
  %v5416 = vpop.permute.xlu0 %5415
  %5417 = vrot.lane.b32.xlu0 %v4263, 96
  %v5418 = vpop.permute.xlu0 %5417
  %5419 = vrot.lane.b32.xlu0 %v4264, 96
  %v5420 = vpop.permute.xlu0 %5419
  %5421 = vrot.lane.b32.xlu0 %v5024, 96
  %v5422 = vpop.permute.xlu0 %5421
  %5423 = vrot.lane.b32.xlu0 %v5356, 96
  %v5424 = vpop.permute.xlu0 %5423
  %5457 = vst.msk [vmem:[#allocation3 + $0x8] sm:$0xff] %vm1519, %v5362
  %5458 = vst.msk [vmem:[#allocation3 + $0x20] sm:$0xff] %vm1519, %v5364
  %5459 = vst.msk [vmem:[#allocation3 + $0x38] sm:$0xff] %vm1519, %v5366
  %5460 = vst.msk [vmem:[#allocation3 + $0x50] sm:$0xff] %vm1519, %v5368
  %5461 = vst.msk [vmem:[#allocation3 + $0x68] sm:$0xff] %vm1519, %v5370
  %5462 = vst.msk [vmem:[#allocation3 + $0x80] sm:$0xff] %vm1519, %v5372
  %5463 = vst.msk [vmem:[#allocation3 + $0x98] sm:$0xff] %vm1519, %v5374
  %5464 = vst.msk [vmem:[#allocation3 + $0xb0] sm:$0xff] %vm1519, %v5376
  %5465 = vst.msk [vmem:[#allocation3 + $0xc8] sm:$0xff] %vm1519, %v5378
  %5466 = vst.msk [vmem:[#allocation3 + $0xe0] sm:$0xff] %vm1519, %v5380
  %5467 = vst.msk [vmem:[#allocation3 + $0xf8] sm:$0xff] %vm1519, %v5382
  %5468 = vst.msk [vmem:[#allocation3 + $0x110] sm:$0xff] %vm1519, %v5384
  %5469 = vst.msk [vmem:[#allocation3 + $0x128] sm:$0xff] %vm1519, %v5386
  %5470 = vst.msk [vmem:[#allocation3 + $0x140] sm:$0xff] %vm1519, %v5388
  %5471 = vst.msk [vmem:[#allocation3 + $0x158] sm:$0xff] %vm1519, %v5390
  %5472 = vst.msk [vmem:[#allocation3 + $0x170] sm:$0xff] %vm1519, %v5392
  %5473 = vst.msk [vmem:[#allocation3 + $0x188] sm:$0xff] %vm1519, %v5394
  %5474 = vst.msk [vmem:[#allocation3 + $0x1a0] sm:$0xff] %vm1519, %v5396
  %5475 = vst.msk [vmem:[#allocation3 + $0x1b8] sm:$0xff] %vm1519, %v5398
  %5476 = vst.msk [vmem:[#allocation3 + $0x1d0] sm:$0xff] %vm1519, %v5400
  %5477 = vst.msk [vmem:[#allocation3 + $0x1e8] sm:$0xff] %vm1519, %v5402
  %5478 = vst.msk [vmem:[#allocation3 + $0x200] sm:$0xff] %vm1519, %v5404
  %5479 = vst.msk [vmem:[#allocation3 + $0x218] sm:$0xff] %vm1519, %v5406
  %5480 = vst.msk [vmem:[#allocation3 + $0x230] sm:$0xff] %vm1519, %v5408
  %5481 = vst.msk [vmem:[#allocation3 + $0x248] sm:$0xff] %vm1519, %v5410
  %5482 = vst.msk [vmem:[#allocation3 + $0x260] sm:$0xff] %vm1519, %v5412
  %5483 = vst.msk [vmem:[#allocation3 + $0x278] sm:$0xff] %vm1519, %v5414
  %5484 = vst.msk [vmem:[#allocation3 + $0x290] sm:$0xff] %vm1519, %v5416
  %5485 = vst.msk [vmem:[#allocation3 + $0x2a8] sm:$0xff] %vm1519, %v5418
  %5486 = vst.msk [vmem:[#allocation3 + $0x2c0] sm:$0xff] %vm1519, %v5420
  %5487 = vst.msk [vmem:[#allocation3 + $0x2d8] sm:$0xff] %vm1519, %v5422
  %5488 = vst.msk [vmem:[#allocation3 + $0x2f0] sm:$0xff] %vm1519, %v5424
  %v5489 = vrot.slane %v3792, 2
  %v5490 = vrot.slane %v3793, 2
  %v5491 = vsel %vm971, %v5489, %v5490
  %v5492 = vrot.slane %v3794, 2
  %v5493 = vsel %vm971, %v5490, %v5492
  %v5494 = vrot.slane %v3846, 2
  %v5495 = vrot.slane %v3847, 2
  %v5496 = vsel %vm971, %v5494, %v5495
  %v5497 = vrot.slane %v3848, 2
  %v5498 = vsel %vm971, %v5495, %v5497
  %v5503 = vpack.c.bf16 %v5493, %v5491
  %v5504 = vpack.c.bf16 %v5498, %v5496
  %5505 = vst.msk [vmem:[#allocation3 + $0x10] sm:$0xff] %vm45, %v4651
  %5506 = vst.msk [vmem:[#allocation3 + $0x28] sm:$0xff] %vm45, %v4652
  %5507 = vst.msk [vmem:[#allocation3 + $0x40] sm:$0xff] %vm45, %v4653
  %5508 = vst.msk [vmem:[#allocation3 + $0x58] sm:$0xff] %vm45, %v4654
  %5509 = vst.msk [vmem:[#allocation3 + $0x70] sm:$0xff] %vm45, %v4655
  %5510 = vst.msk [vmem:[#allocation3 + $0x88] sm:$0xff] %vm45, %v4656
  %5511 = vst.msk [vmem:[#allocation3 + $0xa0] sm:$0xff] %vm45, %v4657
  %5512 = vst.msk [vmem:[#allocation3 + $0xb8] sm:$0xff] %vm45, %v4658
  %5513 = vst.msk [vmem:[#allocation3 + $0xd0] sm:$0xff] %vm45, %v4659
  %5514 = vst.msk [vmem:[#allocation3 + $0xe8] sm:$0xff] %vm45, %v4660
  %5515 = vst.msk [vmem:[#allocation3 + $0x100] sm:$0xff] %vm45, %v4661
  %5516 = vst.msk [vmem:[#allocation3 + $0x118] sm:$0xff] %vm45, %v4662
  %5517 = vst.msk [vmem:[#allocation3 + $0x130] sm:$0xff] %vm45, %v4663
  %5518 = vst.msk [vmem:[#allocation3 + $0x148] sm:$0xff] %vm45, %v4664
  %5519 = vst.msk [vmem:[#allocation3 + $0x160] sm:$0xff] %vm45, %v5071
  %5520 = vst.msk [vmem:[#allocation3 + $0x178] sm:$0xff] %vm45, %v5503
  %5521 = vst.msk [vmem:[#allocation3 + $0x190] sm:$0xff] %vm45, %v4667
  %5522 = vst.msk [vmem:[#allocation3 + $0x1a8] sm:$0xff] %vm45, %v4668
  %5523 = vst.msk [vmem:[#allocation3 + $0x1c0] sm:$0xff] %vm45, %v4669
  %5524 = vst.msk [vmem:[#allocation3 + $0x1d8] sm:$0xff] %vm45, %v4670
  %5525 = vst.msk [vmem:[#allocation3 + $0x1f0] sm:$0xff] %vm45, %v4671
  %5526 = vst.msk [vmem:[#allocation3 + $0x208] sm:$0xff] %vm45, %v4672
  %5527 = vst.msk [vmem:[#allocation3 + $0x220] sm:$0xff] %vm45, %v4673
  %5528 = vst.msk [vmem:[#allocation3 + $0x238] sm:$0xff] %vm45, %v4674
  %5529 = vst.msk [vmem:[#allocation3 + $0x250] sm:$0xff] %vm45, %v4675
  %5530 = vst.msk [vmem:[#allocation3 + $0x268] sm:$0xff] %vm45, %v4676
  %5531 = vst.msk [vmem:[#allocation3 + $0x280] sm:$0xff] %vm45, %v4677
  %5532 = vst.msk [vmem:[#allocation3 + $0x298] sm:$0xff] %vm45, %v4678
  %5533 = vst.msk [vmem:[#allocation3 + $0x2b0] sm:$0xff] %vm45, %v4679
  %5534 = vst.msk [vmem:[#allocation3 + $0x2c8] sm:$0xff] %vm45, %v4680
  %5535 = vst.msk [vmem:[#allocation3 + $0x2e0] sm:$0xff] %vm45, %v5072
  %5536 = vst.msk [vmem:[#allocation3 + $0x2f8] sm:$0xff] %vm45, %v5504
  %v5537 = vld [vmem:[#allocation3] sm:$0xff]
  %v5538 = vld [vmem:[#allocation3 + $0x8] sm:$0xff]
  %v5539 = vld [vmem:[#allocation3 + $0x10] sm:$0xff]
  %v5540 = vld [vmem:[#allocation3 + $0x18] sm:$0xff]
  %v5541 = vld [vmem:[#allocation3 + $0x20] sm:$0xff]
  %v5542 = vld [vmem:[#allocation3 + $0x28] sm:$0xff]
  %v5543 = vld [vmem:[#allocation3 + $0x30] sm:$0xff]
  %v5544 = vld [vmem:[#allocation3 + $0x38] sm:$0xff]
  %v5545 = vld [vmem:[#allocation3 + $0x40] sm:$0xff]
  %v5546 = vld [vmem:[#allocation3 + $0x48] sm:$0xff]
  %v5547 = vld [vmem:[#allocation3 + $0x50] sm:$0xff]
  %v5548 = vld [vmem:[#allocation3 + $0x58] sm:$0xff]
  %v5549 = vld [vmem:[#allocation3 + $0x60] sm:$0xff]
  %v5550 = vld [vmem:[#allocation3 + $0x68] sm:$0xff]
  %v5551 = vld [vmem:[#allocation3 + $0x70] sm:$0xff]
  %v5552 = vld [vmem:[#allocation3 + $0x78] sm:$0xff]
  %v5553 = vld [vmem:[#allocation3 + $0x80] sm:$0xff]
  %v5554 = vld [vmem:[#allocation3 + $0x88] sm:$0xff]
  %v5555 = vld [vmem:[#allocation3 + $0x90] sm:$0xff]
  %v5556 = vld [vmem:[#allocation3 + $0x98] sm:$0xff]
  %v5557 = vld [vmem:[#allocation3 + $0xa0] sm:$0xff]
  %v5558 = vld [vmem:[#allocation3 + $0xa8] sm:$0xff]
  %v5559 = vld [vmem:[#allocation3 + $0xb0] sm:$0xff]
  %v5560 = vld [vmem:[#allocation3 + $0xb8] sm:$0xff]
  %v5561 = vld [vmem:[#allocation3 + $0xc0] sm:$0xff]
  %v5562 = vld [vmem:[#allocation3 + $0xc8] sm:$0xff]
  %v5563 = vld [vmem:[#allocation3 + $0xd0] sm:$0xff]
  %v5564 = vld [vmem:[#allocation3 + $0xd8] sm:$0xff]
  %v5565 = vld [vmem:[#allocation3 + $0xe0] sm:$0xff]
  %v5566 = vld [vmem:[#allocation3 + $0xe8] sm:$0xff]
  %v5567 = vld [vmem:[#allocation3 + $0xf0] sm:$0xff]
  %v5568 = vld [vmem:[#allocation3 + $0xf8] sm:$0xff]
  %v5569 = vld [vmem:[#allocation3 + $0x100] sm:$0xff]
  %v5570 = vld [vmem:[#allocation3 + $0x108] sm:$0xff]
  %v5571 = vld [vmem:[#allocation3 + $0x110] sm:$0xff]
  %v5572 = vld [vmem:[#allocation3 + $0x118] sm:$0xff]
  %v5573 = vld [vmem:[#allocation3 + $0x120] sm:$0xff]
  %v5574 = vld [vmem:[#allocation3 + $0x128] sm:$0xff]
  %v5575 = vld [vmem:[#allocation3 + $0x130] sm:$0xff]
  %v5576 = vld [vmem:[#allocation3 + $0x138] sm:$0xff]
  %v5577 = vld [vmem:[#allocation3 + $0x140] sm:$0xff]
  %v5578 = vld [vmem:[#allocation3 + $0x148] sm:$0xff]
  %v5579 = vld [vmem:[#allocation3 + $0x150] sm:$0xff]
  %v5580 = vld [vmem:[#allocation3 + $0x158] sm:$0xff]
  %v5581 = vld [vmem:[#allocation3 + $0x160] sm:$0xff]
  %v5582 = vld [vmem:[#allocation3 + $0x168] sm:$0xff]
  %v5583 = vld [vmem:[#allocation3 + $0x170] sm:$0xff]
  %v5584 = vld [vmem:[#allocation3 + $0x178] sm:$0xff]
  %v5585 = vld [vmem:[#allocation3 + $0x180] sm:$0xff]
  %v5586 = vld [vmem:[#allocation3 + $0x188] sm:$0xff]
  %v5587 = vld [vmem:[#allocation3 + $0x190] sm:$0xff]
  %v5588 = vld [vmem:[#allocation3 + $0x198] sm:$0xff]
  %v5589 = vld [vmem:[#allocation3 + $0x1a0] sm:$0xff]
  %v5590 = vld [vmem:[#allocation3 + $0x1a8] sm:$0xff]
  %v5591 = vld [vmem:[#allocation3 + $0x1b0] sm:$0xff]
  %v5592 = vld [vmem:[#allocation3 + $0x1b8] sm:$0xff]
  %v5593 = vld [vmem:[#allocation3 + $0x1c0] sm:$0xff]
  %v5594 = vld [vmem:[#allocation3 + $0x1c8] sm:$0xff]
  %v5595 = vld [vmem:[#allocation3 + $0x1d0] sm:$0xff]
  %v5596 = vld [vmem:[#allocation3 + $0x1d8] sm:$0xff]
  %v5597 = vld [vmem:[#allocation3 + $0x1e0] sm:$0xff]
  %v5598 = vld [vmem:[#allocation3 + $0x1e8] sm:$0xff]
  %v5599 = vld [vmem:[#allocation3 + $0x1f0] sm:$0xff]
  %v5600 = vld [vmem:[#allocation3 + $0x1f8] sm:$0xff]
  %v5601 = vld [vmem:[#allocation3 + $0x200] sm:$0xff]
  %v5602 = vld [vmem:[#allocation3 + $0x208] sm:$0xff]
  %v5603 = vld [vmem:[#allocation3 + $0x210] sm:$0xff]
  %v5604 = vld [vmem:[#allocation3 + $0x218] sm:$0xff]
  %v5605 = vld [vmem:[#allocation3 + $0x220] sm:$0xff]
  %v5606 = vld [vmem:[#allocation3 + $0x228] sm:$0xff]
  %v5607 = vld [vmem:[#allocation3 + $0x230] sm:$0xff]
  %v5608 = vld [vmem:[#allocation3 + $0x238] sm:$0xff]
  %v5609 = vld [vmem:[#allocation3 + $0x240] sm:$0xff]
  %v5610 = vld [vmem:[#allocation3 + $0x248] sm:$0xff]
  %v5611 = vld [vmem:[#allocation3 + $0x250] sm:$0xff]
  %v5612 = vld [vmem:[#allocation3 + $0x258] sm:$0xff]
  %v5613 = vld [vmem:[#allocation3 + $0x260] sm:$0xff]
  %v5614 = vld [vmem:[#allocation3 + $0x268] sm:$0xff]
  %v5615 = vld [vmem:[#allocation3 + $0x270] sm:$0xff]
  %v5616 = vld [vmem:[#allocation3 + $0x278] sm:$0xff]
  %v5617 = vld [vmem:[#allocation3 + $0x280] sm:$0xff]
  %v5618 = vld [vmem:[#allocation3 + $0x288] sm:$0xff]
  %v5619 = vld [vmem:[#allocation3 + $0x290] sm:$0xff]
  %v5620 = vld [vmem:[#allocation3 + $0x298] sm:$0xff]
  %v5621 = vld [vmem:[#allocation3 + $0x2a0] sm:$0xff]
  %v5622 = vld [vmem:[#allocation3 + $0x2a8] sm:$0xff]
  %v5623 = vld [vmem:[#allocation3 + $0x2b0] sm:$0xff]
  %v5624 = vld [vmem:[#allocation3 + $0x2b8] sm:$0xff]
  %v5625 = vld [vmem:[#allocation3 + $0x2c0] sm:$0xff]
  %v5626 = vld [vmem:[#allocation3 + $0x2c8] sm:$0xff]
  %v5627 = vld [vmem:[#allocation3 + $0x2d0] sm:$0xff]
  %v5628 = vld [vmem:[#allocation3 + $0x2d8] sm:$0xff]
  %v5629 = vld [vmem:[#allocation3 + $0x2e0] sm:$0xff]
  %v5630 = vld [vmem:[#allocation3 + $0x2e8] sm:$0xff]
  %v5631 = vld [vmem:[#allocation3 + $0x2f0] sm:$0xff]
  %v5632 = vld [vmem:[#allocation3 + $0x2f8] sm:$0xff]
  %v5633 = vld [vmem:[%s5] sm:$0xf]
  %v5634 = vld [vmem:[%s5 + $0x4] sm:$0xf]
  %v5635 = vld [vmem:[%s5 + $0x8] sm:$0xf]
  %v5636 = vld [vmem:[%s5 + $0xc] sm:$0xf]
  %v5637 = vld [vmem:[%s5 + $0x10] sm:$0xf]
  %v5638 = vld [vmem:[%s5 + $0x14] sm:$0xf]
  %v5639 = vld [vmem:[%s5 + $0x18] sm:$0xf]
  %v5640 = vld [vmem:[%s5 + $0x1c] sm:$0xf]
  %v5641 = vld [vmem:[%s5 + $0x20] sm:$0xf]
  %v5642 = vld [vmem:[%s5 + $0x24] sm:$0xf]
  %v5643 = vld [vmem:[%s5 + $0x28] sm:$0xf]
  %v5644 = vld [vmem:[%s5 + $0x2c] sm:$0xf]
  %v5645 = vld [vmem:[%s5 + $0x30] sm:$0xf]
  %v5646 = vld [vmem:[%s5 + $0x34] sm:$0xf]
  %v5647 = vld [vmem:[%s5 + $0x38] sm:$0xf]
  %v5648 = vld [vmem:[%s5 + $0x3c] sm:$0xf]
  %v5649 = vld [vmem:[%s5 + $0x40] sm:$0xf]
  %v5650 = vld [vmem:[%s5 + $0x44] sm:$0xf]
  %v5651 = vld [vmem:[%s5 + $0x48] sm:$0xf]
  %v5652 = vld [vmem:[%s5 + $0x4c] sm:$0xf]
  %v5653 = vld [vmem:[%s5 + $0x50] sm:$0xf]
  %v5654 = vld [vmem:[%s5 + $0x54] sm:$0xf]
  %v5655 = vld [vmem:[%s5 + $0x58] sm:$0xf]
  %v5656 = vld [vmem:[%s5 + $0x5c] sm:$0xf]
  %v5657 = vld [vmem:[%s5 + $0x60] sm:$0xf]
  %v5658 = vld [vmem:[%s5 + $0x64] sm:$0xf]
  %v5659 = vld [vmem:[%s5 + $0x68] sm:$0xf]
  %v5660 = vld [vmem:[%s5 + $0x6c] sm:$0xf]
  %v5661 = vld [vmem:[%s5 + $0x70] sm:$0xf]
  %v5662 = vld [vmem:[%s5 + $0x74] sm:$0xf]
  %v5663 = vld [vmem:[%s5 + $0x78] sm:$0xf]
  %v5664 = vld [vmem:[%s5 + $0x7c] sm:$0xf]
  %v5665 = vld [vmem:[%s5 + $0x80] sm:$0xf]
  %v5666 = vld [vmem:[%s5 + $0x84] sm:$0xf]
  %v5667 = vld [vmem:[%s5 + $0x88] sm:$0xf]
  %v5668 = vld [vmem:[%s5 + $0x8c] sm:$0xf]
  %v5669 = vld [vmem:[%s6] sm:$0x1]
  %v5671 = vlaneseq
  %v5672 = vshrl.u32 %v5671, 7
  %v5673 = vsub.s32 0, %v5672
  %v5674 = vrot.slane %v5669, %v5673
  %v5712 = vunpack.c.l.b16 %v5633
  %v5713 = vunpack.c.l.b16 %v5634
  %v5714 = vunpack.c.l.b16 %v5635
  %v5715 = vunpack.c.l.b16 %v5636
  %v5716 = vunpack.c.l.b16 %v5637
  %v5717 = vunpack.c.l.b16 %v5638
  %v5718 = vunpack.c.l.b16 %v5639
  %v5719 = vunpack.c.l.b16 %v5640
  %v5720 = vunpack.c.l.b16 %v5641
  %v5721 = vunpack.c.l.b16 %v5642
  %v5722 = vunpack.c.l.b16 %v5643
  %v5723 = vunpack.c.l.b16 %v5644
  %v5724 = vunpack.c.l.b16 %v5645
  %v5725 = vunpack.c.l.b16 %v5646
  %v5726 = vunpack.c.l.b16 %v5647
  %v5727 = vunpack.c.l.b16 %v5648
  %v5728 = vunpack.c.l.b16 %v5649
  %v5729 = vunpack.c.l.b16 %v5650
  %v5730 = vunpack.c.l.b16 %v5651
  %v5731 = vunpack.c.l.b16 %v5652
  %v5732 = vunpack.c.l.b16 %v5653
  %v5733 = vunpack.c.l.b16 %v5654
  %v5734 = vunpack.c.l.b16 %v5655
  %v5735 = vunpack.c.l.b16 %v5656
  %v5736 = vunpack.c.l.b16 %v5657
  %v5737 = vunpack.c.l.b16 %v5658
  %v5738 = vunpack.c.l.b16 %v5659
  %v5739 = vunpack.c.l.b16 %v5660
  %v5740 = vunpack.c.l.b16 %v5661
  %v5741 = vunpack.c.l.b16 %v5662
  %v5742 = vunpack.c.l.b16 %v5663
  %v5743 = vunpack.c.l.b16 %v5664
  %v5744 = vunpack.c.l.b16 %v5665
  %v5745 = vunpack.c.l.b16 %v5666
  %v5746 = vunpack.c.l.b16 %v5667
  %v5747 = vunpack.c.l.b16 %v5668
  %v5748 = vpack.c.b16 %v5713, %v5712
  %v5749 = vpack.c.b16 %v5715, %v5714
  %v5750 = vpack.c.b16 %v5717, %v5716
  %v5751 = vpack.c.b16 %v5719, %v5718
  %v5752 = vpack.c.b16 %v5721, %v5720
  %v5753 = vpack.c.b16 %v5723, %v5722
  %v5754 = vpack.c.b16 %v5725, %v5724
  %v5755 = vpack.c.b16 %v5727, %v5726
  %v5756 = vpack.c.b16 %v5729, %v5728
  %v5757 = vpack.c.b16 %v5731, %v5730
  %v5758 = vpack.c.b16 %v5733, %v5732
  %v5759 = vpack.c.b16 %v5735, %v5734
  %v5760 = vpack.c.b16 %v5737, %v5736
  %v5761 = vpack.c.b16 %v5739, %v5738
  %v5762 = vpack.c.b16 %v5741, %v5740
  %v5763 = vpack.c.b16 %v5743, %v5742
  %v5764 = vpack.c.b16 %v5745, %v5744
  %v5765 = vpack.c.b16 %v5747, %v5746
  %v5785 = vsel %vm45, %v5539, 0
  %v5788 = vsel %vm45, %v5542, 0
  %v5791 = vsel %vm45, %v5545, 0
  %v5794 = vsel %vm45, %v5548, 0
  %v5797 = vsel %vm45, %v5551, 0
  %v5800 = vsel %vm45, %v5554, 0
  %v5803 = vsel %vm45, %v5557, 0
  %v5806 = vsel %vm45, %v5560, 0
  %v5809 = vsel %vm45, %v5563, 0
  %v5812 = vsel %vm45, %v5566, 0
  %v5815 = vsel %vm45, %v5569, 0
  %v5818 = vsel %vm45, %v5572, 0
  %v5821 = vsel %vm45, %v5575, 0
  %v5824 = vsel %vm45, %v5578, 0
  %v5827 = vsel %vm45, %v5581, 0
  %v5830 = vsel %vm45, %v5584, 0
  %v5833 = vsel %vm45, %v5587, 0
  %v5836 = vsel %vm45, %v5590, 0
  %v5839 = vsel %vm45, %v5593, 0
  %v5842 = vsel %vm45, %v5596, 0
  %v5845 = vsel %vm45, %v5599, 0
  %v5848 = vsel %vm45, %v5602, 0
  %v5851 = vsel %vm45, %v5605, 0
  %v5854 = vsel %vm45, %v5608, 0
  %v5857 = vsel %vm45, %v5611, 0
  %v5860 = vsel %vm45, %v5614, 0
  %v5863 = vsel %vm45, %v5617, 0
  %v5866 = vsel %vm45, %v5620, 0
  %v5869 = vsel %vm45, %v5623, 0
  %v5872 = vsel %vm45, %v5626, 0
  %v5875 = vsel %vm45, %v5629, 0
  %v5878 = vsel %vm45, %v5632, 0
  %5880 = vmatprep.subr.bf16.mxu0 0
  %5881 = vmatpush1.bf16.msra.mxu0 %v5748
  %5882 = vmatprep.subr.bf16.mxu0 0
  %5883 = vmatpush1.bf16.msra.mxu0 %v5749
  %5884 = vmatprep.subr.bf16.mxu0 0
  %5885 = vmatpush1.bf16.msra.mxu0 %v5750
  %5886 = vmatprep.subr.bf16.mxu0 0
  %5887 = vmatpush1.bf16.msra.mxu0 %v5751
  %5888 = vmatprep.subr.bf16.mxu0 0
  %5889 = vmatpush1.bf16.msra.mxu0 %v5752
  %5890 = vmatprep.subr.bf16.mxu0 0
  %5891 = vmatpush1.bf16.msra.mxu0 %v5753
  %5892 = vmatprep.subr.bf16.mxu0 0
  %5893 = vmatpush1.bf16.msra.mxu0 %v5754
  %5894 = vmatprep.subr.bf16.mxu0 0
  %5895 = vmatpush1.bf16.msra.mxu0 %v5755
  %5896 = vmatprep.subr.bf16.mxu0 0
  %5897 = vmatpush1.bf16.msra.mxu0 %v5756
  %5898 = vmatprep.subr.bf16.mxu0 0
  %5899 = vmatpush1.bf16.msra.mxu0 %v5757
  %5900 = vmatprep.subr.bf16.mxu0 0
  %5901 = vmatpush1.bf16.msra.mxu0 %v5758
  %5902 = vmatprep.subr.bf16.mxu0 0
  %5903 = vmatpush1.bf16.msra.mxu0 %v5759
  %5904 = vmatprep.subr.bf16.mxu0 0
  %5905 = vmatpush1.bf16.msra.mxu0 %v5760
  %5906 = vmatprep.subr.bf16.mxu0 0
  %5907 = vmatpush1.bf16.msra.mxu0 %v5761
  %5908 = vmatprep.subr.bf16.mxu0 0
  %5909 = vmatpush1.bf16.msra.mxu0 %v5762
  %5910 = vmatprep.subr.bf16.mxu0 0
  %5911 = vmatpush1.bf16.msra.mxu0 %v5763
  %5912 = vmatprep.mubr.bf16.mxu0 %v5538
  %5913 = vmatmul.mubr.bf16.gmra.mrb[0].mxu0 %v5537
  %v5914 = vpop.f32.mrb[0].mxu0
  %v5915 = vadd.f32 %v5674, %v5914
  %v5916 = vpop.f32.mrb[0].mxu0
  %v5917 = vpop.f32.mrb[0].mxu0
  %v5918 = vadd.f32 %v5674, %v5917
  %v5919 = vpop.f32.mrb[0].mxu0
  %5920 = vmatprep.mubr.bf16.mxu0 %v5541
  %5921 = vmatmul.mubr.bf16.gmra.mrb[0].mxu0 %v5540
  %v5922 = vpop.f32.mrb[0].mxu0
  %v5923 = vadd.f32 %v5674, %v5922
  %v5924 = vpop.f32.mrb[0].mxu0
  %v5925 = vpop.f32.mrb[0].mxu0
  %v5926 = vadd.f32 %v5674, %v5925
  %v5927 = vpop.f32.mrb[0].mxu0
  %5928 = vmatprep.mubr.bf16.mxu0 %v5544
  %5929 = vmatmul.mubr.bf16.gmra.mrb[0].mxu0 %v5543
  %v5930 = vpop.f32.mrb[0].mxu0
  %v5931 = vadd.f32 %v5674, %v5930
  %v5932 = vpop.f32.mrb[0].mxu0
  %v5933 = vpop.f32.mrb[0].mxu0
  %v5934 = vadd.f32 %v5674, %v5933
  %v5935 = vpop.f32.mrb[0].mxu0
  %5936 = vmatprep.mubr.bf16.mxu0 %v5547
  %5937 = vmatmul.mubr.bf16.gmra.mrb[0].mxu0 %v5546
  %v5938 = vpop.f32.mrb[0].mxu0
  %v5939 = vadd.f32 %v5674, %v5938
  %v5940 = vpop.f32.mrb[0].mxu0
  %v5941 = vpop.f32.mrb[0].mxu0
  %v5942 = vadd.f32 %v5674, %v5941
  %v5943 = vpop.f32.mrb[0].mxu0
  %5944 = vmatprep.mubr.bf16.mxu0 %v5550
  %5945 = vmatmul.mubr.bf16.gmra.mrb[0].mxu0 %v5549
  %v5946 = vpop.f32.mrb[0].mxu0
  %v5947 = vadd.f32 %v5674, %v5946
  %v5948 = vpop.f32.mrb[0].mxu0
  %v5949 = vpop.f32.mrb[0].mxu0
  %v5950 = vadd.f32 %v5674, %v5949
  %v5951 = vpop.f32.mrb[0].mxu0
  %5952 = vmatprep.mubr.bf16.mxu0 %v5553
  %5953 = vmatmul.mubr.bf16.gmra.mrb[0].mxu0 %v5552
  %v5954 = vpop.f32.mrb[0].mxu0
  %v5955 = vadd.f32 %v5674, %v5954
  %v5956 = vpop.f32.mrb[0].mxu0
  %v5957 = vpop.f32.mrb[0].mxu0
  %v5958 = vadd.f32 %v5674, %v5957
  %v5959 = vpop.f32.mrb[0].mxu0
  %5960 = vmatprep.mubr.bf16.mxu0 %v5556
  %5961 = vmatmul.mubr.bf16.gmra.mrb[0].mxu0 %v5555
  %v5962 = vpop.f32.mrb[0].mxu0
  %v5963 = vadd.f32 %v5674, %v5962
  %v5964 = vpop.f32.mrb[0].mxu0
  %v5965 = vpop.f32.mrb[0].mxu0
  %v5966 = vadd.f32 %v5674, %v5965
  %v5967 = vpop.f32.mrb[0].mxu0
  %5968 = vmatprep.mubr.bf16.mxu0 %v5559
  %5969 = vmatmul.mubr.bf16.gmra.mrb[0].mxu0 %v5558
  %v5970 = vpop.f32.mrb[0].mxu0
  %v5971 = vadd.f32 %v5674, %v5970
  %v5972 = vpop.f32.mrb[0].mxu0
  %v5973 = vpop.f32.mrb[0].mxu0
  %v5974 = vadd.f32 %v5674, %v5973
  %v5975 = vpop.f32.mrb[0].mxu0
  %5976 = vmatprep.mubr.bf16.mxu0 %v5562
  %5977 = vmatmul.mubr.bf16.gmra.mrb[0].mxu0 %v5561
  %v5978 = vpop.f32.mrb[0].mxu0
  %v5979 = vadd.f32 %v5674, %v5978
  %v5980 = vpop.f32.mrb[0].mxu0
  %v5981 = vpop.f32.mrb[0].mxu0
  %v5982 = vadd.f32 %v5674, %v5981
  %v5983 = vpop.f32.mrb[0].mxu0
  %5984 = vmatprep.mubr.bf16.mxu0 %v5565
  %5985 = vmatmul.mubr.bf16.gmra.mrb[0].mxu0 %v5564
  %v5986 = vpop.f32.mrb[0].mxu0
  %v5987 = vadd.f32 %v5674, %v5986
  %v5988 = vpop.f32.mrb[0].mxu0
  %v5989 = vpop.f32.mrb[0].mxu0
  %v5990 = vadd.f32 %v5674, %v5989
  %v5991 = vpop.f32.mrb[0].mxu0
  %5992 = vmatprep.mubr.bf16.mxu0 %v5568
  %5993 = vmatmul.mubr.bf16.gmra.mrb[0].mxu0 %v5567
  %v5994 = vpop.f32.mrb[0].mxu0
  %v5995 = vadd.f32 %v5674, %v5994
  %v5996 = vpop.f32.mrb[0].mxu0
  %v5997 = vpop.f32.mrb[0].mxu0
  %v5998 = vadd.f32 %v5674, %v5997
  %v5999 = vpop.f32.mrb[0].mxu0
  %6000 = vmatprep.mubr.bf16.mxu0 %v5571
  %6001 = vmatmul.mubr.bf16.gmra.mrb[0].mxu0 %v5570
  %v6002 = vpop.f32.mrb[0].mxu0
  %v6003 = vadd.f32 %v5674, %v6002
  %v6004 = vpop.f32.mrb[0].mxu0
  %v6005 = vpop.f32.mrb[0].mxu0
  %v6006 = vadd.f32 %v5674, %v6005
  %v6007 = vpop.f32.mrb[0].mxu0
  %6008 = vmatprep.mubr.bf16.mxu0 %v5574
  %6009 = vmatmul.mubr.bf16.gmra.mrb[0].mxu0 %v5573
  %v6010 = vpop.f32.mrb[0].mxu0
  %v6011 = vadd.f32 %v5674, %v6010
  %v6012 = vpop.f32.mrb[0].mxu0
  %v6013 = vpop.f32.mrb[0].mxu0
  %v6014 = vadd.f32 %v5674, %v6013
  %v6015 = vpop.f32.mrb[0].mxu0
  %6016 = vmatprep.mubr.bf16.mxu0 %v5577
  %6017 = vmatmul.mubr.bf16.gmra.mrb[0].mxu0 %v5576
  %v6018 = vpop.f32.mrb[0].mxu0
  %v6019 = vadd.f32 %v5674, %v6018
  %v6020 = vpop.f32.mrb[0].mxu0
  %v6021 = vpop.f32.mrb[0].mxu0
  %v6022 = vadd.f32 %v5674, %v6021
  %v6023 = vpop.f32.mrb[0].mxu0
  %6024 = vmatprep.mubr.bf16.mxu0 %v5580
  %6025 = vmatmul.mubr.bf16.gmra.mrb[0].mxu0 %v5579
  %v6026 = vpop.f32.mrb[0].mxu0
  %v6027 = vadd.f32 %v5674, %v6026
  %v6028 = vpop.f32.mrb[0].mxu0
  %v6029 = vpop.f32.mrb[0].mxu0
  %v6030 = vadd.f32 %v5674, %v6029
  %v6031 = vpop.f32.mrb[0].mxu0
  %6032 = vmatprep.mubr.bf16.mxu0 %v5583
  %6033 = vmatmul.mubr.bf16.gmra.mrb[0].mxu0 %v5582
  %v6034 = vpop.f32.mrb[0].mxu0
  %v6035 = vadd.f32 %v5674, %v6034
  %v6036 = vpop.f32.mrb[0].mxu0
  %v6037 = vpop.f32.mrb[0].mxu0
  %v6038 = vadd.f32 %v5674, %v6037
  %v6039 = vpop.f32.mrb[0].mxu0
  %6040 = vmatprep.mubr.bf16.mxu0 %v5586
  %6041 = vmatmul.mubr.bf16.gmra.mrb[0].mxu0 %v5585
  %v6042 = vpop.f32.mrb[0].mxu0
  %v6043 = vadd.f32 %v5674, %v6042
  %v6044 = vpop.f32.mrb[0].mxu0
  %v6045 = vpop.f32.mrb[0].mxu0
  %v6046 = vadd.f32 %v5674, %v6045
  %v6047 = vpop.f32.mrb[0].mxu0
  %6048 = vmatprep.mubr.bf16.mxu0 %v5589
  %6049 = vmatmul.mubr.bf16.gmra.mrb[0].mxu0 %v5588
  %v6050 = vpop.f32.mrb[0].mxu0
  %v6051 = vadd.f32 %v5674, %v6050
  %v6052 = vpop.f32.mrb[0].mxu0
  %v6053 = vpop.f32.mrb[0].mxu0
  %v6054 = vadd.f32 %v5674, %v6053
  %v6055 = vpop.f32.mrb[0].mxu0
  %6056 = vmatprep.mubr.bf16.mxu0 %v5592
  %6057 = vmatmul.mubr.bf16.gmra.mrb[0].mxu0 %v5591
  %v6058 = vpop.f32.mrb[0].mxu0
  %v6059 = vadd.f32 %v5674, %v6058
  %v6060 = vpop.f32.mrb[0].mxu0
  %v6061 = vpop.f32.mrb[0].mxu0
  %v6062 = vadd.f32 %v5674, %v6061
  %v6063 = vpop.f32.mrb[0].mxu0
  %6064 = vmatprep.mubr.bf16.mxu0 %v5595
  %6065 = vmatmul.mubr.bf16.gmra.mrb[0].mxu0 %v5594
  %v6066 = vpop.f32.mrb[0].mxu0
  %v6067 = vadd.f32 %v5674, %v6066
  %v6068 = vpop.f32.mrb[0].mxu0
  %v6069 = vpop.f32.mrb[0].mxu0
  %v6070 = vadd.f32 %v5674, %v6069
  %v6071 = vpop.f32.mrb[0].mxu0
  %6072 = vmatprep.mubr.bf16.mxu0 %v5598
  %6073 = vmatmul.mubr.bf16.gmra.mrb[0].mxu0 %v5597
  %v6074 = vpop.f32.mrb[0].mxu0
  %v6075 = vadd.f32 %v5674, %v6074
  %v6076 = vpop.f32.mrb[0].mxu0
  %v6077 = vpop.f32.mrb[0].mxu0
  %v6078 = vadd.f32 %v5674, %v6077
  %v6079 = vpop.f32.mrb[0].mxu0
  %6080 = vmatprep.mubr.bf16.mxu0 %v5601
  %6081 = vmatmul.mubr.bf16.gmra.mrb[0].mxu0 %v5600
  %v6082 = vpop.f32.mrb[0].mxu0
  %v6083 = vadd.f32 %v5674, %v6082
  %v6084 = vpop.f32.mrb[0].mxu0
  %v6085 = vpop.f32.mrb[0].mxu0
  %v6086 = vadd.f32 %v5674, %v6085
  %v6087 = vpop.f32.mrb[0].mxu0
  %6088 = vmatprep.mubr.bf16.mxu0 %v5604
  %6089 = vmatmul.mubr.bf16.gmra.mrb[0].mxu0 %v5603
  %v6090 = vpop.f32.mrb[0].mxu0
  %v6091 = vadd.f32 %v5674, %v6090
  %v6092 = vpop.f32.mrb[0].mxu0
  %v6093 = vpop.f32.mrb[0].mxu0
  %v6094 = vadd.f32 %v5674, %v6093
  %v6095 = vpop.f32.mrb[0].mxu0
  %6096 = vmatprep.mubr.bf16.mxu0 %v5607
  %6097 = vmatmul.mubr.bf16.gmra.mrb[0].mxu0 %v5606
  %v6098 = vpop.f32.mrb[0].mxu0
  %v6099 = vadd.f32 %v5674, %v6098
  %v6100 = vpop.f32.mrb[0].mxu0
  %v6101 = vpop.f32.mrb[0].mxu0
  %v6102 = vadd.f32 %v5674, %v6101
  %v6103 = vpop.f32.mrb[0].mxu0
  %6104 = vmatprep.mubr.bf16.mxu0 %v5610
  %6105 = vmatmul.mubr.bf16.gmra.mrb[0].mxu0 %v5609
  %v6106 = vpop.f32.mrb[0].mxu0
  %v6107 = vadd.f32 %v5674, %v6106
  %v6108 = vpop.f32.mrb[0].mxu0
  %v6109 = vpop.f32.mrb[0].mxu0
  %v6110 = vadd.f32 %v5674, %v6109
  %v6111 = vpop.f32.mrb[0].mxu0
  %6112 = vmatprep.mubr.bf16.mxu0 %v5613
  %6113 = vmatmul.mubr.bf16.gmra.mrb[0].mxu0 %v5612
  %v6114 = vpop.f32.mrb[0].mxu0
  %v6115 = vadd.f32 %v5674, %v6114
  %v6116 = vpop.f32.mrb[0].mxu0
  %v6117 = vpop.f32.mrb[0].mxu0
  %v6118 = vadd.f32 %v5674, %v6117
  %v6119 = vpop.f32.mrb[0].mxu0
  %6120 = vmatprep.mubr.bf16.mxu0 %v5616
  %6121 = vmatmul.mubr.bf16.gmra.mrb[0].mxu0 %v5615
  %v6122 = vpop.f32.mrb[0].mxu0
  %v6123 = vadd.f32 %v5674, %v6122
  %v6124 = vpop.f32.mrb[0].mxu0
  %v6125 = vpop.f32.mrb[0].mxu0
  %v6126 = vadd.f32 %v5674, %v6125
  %v6127 = vpop.f32.mrb[0].mxu0
  %6128 = vmatprep.mubr.bf16.mxu0 %v5619
  %6129 = vmatmul.mubr.bf16.gmra.mrb[0].mxu0 %v5618
  %v6130 = vpop.f32.mrb[0].mxu0
  %v6131 = vadd.f32 %v5674, %v6130
  %v6132 = vpop.f32.mrb[0].mxu0
  %v6133 = vpop.f32.mrb[0].mxu0
  %v6134 = vadd.f32 %v5674, %v6133
  %v6135 = vpop.f32.mrb[0].mxu0
  %6136 = vmatprep.mubr.bf16.mxu0 %v5622
  %6137 = vmatmul.mubr.bf16.gmra.mrb[0].mxu0 %v5621
  %v6138 = vpop.f32.mrb[0].mxu0
  %v6139 = vadd.f32 %v5674, %v6138
  %v6140 = vpop.f32.mrb[0].mxu0
  %v6141 = vpop.f32.mrb[0].mxu0
  %v6142 = vadd.f32 %v5674, %v6141
  %v6143 = vpop.f32.mrb[0].mxu0
  %6144 = vmatprep.mubr.bf16.mxu0 %v5625
  %6145 = vmatmul.mubr.bf16.gmra.mrb[0].mxu0 %v5624
  %v6146 = vpop.f32.mrb[0].mxu0
  %v6147 = vadd.f32 %v5674, %v6146
  %v6148 = vpop.f32.mrb[0].mxu0
  %v6149 = vpop.f32.mrb[0].mxu0
  %v6150 = vadd.f32 %v5674, %v6149
  %v6151 = vpop.f32.mrb[0].mxu0
  %6152 = vmatprep.mubr.bf16.mxu0 %v5628
  %6153 = vmatmul.mubr.bf16.gmra.mrb[0].mxu0 %v5627
  %v6154 = vpop.f32.mrb[0].mxu0
  %v6155 = vadd.f32 %v5674, %v6154
  %v6156 = vpop.f32.mrb[0].mxu0
  %v6157 = vpop.f32.mrb[0].mxu0
  %v6158 = vadd.f32 %v5674, %v6157
  %v6159 = vpop.f32.mrb[0].mxu0
  %6160 = vmatprep.mubr.bf16.mxu0 %v5631
  %6161 = vmatmul.mubr.bf16.gmra.mrb[0].mxu0 %v5630
  %v6162 = vpop.f32.mrb[0].mxu0
  %v6163 = vadd.f32 %v5674, %v6162
  %v6164 = vpop.f32.mrb[0].mxu0
  %v6165 = vpop.f32.mrb[0].mxu0
  %v6166 = vadd.f32 %v5674, %v6165
  %v6167 = vpop.f32.mrb[0].mxu0
  %6168 = vdwg.mxu0
  %6169 = vmatprep.subr.bf16.mxu0 0
  %6170 = vmatpush1.bf16.msra.mxu0 %v5764
  %6171 = vmatprep.subr.bf16.mxu0 0
  %6172 = vmatpush1.bf16.msra.mxu0 %v5765
  %6173 = vmatprep.subr.bf16.mxu0 0
  %6174 = vmatpush1.bf16.msra.mxu0 0
  %6175 = vmatprep.subr.bf16.mxu0 0
  %6176 = vmatpush1.bf16.msra.mxu0 0
  %6177 = vmatprep.subr.bf16.mxu0 0
  %6178 = vmatpush1.bf16.msra.mxu0 0
  %6179 = vmatprep.subr.bf16.mxu0 0
  %6180 = vmatpush1.bf16.msra.mxu0 0
  %6181 = vmatprep.subr.bf16.mxu0 0
  %6182 = vmatpush1.bf16.msra.mxu0 0
  %6183 = vmatprep.subr.bf16.mxu0 0
  %6184 = vmatpush1.bf16.msra.mxu0 0
  %6185 = vmatprep.subr.bf16.mxu0 0
  %6186 = vmatpush1.bf16.msra.mxu0 0
  %6187 = vmatprep.subr.bf16.mxu0 0
  %6188 = vmatpush1.bf16.msra.mxu0 0
  %6189 = vmatprep.subr.bf16.mxu0 0
  %6190 = vmatpush1.bf16.msra.mxu0 0
  %6191 = vmatprep.subr.bf16.mxu0 0
  %6192 = vmatpush1.bf16.msra.mxu0 0
  %6193 = vmatprep.subr.bf16.mxu0 0
  %6194 = vmatpush1.bf16.msra.mxu0 0
  %6195 = vmatprep.subr.bf16.mxu0 0
  %6196 = vmatpush1.bf16.msra.mxu0 0
  %6197 = vmatprep.subr.bf16.mxu0 0
  %6198 = vmatpush1.bf16.msra.mxu0 0
  %6199 = vmatprep.subr.bf16.mxu0 0
  %6200 = vmatpush1.bf16.msra.mxu0 0
  %6201 = vmatprep.mubr.bf16.mxu0 0
  %6202 = vmatmul.mubr.bf16.gmra.mrb[0].mxu0 %v5785
  %v6203 = vpop.f32.mrb[0].mxu0
  %v6204 = vadd.f32 %v5915, %v6203
  %v6205 = vpop.f32.mrb[0].mxu0
  %v6206 = vpop.f32.mrb[0].mxu0
  %v6207 = vadd.f32 %v5918, %v6206
  %v6208 = vpop.f32.mrb[0].mxu0
  %6209 = vmatprep.mubr.bf16.mxu0 0
  %6210 = vmatmul.mubr.bf16.gmra.mrb[0].mxu0 %v5788
  %v6211 = vpop.f32.mrb[0].mxu0
  %v6212 = vadd.f32 %v5923, %v6211
  %v6213 = vpop.f32.mrb[0].mxu0
  %v6214 = vpop.f32.mrb[0].mxu0
  %v6215 = vadd.f32 %v5926, %v6214
  %v6216 = vpop.f32.mrb[0].mxu0
  %6217 = vmatprep.mubr.bf16.mxu0 0
  %6218 = vmatmul.mubr.bf16.gmra.mrb[0].mxu0 %v5791
  %v6219 = vpop.f32.mrb[0].mxu0
  %v6220 = vadd.f32 %v5931, %v6219
  %v6221 = vpop.f32.mrb[0].mxu0
  %v6222 = vpop.f32.mrb[0].mxu0
  %v6223 = vadd.f32 %v5934, %v6222
  %v6224 = vpop.f32.mrb[0].mxu0
  %6225 = vmatprep.mubr.bf16.mxu0 0
  %6226 = vmatmul.mubr.bf16.gmra.mrb[0].mxu0 %v5794
  %v6227 = vpop.f32.mrb[0].mxu0
  %v6228 = vadd.f32 %v5939, %v6227
  %v6229 = vpop.f32.mrb[0].mxu0
  %v6230 = vpop.f32.mrb[0].mxu0
  %v6231 = vadd.f32 %v5942, %v6230
  %v6232 = vpop.f32.mrb[0].mxu0
  %6233 = vmatprep.mubr.bf16.mxu0 0
  %6234 = vmatmul.mubr.bf16.gmra.mrb[0].mxu0 %v5797
  %v6235 = vpop.f32.mrb[0].mxu0
  %v6236 = vadd.f32 %v5947, %v6235
  %v6237 = vpop.f32.mrb[0].mxu0
  %v6238 = vpop.f32.mrb[0].mxu0
  %v6239 = vadd.f32 %v5950, %v6238
  %v6240 = vpop.f32.mrb[0].mxu0
  %6241 = vmatprep.mubr.bf16.mxu0 0
  %6242 = vmatmul.mubr.bf16.gmra.mrb[0].mxu0 %v5800
  %v6243 = vpop.f32.mrb[0].mxu0
  %v6244 = vadd.f32 %v5955, %v6243
  %v6245 = vpop.f32.mrb[0].mxu0
  %v6246 = vpop.f32.mrb[0].mxu0
  %v6247 = vadd.f32 %v5958, %v6246
  %v6248 = vpop.f32.mrb[0].mxu0
  %6249 = vmatprep.mubr.bf16.mxu0 0
  %6250 = vmatmul.mubr.bf16.gmra.mrb[0].mxu0 %v5803
  %v6251 = vpop.f32.mrb[0].mxu0
  %v6252 = vadd.f32 %v5963, %v6251
  %v6253 = vpop.f32.mrb[0].mxu0
  %v6254 = vpop.f32.mrb[0].mxu0
  %v6255 = vadd.f32 %v5966, %v6254
  %v6256 = vpop.f32.mrb[0].mxu0
  %6257 = vmatprep.mubr.bf16.mxu0 0
  %6258 = vmatmul.mubr.bf16.gmra.mrb[0].mxu0 %v5806
  %v6259 = vpop.f32.mrb[0].mxu0
  %v6260 = vadd.f32 %v5971, %v6259
  %v6261 = vpop.f32.mrb[0].mxu0
  %v6262 = vpop.f32.mrb[0].mxu0
  %v6263 = vadd.f32 %v5974, %v6262
  %v6264 = vpop.f32.mrb[0].mxu0
  %6265 = vmatprep.mubr.bf16.mxu0 0
  %6266 = vmatmul.mubr.bf16.gmra.mrb[0].mxu0 %v5809
  %v6267 = vpop.f32.mrb[0].mxu0
  %v6268 = vadd.f32 %v5979, %v6267
  %v6269 = vpop.f32.mrb[0].mxu0
  %v6270 = vpop.f32.mrb[0].mxu0
  %v6271 = vadd.f32 %v5982, %v6270
  %v6272 = vpop.f32.mrb[0].mxu0
  %6273 = vmatprep.mubr.bf16.mxu0 0
  %6274 = vmatmul.mubr.bf16.gmra.mrb[0].mxu0 %v5812
  %v6275 = vpop.f32.mrb[0].mxu0
  %v6276 = vadd.f32 %v5987, %v6275
  %v6277 = vpop.f32.mrb[0].mxu0
  %v6278 = vpop.f32.mrb[0].mxu0
  %v6279 = vadd.f32 %v5990, %v6278
  %v6280 = vpop.f32.mrb[0].mxu0
  %6281 = vmatprep.mubr.bf16.mxu0 0
  %6282 = vmatmul.mubr.bf16.gmra.mrb[0].mxu0 %v5815
  %v6283 = vpop.f32.mrb[0].mxu0
  %v6284 = vadd.f32 %v5995, %v6283
  %v6285 = vpop.f32.mrb[0].mxu0
  %v6286 = vpop.f32.mrb[0].mxu0
  %v6287 = vadd.f32 %v5998, %v6286
  %v6288 = vpop.f32.mrb[0].mxu0
  %6289 = vmatprep.mubr.bf16.mxu0 0
  %6290 = vmatmul.mubr.bf16.gmra.mrb[0].mxu0 %v5818
  %v6291 = vpop.f32.mrb[0].mxu0
  %v6292 = vadd.f32 %v6003, %v6291
  %v6293 = vpop.f32.mrb[0].mxu0
  %v6294 = vpop.f32.mrb[0].mxu0
  %v6295 = vadd.f32 %v6006, %v6294
  %v6296 = vpop.f32.mrb[0].mxu0
  %6297 = vmatprep.mubr.bf16.mxu0 0
  %6298 = vmatmul.mubr.bf16.gmra.mrb[0].mxu0 %v5821
  %v6299 = vpop.f32.mrb[0].mxu0
  %v6300 = vadd.f32 %v6011, %v6299
  %v6301 = vpop.f32.mrb[0].mxu0
  %v6302 = vpop.f32.mrb[0].mxu0
  %v6303 = vadd.f32 %v6014, %v6302
  %v6304 = vpop.f32.mrb[0].mxu0
  %6305 = vmatprep.mubr.bf16.mxu0 0
  %6306 = vmatmul.mubr.bf16.gmra.mrb[0].mxu0 %v5824
  %v6307 = vpop.f32.mrb[0].mxu0
  %v6308 = vadd.f32 %v6019, %v6307
  %v6309 = vpop.f32.mrb[0].mxu0
  %v6310 = vpop.f32.mrb[0].mxu0
  %v6311 = vadd.f32 %v6022, %v6310
  %v6312 = vpop.f32.mrb[0].mxu0
  %6313 = vmatprep.mubr.bf16.mxu0 0
  %6314 = vmatmul.mubr.bf16.gmra.mrb[0].mxu0 %v5827
  %v6315 = vpop.f32.mrb[0].mxu0
  %v6316 = vadd.f32 %v6027, %v6315
  %v6317 = vpop.f32.mrb[0].mxu0
  %v6318 = vpop.f32.mrb[0].mxu0
  %v6319 = vadd.f32 %v6030, %v6318
  %v6320 = vpop.f32.mrb[0].mxu0
  %6321 = vmatprep.mubr.bf16.mxu0 0
  %6322 = vmatmul.mubr.bf16.gmra.mrb[0].mxu0 %v5830
  %v6323 = vpop.f32.mrb[0].mxu0
  %v6324 = vadd.f32 %v6035, %v6323
  %v6325 = vpop.f32.mrb[0].mxu0
  %v6326 = vpop.f32.mrb[0].mxu0
  %v6327 = vadd.f32 %v6038, %v6326
  %v6328 = vpop.f32.mrb[0].mxu0
  %6329 = vmatprep.mubr.bf16.mxu0 0
  %6330 = vmatmul.mubr.bf16.gmra.mrb[0].mxu0 %v5833
  %v6331 = vpop.f32.mrb[0].mxu0
  %v6332 = vadd.f32 %v6043, %v6331
  %v6333 = vpop.f32.mrb[0].mxu0
  %v6334 = vpop.f32.mrb[0].mxu0
  %v6335 = vadd.f32 %v6046, %v6334
  %v6336 = vpop.f32.mrb[0].mxu0
  %6337 = vmatprep.mubr.bf16.mxu0 0
  %6338 = vmatmul.mubr.bf16.gmra.mrb[0].mxu0 %v5836
  %v6339 = vpop.f32.mrb[0].mxu0
  %v6340 = vadd.f32 %v6051, %v6339
  %v6341 = vpop.f32.mrb[0].mxu0
  %v6342 = vpop.f32.mrb[0].mxu0
  %v6343 = vadd.f32 %v6054, %v6342
  %v6344 = vpop.f32.mrb[0].mxu0
  %6345 = vmatprep.mubr.bf16.mxu0 0
  %6346 = vmatmul.mubr.bf16.gmra.mrb[0].mxu0 %v5839
  %v6347 = vpop.f32.mrb[0].mxu0
  %v6348 = vadd.f32 %v6059, %v6347
  %v6349 = vpop.f32.mrb[0].mxu0
  %v6350 = vpop.f32.mrb[0].mxu0
  %v6351 = vadd.f32 %v6062, %v6350
  %v6352 = vpop.f32.mrb[0].mxu0
  %6353 = vmatprep.mubr.bf16.mxu0 0
  %6354 = vmatmul.mubr.bf16.gmra.mrb[0].mxu0 %v5842
  %v6355 = vpop.f32.mrb[0].mxu0
  %v6356 = vadd.f32 %v6067, %v6355
  %v6357 = vpop.f32.mrb[0].mxu0
  %v6358 = vpop.f32.mrb[0].mxu0
  %v6359 = vadd.f32 %v6070, %v6358
  %v6360 = vpop.f32.mrb[0].mxu0
  %6361 = vmatprep.mubr.bf16.mxu0 0
  %6362 = vmatmul.mubr.bf16.gmra.mrb[0].mxu0 %v5845
  %v6363 = vpop.f32.mrb[0].mxu0
  %v6364 = vadd.f32 %v6075, %v6363
  %v6365 = vpop.f32.mrb[0].mxu0
  %v6366 = vpop.f32.mrb[0].mxu0
  %v6367 = vadd.f32 %v6078, %v6366
  %v6368 = vpop.f32.mrb[0].mxu0
  %6369 = vmatprep.mubr.bf16.mxu0 0
  %6370 = vmatmul.mubr.bf16.gmra.mrb[0].mxu0 %v5848
  %v6371 = vpop.f32.mrb[0].mxu0
  %v6372 = vadd.f32 %v6083, %v6371
  %v6373 = vpop.f32.mrb[0].mxu0
  %v6374 = vpop.f32.mrb[0].mxu0
  %v6375 = vadd.f32 %v6086, %v6374
  %v6376 = vpop.f32.mrb[0].mxu0
  %6377 = vmatprep.mubr.bf16.mxu0 0
  %6378 = vmatmul.mubr.bf16.gmra.mrb[0].mxu0 %v5851
  %v6379 = vpop.f32.mrb[0].mxu0
  %v6380 = vadd.f32 %v6091, %v6379
  %v6381 = vpop.f32.mrb[0].mxu0
  %v6382 = vpop.f32.mrb[0].mxu0
  %v6383 = vadd.f32 %v6094, %v6382
  %v6384 = vpop.f32.mrb[0].mxu0
  %6385 = vmatprep.mubr.bf16.mxu0 0
  %6386 = vmatmul.mubr.bf16.gmra.mrb[0].mxu0 %v5854
  %v6387 = vpop.f32.mrb[0].mxu0
  %v6388 = vadd.f32 %v6099, %v6387
  %v6389 = vpop.f32.mrb[0].mxu0
  %v6390 = vpop.f32.mrb[0].mxu0
  %v6391 = vadd.f32 %v6102, %v6390
  %v6392 = vpop.f32.mrb[0].mxu0
  %6393 = vmatprep.mubr.bf16.mxu0 0
  %6394 = vmatmul.mubr.bf16.gmra.mrb[0].mxu0 %v5857
  %v6395 = vpop.f32.mrb[0].mxu0
  %v6396 = vadd.f32 %v6107, %v6395
  %v6397 = vpop.f32.mrb[0].mxu0
  %v6398 = vpop.f32.mrb[0].mxu0
  %v6399 = vadd.f32 %v6110, %v6398
  %v6400 = vpop.f32.mrb[0].mxu0
  %6401 = vmatprep.mubr.bf16.mxu0 0
  %6402 = vmatmul.mubr.bf16.gmra.mrb[0].mxu0 %v5860
  %v6403 = vpop.f32.mrb[0].mxu0
  %v6404 = vadd.f32 %v6115, %v6403
  %v6405 = vpop.f32.mrb[0].mxu0
  %v6406 = vpop.f32.mrb[0].mxu0
  %v6407 = vadd.f32 %v6118, %v6406
  %v6408 = vpop.f32.mrb[0].mxu0
  %6409 = vmatprep.mubr.bf16.mxu0 0
  %6410 = vmatmul.mubr.bf16.gmra.mrb[0].mxu0 %v5863
  %v6411 = vpop.f32.mrb[0].mxu0
  %v6412 = vadd.f32 %v6123, %v6411
  %v6413 = vpop.f32.mrb[0].mxu0
  %v6414 = vpop.f32.mrb[0].mxu0
  %v6415 = vadd.f32 %v6126, %v6414
  %v6416 = vpop.f32.mrb[0].mxu0
  %6417 = vmatprep.mubr.bf16.mxu0 0
  %6418 = vmatmul.mubr.bf16.gmra.mrb[0].mxu0 %v5866
  %v6419 = vpop.f32.mrb[0].mxu0
  %v6420 = vadd.f32 %v6131, %v6419
  %v6421 = vpop.f32.mrb[0].mxu0
  %v6422 = vpop.f32.mrb[0].mxu0
  %v6423 = vadd.f32 %v6134, %v6422
  %v6424 = vpop.f32.mrb[0].mxu0
  %6425 = vmatprep.mubr.bf16.mxu0 0
  %6426 = vmatmul.mubr.bf16.gmra.mrb[0].mxu0 %v5869
  %v6427 = vpop.f32.mrb[0].mxu0
  %v6428 = vadd.f32 %v6139, %v6427
  %v6429 = vpop.f32.mrb[0].mxu0
  %v6430 = vpop.f32.mrb[0].mxu0
  %v6431 = vadd.f32 %v6142, %v6430
  %v6432 = vpop.f32.mrb[0].mxu0
  %6433 = vmatprep.mubr.bf16.mxu0 0
  %6434 = vmatmul.mubr.bf16.gmra.mrb[0].mxu0 %v5872
  %v6435 = vpop.f32.mrb[0].mxu0
  %v6436 = vadd.f32 %v6147, %v6435
  %v6437 = vpop.f32.mrb[0].mxu0
  %v6438 = vpop.f32.mrb[0].mxu0
  %v6439 = vadd.f32 %v6150, %v6438
  %v6440 = vpop.f32.mrb[0].mxu0
  %6441 = vmatprep.mubr.bf16.mxu0 0
  %6442 = vmatmul.mubr.bf16.gmra.mrb[0].mxu0 %v5875
  %v6443 = vpop.f32.mrb[0].mxu0
  %v6444 = vadd.f32 %v6155, %v6443
  %v6445 = vpop.f32.mrb[0].mxu0
  %v6446 = vpop.f32.mrb[0].mxu0
  %v6447 = vadd.f32 %v6158, %v6446
  %v6448 = vpop.f32.mrb[0].mxu0
  %6449 = vmatprep.mubr.bf16.mxu0 0
  %6450 = vmatmul.mubr.bf16.gmra.mrb[0].mxu0 %v5878
  %v6451 = vpop.f32.mrb[0].mxu0
  %v6452 = vadd.f32 %v6163, %v6451
  %v6453 = vpop.f32.mrb[0].mxu0
  %v6454 = vpop.f32.mrb[0].mxu0
  %v6455 = vadd.f32 %v6166, %v6454
  %v6456 = vpop.f32.mrb[0].mxu0
  %6457 = vdwg.mxu0
  %v6458 = vmax.f32 %v6204, 0.0
  %v6459 = vmax.f32 %v6207, 0.0
  %v6460 = vmax.f32 %v6212, 0.0
  %v6461 = vmax.f32 %v6215, 0.0
  %v6462 = vmax.f32 %v6220, 0.0
  %v6463 = vmax.f32 %v6223, 0.0
  %v6464 = vmax.f32 %v6228, 0.0
  %v6465 = vmax.f32 %v6231, 0.0
  %v6466 = vmax.f32 %v6236, 0.0
  %v6467 = vmax.f32 %v6239, 0.0
  %v6468 = vmax.f32 %v6244, 0.0
  %v6469 = vmax.f32 %v6247, 0.0
  %v6470 = vmax.f32 %v6252, 0.0
  %v6471 = vmax.f32 %v6255, 0.0
  %v6472 = vmax.f32 %v6260, 0.0
  %v6473 = vmax.f32 %v6263, 0.0
  %v6474 = vmax.f32 %v6268, 0.0
  %v6475 = vmax.f32 %v6271, 0.0
  %v6476 = vmax.f32 %v6276, 0.0
  %v6477 = vmax.f32 %v6279, 0.0
  %v6478 = vmax.f32 %v6284, 0.0
  %v6479 = vmax.f32 %v6287, 0.0
  %v6480 = vmax.f32 %v6292, 0.0
  %v6481 = vmax.f32 %v6295, 0.0
  %v6482 = vmax.f32 %v6300, 0.0
  %v6483 = vmax.f32 %v6303, 0.0
  %v6484 = vmax.f32 %v6308, 0.0
  %v6485 = vmax.f32 %v6311, 0.0
  %v6486 = vmax.f32 %v6316, 0.0
  %v6487 = vmax.f32 %v6319, 0.0
  %v6488 = vmax.f32 %v6324, 0.0
  %v6489 = vmax.f32 %v6327, 0.0
  %v6490 = vmax.f32 %v6332, 0.0
  %v6491 = vmax.f32 %v6335, 0.0
  %v6492 = vmax.f32 %v6340, 0.0
  %v6493 = vmax.f32 %v6343, 0.0
  %v6494 = vmax.f32 %v6348, 0.0
  %v6495 = vmax.f32 %v6351, 0.0
  %v6496 = vmax.f32 %v6356, 0.0
  %v6497 = vmax.f32 %v6359, 0.0
  %v6498 = vmax.f32 %v6364, 0.0
  %v6499 = vmax.f32 %v6367, 0.0
  %v6500 = vmax.f32 %v6372, 0.0
  %v6501 = vmax.f32 %v6375, 0.0
  %v6502 = vmax.f32 %v6380, 0.0
  %v6503 = vmax.f32 %v6383, 0.0
  %v6504 = vmax.f32 %v6388, 0.0
  %v6505 = vmax.f32 %v6391, 0.0
  %v6506 = vmax.f32 %v6396, 0.0
  %v6507 = vmax.f32 %v6399, 0.0
  %v6508 = vmax.f32 %v6404, 0.0
  %v6509 = vmax.f32 %v6407, 0.0
  %v6510 = vmax.f32 %v6412, 0.0
  %v6511 = vmax.f32 %v6415, 0.0
  %v6512 = vmax.f32 %v6420, 0.0
  %v6513 = vmax.f32 %v6423, 0.0
  %v6514 = vmax.f32 %v6428, 0.0
  %v6515 = vmax.f32 %v6431, 0.0
  %v6516 = vmax.f32 %v6436, 0.0
  %v6517 = vmax.f32 %v6439, 0.0
  %v6518 = vmax.f32 %v6444, 0.0
  %v6519 = vmax.f32 %v6447, 0.0
  %v6520 = vmax.f32 %v6452, 0.0
  %v6521 = vmax.f32 %v6455, 0.0
  %v6522 = vld [vmem:[%s7] sm:$0x1]
  %v6523 = vld [vmem:[%s8] sm:$0x1]
  %v6524 = vsel %vm45, %v6458, 0.0
  %v6525 = vsel %vm45, %v6459, 0.0
  %v6526 = vadd.f32 %v6524, %v6525
  %v6527 = vsel %vm45, %v6460, 0.0
  %v6528 = vadd.f32 %v6526, %v6527
  %v6529 = vsel %vm45, %v6461, 0.0
  %v6530 = vadd.f32 %v6528, %v6529
  %v6531 = vsel %vm45, %v6462, 0.0
  %v6532 = vadd.f32 %v6530, %v6531
  %v6533 = vsel %vm45, %v6463, 0.0
  %v6534 = vadd.f32 %v6532, %v6533
  %v6535 = vsel %vm45, %v6464, 0.0
  %v6536 = vadd.f32 %v6534, %v6535
  %v6537 = vsel %vm45, %v6465, 0.0
  %v6538 = vadd.f32 %v6536, %v6537
  %v6539 = vsel %vm45, %v6466, 0.0
  %v6540 = vadd.f32 %v6538, %v6539
  %v6541 = vsel %vm45, %v6467, 0.0
  %v6542 = vadd.f32 %v6540, %v6541
  %v6543 = vsel %vm45, %v6468, 0.0
  %v6544 = vadd.f32 %v6542, %v6543
  %v6545 = vsel %vm45, %v6469, 0.0
  %v6546 = vadd.f32 %v6544, %v6545
  %v6547 = vsel %vm45, %v6470, 0.0
  %v6548 = vadd.f32 %v6546, %v6547
  %v6549 = vsel %vm45, %v6471, 0.0
  %v6550 = vadd.f32 %v6548, %v6549
  %v6551 = vsel %vm45, %v6472, 0.0
  %v6552 = vadd.f32 %v6550, %v6551
  %v6553 = vsel %vm45, %v6473, 0.0
  %v6554 = vadd.f32 %v6552, %v6553
  %v6555 = vsel %vm45, %v6474, 0.0
  %v6556 = vadd.f32 %v6554, %v6555
  %v6557 = vsel %vm45, %v6475, 0.0
  %v6558 = vadd.f32 %v6556, %v6557
  %v6559 = vsel %vm45, %v6476, 0.0
  %v6560 = vadd.f32 %v6558, %v6559
  %v6561 = vsel %vm45, %v6477, 0.0
  %v6562 = vadd.f32 %v6560, %v6561
  %v6563 = vsel %vm45, %v6478, 0.0
  %v6564 = vadd.f32 %v6562, %v6563
  %v6565 = vsel %vm45, %v6479, 0.0
  %v6566 = vadd.f32 %v6564, %v6565
  %v6567 = vsel %vm45, %v6480, 0.0
  %v6568 = vadd.f32 %v6566, %v6567
  %v6569 = vsel %vm45, %v6481, 0.0
  %v6570 = vadd.f32 %v6568, %v6569
  %v6571 = vsel %vm45, %v6482, 0.0
  %v6572 = vadd.f32 %v6570, %v6571
  %v6573 = vsel %vm45, %v6483, 0.0
  %v6574 = vadd.f32 %v6572, %v6573
  %v6575 = vsel %vm45, %v6484, 0.0
  %v6576 = vadd.f32 %v6574, %v6575
  %v6577 = vsel %vm45, %v6485, 0.0
  %v6578 = vadd.f32 %v6576, %v6577
  %v6579 = vsel %vm45, %v6486, 0.0
  %v6580 = vadd.f32 %v6578, %v6579
  %v6581 = vsel %vm45, %v6487, 0.0
  %v6582 = vadd.f32 %v6580, %v6581
  %v6583 = vsel %vm45, %v6488, 0.0
  %v6584 = vadd.f32 %v6582, %v6583
  %v6585 = vsel %vm45, %v6489, 0.0
  %v6586 = vadd.f32 %v6584, %v6585
  %v6587 = vsel %vm45, %v6490, 0.0
  %v6588 = vadd.f32 %v6586, %v6587
  %v6589 = vsel %vm45, %v6491, 0.0
  %v6590 = vadd.f32 %v6588, %v6589
  %v6591 = vsel %vm45, %v6492, 0.0
  %v6592 = vadd.f32 %v6590, %v6591
  %v6593 = vsel %vm45, %v6493, 0.0
  %v6594 = vadd.f32 %v6592, %v6593
  %v6595 = vsel %vm45, %v6494, 0.0
  %v6596 = vadd.f32 %v6594, %v6595
  %v6597 = vsel %vm45, %v6495, 0.0
  %v6598 = vadd.f32 %v6596, %v6597
  %v6599 = vsel %vm45, %v6496, 0.0
  %v6600 = vadd.f32 %v6598, %v6599
  %v6601 = vsel %vm45, %v6497, 0.0
  %v6602 = vadd.f32 %v6600, %v6601
  %v6603 = vsel %vm45, %v6498, 0.0
  %v6604 = vadd.f32 %v6602, %v6603
  %v6605 = vsel %vm45, %v6499, 0.0
  %v6606 = vadd.f32 %v6604, %v6605
  %v6607 = vsel %vm45, %v6500, 0.0
  %v6608 = vadd.f32 %v6606, %v6607
  %v6609 = vsel %vm45, %v6501, 0.0
  %v6610 = vadd.f32 %v6608, %v6609
  %v6611 = vsel %vm45, %v6502, 0.0
  %v6612 = vadd.f32 %v6610, %v6611
  %v6613 = vsel %vm45, %v6503, 0.0
  %v6614 = vadd.f32 %v6612, %v6613
  %v6615 = vsel %vm45, %v6504, 0.0
  %v6616 = vadd.f32 %v6614, %v6615
  %v6617 = vsel %vm45, %v6505, 0.0
  %v6618 = vadd.f32 %v6616, %v6617
  %v6619 = vsel %vm45, %v6506, 0.0
  %v6620 = vadd.f32 %v6618, %v6619
  %v6621 = vsel %vm45, %v6507, 0.0
  %v6622 = vadd.f32 %v6620, %v6621
  %v6623 = vsel %vm45, %v6508, 0.0
  %v6624 = vadd.f32 %v6622, %v6623
  %v6625 = vsel %vm45, %v6509, 0.0
  %v6626 = vadd.f32 %v6624, %v6625
  %v6627 = vsel %vm45, %v6510, 0.0
  %v6628 = vadd.f32 %v6626, %v6627
  %v6629 = vsel %vm45, %v6511, 0.0
  %v6630 = vadd.f32 %v6628, %v6629
  %v6631 = vsel %vm45, %v6512, 0.0
  %v6632 = vadd.f32 %v6630, %v6631
  %v6633 = vsel %vm45, %v6513, 0.0
  %v6634 = vadd.f32 %v6632, %v6633
  %v6635 = vsel %vm45, %v6514, 0.0
  %v6636 = vadd.f32 %v6634, %v6635
  %v6637 = vsel %vm45, %v6515, 0.0
  %v6638 = vadd.f32 %v6636, %v6637
  %v6639 = vsel %vm45, %v6516, 0.0
  %v6640 = vadd.f32 %v6638, %v6639
  %v6641 = vsel %vm45, %v6517, 0.0
  %v6642 = vadd.f32 %v6640, %v6641
  %v6643 = vsel %vm45, %v6518, 0.0
  %v6644 = vadd.f32 %v6642, %v6643
  %v6645 = vsel %vm45, %v6519, 0.0
  %v6646 = vadd.f32 %v6644, %v6645
  %v6647 = vsel %vm45, %v6520, 0.0
  %v6648 = vadd.f32 %v6646, %v6647
  %v6649 = vsel %vm45, %v6521, 0.0
  %v6650 = vadd.f32 %v6648, %v6649
  %v6651 = vrot.slane %v6650, 4
  %v6652 = vadd.f32 %v6650, %v6651
  %v6653 = vrot.slane %v6652, 2
  %v6654 = vadd.f32 %v6652, %v6653
  %v6655 = vrot.slane %v6654, 1
  %v6656 = vadd.f32 %v6654, %v6655
  %v6657 = vmul.f32 %v6656, 0.001953125
  %v6658 = vmul.f32 %v6458, %v6458
  %v6659 = vmul.f32 %v6459, %v6459
  %v6660 = vmul.f32 %v6460, %v6460
  %v6661 = vmul.f32 %v6461, %v6461
  %v6662 = vmul.f32 %v6462, %v6462
  %v6663 = vmul.f32 %v6463, %v6463
  %v6664 = vmul.f32 %v6464, %v6464
  %v6665 = vmul.f32 %v6465, %v6465
  %v6666 = vmul.f32 %v6466, %v6466
  %v6667 = vmul.f32 %v6467, %v6467
  %v6668 = vmul.f32 %v6468, %v6468
  %v6669 = vmul.f32 %v6469, %v6469
  %v6670 = vmul.f32 %v6470, %v6470
  %v6671 = vmul.f32 %v6471, %v6471
  %v6672 = vmul.f32 %v6472, %v6472
  %v6673 = vmul.f32 %v6473, %v6473
  %v6674 = vmul.f32 %v6474, %v6474
  %v6675 = vmul.f32 %v6475, %v6475
  %v6676 = vmul.f32 %v6476, %v6476
  %v6677 = vmul.f32 %v6477, %v6477
  %v6678 = vmul.f32 %v6478, %v6478
  %v6679 = vmul.f32 %v6479, %v6479
  %v6680 = vmul.f32 %v6480, %v6480
  %v6681 = vmul.f32 %v6481, %v6481
  %v6682 = vmul.f32 %v6482, %v6482
  %v6683 = vmul.f32 %v6483, %v6483
  %v6684 = vmul.f32 %v6484, %v6484
  %v6685 = vmul.f32 %v6485, %v6485
  %v6686 = vmul.f32 %v6486, %v6486
  %v6687 = vmul.f32 %v6487, %v6487
  %v6688 = vmul.f32 %v6488, %v6488
  %v6689 = vmul.f32 %v6489, %v6489
  %v6690 = vmul.f32 %v6490, %v6490
  %v6691 = vmul.f32 %v6491, %v6491
  %v6692 = vmul.f32 %v6492, %v6492
  %v6693 = vmul.f32 %v6493, %v6493
  %v6694 = vmul.f32 %v6494, %v6494
  %v6695 = vmul.f32 %v6495, %v6495
  %v6696 = vmul.f32 %v6496, %v6496
  %v6697 = vmul.f32 %v6497, %v6497
  %v6698 = vmul.f32 %v6498, %v6498
  %v6699 = vmul.f32 %v6499, %v6499
  %v6700 = vmul.f32 %v6500, %v6500
  %v6701 = vmul.f32 %v6501, %v6501
  %v6702 = vmul.f32 %v6502, %v6502
  %v6703 = vmul.f32 %v6503, %v6503
  %v6704 = vmul.f32 %v6504, %v6504
  %v6705 = vmul.f32 %v6505, %v6505
  %v6706 = vmul.f32 %v6506, %v6506
  %v6707 = vmul.f32 %v6507, %v6507
  %v6708 = vmul.f32 %v6508, %v6508
  %v6709 = vmul.f32 %v6509, %v6509
  %v6710 = vmul.f32 %v6510, %v6510
  %v6711 = vmul.f32 %v6511, %v6511
  %v6712 = vmul.f32 %v6512, %v6512
  %v6713 = vmul.f32 %v6513, %v6513
  %v6714 = vmul.f32 %v6514, %v6514
  %v6715 = vmul.f32 %v6515, %v6515
  %v6716 = vmul.f32 %v6516, %v6516
  %v6717 = vmul.f32 %v6517, %v6517
  %v6718 = vmul.f32 %v6518, %v6518
  %v6719 = vmul.f32 %v6519, %v6519
  %v6720 = vmul.f32 %v6520, %v6520
  %v6721 = vmul.f32 %v6521, %v6521
  %v6722 = vsel %vm45, %v6658, 0.0
  %v6723 = vsel %vm45, %v6659, 0.0
  %v6724 = vadd.f32 %v6722, %v6723
  %v6725 = vsel %vm45, %v6660, 0.0
  %v6726 = vadd.f32 %v6724, %v6725
  %v6727 = vsel %vm45, %v6661, 0.0
  %v6728 = vadd.f32 %v6726, %v6727
  %v6729 = vsel %vm45, %v6662, 0.0
  %v6730 = vadd.f32 %v6728, %v6729
  %v6731 = vsel %vm45, %v6663, 0.0
  %v6732 = vadd.f32 %v6730, %v6731
  %v6733 = vsel %vm45, %v6664, 0.0
  %v6734 = vadd.f32 %v6732, %v6733
  %v6735 = vsel %vm45, %v6665, 0.0
  %v6736 = vadd.f32 %v6734, %v6735
  %v6737 = vsel %vm45, %v6666, 0.0
  %v6738 = vadd.f32 %v6736, %v6737
  %v6739 = vsel %vm45, %v6667, 0.0
  %v6740 = vadd.f32 %v6738, %v6739
  %v6741 = vsel %vm45, %v6668, 0.0
  %v6742 = vadd.f32 %v6740, %v6741
  %v6743 = vsel %vm45, %v6669, 0.0
  %v6744 = vadd.f32 %v6742, %v6743
  %v6745 = vsel %vm45, %v6670, 0.0
  %v6746 = vadd.f32 %v6744, %v6745
  %v6747 = vsel %vm45, %v6671, 0.0
  %v6748 = vadd.f32 %v6746, %v6747
  %v6749 = vsel %vm45, %v6672, 0.0
  %v6750 = vadd.f32 %v6748, %v6749
  %v6751 = vsel %vm45, %v6673, 0.0
  %v6752 = vadd.f32 %v6750, %v6751
  %v6753 = vsel %vm45, %v6674, 0.0
  %v6754 = vadd.f32 %v6752, %v6753
  %v6755 = vsel %vm45, %v6675, 0.0
  %v6756 = vadd.f32 %v6754, %v6755
  %v6757 = vsel %vm45, %v6676, 0.0
  %v6758 = vadd.f32 %v6756, %v6757
  %v6759 = vsel %vm45, %v6677, 0.0
  %v6760 = vadd.f32 %v6758, %v6759
  %v6761 = vsel %vm45, %v6678, 0.0
  %v6762 = vadd.f32 %v6760, %v6761
  %v6763 = vsel %vm45, %v6679, 0.0
  %v6764 = vadd.f32 %v6762, %v6763
  %v6765 = vsel %vm45, %v6680, 0.0
  %v6766 = vadd.f32 %v6764, %v6765
  %v6767 = vsel %vm45, %v6681, 0.0
  %v6768 = vadd.f32 %v6766, %v6767
  %v6769 = vsel %vm45, %v6682, 0.0
  %v6770 = vadd.f32 %v6768, %v6769
  %v6771 = vsel %vm45, %v6683, 0.0
  %v6772 = vadd.f32 %v6770, %v6771
  %v6773 = vsel %vm45, %v6684, 0.0
  %v6774 = vadd.f32 %v6772, %v6773
  %v6775 = vsel %vm45, %v6685, 0.0
  %v6776 = vadd.f32 %v6774, %v6775
  %v6777 = vsel %vm45, %v6686, 0.0
  %v6778 = vadd.f32 %v6776, %v6777
  %v6779 = vsel %vm45, %v6687, 0.0
  %v6780 = vadd.f32 %v6778, %v6779
  %v6781 = vsel %vm45, %v6688, 0.0
  %v6782 = vadd.f32 %v6780, %v6781
  %v6783 = vsel %vm45, %v6689, 0.0
  %v6784 = vadd.f32 %v6782, %v6783
  %v6785 = vsel %vm45, %v6690, 0.0
  %v6786 = vadd.f32 %v6784, %v6785
  %v6787 = vsel %vm45, %v6691, 0.0
  %v6788 = vadd.f32 %v6786, %v6787
  %v6789 = vsel %vm45, %v6692, 0.0
  %v6790 = vadd.f32 %v6788, %v6789
  %v6791 = vsel %vm45, %v6693, 0.0
  %v6792 = vadd.f32 %v6790, %v6791
  %v6793 = vsel %vm45, %v6694, 0.0
  %v6794 = vadd.f32 %v6792, %v6793
  %v6795 = vsel %vm45, %v6695, 0.0
  %v6796 = vadd.f32 %v6794, %v6795
  %v6797 = vsel %vm45, %v6696, 0.0
  %v6798 = vadd.f32 %v6796, %v6797
  %v6799 = vsel %vm45, %v6697, 0.0
  %v6800 = vadd.f32 %v6798, %v6799
  %v6801 = vsel %vm45, %v6698, 0.0
  %v6802 = vadd.f32 %v6800, %v6801
  %v6803 = vsel %vm45, %v6699, 0.0
  %v6804 = vadd.f32 %v6802, %v6803
  %v6805 = vsel %vm45, %v6700, 0.0
  %v6806 = vadd.f32 %v6804, %v6805
  %v6807 = vsel %vm45, %v6701, 0.0
  %v6808 = vadd.f32 %v6806, %v6807
  %v6809 = vsel %vm45, %v6702, 0.0
  %v6810 = vadd.f32 %v6808, %v6809
  %v6811 = vsel %vm45, %v6703, 0.0
  %v6812 = vadd.f32 %v6810, %v6811
  %v6813 = vsel %vm45, %v6704, 0.0
  %v6814 = vadd.f32 %v6812, %v6813
  %v6815 = vsel %vm45, %v6705, 0.0
  %v6816 = vadd.f32 %v6814, %v6815
  %v6817 = vsel %vm45, %v6706, 0.0
  %v6818 = vadd.f32 %v6816, %v6817
  %v6819 = vsel %vm45, %v6707, 0.0
  %v6820 = vadd.f32 %v6818, %v6819
  %v6821 = vsel %vm45, %v6708, 0.0
  %v6822 = vadd.f32 %v6820, %v6821
  %v6823 = vsel %vm45, %v6709, 0.0
  %v6824 = vadd.f32 %v6822, %v6823
  %v6825 = vsel %vm45, %v6710, 0.0
  %v6826 = vadd.f32 %v6824, %v6825
  %v6827 = vsel %vm45, %v6711, 0.0
  %v6828 = vadd.f32 %v6826, %v6827
  %v6829 = vsel %vm45, %v6712, 0.0
  %v6830 = vadd.f32 %v6828, %v6829
  %v6831 = vsel %vm45, %v6713, 0.0
  %v6832 = vadd.f32 %v6830, %v6831
  %v6833 = vsel %vm45, %v6714, 0.0
  %v6834 = vadd.f32 %v6832, %v6833
  %v6835 = vsel %vm45, %v6715, 0.0
  %v6836 = vadd.f32 %v6834, %v6835
  %v6837 = vsel %vm45, %v6716, 0.0
  %v6838 = vadd.f32 %v6836, %v6837
  %v6839 = vsel %vm45, %v6717, 0.0
  %v6840 = vadd.f32 %v6838, %v6839
  %v6841 = vsel %vm45, %v6718, 0.0
  %v6842 = vadd.f32 %v6840, %v6841
  %v6843 = vsel %vm45, %v6719, 0.0
  %v6844 = vadd.f32 %v6842, %v6843
  %v6845 = vsel %vm45, %v6720, 0.0
  %v6846 = vadd.f32 %v6844, %v6845
  %v6847 = vsel %vm45, %v6721, 0.0
  %v6848 = vadd.f32 %v6846, %v6847
  %v6849 = vrot.slane %v6848, 4
  %v6850 = vadd.f32 %v6848, %v6849
  %v6851 = vrot.slane %v6850, 2
  %v6852 = vadd.f32 %v6850, %v6851
  %v6853 = vrot.slane %v6852, 1
  %v6854 = vadd.f32 %v6852, %v6853
  %v6855 = vmul.f32 %v6854, 0.001953125
  %v6856 = vmul.f32 %v6657, %v6657
  %v6857 = vsub.f32 %v6855, %v6856
  %v6858 = vsub.f32 %v6458, %v6657
  %v6859 = vsub.f32 %v6459, %v6657
  %v6860 = vsub.f32 %v6460, %v6657
  %v6861 = vsub.f32 %v6461, %v6657
  %v6862 = vsub.f32 %v6462, %v6657
  %v6863 = vsub.f32 %v6463, %v6657
  %v6864 = vsub.f32 %v6464, %v6657
  %v6865 = vsub.f32 %v6465, %v6657
  %v6866 = vsub.f32 %v6466, %v6657
  %v6867 = vsub.f32 %v6467, %v6657
  %v6868 = vsub.f32 %v6468, %v6657
  %v6869 = vsub.f32 %v6469, %v6657
  %v6870 = vsub.f32 %v6470, %v6657
  %v6871 = vsub.f32 %v6471, %v6657
  %v6872 = vsub.f32 %v6472, %v6657
  %v6873 = vsub.f32 %v6473, %v6657
  %v6874 = vsub.f32 %v6474, %v6657
  %v6875 = vsub.f32 %v6475, %v6657
  %v6876 = vsub.f32 %v6476, %v6657
  %v6877 = vsub.f32 %v6477, %v6657
  %v6878 = vsub.f32 %v6478, %v6657
  %v6879 = vsub.f32 %v6479, %v6657
  %v6880 = vsub.f32 %v6480, %v6657
  %v6881 = vsub.f32 %v6481, %v6657
  %v6882 = vsub.f32 %v6482, %v6657
  %v6883 = vsub.f32 %v6483, %v6657
  %v6884 = vsub.f32 %v6484, %v6657
  %v6885 = vsub.f32 %v6485, %v6657
  %v6886 = vsub.f32 %v6486, %v6657
  %v6887 = vsub.f32 %v6487, %v6657
  %v6888 = vsub.f32 %v6488, %v6657
  %v6889 = vsub.f32 %v6489, %v6657
  %v6890 = vsub.f32 %v6490, %v6657
  %v6891 = vsub.f32 %v6491, %v6657
  %v6892 = vsub.f32 %v6492, %v6657
  %v6893 = vsub.f32 %v6493, %v6657
  %v6894 = vsub.f32 %v6494, %v6657
  %v6895 = vsub.f32 %v6495, %v6657
  %v6896 = vsub.f32 %v6496, %v6657
  %v6897 = vsub.f32 %v6497, %v6657
  %v6898 = vsub.f32 %v6498, %v6657
  %v6899 = vsub.f32 %v6499, %v6657
  %v6900 = vsub.f32 %v6500, %v6657
  %v6901 = vsub.f32 %v6501, %v6657
  %v6902 = vsub.f32 %v6502, %v6657
  %v6903 = vsub.f32 %v6503, %v6657
  %v6904 = vsub.f32 %v6504, %v6657
  %v6905 = vsub.f32 %v6505, %v6657
  %v6906 = vsub.f32 %v6506, %v6657
  %v6907 = vsub.f32 %v6507, %v6657
  %v6908 = vsub.f32 %v6508, %v6657
  %v6909 = vsub.f32 %v6509, %v6657
  %v6910 = vsub.f32 %v6510, %v6657
  %v6911 = vsub.f32 %v6511, %v6657
  %v6912 = vsub.f32 %v6512, %v6657
  %v6913 = vsub.f32 %v6513, %v6657
  %v6914 = vsub.f32 %v6514, %v6657
  %v6915 = vsub.f32 %v6515, %v6657
  %v6916 = vsub.f32 %v6516, %v6657
  %v6917 = vsub.f32 %v6517, %v6657
  %v6918 = vsub.f32 %v6518, %v6657
  %v6919 = vsub.f32 %v6519, %v6657
  %v6920 = vsub.f32 %v6520, %v6657
  %v6921 = vsub.f32 %v6521, %v6657
  %v6922 = vadd.f32 %v6857, 1e-05
  %v6923 = vrsqrt.pop %v6922
  %v6924 = vmul.f32 %v6858, %v6923
  %v6925 = vmul.f32 %v6859, %v6923
  %v6926 = vmul.f32 %v6860, %v6923
  %v6927 = vmul.f32 %v6861, %v6923
  %v6928 = vmul.f32 %v6862, %v6923
  %v6929 = vmul.f32 %v6863, %v6923
  %v6930 = vmul.f32 %v6864, %v6923
  %v6931 = vmul.f32 %v6865, %v6923
  %v6932 = vmul.f32 %v6866, %v6923
  %v6933 = vmul.f32 %v6867, %v6923
  %v6934 = vmul.f32 %v6868, %v6923
  %v6935 = vmul.f32 %v6869, %v6923
  %v6936 = vmul.f32 %v6870, %v6923
  %v6937 = vmul.f32 %v6871, %v6923
  %v6938 = vmul.f32 %v6872, %v6923
  %v6939 = vmul.f32 %v6873, %v6923
  %v6940 = vmul.f32 %v6874, %v6923
  %v6941 = vmul.f32 %v6875, %v6923
  %v6942 = vmul.f32 %v6876, %v6923
  %v6943 = vmul.f32 %v6877, %v6923
  %v6944 = vmul.f32 %v6878, %v6923
  %v6945 = vmul.f32 %v6879, %v6923
  %v6946 = vmul.f32 %v6880, %v6923
  %v6947 = vmul.f32 %v6881, %v6923
  %v6948 = vmul.f32 %v6882, %v6923
  %v6949 = vmul.f32 %v6883, %v6923
  %v6950 = vmul.f32 %v6884, %v6923
  %v6951 = vmul.f32 %v6885, %v6923
  %v6952 = vmul.f32 %v6886, %v6923
  %v6953 = vmul.f32 %v6887, %v6923
  %v6954 = vmul.f32 %v6888, %v6923
  %v6955 = vmul.f32 %v6889, %v6923
  %v6956 = vmul.f32 %v6890, %v6923
  %v6957 = vmul.f32 %v6891, %v6923
  %v6958 = vmul.f32 %v6892, %v6923
  %v6959 = vmul.f32 %v6893, %v6923
  %v6960 = vmul.f32 %v6894, %v6923
  %v6961 = vmul.f32 %v6895, %v6923
  %v6962 = vmul.f32 %v6896, %v6923
  %v6963 = vmul.f32 %v6897, %v6923
  %v6964 = vmul.f32 %v6898, %v6923
  %v6965 = vmul.f32 %v6899, %v6923
  %v6966 = vmul.f32 %v6900, %v6923
  %v6967 = vmul.f32 %v6901, %v6923
  %v6968 = vmul.f32 %v6902, %v6923
  %v6969 = vmul.f32 %v6903, %v6923
  %v6970 = vmul.f32 %v6904, %v6923
  %v6971 = vmul.f32 %v6905, %v6923
  %v6972 = vmul.f32 %v6906, %v6923
  %v6973 = vmul.f32 %v6907, %v6923
  %v6974 = vmul.f32 %v6908, %v6923
  %v6975 = vmul.f32 %v6909, %v6923
  %v6976 = vmul.f32 %v6910, %v6923
  %v6977 = vmul.f32 %v6911, %v6923
  %v6978 = vmul.f32 %v6912, %v6923
  %v6979 = vmul.f32 %v6913, %v6923
  %v6980 = vmul.f32 %v6914, %v6923
  %v6981 = vmul.f32 %v6915, %v6923
  %v6982 = vmul.f32 %v6916, %v6923
  %v6983 = vmul.f32 %v6917, %v6923
  %v6984 = vmul.f32 %v6918, %v6923
  %v6985 = vmul.f32 %v6919, %v6923
  %v6986 = vmul.f32 %v6920, %v6923
  %v6987 = vmul.f32 %v6921, %v6923
  %v6989 = vlaneseq
  %v6990 = vshrl.u32 %v6989, 7
  %v6991 = vsub.s32 0, %v6990
  %v6992 = vrot.slane %v6522, %v6991
  %v6994 = vmul.f32 %v6924, %v6992
  %v6995 = vmul.f32 %v6925, %v6992
  %v6996 = vmul.f32 %v6926, %v6992
  %v6997 = vmul.f32 %v6927, %v6992
  %v6998 = vmul.f32 %v6928, %v6992
  %v6999 = vmul.f32 %v6929, %v6992
  %v7000 = vmul.f32 %v6930, %v6992
  %v7001 = vmul.f32 %v6931, %v6992
  %v7002 = vmul.f32 %v6932, %v6992
  %v7003 = vmul.f32 %v6933, %v6992
  %v7004 = vmul.f32 %v6934, %v6992
  %v7005 = vmul.f32 %v6935, %v6992
  %v7006 = vmul.f32 %v6936, %v6992
  %v7007 = vmul.f32 %v6937, %v6992
  %v7008 = vmul.f32 %v6938, %v6992
  %v7009 = vmul.f32 %v6939, %v6992
  %v7010 = vmul.f32 %v6940, %v6992
  %v7011 = vmul.f32 %v6941, %v6992
  %v7012 = vmul.f32 %v6942, %v6992
  %v7013 = vmul.f32 %v6943, %v6992
  %v7014 = vmul.f32 %v6944, %v6992
  %v7015 = vmul.f32 %v6945, %v6992
  %v7016 = vmul.f32 %v6946, %v6992
  %v7017 = vmul.f32 %v6947, %v6992
  %v7018 = vmul.f32 %v6948, %v6992
  %v7019 = vmul.f32 %v6949, %v6992
  %v7020 = vmul.f32 %v6950, %v6992
  %v7021 = vmul.f32 %v6951, %v6992
  %v7022 = vmul.f32 %v6952, %v6992
  %v7023 = vmul.f32 %v6953, %v6992
  %v7024 = vmul.f32 %v6954, %v6992
  %v7025 = vmul.f32 %v6955, %v6992
  %v7026 = vmul.f32 %v6956, %v6992
  %v7027 = vmul.f32 %v6957, %v6992
  %v7028 = vmul.f32 %v6958, %v6992
  %v7029 = vmul.f32 %v6959, %v6992
  %v7030 = vmul.f32 %v6960, %v6992
  %v7031 = vmul.f32 %v6961, %v6992
  %v7032 = vmul.f32 %v6962, %v6992
  %v7033 = vmul.f32 %v6963, %v6992
  %v7034 = vmul.f32 %v6964, %v6992
  %v7035 = vmul.f32 %v6965, %v6992
  %v7036 = vmul.f32 %v6966, %v6992
  %v7037 = vmul.f32 %v6967, %v6992
  %v7038 = vmul.f32 %v6968, %v6992
  %v7039 = vmul.f32 %v6969, %v6992
  %v7040 = vmul.f32 %v6970, %v6992
  %v7041 = vmul.f32 %v6971, %v6992
  %v7042 = vmul.f32 %v6972, %v6992
  %v7043 = vmul.f32 %v6973, %v6992
  %v7044 = vmul.f32 %v6974, %v6992
  %v7045 = vmul.f32 %v6975, %v6992
  %v7046 = vmul.f32 %v6976, %v6992
  %v7047 = vmul.f32 %v6977, %v6992
  %v7048 = vmul.f32 %v6978, %v6992
  %v7049 = vmul.f32 %v6979, %v6992
  %v7050 = vmul.f32 %v6980, %v6992
  %v7051 = vmul.f32 %v6981, %v6992
  %v7052 = vmul.f32 %v6982, %v6992
  %v7053 = vmul.f32 %v6983, %v6992
  %v7054 = vmul.f32 %v6984, %v6992
  %v7055 = vmul.f32 %v6985, %v6992
  %v7056 = vmul.f32 %v6986, %v6992
  %v7057 = vmul.f32 %v6987, %v6992
  %v7059 = vlaneseq
  %v7060 = vshrl.u32 %v7059, 7
  %v7061 = vsub.s32 0, %v7060
  %v7062 = vrot.slane %v6523, %v7061
  %v7064 = vadd.f32 %v6994, %v7062
  %v7065 = vadd.f32 %v6995, %v7062
  %v7066 = vadd.f32 %v6996, %v7062
  %v7067 = vadd.f32 %v6997, %v7062
  %v7068 = vadd.f32 %v6998, %v7062
  %v7069 = vadd.f32 %v6999, %v7062
  %v7070 = vadd.f32 %v7000, %v7062
  %v7071 = vadd.f32 %v7001, %v7062
  %v7072 = vadd.f32 %v7002, %v7062
  %v7073 = vadd.f32 %v7003, %v7062
  %v7074 = vadd.f32 %v7004, %v7062
  %v7075 = vadd.f32 %v7005, %v7062
  %v7076 = vadd.f32 %v7006, %v7062
  %v7077 = vadd.f32 %v7007, %v7062
  %v7078 = vadd.f32 %v7008, %v7062
  %v7079 = vadd.f32 %v7009, %v7062
  %v7080 = vadd.f32 %v7010, %v7062
  %v7081 = vadd.f32 %v7011, %v7062
  %v7082 = vadd.f32 %v7012, %v7062
  %v7083 = vadd.f32 %v7013, %v7062
  %v7084 = vadd.f32 %v7014, %v7062
  %v7085 = vadd.f32 %v7015, %v7062
  %v7086 = vadd.f32 %v7016, %v7062
  %v7087 = vadd.f32 %v7017, %v7062
  %v7088 = vadd.f32 %v7018, %v7062
  %v7089 = vadd.f32 %v7019, %v7062
  %v7090 = vadd.f32 %v7020, %v7062
  %v7091 = vadd.f32 %v7021, %v7062
  %v7092 = vadd.f32 %v7022, %v7062
  %v7093 = vadd.f32 %v7023, %v7062
  %v7094 = vadd.f32 %v7024, %v7062
  %v7095 = vadd.f32 %v7025, %v7062
  %v7096 = vadd.f32 %v7026, %v7062
  %v7097 = vadd.f32 %v7027, %v7062
  %v7098 = vadd.f32 %v7028, %v7062
  %v7099 = vadd.f32 %v7029, %v7062
  %v7100 = vadd.f32 %v7030, %v7062
  %v7101 = vadd.f32 %v7031, %v7062
  %v7102 = vadd.f32 %v7032, %v7062
  %v7103 = vadd.f32 %v7033, %v7062
  %v7104 = vadd.f32 %v7034, %v7062
  %v7105 = vadd.f32 %v7035, %v7062
  %v7106 = vadd.f32 %v7036, %v7062
  %v7107 = vadd.f32 %v7037, %v7062
  %v7108 = vadd.f32 %v7038, %v7062
  %v7109 = vadd.f32 %v7039, %v7062
  %v7110 = vadd.f32 %v7040, %v7062
  %v7111 = vadd.f32 %v7041, %v7062
  %v7112 = vadd.f32 %v7042, %v7062
  %v7113 = vadd.f32 %v7043, %v7062
  %v7114 = vadd.f32 %v7044, %v7062
  %v7115 = vadd.f32 %v7045, %v7062
  %v7116 = vadd.f32 %v7046, %v7062
  %v7117 = vadd.f32 %v7047, %v7062
  %v7118 = vadd.f32 %v7048, %v7062
  %v7119 = vadd.f32 %v7049, %v7062
  %v7120 = vadd.f32 %v7050, %v7062
  %v7121 = vadd.f32 %v7051, %v7062
  %v7122 = vadd.f32 %v7052, %v7062
  %v7123 = vadd.f32 %v7053, %v7062
  %v7124 = vadd.f32 %v7054, %v7062
  %v7125 = vadd.f32 %v7055, %v7062
  %v7126 = vadd.f32 %v7056, %v7062
  %v7127 = vadd.f32 %v7057, %v7062
  %v7128 = vpack.c.bf16 %v7065, %v7064
  %v7129 = vpack.c.bf16 %v7067, %v7066
  %v7130 = vpack.c.bf16 %v7069, %v7068
  %v7131 = vpack.c.bf16 %v7071, %v7070
  %v7132 = vpack.c.bf16 %v7073, %v7072
  %v7133 = vpack.c.bf16 %v7075, %v7074
  %v7134 = vpack.c.bf16 %v7077, %v7076
  %v7135 = vpack.c.bf16 %v7079, %v7078
  %v7136 = vpack.c.bf16 %v7081, %v7080
  %v7137 = vpack.c.bf16 %v7083, %v7082
  %v7138 = vpack.c.bf16 %v7085, %v7084
  %v7139 = vpack.c.bf16 %v7087, %v7086
  %v7140 = vpack.c.bf16 %v7089, %v7088
  %v7141 = vpack.c.bf16 %v7091, %v7090
  %v7142 = vpack.c.bf16 %v7093, %v7092
  %v7143 = vpack.c.bf16 %v7095, %v7094
  %v7144 = vpack.c.bf16 %v7097, %v7096
  %v7145 = vpack.c.bf16 %v7099, %v7098
  %v7146 = vpack.c.bf16 %v7101, %v7100
  %v7147 = vpack.c.bf16 %v7103, %v7102
  %v7148 = vpack.c.bf16 %v7105, %v7104
  %v7149 = vpack.c.bf16 %v7107, %v7106
  %v7150 = vpack.c.bf16 %v7109, %v7108
  %v7151 = vpack.c.bf16 %v7111, %v7110
  %v7152 = vpack.c.bf16 %v7113, %v7112
  %v7153 = vpack.c.bf16 %v7115, %v7114
  %v7154 = vpack.c.bf16 %v7117, %v7116
  %v7155 = vpack.c.bf16 %v7119, %v7118
  %v7156 = vpack.c.bf16 %v7121, %v7120
  %v7157 = vpack.c.bf16 %v7123, %v7122
  %v7158 = vpack.c.bf16 %v7125, %v7124
  %v7159 = vpack.c.bf16 %v7127, %v7126
  %v7160 = vld [vmem:[%s9] sm:$0xf]
  %v7161 = vld [vmem:[%s9 + $0x4] sm:$0xf]
  %v7162 = vld [vmem:[%s9 + $0x8] sm:$0xf]
  %v7163 = vld [vmem:[%s9 + $0xc] sm:$0xf]
  %v7164 = vld [vmem:[%s10] sm:$0x1]
  %v7166 = vlaneseq
  %v7167 = vshrl.u32 %v7166, 7
  %v7168 = vsub.s32 0, %v7167
  %v7169 = vrot.slane %v7164, %v7168
  %v7175 = vunpack.c.l.b16 %v7160
  %v7176 = vunpack.c.l.b16 %v7161
  %v7177 = vunpack.c.l.b16 %v7162
  %v7178 = vunpack.c.l.b16 %v7163
  %v7179 = vpack.c.b16 %v7176, %v7175
  %v7180 = vpack.c.b16 %v7178, %v7177
  %v7184 = vsel %vm45, %v7128, 0
  %v7187 = vsel %vm45, %v7129, 0
  %v7190 = vsel %vm45, %v7130, 0
  %v7193 = vsel %vm45, %v7131, 0
  %v7196 = vsel %vm45, %v7132, 0
  %v7199 = vsel %vm45, %v7133, 0
  %v7202 = vsel %vm45, %v7134, 0
  %v7205 = vsel %vm45, %v7135, 0
  %v7208 = vsel %vm45, %v7136, 0
  %v7211 = vsel %vm45, %v7137, 0
  %v7214 = vsel %vm45, %v7138, 0
  %v7217 = vsel %vm45, %v7139, 0
  %v7220 = vsel %vm45, %v7140, 0
  %v7223 = vsel %vm45, %v7141, 0
  %v7226 = vsel %vm45, %v7142, 0
  %v7229 = vsel %vm45, %v7143, 0
  %v7232 = vsel %vm45, %v7144, 0
  %v7235 = vsel %vm45, %v7145, 0
  %v7238 = vsel %vm45, %v7146, 0
  %v7241 = vsel %vm45, %v7147, 0
  %v7244 = vsel %vm45, %v7148, 0
  %v7247 = vsel %vm45, %v7149, 0
  %v7250 = vsel %vm45, %v7150, 0
  %v7253 = vsel %vm45, %v7151, 0
  %v7256 = vsel %vm45, %v7152, 0
  %v7259 = vsel %vm45, %v7153, 0
  %v7262 = vsel %vm45, %v7154, 0
  %v7265 = vsel %vm45, %v7155, 0
  %v7268 = vsel %vm45, %v7156, 0
  %v7271 = vsel %vm45, %v7157, 0
  %v7274 = vsel %vm45, %v7158, 0
  %v7277 = vsel %vm45, %v7159, 0
  %7279 = vmatprep.subr.bf16.mxu0 0
  %7280 = vmatpush1.bf16.msra.mxu0 %v7179
  %7281 = vmatprep.subr.bf16.mxu0 0
  %7282 = vmatpush1.bf16.msra.mxu0 %v7180
  %7283 = vmatprep.subr.bf16.mxu0 0
  %7284 = vmatpush1.bf16.msra.mxu0 0
  %7285 = vmatprep.subr.bf16.mxu0 0
  %7286 = vmatpush1.bf16.msra.mxu0 0
  %7287 = vmatprep.subr.bf16.mxu0 0
  %7288 = vmatpush1.bf16.msra.mxu0 0
  %7289 = vmatprep.subr.bf16.mxu0 0
  %7290 = vmatpush1.bf16.msra.mxu0 0
  %7291 = vmatprep.subr.bf16.mxu0 0
  %7292 = vmatpush1.bf16.msra.mxu0 0
  %7293 = vmatprep.subr.bf16.mxu0 0
  %7294 = vmatpush1.bf16.msra.mxu0 0
  %7295 = vmatprep.subr.bf16.mxu0 0
  %7296 = vmatpush1.bf16.msra.mxu0 0
  %7297 = vmatprep.subr.bf16.mxu0 0
  %7298 = vmatpush1.bf16.msra.mxu0 0
  %7299 = vmatprep.subr.bf16.mxu0 0
  %7300 = vmatpush1.bf16.msra.mxu0 0
  %7301 = vmatprep.subr.bf16.mxu0 0
  %7302 = vmatpush1.bf16.msra.mxu0 0
  %7303 = vmatprep.subr.bf16.mxu0 0
  %7304 = vmatpush1.bf16.msra.mxu0 0
  %7305 = vmatprep.subr.bf16.mxu0 0
  %7306 = vmatpush1.bf16.msra.mxu0 0
  %7307 = vmatprep.subr.bf16.mxu0 0
  %7308 = vmatpush1.bf16.msra.mxu0 0
  %7309 = vmatprep.subr.bf16.mxu0 0
  %7310 = vmatpush1.bf16.msra.mxu0 0
  %7311 = vmatprep.mubr.bf16.mxu0 0
  %7312 = vmatmul.mubr.bf16.gmra.mrb[0].mxu0 %v7184
  %v7313 = vpop.f32.mrb[0].mxu0
  %v7314 = vadd.f32 %v7169, %v7313
  %v7315 = vpop.f32.mrb[0].mxu0
  %v7316 = vpop.f32.mrb[0].mxu0
  %v7317 = vadd.f32 %v7169, %v7316
  %v7318 = vpop.f32.mrb[0].mxu0
  %7319 = vmatprep.mubr.bf16.mxu0 0
  %7320 = vmatmul.mubr.bf16.gmra.mrb[0].mxu0 %v7187
  %v7321 = vpop.f32.mrb[0].mxu0
  %v7322 = vadd.f32 %v7169, %v7321
  %v7323 = vpop.f32.mrb[0].mxu0
  %v7324 = vpop.f32.mrb[0].mxu0
  %v7325 = vadd.f32 %v7169, %v7324
  %v7326 = vpop.f32.mrb[0].mxu0
  %7327 = vmatprep.mubr.bf16.mxu0 0
  %7328 = vmatmul.mubr.bf16.gmra.mrb[0].mxu0 %v7190
  %v7329 = vpop.f32.mrb[0].mxu0
  %v7330 = vadd.f32 %v7169, %v7329
  %v7331 = vpop.f32.mrb[0].mxu0
  %v7332 = vpop.f32.mrb[0].mxu0
  %v7333 = vadd.f32 %v7169, %v7332
  %v7334 = vpop.f32.mrb[0].mxu0
  %7335 = vmatprep.mubr.bf16.mxu0 0
  %7336 = vmatmul.mubr.bf16.gmra.mrb[0].mxu0 %v7193
  %v7337 = vpop.f32.mrb[0].mxu0
  %v7338 = vadd.f32 %v7169, %v7337
  %v7339 = vpop.f32.mrb[0].mxu0
  %v7340 = vpop.f32.mrb[0].mxu0
  %v7341 = vadd.f32 %v7169, %v7340
  %v7342 = vpop.f32.mrb[0].mxu0
  %7343 = vmatprep.mubr.bf16.mxu0 0
  %7344 = vmatmul.mubr.bf16.gmra.mrb[0].mxu0 %v7196
  %v7345 = vpop.f32.mrb[0].mxu0
  %v7346 = vadd.f32 %v7169, %v7345
  %v7347 = vpop.f32.mrb[0].mxu0
  %v7348 = vpop.f32.mrb[0].mxu0
  %v7349 = vadd.f32 %v7169, %v7348
  %v7350 = vpop.f32.mrb[0].mxu0
  %7351 = vmatprep.mubr.bf16.mxu0 0
  %7352 = vmatmul.mubr.bf16.gmra.mrb[0].mxu0 %v7199
  %v7353 = vpop.f32.mrb[0].mxu0
  %v7354 = vadd.f32 %v7169, %v7353
  %v7355 = vpop.f32.mrb[0].mxu0
  %v7356 = vpop.f32.mrb[0].mxu0
  %v7357 = vadd.f32 %v7169, %v7356
  %v7358 = vpop.f32.mrb[0].mxu0
  %7359 = vmatprep.mubr.bf16.mxu0 0
  %7360 = vmatmul.mubr.bf16.gmra.mrb[0].mxu0 %v7202
  %v7361 = vpop.f32.mrb[0].mxu0
  %v7362 = vadd.f32 %v7169, %v7361
  %v7363 = vpop.f32.mrb[0].mxu0
  %v7364 = vpop.f32.mrb[0].mxu0
  %v7365 = vadd.f32 %v7169, %v7364
  %v7366 = vpop.f32.mrb[0].mxu0
  %7367 = vmatprep.mubr.bf16.mxu0 0
  %7368 = vmatmul.mubr.bf16.gmra.mrb[0].mxu0 %v7205
  %v7369 = vpop.f32.mrb[0].mxu0
  %v7370 = vadd.f32 %v7169, %v7369
  %v7371 = vpop.f32.mrb[0].mxu0
  %v7372 = vpop.f32.mrb[0].mxu0
  %v7373 = vadd.f32 %v7169, %v7372
  %v7374 = vpop.f32.mrb[0].mxu0
  %7375 = vmatprep.mubr.bf16.mxu0 0
  %7376 = vmatmul.mubr.bf16.gmra.mrb[0].mxu0 %v7208
  %v7377 = vpop.f32.mrb[0].mxu0
  %v7378 = vadd.f32 %v7169, %v7377
  %v7379 = vpop.f32.mrb[0].mxu0
  %v7380 = vpop.f32.mrb[0].mxu0
  %v7381 = vadd.f32 %v7169, %v7380
  %v7382 = vpop.f32.mrb[0].mxu0
  %7383 = vmatprep.mubr.bf16.mxu0 0
  %7384 = vmatmul.mubr.bf16.gmra.mrb[0].mxu0 %v7211
  %v7385 = vpop.f32.mrb[0].mxu0
  %v7386 = vadd.f32 %v7169, %v7385
  %v7387 = vpop.f32.mrb[0].mxu0
  %v7388 = vpop.f32.mrb[0].mxu0
  %v7389 = vadd.f32 %v7169, %v7388
  %v7390 = vpop.f32.mrb[0].mxu0
  %7391 = vmatprep.mubr.bf16.mxu0 0
  %7392 = vmatmul.mubr.bf16.gmra.mrb[0].mxu0 %v7214
  %v7393 = vpop.f32.mrb[0].mxu0
  %v7394 = vadd.f32 %v7169, %v7393
  %v7395 = vpop.f32.mrb[0].mxu0
  %v7396 = vpop.f32.mrb[0].mxu0
  %v7397 = vadd.f32 %v7169, %v7396
  %v7398 = vpop.f32.mrb[0].mxu0
  %7399 = vmatprep.mubr.bf16.mxu0 0
  %7400 = vmatmul.mubr.bf16.gmra.mrb[0].mxu0 %v7217
  %v7401 = vpop.f32.mrb[0].mxu0
  %v7402 = vadd.f32 %v7169, %v7401
  %v7403 = vpop.f32.mrb[0].mxu0
  %v7404 = vpop.f32.mrb[0].mxu0
  %v7405 = vadd.f32 %v7169, %v7404
  %v7406 = vpop.f32.mrb[0].mxu0
  %7407 = vmatprep.mubr.bf16.mxu0 0
  %7408 = vmatmul.mubr.bf16.gmra.mrb[0].mxu0 %v7220
  %v7409 = vpop.f32.mrb[0].mxu0
  %v7410 = vadd.f32 %v7169, %v7409
  %v7411 = vpop.f32.mrb[0].mxu0
  %v7412 = vpop.f32.mrb[0].mxu0
  %v7413 = vadd.f32 %v7169, %v7412
  %v7414 = vpop.f32.mrb[0].mxu0
  %7415 = vmatprep.mubr.bf16.mxu0 0
  %7416 = vmatmul.mubr.bf16.gmra.mrb[0].mxu0 %v7223
  %v7417 = vpop.f32.mrb[0].mxu0
  %v7418 = vadd.f32 %v7169, %v7417
  %v7419 = vpop.f32.mrb[0].mxu0
  %v7420 = vpop.f32.mrb[0].mxu0
  %v7421 = vadd.f32 %v7169, %v7420
  %v7422 = vpop.f32.mrb[0].mxu0
  %7423 = vmatprep.mubr.bf16.mxu0 0
  %7424 = vmatmul.mubr.bf16.gmra.mrb[0].mxu0 %v7226
  %v7425 = vpop.f32.mrb[0].mxu0
  %v7426 = vadd.f32 %v7169, %v7425
  %v7427 = vpop.f32.mrb[0].mxu0
  %v7428 = vpop.f32.mrb[0].mxu0
  %v7429 = vadd.f32 %v7169, %v7428
  %v7430 = vpop.f32.mrb[0].mxu0
  %7431 = vmatprep.mubr.bf16.mxu0 0
  %7432 = vmatmul.mubr.bf16.gmra.mrb[0].mxu0 %v7229
  %v7433 = vpop.f32.mrb[0].mxu0
  %v7434 = vadd.f32 %v7169, %v7433
  %v7435 = vpop.f32.mrb[0].mxu0
  %v7436 = vpop.f32.mrb[0].mxu0
  %v7437 = vadd.f32 %v7169, %v7436
  %v7438 = vpop.f32.mrb[0].mxu0
  %7439 = vmatprep.mubr.bf16.mxu0 0
  %7440 = vmatmul.mubr.bf16.gmra.mrb[0].mxu0 %v7232
  %v7441 = vpop.f32.mrb[0].mxu0
  %v7442 = vadd.f32 %v7169, %v7441
  %v7443 = vpop.f32.mrb[0].mxu0
  %v7444 = vpop.f32.mrb[0].mxu0
  %v7445 = vadd.f32 %v7169, %v7444
  %v7446 = vpop.f32.mrb[0].mxu0
  %7447 = vmatprep.mubr.bf16.mxu0 0
  %7448 = vmatmul.mubr.bf16.gmra.mrb[0].mxu0 %v7235
  %v7449 = vpop.f32.mrb[0].mxu0
  %v7450 = vadd.f32 %v7169, %v7449
  %v7451 = vpop.f32.mrb[0].mxu0
  %v7452 = vpop.f32.mrb[0].mxu0
  %v7453 = vadd.f32 %v7169, %v7452
  %v7454 = vpop.f32.mrb[0].mxu0
  %7455 = vmatprep.mubr.bf16.mxu0 0
  %7456 = vmatmul.mubr.bf16.gmra.mrb[0].mxu0 %v7238
  %v7457 = vpop.f32.mrb[0].mxu0
  %v7458 = vadd.f32 %v7169, %v7457
  %v7459 = vpop.f32.mrb[0].mxu0
  %v7460 = vpop.f32.mrb[0].mxu0
  %v7461 = vadd.f32 %v7169, %v7460
  %v7462 = vpop.f32.mrb[0].mxu0
  %7463 = vmatprep.mubr.bf16.mxu0 0
  %7464 = vmatmul.mubr.bf16.gmra.mrb[0].mxu0 %v7241
  %v7465 = vpop.f32.mrb[0].mxu0
  %v7466 = vadd.f32 %v7169, %v7465
  %v7467 = vpop.f32.mrb[0].mxu0
  %v7468 = vpop.f32.mrb[0].mxu0
  %v7469 = vadd.f32 %v7169, %v7468
  %v7470 = vpop.f32.mrb[0].mxu0
  %7471 = vmatprep.mubr.bf16.mxu0 0
  %7472 = vmatmul.mubr.bf16.gmra.mrb[0].mxu0 %v7244
  %v7473 = vpop.f32.mrb[0].mxu0
  %v7474 = vadd.f32 %v7169, %v7473
  %v7475 = vpop.f32.mrb[0].mxu0
  %v7476 = vpop.f32.mrb[0].mxu0
  %v7477 = vadd.f32 %v7169, %v7476
  %v7478 = vpop.f32.mrb[0].mxu0
  %7479 = vmatprep.mubr.bf16.mxu0 0
  %7480 = vmatmul.mubr.bf16.gmra.mrb[0].mxu0 %v7247
  %v7481 = vpop.f32.mrb[0].mxu0
  %v7482 = vadd.f32 %v7169, %v7481
  %v7483 = vpop.f32.mrb[0].mxu0
  %v7484 = vpop.f32.mrb[0].mxu0
  %v7485 = vadd.f32 %v7169, %v7484
  %v7486 = vpop.f32.mrb[0].mxu0
  %7487 = vmatprep.mubr.bf16.mxu0 0
  %7488 = vmatmul.mubr.bf16.gmra.mrb[0].mxu0 %v7250
  %v7489 = vpop.f32.mrb[0].mxu0
  %v7490 = vadd.f32 %v7169, %v7489
  %v7491 = vpop.f32.mrb[0].mxu0
  %v7492 = vpop.f32.mrb[0].mxu0
  %v7493 = vadd.f32 %v7169, %v7492
  %v7494 = vpop.f32.mrb[0].mxu0
  %7495 = vmatprep.mubr.bf16.mxu0 0
  %7496 = vmatmul.mubr.bf16.gmra.mrb[0].mxu0 %v7253
  %v7497 = vpop.f32.mrb[0].mxu0
  %v7498 = vadd.f32 %v7169, %v7497
  %v7499 = vpop.f32.mrb[0].mxu0
  %v7500 = vpop.f32.mrb[0].mxu0
  %v7501 = vadd.f32 %v7169, %v7500
  %v7502 = vpop.f32.mrb[0].mxu0
  %7503 = vmatprep.mubr.bf16.mxu0 0
  %7504 = vmatmul.mubr.bf16.gmra.mrb[0].mxu0 %v7256
  %v7505 = vpop.f32.mrb[0].mxu0
  %v7506 = vadd.f32 %v7169, %v7505
  %v7507 = vpop.f32.mrb[0].mxu0
  %v7508 = vpop.f32.mrb[0].mxu0
  %v7509 = vadd.f32 %v7169, %v7508
  %v7510 = vpop.f32.mrb[0].mxu0
  %7511 = vmatprep.mubr.bf16.mxu0 0
  %7512 = vmatmul.mubr.bf16.gmra.mrb[0].mxu0 %v7259
  %v7513 = vpop.f32.mrb[0].mxu0
  %v7514 = vadd.f32 %v7169, %v7513
  %v7515 = vpop.f32.mrb[0].mxu0
  %v7516 = vpop.f32.mrb[0].mxu0
  %v7517 = vadd.f32 %v7169, %v7516
  %v7518 = vpop.f32.mrb[0].mxu0
  %7519 = vmatprep.mubr.bf16.mxu0 0
  %7520 = vmatmul.mubr.bf16.gmra.mrb[0].mxu0 %v7262
  %v7521 = vpop.f32.mrb[0].mxu0
  %v7522 = vadd.f32 %v7169, %v7521
  %v7523 = vpop.f32.mrb[0].mxu0
  %v7524 = vpop.f32.mrb[0].mxu0
  %v7525 = vadd.f32 %v7169, %v7524
  %v7526 = vpop.f32.mrb[0].mxu0
  %7527 = vmatprep.mubr.bf16.mxu0 0
  %7528 = vmatmul.mubr.bf16.gmra.mrb[0].mxu0 %v7265
  %v7529 = vpop.f32.mrb[0].mxu0
  %v7530 = vadd.f32 %v7169, %v7529
  %v7531 = vpop.f32.mrb[0].mxu0
  %v7532 = vpop.f32.mrb[0].mxu0
  %v7533 = vadd.f32 %v7169, %v7532
  %v7534 = vpop.f32.mrb[0].mxu0
  %7535 = vmatprep.mubr.bf16.mxu0 0
  %7536 = vmatmul.mubr.bf16.gmra.mrb[0].mxu0 %v7268
  %v7537 = vpop.f32.mrb[0].mxu0
  %v7538 = vadd.f32 %v7169, %v7537
  %v7539 = vpop.f32.mrb[0].mxu0
  %v7540 = vpop.f32.mrb[0].mxu0
  %v7541 = vadd.f32 %v7169, %v7540
  %v7542 = vpop.f32.mrb[0].mxu0
  %7543 = vmatprep.mubr.bf16.mxu0 0
  %7544 = vmatmul.mubr.bf16.gmra.mrb[0].mxu0 %v7271
  %v7545 = vpop.f32.mrb[0].mxu0
  %v7546 = vadd.f32 %v7169, %v7545
  %v7547 = vpop.f32.mrb[0].mxu0
  %v7548 = vpop.f32.mrb[0].mxu0
  %v7549 = vadd.f32 %v7169, %v7548
  %v7550 = vpop.f32.mrb[0].mxu0
  %7551 = vmatprep.mubr.bf16.mxu0 0
  %7552 = vmatmul.mubr.bf16.gmra.mrb[0].mxu0 %v7274
  %v7553 = vpop.f32.mrb[0].mxu0
  %v7554 = vadd.f32 %v7169, %v7553
  %v7555 = vpop.f32.mrb[0].mxu0
  %v7556 = vpop.f32.mrb[0].mxu0
  %v7557 = vadd.f32 %v7169, %v7556
  %v7558 = vpop.f32.mrb[0].mxu0
  %7559 = vmatprep.mubr.bf16.mxu0 0
  %7560 = vmatmul.mubr.bf16.gmra.mrb[0].mxu0 %v7277
  %v7561 = vpop.f32.mrb[0].mxu0
  %v7562 = vadd.f32 %v7169, %v7561
  %v7563 = vpop.f32.mrb[0].mxu0
  %v7564 = vpop.f32.mrb[0].mxu0
  %v7565 = vadd.f32 %v7169, %v7564
  %v7566 = vpop.f32.mrb[0].mxu0
  %7567 = vdwg.mxu0
  %v7568 = vld [vmem:[%s11] sm:$0x1]
  %v7569 = vld [vmem:[%s12] sm:$0x1]
  %v7570 = vsel %vm45, %v7314, 0.0
  %v7571 = vsel %vm45, %v7317, 0.0
  %v7572 = vadd.f32 %v7570, %v7571
  %v7573 = vsel %vm45, %v7322, 0.0
  %v7574 = vadd.f32 %v7572, %v7573
  %v7575 = vsel %vm45, %v7325, 0.0
  %v7576 = vadd.f32 %v7574, %v7575
  %v7577 = vsel %vm45, %v7330, 0.0
  %v7578 = vadd.f32 %v7576, %v7577
  %v7579 = vsel %vm45, %v7333, 0.0
  %v7580 = vadd.f32 %v7578, %v7579
  %v7581 = vsel %vm45, %v7338, 0.0
  %v7582 = vadd.f32 %v7580, %v7581
  %v7583 = vsel %vm45, %v7341, 0.0
  %v7584 = vadd.f32 %v7582, %v7583
  %v7585 = vsel %vm45, %v7346, 0.0
  %v7586 = vadd.f32 %v7584, %v7585
  %v7587 = vsel %vm45, %v7349, 0.0
  %v7588 = vadd.f32 %v7586, %v7587
  %v7589 = vsel %vm45, %v7354, 0.0
  %v7590 = vadd.f32 %v7588, %v7589
  %v7591 = vsel %vm45, %v7357, 0.0
  %v7592 = vadd.f32 %v7590, %v7591
  %v7593 = vsel %vm45, %v7362, 0.0
  %v7594 = vadd.f32 %v7592, %v7593
  %v7595 = vsel %vm45, %v7365, 0.0
  %v7596 = vadd.f32 %v7594, %v7595
  %v7597 = vsel %vm45, %v7370, 0.0
  %v7598 = vadd.f32 %v7596, %v7597
  %v7599 = vsel %vm45, %v7373, 0.0
  %v7600 = vadd.f32 %v7598, %v7599
  %v7601 = vsel %vm45, %v7378, 0.0
  %v7602 = vadd.f32 %v7600, %v7601
  %v7603 = vsel %vm45, %v7381, 0.0
  %v7604 = vadd.f32 %v7602, %v7603
  %v7605 = vsel %vm45, %v7386, 0.0
  %v7606 = vadd.f32 %v7604, %v7605
  %v7607 = vsel %vm45, %v7389, 0.0
  %v7608 = vadd.f32 %v7606, %v7607
  %v7609 = vsel %vm45, %v7394, 0.0
  %v7610 = vadd.f32 %v7608, %v7609
  %v7611 = vsel %vm45, %v7397, 0.0
  %v7612 = vadd.f32 %v7610, %v7611
  %v7613 = vsel %vm45, %v7402, 0.0
  %v7614 = vadd.f32 %v7612, %v7613
  %v7615 = vsel %vm45, %v7405, 0.0
  %v7616 = vadd.f32 %v7614, %v7615
  %v7617 = vsel %vm45, %v7410, 0.0
  %v7618 = vadd.f32 %v7616, %v7617
  %v7619 = vsel %vm45, %v7413, 0.0
  %v7620 = vadd.f32 %v7618, %v7619
  %v7621 = vsel %vm45, %v7418, 0.0
  %v7622 = vadd.f32 %v7620, %v7621
  %v7623 = vsel %vm45, %v7421, 0.0
  %v7624 = vadd.f32 %v7622, %v7623
  %v7625 = vsel %vm45, %v7426, 0.0
  %v7626 = vadd.f32 %v7624, %v7625
  %v7627 = vsel %vm45, %v7429, 0.0
  %v7628 = vadd.f32 %v7626, %v7627
  %v7629 = vsel %vm45, %v7434, 0.0
  %v7630 = vadd.f32 %v7628, %v7629
  %v7631 = vsel %vm45, %v7437, 0.0
  %v7632 = vadd.f32 %v7630, %v7631
  %v7633 = vsel %vm45, %v7442, 0.0
  %v7634 = vadd.f32 %v7632, %v7633
  %v7635 = vsel %vm45, %v7445, 0.0
  %v7636 = vadd.f32 %v7634, %v7635
  %v7637 = vsel %vm45, %v7450, 0.0
  %v7638 = vadd.f32 %v7636, %v7637
  %v7639 = vsel %vm45, %v7453, 0.0
  %v7640 = vadd.f32 %v7638, %v7639
  %v7641 = vsel %vm45, %v7458, 0.0
  %v7642 = vadd.f32 %v7640, %v7641
  %v7643 = vsel %vm45, %v7461, 0.0
  %v7644 = vadd.f32 %v7642, %v7643
  %v7645 = vsel %vm45, %v7466, 0.0
  %v7646 = vadd.f32 %v7644, %v7645
  %v7647 = vsel %vm45, %v7469, 0.0
  %v7648 = vadd.f32 %v7646, %v7647
  %v7649 = vsel %vm45, %v7474, 0.0
  %v7650 = vadd.f32 %v7648, %v7649
  %v7651 = vsel %vm45, %v7477, 0.0
  %v7652 = vadd.f32 %v7650, %v7651
  %v7653 = vsel %vm45, %v7482, 0.0
  %v7654 = vadd.f32 %v7652, %v7653
  %v7655 = vsel %vm45, %v7485, 0.0
  %v7656 = vadd.f32 %v7654, %v7655
  %v7657 = vsel %vm45, %v7490, 0.0
  %v7658 = vadd.f32 %v7656, %v7657
  %v7659 = vsel %vm45, %v7493, 0.0
  %v7660 = vadd.f32 %v7658, %v7659
  %v7661 = vsel %vm45, %v7498, 0.0
  %v7662 = vadd.f32 %v7660, %v7661
  %v7663 = vsel %vm45, %v7501, 0.0
  %v7664 = vadd.f32 %v7662, %v7663
  %v7665 = vsel %vm45, %v7506, 0.0
  %v7666 = vadd.f32 %v7664, %v7665
  %v7667 = vsel %vm45, %v7509, 0.0
  %v7668 = vadd.f32 %v7666, %v7667
  %v7669 = vsel %vm45, %v7514, 0.0
  %v7670 = vadd.f32 %v7668, %v7669
  %v7671 = vsel %vm45, %v7517, 0.0
  %v7672 = vadd.f32 %v7670, %v7671
  %v7673 = vsel %vm45, %v7522, 0.0
  %v7674 = vadd.f32 %v7672, %v7673
  %v7675 = vsel %vm45, %v7525, 0.0
  %v7676 = vadd.f32 %v7674, %v7675
  %v7677 = vsel %vm45, %v7530, 0.0
  %v7678 = vadd.f32 %v7676, %v7677
  %v7679 = vsel %vm45, %v7533, 0.0
  %v7680 = vadd.f32 %v7678, %v7679
  %v7681 = vsel %vm45, %v7538, 0.0
  %v7682 = vadd.f32 %v7680, %v7681
  %v7683 = vsel %vm45, %v7541, 0.0
  %v7684 = vadd.f32 %v7682, %v7683
  %v7685 = vsel %vm45, %v7546, 0.0
  %v7686 = vadd.f32 %v7684, %v7685
  %v7687 = vsel %vm45, %v7549, 0.0
  %v7688 = vadd.f32 %v7686, %v7687
  %v7689 = vsel %vm45, %v7554, 0.0
  %v7690 = vadd.f32 %v7688, %v7689
  %v7691 = vsel %vm45, %v7557, 0.0
  %v7692 = vadd.f32 %v7690, %v7691
  %v7693 = vsel %vm45, %v7562, 0.0
  %v7694 = vadd.f32 %v7692, %v7693
  %v7695 = vsel %vm45, %v7565, 0.0
  %v7696 = vadd.f32 %v7694, %v7695
  %v7697 = vrot.slane %v7696, 4
  %v7698 = vadd.f32 %v7696, %v7697
  %v7699 = vrot.slane %v7698, 2
  %v7700 = vadd.f32 %v7698, %v7699
  %v7701 = vrot.slane %v7700, 1
  %v7702 = vadd.f32 %v7700, %v7701
  %v7703 = vmul.f32 %v7702, 0.001953125
  %v7704 = vmul.f32 %v7314, %v7314
  %v7705 = vmul.f32 %v7317, %v7317
  %v7706 = vmul.f32 %v7322, %v7322
  %v7707 = vmul.f32 %v7325, %v7325
  %v7708 = vmul.f32 %v7330, %v7330
  %v7709 = vmul.f32 %v7333, %v7333
  %v7710 = vmul.f32 %v7338, %v7338
  %v7711 = vmul.f32 %v7341, %v7341
  %v7712 = vmul.f32 %v7346, %v7346
  %v7713 = vmul.f32 %v7349, %v7349
  %v7714 = vmul.f32 %v7354, %v7354
  %v7715 = vmul.f32 %v7357, %v7357
  %v7716 = vmul.f32 %v7362, %v7362
  %v7717 = vmul.f32 %v7365, %v7365
  %v7718 = vmul.f32 %v7370, %v7370
  %v7719 = vmul.f32 %v7373, %v7373
  %v7720 = vmul.f32 %v7378, %v7378
  %v7721 = vmul.f32 %v7381, %v7381
  %v7722 = vmul.f32 %v7386, %v7386
  %v7723 = vmul.f32 %v7389, %v7389
  %v7724 = vmul.f32 %v7394, %v7394
  %v7725 = vmul.f32 %v7397, %v7397
  %v7726 = vmul.f32 %v7402, %v7402
  %v7727 = vmul.f32 %v7405, %v7405
  %v7728 = vmul.f32 %v7410, %v7410
  %v7729 = vmul.f32 %v7413, %v7413
  %v7730 = vmul.f32 %v7418, %v7418
  %v7731 = vmul.f32 %v7421, %v7421
  %v7732 = vmul.f32 %v7426, %v7426
  %v7733 = vmul.f32 %v7429, %v7429
  %v7734 = vmul.f32 %v7434, %v7434
  %v7735 = vmul.f32 %v7437, %v7437
  %v7736 = vmul.f32 %v7442, %v7442
  %v7737 = vmul.f32 %v7445, %v7445
  %v7738 = vmul.f32 %v7450, %v7450
  %v7739 = vmul.f32 %v7453, %v7453
  %v7740 = vmul.f32 %v7458, %v7458
  %v7741 = vmul.f32 %v7461, %v7461
  %v7742 = vmul.f32 %v7466, %v7466
  %v7743 = vmul.f32 %v7469, %v7469
  %v7744 = vmul.f32 %v7474, %v7474
  %v7745 = vmul.f32 %v7477, %v7477
  %v7746 = vmul.f32 %v7482, %v7482
  %v7747 = vmul.f32 %v7485, %v7485
  %v7748 = vmul.f32 %v7490, %v7490
  %v7749 = vmul.f32 %v7493, %v7493
  %v7750 = vmul.f32 %v7498, %v7498
  %v7751 = vmul.f32 %v7501, %v7501
  %v7752 = vmul.f32 %v7506, %v7506
  %v7753 = vmul.f32 %v7509, %v7509
  %v7754 = vmul.f32 %v7514, %v7514
  %v7755 = vmul.f32 %v7517, %v7517
  %v7756 = vmul.f32 %v7522, %v7522
  %v7757 = vmul.f32 %v7525, %v7525
  %v7758 = vmul.f32 %v7530, %v7530
  %v7759 = vmul.f32 %v7533, %v7533
  %v7760 = vmul.f32 %v7538, %v7538
  %v7761 = vmul.f32 %v7541, %v7541
  %v7762 = vmul.f32 %v7546, %v7546
  %v7763 = vmul.f32 %v7549, %v7549
  %v7764 = vmul.f32 %v7554, %v7554
  %v7765 = vmul.f32 %v7557, %v7557
  %v7766 = vmul.f32 %v7562, %v7562
  %v7767 = vmul.f32 %v7565, %v7565
  %v7768 = vsel %vm45, %v7704, 0.0
  %v7769 = vsel %vm45, %v7705, 0.0
  %v7770 = vadd.f32 %v7768, %v7769
  %v7771 = vsel %vm45, %v7706, 0.0
  %v7772 = vadd.f32 %v7770, %v7771
  %v7773 = vsel %vm45, %v7707, 0.0
  %v7774 = vadd.f32 %v7772, %v7773
  %v7775 = vsel %vm45, %v7708, 0.0
  %v7776 = vadd.f32 %v7774, %v7775
  %v7777 = vsel %vm45, %v7709, 0.0
  %v7778 = vadd.f32 %v7776, %v7777
  %v7779 = vsel %vm45, %v7710, 0.0
  %v7780 = vadd.f32 %v7778, %v7779
  %v7781 = vsel %vm45, %v7711, 0.0
  %v7782 = vadd.f32 %v7780, %v7781
  %v7783 = vsel %vm45, %v7712, 0.0
  %v7784 = vadd.f32 %v7782, %v7783
  %v7785 = vsel %vm45, %v7713, 0.0
  %v7786 = vadd.f32 %v7784, %v7785
  %v7787 = vsel %vm45, %v7714, 0.0
  %v7788 = vadd.f32 %v7786, %v7787
  %v7789 = vsel %vm45, %v7715, 0.0
  %v7790 = vadd.f32 %v7788, %v7789
  %v7791 = vsel %vm45, %v7716, 0.0
  %v7792 = vadd.f32 %v7790, %v7791
  %v7793 = vsel %vm45, %v7717, 0.0
  %v7794 = vadd.f32 %v7792, %v7793
  %v7795 = vsel %vm45, %v7718, 0.0
  %v7796 = vadd.f32 %v7794, %v7795
  %v7797 = vsel %vm45, %v7719, 0.0
  %v7798 = vadd.f32 %v7796, %v7797
  %v7799 = vsel %vm45, %v7720, 0.0
  %v7800 = vadd.f32 %v7798, %v7799
  %v7801 = vsel %vm45, %v7721, 0.0
  %v7802 = vadd.f32 %v7800, %v7801
  %v7803 = vsel %vm45, %v7722, 0.0
  %v7804 = vadd.f32 %v7802, %v7803
  %v7805 = vsel %vm45, %v7723, 0.0
  %v7806 = vadd.f32 %v7804, %v7805
  %v7807 = vsel %vm45, %v7724, 0.0
  %v7808 = vadd.f32 %v7806, %v7807
  %v7809 = vsel %vm45, %v7725, 0.0
  %v7810 = vadd.f32 %v7808, %v7809
  %v7811 = vsel %vm45, %v7726, 0.0
  %v7812 = vadd.f32 %v7810, %v7811
  %v7813 = vsel %vm45, %v7727, 0.0
  %v7814 = vadd.f32 %v7812, %v7813
  %v7815 = vsel %vm45, %v7728, 0.0
  %v7816 = vadd.f32 %v7814, %v7815
  %v7817 = vsel %vm45, %v7729, 0.0
  %v7818 = vadd.f32 %v7816, %v7817
  %v7819 = vsel %vm45, %v7730, 0.0
  %v7820 = vadd.f32 %v7818, %v7819
  %v7821 = vsel %vm45, %v7731, 0.0
  %v7822 = vadd.f32 %v7820, %v7821
  %v7823 = vsel %vm45, %v7732, 0.0
  %v7824 = vadd.f32 %v7822, %v7823
  %v7825 = vsel %vm45, %v7733, 0.0
  %v7826 = vadd.f32 %v7824, %v7825
  %v7827 = vsel %vm45, %v7734, 0.0
  %v7828 = vadd.f32 %v7826, %v7827
  %v7829 = vsel %vm45, %v7735, 0.0
  %v7830 = vadd.f32 %v7828, %v7829
  %v7831 = vsel %vm45, %v7736, 0.0
  %v7832 = vadd.f32 %v7830, %v7831
  %v7833 = vsel %vm45, %v7737, 0.0
  %v7834 = vadd.f32 %v7832, %v7833
  %v7835 = vsel %vm45, %v7738, 0.0
  %v7836 = vadd.f32 %v7834, %v7835
  %v7837 = vsel %vm45, %v7739, 0.0
  %v7838 = vadd.f32 %v7836, %v7837
  %v7839 = vsel %vm45, %v7740, 0.0
  %v7840 = vadd.f32 %v7838, %v7839
  %v7841 = vsel %vm45, %v7741, 0.0
  %v7842 = vadd.f32 %v7840, %v7841
  %v7843 = vsel %vm45, %v7742, 0.0
  %v7844 = vadd.f32 %v7842, %v7843
  %v7845 = vsel %vm45, %v7743, 0.0
  %v7846 = vadd.f32 %v7844, %v7845
  %v7847 = vsel %vm45, %v7744, 0.0
  %v7848 = vadd.f32 %v7846, %v7847
  %v7849 = vsel %vm45, %v7745, 0.0
  %v7850 = vadd.f32 %v7848, %v7849
  %v7851 = vsel %vm45, %v7746, 0.0
  %v7852 = vadd.f32 %v7850, %v7851
  %v7853 = vsel %vm45, %v7747, 0.0
  %v7854 = vadd.f32 %v7852, %v7853
  %v7855 = vsel %vm45, %v7748, 0.0
  %v7856 = vadd.f32 %v7854, %v7855
  %v7857 = vsel %vm45, %v7749, 0.0
  %v7858 = vadd.f32 %v7856, %v7857
  %v7859 = vsel %vm45, %v7750, 0.0
  %v7860 = vadd.f32 %v7858, %v7859
  %v7861 = vsel %vm45, %v7751, 0.0
  %v7862 = vadd.f32 %v7860, %v7861
  %v7863 = vsel %vm45, %v7752, 0.0
  %v7864 = vadd.f32 %v7862, %v7863
  %v7865 = vsel %vm45, %v7753, 0.0
  %v7866 = vadd.f32 %v7864, %v7865
  %v7867 = vsel %vm45, %v7754, 0.0
  %v7868 = vadd.f32 %v7866, %v7867
  %v7869 = vsel %vm45, %v7755, 0.0
  %v7870 = vadd.f32 %v7868, %v7869
  %v7871 = vsel %vm45, %v7756, 0.0
  %v7872 = vadd.f32 %v7870, %v7871
  %v7873 = vsel %vm45, %v7757, 0.0
  %v7874 = vadd.f32 %v7872, %v7873
  %v7875 = vsel %vm45, %v7758, 0.0
  %v7876 = vadd.f32 %v7874, %v7875
  %v7877 = vsel %vm45, %v7759, 0.0
  %v7878 = vadd.f32 %v7876, %v7877
  %v7879 = vsel %vm45, %v7760, 0.0
  %v7880 = vadd.f32 %v7878, %v7879
  %v7881 = vsel %vm45, %v7761, 0.0
  %v7882 = vadd.f32 %v7880, %v7881
  %v7883 = vsel %vm45, %v7762, 0.0
  %v7884 = vadd.f32 %v7882, %v7883
  %v7885 = vsel %vm45, %v7763, 0.0
  %v7886 = vadd.f32 %v7884, %v7885
  %v7887 = vsel %vm45, %v7764, 0.0
  %v7888 = vadd.f32 %v7886, %v7887
  %v7889 = vsel %vm45, %v7765, 0.0
  %v7890 = vadd.f32 %v7888, %v7889
  %v7891 = vsel %vm45, %v7766, 0.0
  %v7892 = vadd.f32 %v7890, %v7891
  %v7893 = vsel %vm45, %v7767, 0.0
  %v7894 = vadd.f32 %v7892, %v7893
  %v7895 = vrot.slane %v7894, 4
  %v7896 = vadd.f32 %v7894, %v7895
  %v7897 = vrot.slane %v7896, 2
  %v7898 = vadd.f32 %v7896, %v7897
  %v7899 = vrot.slane %v7898, 1
  %v7900 = vadd.f32 %v7898, %v7899
  %v7901 = vmul.f32 %v7900, 0.001953125
  %v7902 = vmul.f32 %v7703, %v7703
  %v7903 = vsub.f32 %v7901, %v7902
  %v7904 = vsub.f32 %v7314, %v7703
  %v7905 = vsub.f32 %v7317, %v7703
  %v7906 = vsub.f32 %v7322, %v7703
  %v7907 = vsub.f32 %v7325, %v7703
  %v7908 = vsub.f32 %v7330, %v7703
  %v7909 = vsub.f32 %v7333, %v7703
  %v7910 = vsub.f32 %v7338, %v7703
  %v7911 = vsub.f32 %v7341, %v7703
  %v7912 = vsub.f32 %v7346, %v7703
  %v7913 = vsub.f32 %v7349, %v7703
  %v7914 = vsub.f32 %v7354, %v7703
  %v7915 = vsub.f32 %v7357, %v7703
  %v7916 = vsub.f32 %v7362, %v7703
  %v7917 = vsub.f32 %v7365, %v7703
  %v7918 = vsub.f32 %v7370, %v7703
  %v7919 = vsub.f32 %v7373, %v7703
  %v7920 = vsub.f32 %v7378, %v7703
  %v7921 = vsub.f32 %v7381, %v7703
  %v7922 = vsub.f32 %v7386, %v7703
  %v7923 = vsub.f32 %v7389, %v7703
  %v7924 = vsub.f32 %v7394, %v7703
  %v7925 = vsub.f32 %v7397, %v7703
  %v7926 = vsub.f32 %v7402, %v7703
  %v7927 = vsub.f32 %v7405, %v7703
  %v7928 = vsub.f32 %v7410, %v7703
  %v7929 = vsub.f32 %v7413, %v7703
  %v7930 = vsub.f32 %v7418, %v7703
  %v7931 = vsub.f32 %v7421, %v7703
  %v7932 = vsub.f32 %v7426, %v7703
  %v7933 = vsub.f32 %v7429, %v7703
  %v7934 = vsub.f32 %v7434, %v7703
  %v7935 = vsub.f32 %v7437, %v7703
  %v7936 = vsub.f32 %v7442, %v7703
  %v7937 = vsub.f32 %v7445, %v7703
  %v7938 = vsub.f32 %v7450, %v7703
  %v7939 = vsub.f32 %v7453, %v7703
  %v7940 = vsub.f32 %v7458, %v7703
  %v7941 = vsub.f32 %v7461, %v7703
  %v7942 = vsub.f32 %v7466, %v7703
  %v7943 = vsub.f32 %v7469, %v7703
  %v7944 = vsub.f32 %v7474, %v7703
  %v7945 = vsub.f32 %v7477, %v7703
  %v7946 = vsub.f32 %v7482, %v7703
  %v7947 = vsub.f32 %v7485, %v7703
  %v7948 = vsub.f32 %v7490, %v7703
  %v7949 = vsub.f32 %v7493, %v7703
  %v7950 = vsub.f32 %v7498, %v7703
  %v7951 = vsub.f32 %v7501, %v7703
  %v7952 = vsub.f32 %v7506, %v7703
  %v7953 = vsub.f32 %v7509, %v7703
  %v7954 = vsub.f32 %v7514, %v7703
  %v7955 = vsub.f32 %v7517, %v7703
  %v7956 = vsub.f32 %v7522, %v7703
  %v7957 = vsub.f32 %v7525, %v7703
  %v7958 = vsub.f32 %v7530, %v7703
  %v7959 = vsub.f32 %v7533, %v7703
  %v7960 = vsub.f32 %v7538, %v7703
  %v7961 = vsub.f32 %v7541, %v7703
  %v7962 = vsub.f32 %v7546, %v7703
  %v7963 = vsub.f32 %v7549, %v7703
  %v7964 = vsub.f32 %v7554, %v7703
  %v7965 = vsub.f32 %v7557, %v7703
  %v7966 = vsub.f32 %v7562, %v7703
  %v7967 = vsub.f32 %v7565, %v7703
  %v7968 = vadd.f32 %v7903, 1e-05
  %v7969 = vrsqrt.pop %v7968
  %v7970 = vmul.f32 %v7904, %v7969
  %v7971 = vmul.f32 %v7905, %v7969
  %v7972 = vmul.f32 %v7906, %v7969
  %v7973 = vmul.f32 %v7907, %v7969
  %v7974 = vmul.f32 %v7908, %v7969
  %v7975 = vmul.f32 %v7909, %v7969
  %v7976 = vmul.f32 %v7910, %v7969
  %v7977 = vmul.f32 %v7911, %v7969
  %v7978 = vmul.f32 %v7912, %v7969
  %v7979 = vmul.f32 %v7913, %v7969
  %v7980 = vmul.f32 %v7914, %v7969
  %v7981 = vmul.f32 %v7915, %v7969
  %v7982 = vmul.f32 %v7916, %v7969
  %v7983 = vmul.f32 %v7917, %v7969
  %v7984 = vmul.f32 %v7918, %v7969
  %v7985 = vmul.f32 %v7919, %v7969
  %v7986 = vmul.f32 %v7920, %v7969
  %v7987 = vmul.f32 %v7921, %v7969
  %v7988 = vmul.f32 %v7922, %v7969
  %v7989 = vmul.f32 %v7923, %v7969
  %v7990 = vmul.f32 %v7924, %v7969
  %v7991 = vmul.f32 %v7925, %v7969
  %v7992 = vmul.f32 %v7926, %v7969
  %v7993 = vmul.f32 %v7927, %v7969
  %v7994 = vmul.f32 %v7928, %v7969
  %v7995 = vmul.f32 %v7929, %v7969
  %v7996 = vmul.f32 %v7930, %v7969
  %v7997 = vmul.f32 %v7931, %v7969
  %v7998 = vmul.f32 %v7932, %v7969
  %v7999 = vmul.f32 %v7933, %v7969
  %v8000 = vmul.f32 %v7934, %v7969
  %v8001 = vmul.f32 %v7935, %v7969
  %v8002 = vmul.f32 %v7936, %v7969
  %v8003 = vmul.f32 %v7937, %v7969
  %v8004 = vmul.f32 %v7938, %v7969
  %v8005 = vmul.f32 %v7939, %v7969
  %v8006 = vmul.f32 %v7940, %v7969
  %v8007 = vmul.f32 %v7941, %v7969
  %v8008 = vmul.f32 %v7942, %v7969
  %v8009 = vmul.f32 %v7943, %v7969
  %v8010 = vmul.f32 %v7944, %v7969
  %v8011 = vmul.f32 %v7945, %v7969
  %v8012 = vmul.f32 %v7946, %v7969
  %v8013 = vmul.f32 %v7947, %v7969
  %v8014 = vmul.f32 %v7948, %v7969
  %v8015 = vmul.f32 %v7949, %v7969
  %v8016 = vmul.f32 %v7950, %v7969
  %v8017 = vmul.f32 %v7951, %v7969
  %v8018 = vmul.f32 %v7952, %v7969
  %v8019 = vmul.f32 %v7953, %v7969
  %v8020 = vmul.f32 %v7954, %v7969
  %v8021 = vmul.f32 %v7955, %v7969
  %v8022 = vmul.f32 %v7956, %v7969
  %v8023 = vmul.f32 %v7957, %v7969
  %v8024 = vmul.f32 %v7958, %v7969
  %v8025 = vmul.f32 %v7959, %v7969
  %v8026 = vmul.f32 %v7960, %v7969
  %v8027 = vmul.f32 %v7961, %v7969
  %v8028 = vmul.f32 %v7962, %v7969
  %v8029 = vmul.f32 %v7963, %v7969
  %v8030 = vmul.f32 %v7964, %v7969
  %v8031 = vmul.f32 %v7965, %v7969
  %v8032 = vmul.f32 %v7966, %v7969
  %v8033 = vmul.f32 %v7967, %v7969
  %v8035 = vlaneseq
  %v8036 = vshrl.u32 %v8035, 7
  %v8037 = vsub.s32 0, %v8036
  %v8038 = vrot.slane %v7568, %v8037
  %v8040 = vmul.f32 %v7970, %v8038
  %v8041 = vmul.f32 %v7971, %v8038
  %v8042 = vmul.f32 %v7972, %v8038
  %v8043 = vmul.f32 %v7973, %v8038
  %v8044 = vmul.f32 %v7974, %v8038
  %v8045 = vmul.f32 %v7975, %v8038
  %v8046 = vmul.f32 %v7976, %v8038
  %v8047 = vmul.f32 %v7977, %v8038
  %v8048 = vmul.f32 %v7978, %v8038
  %v8049 = vmul.f32 %v7979, %v8038
  %v8050 = vmul.f32 %v7980, %v8038
  %v8051 = vmul.f32 %v7981, %v8038
  %v8052 = vmul.f32 %v7982, %v8038
  %v8053 = vmul.f32 %v7983, %v8038
  %v8054 = vmul.f32 %v7984, %v8038
  %v8055 = vmul.f32 %v7985, %v8038
  %v8056 = vmul.f32 %v7986, %v8038
  %v8057 = vmul.f32 %v7987, %v8038
  %v8058 = vmul.f32 %v7988, %v8038
  %v8059 = vmul.f32 %v7989, %v8038
  %v8060 = vmul.f32 %v7990, %v8038
  %v8061 = vmul.f32 %v7991, %v8038
  %v8062 = vmul.f32 %v7992, %v8038
  %v8063 = vmul.f32 %v7993, %v8038
  %v8064 = vmul.f32 %v7994, %v8038
  %v8065 = vmul.f32 %v7995, %v8038
  %v8066 = vmul.f32 %v7996, %v8038
  %v8067 = vmul.f32 %v7997, %v8038
  %v8068 = vmul.f32 %v7998, %v8038
  %v8069 = vmul.f32 %v7999, %v8038
  %v8070 = vmul.f32 %v8000, %v8038
  %v8071 = vmul.f32 %v8001, %v8038
  %v8072 = vmul.f32 %v8002, %v8038
  %v8073 = vmul.f32 %v8003, %v8038
  %v8074 = vmul.f32 %v8004, %v8038
  %v8075 = vmul.f32 %v8005, %v8038
  %v8076 = vmul.f32 %v8006, %v8038
  %v8077 = vmul.f32 %v8007, %v8038
  %v8078 = vmul.f32 %v8008, %v8038
  %v8079 = vmul.f32 %v8009, %v8038
  %v8080 = vmul.f32 %v8010, %v8038
  %v8081 = vmul.f32 %v8011, %v8038
  %v8082 = vmul.f32 %v8012, %v8038
  %v8083 = vmul.f32 %v8013, %v8038
  %v8084 = vmul.f32 %v8014, %v8038
  %v8085 = vmul.f32 %v8015, %v8038
  %v8086 = vmul.f32 %v8016, %v8038
  %v8087 = vmul.f32 %v8017, %v8038
  %v8088 = vmul.f32 %v8018, %v8038
  %v8089 = vmul.f32 %v8019, %v8038
  %v8090 = vmul.f32 %v8020, %v8038
  %v8091 = vmul.f32 %v8021, %v8038
  %v8092 = vmul.f32 %v8022, %v8038
  %v8093 = vmul.f32 %v8023, %v8038
  %v8094 = vmul.f32 %v8024, %v8038
  %v8095 = vmul.f32 %v8025, %v8038
  %v8096 = vmul.f32 %v8026, %v8038
  %v8097 = vmul.f32 %v8027, %v8038
  %v8098 = vmul.f32 %v8028, %v8038
  %v8099 = vmul.f32 %v8029, %v8038
  %v8100 = vmul.f32 %v8030, %v8038
  %v8101 = vmul.f32 %v8031, %v8038
  %v8102 = vmul.f32 %v8032, %v8038
  %v8103 = vmul.f32 %v8033, %v8038
  %v8105 = vlaneseq
  %v8106 = vshrl.u32 %v8105, 7
  %v8107 = vsub.s32 0, %v8106
  %v8108 = vrot.slane %v7569, %v8107
  %v8110 = vadd.f32 %v8040, %v8108
  %v8111 = vadd.f32 %v8041, %v8108
  %v8112 = vadd.f32 %v8042, %v8108
  %v8113 = vadd.f32 %v8043, %v8108
  %v8114 = vadd.f32 %v8044, %v8108
  %v8115 = vadd.f32 %v8045, %v8108
  %v8116 = vadd.f32 %v8046, %v8108
  %v8117 = vadd.f32 %v8047, %v8108
  %v8118 = vadd.f32 %v8048, %v8108
  %v8119 = vadd.f32 %v8049, %v8108
  %v8120 = vadd.f32 %v8050, %v8108
  %v8121 = vadd.f32 %v8051, %v8108
  %v8122 = vadd.f32 %v8052, %v8108
  %v8123 = vadd.f32 %v8053, %v8108
  %v8124 = vadd.f32 %v8054, %v8108
  %v8125 = vadd.f32 %v8055, %v8108
  %v8126 = vadd.f32 %v8056, %v8108
  %v8127 = vadd.f32 %v8057, %v8108
  %v8128 = vadd.f32 %v8058, %v8108
  %v8129 = vadd.f32 %v8059, %v8108
  %v8130 = vadd.f32 %v8060, %v8108
  %v8131 = vadd.f32 %v8061, %v8108
  %v8132 = vadd.f32 %v8062, %v8108
  %v8133 = vadd.f32 %v8063, %v8108
  %v8134 = vadd.f32 %v8064, %v8108
  %v8135 = vadd.f32 %v8065, %v8108
  %v8136 = vadd.f32 %v8066, %v8108
  %v8137 = vadd.f32 %v8067, %v8108
  %v8138 = vadd.f32 %v8068, %v8108
  %v8139 = vadd.f32 %v8069, %v8108
  %v8140 = vadd.f32 %v8070, %v8108
  %v8141 = vadd.f32 %v8071, %v8108
  %v8142 = vadd.f32 %v8072, %v8108
  %v8143 = vadd.f32 %v8073, %v8108
  %v8144 = vadd.f32 %v8074, %v8108
  %v8145 = vadd.f32 %v8075, %v8108
  %v8146 = vadd.f32 %v8076, %v8108
  %v8147 = vadd.f32 %v8077, %v8108
  %v8148 = vadd.f32 %v8078, %v8108
  %v8149 = vadd.f32 %v8079, %v8108
  %v8150 = vadd.f32 %v8080, %v8108
  %v8151 = vadd.f32 %v8081, %v8108
  %v8152 = vadd.f32 %v8082, %v8108
  %v8153 = vadd.f32 %v8083, %v8108
  %v8154 = vadd.f32 %v8084, %v8108
  %v8155 = vadd.f32 %v8085, %v8108
  %v8156 = vadd.f32 %v8086, %v8108
  %v8157 = vadd.f32 %v8087, %v8108
  %v8158 = vadd.f32 %v8088, %v8108
  %v8159 = vadd.f32 %v8089, %v8108
  %v8160 = vadd.f32 %v8090, %v8108
  %v8161 = vadd.f32 %v8091, %v8108
  %v8162 = vadd.f32 %v8092, %v8108
  %v8163 = vadd.f32 %v8093, %v8108
  %v8164 = vadd.f32 %v8094, %v8108
  %v8165 = vadd.f32 %v8095, %v8108
  %v8166 = vadd.f32 %v8096, %v8108
  %v8167 = vadd.f32 %v8097, %v8108
  %v8168 = vadd.f32 %v8098, %v8108
  %v8169 = vadd.f32 %v8099, %v8108
  %v8170 = vadd.f32 %v8100, %v8108
  %v8171 = vadd.f32 %v8101, %v8108
  %v8172 = vadd.f32 %v8102, %v8108
  %v8173 = vadd.f32 %v8103, %v8108
  %8174 = vxpose.xlu0.b32.start [1/16] %v8110, 128
  %8175 = vxpose.xlu0.b32.cont [2/16] %v8111, 128
  %8176 = vxpose.xlu0.b32.cont [3/16] %v8112, 128
  %8177 = vxpose.xlu0.b32.cont [4/16] %v8113, 128
  %8178 = vxpose.xlu0.b32.cont [5/16] %v8114, 128
  %8179 = vxpose.xlu0.b32.cont [6/16] %v8115, 128
  %8180 = vxpose.xlu0.b32.cont [7/16] %v8116, 128
  %8181 = vxpose.xlu0.b32.cont [8/16] %v8117, 128
  %8182 = vxpose.xlu0.b32.cont [9/16] %v8118, 128
  %8183 = vxpose.xlu0.b32.cont [10/16] %v8119, 128
  %8184 = vxpose.xlu0.b32.cont [11/16] %v8120, 128
  %8185 = vxpose.xlu0.b32.cont [12/16] %v8121, 128
  %8186 = vxpose.xlu0.b32.cont [13/16] %v8122, 128
  %8187 = vxpose.xlu0.b32.cont [14/16] %v8123, 128
  %8188 = vxpose.xlu0.b32.cont [15/16] %v8124, 128
  %8189 = vxpose.xlu0.b32.end [16/16] %v8125, 128
  %v8190 = vpop.trf.xlu0
  %v8191 = vpop.trf.xlu0
  %v8192 = vpop.trf.xlu0
  %v8193 = vpop.trf.xlu0
  %v8194 = vpop.trf.xlu0
  %v8195 = vpop.trf.xlu0
  %v8196 = vpop.trf.xlu0
  %v8197 = vpop.trf.xlu0
  %v8198 = vpop.trf.xlu0
  %v8199 = vpop.trf.xlu0
  %v8200 = vpop.trf.xlu0
  %v8201 = vpop.trf.xlu0
  %v8202 = vpop.trf.xlu0
  %v8203 = vpop.trf.xlu0
  %v8204 = vpop.trf.xlu0
  %v8205 = vpop.trf.xlu0
  %8206 = vxpose.xlu0.b32.start [1/16] %v8126, 128
  %8207 = vxpose.xlu0.b32.cont [2/16] %v8127, 128
  %8208 = vxpose.xlu0.b32.cont [3/16] %v8128, 128
  %8209 = vxpose.xlu0.b32.cont [4/16] %v8129, 128
  %8210 = vxpose.xlu0.b32.cont [5/16] %v8130, 128
  %8211 = vxpose.xlu0.b32.cont [6/16] %v8131, 128
  %8212 = vxpose.xlu0.b32.cont [7/16] %v8132, 128
  %8213 = vxpose.xlu0.b32.cont [8/16] %v8133, 128
  %8214 = vxpose.xlu0.b32.cont [9/16] %v8134, 128
  %8215 = vxpose.xlu0.b32.cont [10/16] %v8135, 128
  %8216 = vxpose.xlu0.b32.cont [11/16] %v8136, 128
  %8217 = vxpose.xlu0.b32.cont [12/16] %v8137, 128
  %8218 = vxpose.xlu0.b32.cont [13/16] %v8138, 128
  %8219 = vxpose.xlu0.b32.cont [14/16] %v8139, 128
  %8220 = vxpose.xlu0.b32.cont [15/16] %v8140, 128
  %8221 = vxpose.xlu0.b32.end [16/16] %v8141, 128
  %v8222 = vpop.trf.xlu0
  %v8223 = vpop.trf.xlu0
  %v8224 = vpop.trf.xlu0
  %v8225 = vpop.trf.xlu0
  %v8226 = vpop.trf.xlu0
  %v8227 = vpop.trf.xlu0
  %v8228 = vpop.trf.xlu0
  %v8229 = vpop.trf.xlu0
  %v8230 = vpop.trf.xlu0
  %v8231 = vpop.trf.xlu0
  %v8232 = vpop.trf.xlu0
  %v8233 = vpop.trf.xlu0
  %v8234 = vpop.trf.xlu0
  %v8235 = vpop.trf.xlu0
  %v8236 = vpop.trf.xlu0
  %v8237 = vpop.trf.xlu0
  %8238 = vxpose.xlu0.b32.start [1/16] %v8142, 128
  %8239 = vxpose.xlu0.b32.cont [2/16] %v8143, 128
  %8240 = vxpose.xlu0.b32.cont [3/16] %v8144, 128
  %8241 = vxpose.xlu0.b32.cont [4/16] %v8145, 128
  %8242 = vxpose.xlu0.b32.cont [5/16] %v8146, 128
  %8243 = vxpose.xlu0.b32.cont [6/16] %v8147, 128
  %8244 = vxpose.xlu0.b32.cont [7/16] %v8148, 128
  %8245 = vxpose.xlu0.b32.cont [8/16] %v8149, 128
  %8246 = vxpose.xlu0.b32.cont [9/16] %v8150, 128
  %8247 = vxpose.xlu0.b32.cont [10/16] %v8151, 128
  %8248 = vxpose.xlu0.b32.cont [11/16] %v8152, 128
  %8249 = vxpose.xlu0.b32.cont [12/16] %v8153, 128
  %8250 = vxpose.xlu0.b32.cont [13/16] %v8154, 128
  %8251 = vxpose.xlu0.b32.cont [14/16] %v8155, 128
  %8252 = vxpose.xlu0.b32.cont [15/16] %v8156, 128
  %8253 = vxpose.xlu0.b32.end [16/16] %v8157, 128
  %v8254 = vpop.trf.xlu0
  %v8255 = vpop.trf.xlu0
  %v8256 = vpop.trf.xlu0
  %v8257 = vpop.trf.xlu0
  %v8258 = vpop.trf.xlu0
  %v8259 = vpop.trf.xlu0
  %v8260 = vpop.trf.xlu0
  %v8261 = vpop.trf.xlu0
  %v8262 = vpop.trf.xlu0
  %v8263 = vpop.trf.xlu0
  %v8264 = vpop.trf.xlu0
  %v8265 = vpop.trf.xlu0
  %v8266 = vpop.trf.xlu0
  %v8267 = vpop.trf.xlu0
  %v8268 = vpop.trf.xlu0
  %v8269 = vpop.trf.xlu0
  %8270 = vxpose.xlu0.b32.start [1/16] %v8158, 128
  %8271 = vxpose.xlu0.b32.cont [2/16] %v8159, 128
  %8272 = vxpose.xlu0.b32.cont [3/16] %v8160, 128
  %8273 = vxpose.xlu0.b32.cont [4/16] %v8161, 128
  %8274 = vxpose.xlu0.b32.cont [5/16] %v8162, 128
  %8275 = vxpose.xlu0.b32.cont [6/16] %v8163, 128
  %8276 = vxpose.xlu0.b32.cont [7/16] %v8164, 128
  %8277 = vxpose.xlu0.b32.cont [8/16] %v8165, 128
  %8278 = vxpose.xlu0.b32.cont [9/16] %v8166, 128
  %8279 = vxpose.xlu0.b32.cont [10/16] %v8167, 128
  %8280 = vxpose.xlu0.b32.cont [11/16] %v8168, 128
  %8281 = vxpose.xlu0.b32.cont [12/16] %v8169, 128
  %8282 = vxpose.xlu0.b32.cont [13/16] %v8170, 128
  %8283 = vxpose.xlu0.b32.cont [14/16] %v8171, 128
  %8284 = vxpose.xlu0.b32.cont [15/16] %v8172, 128
  %8285 = vxpose.xlu0.b32.end [16/16] %v8173, 128
  %v8286 = vpop.trf.xlu0
  %v8287 = vpop.trf.xlu0
  %v8288 = vpop.trf.xlu0
  %v8289 = vpop.trf.xlu0
  %v8290 = vpop.trf.xlu0
  %v8291 = vpop.trf.xlu0
  %v8292 = vpop.trf.xlu0
  %v8293 = vpop.trf.xlu0
  %v8294 = vpop.trf.xlu0
  %v8295 = vpop.trf.xlu0
  %v8296 = vpop.trf.xlu0
  %v8297 = vpop.trf.xlu0
  %v8298 = vpop.trf.xlu0
  %v8299 = vpop.trf.xlu0
  %v8300 = vpop.trf.xlu0
  %v8301 = vpop.trf.xlu0
  %8302 = vst [vmem:[%s13] sm:$0xff] %v8190
  %8303 = vst [vmem:[%s13 + $0x8] sm:$0xff] %v8222
  %8304 = vst [vmem:[%s13 + $0x10] sm:$0xff] %v8254
  %8305 = vst [vmem:[%s13 + $0x18] sm:$0xff] %v8286
  %8306 = vst [vmem:[%s13 + $0x20] sm:$0xff] %v8191
  %8307 = vst [vmem:[%s13 + $0x28] sm:$0xff] %v8223
  %8308 = vst [vmem:[%s13 + $0x30] sm:$0xff] %v8255
  %8309 = vst [vmem:[%s13 + $0x38] sm:$0xff] %v8287
  %8310 = vst [vmem:[%s13 + $0x40] sm:$0xff] %v8192
  %8311 = vst [vmem:[%s13 + $0x48] sm:$0xff] %v8224
  %8312 = vst [vmem:[%s13 + $0x50] sm:$0xff] %v8256
  %8313 = vst [vmem:[%s13 + $0x58] sm:$0xff] %v8288
  %8314 = vst [vmem:[%s13 + $0x60] sm:$0xff] %v8193
  %8315 = vst [vmem:[%s13 + $0x68] sm:$0xff] %v8225
  %8316 = vst [vmem:[%s13 + $0x70] sm:$0xff] %v8257
  %8317 = vst [vmem:[%s13 + $0x78] sm:$0xff] %v8289
  // Predicated region
  $region54: #{mynet_forward.1} parent=0 // pred_check
    _
  $region55: #{mynet_forward.1} parent=0 // pred_check_branch
    %8319 = sbr.rel (0) target = $region57
  $region56: #{mynet_forward.1} parent=0 // pred_region
    _
  $region57: #{mynet_forward.1} parent=0 // pred_fallthru
    _
  // Predicated region
  $region58: #{mynet_forward.1} parent=0 // pred_check
    _
  $region59: #{mynet_forward.1} parent=0 // pred_check_branch
    %8321 = sbr.rel (0) target = $region61
  $region60: #{mynet_forward.1} parent=0 // pred_region
    _
  $region61: #{mynet_forward.1} parent=0 // pred_fallthru
    _

</llo_original>
